<compile_context>
chip_gen: v5e
topology: v5e:2x2
jax: 0.10.0
libtpu: 0.0.40
codegen_flags: <defaults>
</compile_context>

<pallas_src>
import functools

import jax
import jax.numpy as jnp
import numpy as np
from jax import lax
from jax.experimental import pallas as pl
from jax.experimental.pallas import tpu as pltpu

N_CH_UNIT = 64   # feature channels inside the network
N_BLOCK = 6      # number of residual blocks


# -----------------------------------------------------------------------------
# Fused Pallas kernel: the whole C2N_D forward pass for one batch element.
# -----------------------------------------------------------------------------
def _c2n_d_kernel(alpha_ref,                    # SMEM (1 + n_block,) f32     PReLU slopes
                  xcol_ref,                     # (1, Mp, 9*Cin) bf16         im2col'd input
                  mask_ref,                     # (Mp, 1)  f32                interior mask
                  head_w_ref, head_b_ref,       # (9*Cin, 64) bf16, (1, 64) f32
                  blk_w_ref, blk_b_ref,         # (12, 576, 64) bf16, (12, 1, 64) f32
                  tail_w_ref, tail_b_ref,       # (576, Cin) bf16, (1, Cin) f32
                  out_ref,                      # (1, Mp, Cin) f32
                  *, W, n_block):
    Wp = W + 2
    Mp = mask_ref.shape[0]
    mask = mask_ref[...]                        # (Mp, 1) f32, broadcast across lanes

    # Per-tap roll amounts with the SAME-padding shift (+Wp+1) folded in:
    #   rolled_t[h] = act[h + d_t - (Wp+1)],  d_t = ky*Wp + kx.
    # Roll wrap-around only lands on rows the interior mask zeroes (holds for any Mp >= m).
    shifts = [(Wp + 1 - (ky * Wp + kx)) % Mp for ky in range(3) for kx in range(3)]

    def stack9(act):
        """(Mp, 64) f32 padded-flat activation -> (Mp, 576) bf16 K-stacked conv LHS."""
        parts = [act if s == 0 else pltpu.roll(act, s, axis=0) for s in shifts]
        return jnp.concatenate(parts, axis=-1).astype(jnp.bfloat16)

    def prelu(v, alpha):
        return jnp.where(v > 0, v, alpha * v)

    # ---- head: single K=9*Cin matmul (im2col + pad shift already folded in by wrapper) --
    h = jnp.dot(xcol_ref[0], head_w_ref[...], preferred_element_type=jnp.float32)
    cur = prelu(h + head_b_ref[...], alpha_ref[0]) * mask     # (Mp, 64) f32, padded-flat

    # ---- body: n_block x { y = y + conv(PReLU(conv(y))) } --------------------------------
    def block(i, cur):
        t = jnp.dot(stack9(cur), blk_w_ref[2 * i],
                    preferred_element_type=jnp.float32) + blk_b_ref[2 * i]
        t = prelu(t, alpha_ref[1 + i]) * mask
        r = jnp.dot(stack9(t), blk_w_ref[2 * i + 1],
                    preferred_element_type=jnp.float32) + blk_b_ref[2 * i + 1]
        return cur + r * mask                                  # f32 residual carry

    cur = lax.fori_loop(0, n_block, block, cur)

    # ---- tail: conv(64 -> Cin); result sits at padded-flat positions, wrapper crops ring --
    y = jnp.dot(stack9(cur), tail_w_ref[...],
                preferred_element_type=jnp.float32) + tail_b_ref[...]
    out_ref[0] = y.astype(out_ref.dtype)


# -----------------------------------------------------------------------------
# Wrapper: parameter packing + pallas_call (mirrors C2N_D.forward on NCHW input)
# -----------------------------------------------------------------------------
def c2n_d_forward(params, x_nchw):
    N, C, H, W = x_nchw.shape
    n_block = len(params['blocks'])
    U = N_CH_UNIT
    Hp, Wp = H + 2, W + 2
    m = Hp * Wp
    Mp = pl.cdiv(m, 16) * 16          # padded-flat rows, rounded for clean bf16 tiling

    # NCHW -> NHWC, one-time SAME zero padding, flatten to padded-flat rows.
    x = jnp.transpose(x_nchw, (0, 2, 3, 1))
    xp = jnp.pad(x, ((0, 0), (1, 1), (1, 1), (0, 0))).reshape(N, m, C)
    xp = jnp.pad(xp, ((0, 0), (0, Mp - m), (0, 0)))

    # im2col for the head conv, with the SAME-padding shift (+Wp+1) folded into every tap.
    cols = [jnp.roll(xp, (Wp + 1) - (ky * Wp + kx), axis=1)
            for ky in range(3) for kx in range(3)]
    xcol = jnp.concatenate(cols, axis=-1).astype(jnp.bfloat16)        # (N, Mp, 9*C)

    # Interior mask (1.0 on real pixels of the padded-flat layout), 1 lane wide.
    mask_np = np.zeros((Hp, Wp), np.float32)
    mask_np[1:H + 1, 1:W + 1] = 1.0
    mask_full = np.zeros((Mp, 1), np.float32)
    mask_full[:m, 0] = mask_np.reshape(-1)
    mask = jnp.asarray(mask_full)

    # Pack parameters: bf16 weights, taps K-stacked (tap-major, cin-minor).
    head_w = params['head_w'].reshape(9 * C, U).astype(jnp.bfloat16)
    head_b = params['head_b'].reshape(1, U).astype(jnp.float32)
    blk_w = jnp.stack([w for b in params['blocks'] for w in (b['w1'], b['w2'])])
    blk_w = blk_w.reshape(2 * n_block, 9 * U, U).astype(jnp.bfloat16)
    blk_b = jnp.stack([bb for b in params['blocks'] for bb in (b['b1'], b['b2'])])
    blk_b = blk_b.reshape(2 * n_block, 1, U).astype(jnp.float32)
    tail_w = params['tail_w'].reshape(9 * U, C).astype(jnp.bfloat16)
    tail_b = params['tail_b'].reshape(1, C).astype(jnp.float32)
    alphas = jnp.stack([params['head_alpha']] +
                       [b['alpha'] for b in params['blocks']]).astype(jnp.float32)

    kernel = functools.partial(_c2n_d_kernel, W=W, n_block=n_block)

    out_flat = pl.pallas_call(
        kernel,
        out_shape=jax.ShapeDtypeStruct((N, Mp, C), jnp.float32),
        grid_spec=pltpu.PrefetchScalarGridSpec(
            num_scalar_prefetch=1,                       # PReLU alphas -> SMEM
            grid=(N,),
            in_specs=[
                pl.BlockSpec((1, Mp, 9 * C), lambda n, s: (n, 0, 0)),           # xcol
                pl.BlockSpec((Mp, 1), lambda n, s: (0, 0)),                     # mask
                pl.BlockSpec((9 * C, U), lambda n, s: (0, 0)),                  # head w
                pl.BlockSpec((1, U), lambda n, s: (0, 0)),                      # head b
                pl.BlockSpec((2 * n_block, 9 * U, U), lambda n, s: (0, 0, 0)),  # blk w
                pl.BlockSpec((2 * n_block, 1, U), lambda n, s: (0, 0, 0)),      # blk b
                pl.BlockSpec((9 * U, C), lambda n, s: (0, 0)),                  # tail w
                pl.BlockSpec((1, C), lambda n, s: (0, 0)),                      # tail b
            ],
            out_specs=pl.BlockSpec((1, Mp, C), lambda n, s: (n, 0, 0)),
        ),
        compiler_params=pltpu.CompilerParams(dimension_semantics=("parallel",)),
    )(alphas, xcol, mask, head_w, head_b, blk_w, blk_b, tail_w, tail_b)

    # Un-flatten; the kernel output sits at padded positions -> crop the SAME-padding ring.
    out = out_flat[:, :m, :].reshape(N, Hp, Wp, C)[:, 1:H + 1, 1:W + 1, :]
    return jnp.transpose(out, (0, 3, 1, 2))


# -----------------------------------------------------------------------------
# Deterministic parameter init (PyTorch-conv-like uniform(-1/sqrt(fan_in), ...))
# -----------------------------------------------------------------------------
def _init_conv(key, cin, cout):
    kw, kb = jax.random.split(key)
    bound = 1.0 / np.sqrt(cin * 9)
    w = jax.random.uniform(kw, (3, 3, cin, cout), jnp.float32, -bound, bound)
    b = jax.random.uniform(kb, (cout,), jnp.float32, -bound, bound)
    return w, b


def init_c2n_d_params(key, n_ch_in, n_ch_unit=N_CH_UNIT, n_block=N_BLOCK):
    keys = jax.random.split(key, 2 + 2 * n_block)
    head_w, head_b = _init_conv(keys[0], n_ch_in, n_ch_unit)
    blocks = []
    for i in range(n_block):
        w1, b1 = _init_conv(keys[1 + 2 * i], n_ch_unit, n_ch_unit)
        w2, b2 = _init_conv(keys[2 + 2 * i], n_ch_unit, n_ch_unit)
        blocks.append(dict(w1=w1, b1=b1, alpha=jnp.array(0.25, jnp.float32),
                           w2=w2, b2=b2))
    tail_w, tail_b = _init_conv(keys[-1], n_ch_unit, n_ch_in)
    return dict(head_w=head_w, head_b=head_b,
                head_alpha=jnp.array(0.25, jnp.float32),
                blocks=blocks, tail_w=tail_w, tail_b=tail_b)


# -----------------------------------------------------------------------------
# Pure-JAX reference (f32, HIGHEST precision) for a sanity check
# -----------------------------------------------------------------------------
def _conv_ref(x, w, b):
    y = lax.conv_general_dilated(
        x, w, (1, 1), 'SAME',
        dimension_numbers=('NHWC', 'HWIO', 'NHWC'),
        precision=lax.Precision.HIGHEST)
    return y + b


def c2n_d_forward_ref(params, x_nchw):
    x = jnp.transpose(x_nchw, (0, 2, 3, 1))
    y = _conv_ref(x, params['head_w'], params['head_b'])
    y = jnp.where(y > 0, y, params['head_alpha'] * y)
    for blk in params['blocks']:
        t = _conv_ref(y, blk['w1'], blk['b1'])
        t = jnp.where(t > 0, t, blk['alpha'] * t)
        y = y + _conv_ref(t, blk['w2'], blk['b2'])
    y = _conv_ref(y, params['tail_w'], params['tail_b'])
    return jnp.transpose(y, (0, 3, 1, 2))


if __name__ == "__main__":
    key = jax.random.PRNGKey(0)
    k_param, k_x = jax.random.split(key)

    N, C, H, W = 2, 4, 16, 16          # small NCHW input, n_ch_in = 4
    params = init_c2n_d_params(k_param, n_ch_in=C)
    x = jax.random.normal(k_x, (N, C, H, W), jnp.float32)

    out = jax.block_until_ready(jax.jit(c2n_d_forward)(params, x))
    assert out.shape == (N, C, H, W) and out.dtype == jnp.float32

    ref = jax.block_until_ready(jax.jit(c2n_d_forward_ref)(params, x))
    err = float(jnp.max(jnp.abs(out - ref)) / (jnp.max(jnp.abs(ref)) + 1e-8))
    assert err < 5e-2, f"mismatch vs reference, rel err = {err}"

    print("KERNEL_OK")
</pallas_src>

<mosaic_0001>
module attributes {stable_mosaic.version = 11 : i64} {
  func.func @_c2n_d_kernel(%arg0: i32, %arg1: memref<7xf32, #tpu.memory_space<smem>>, %arg2: memref<1x336x36xbf16, #tpu.memory_space<vmem>>, %arg3: memref<336x1xf32, #tpu.memory_space<vmem>>, %arg4: memref<36x64xbf16, #tpu.memory_space<vmem>>, %arg5: memref<1x64xf32, #tpu.memory_space<vmem>>, %arg6: memref<12x576x64xbf16, #tpu.memory_space<vmem>>, %arg7: memref<12x1x64xf32, #tpu.memory_space<vmem>>, %arg8: memref<576x4xbf16, #tpu.memory_space<vmem>>, %arg9: memref<1x4xf32, #tpu.memory_space<vmem>>, %arg10: memref<1x336x4xf32, #tpu.memory_space<vmem>>) attributes {dimension_semantics = [#tpu.dimension_semantics<parallel>], iteration_bounds = array<i64: 2>, scalar_prefetch = 1 : i64, scratch_operands = 0 : i64, tpu.core_type = #tpu.core_type<tc>, window_params = [{transform_indices = @transform_0, window_bounds = array<i64: 1, 336, 36>}, {pipeline_mode = #tpu.pipeline_mode<synchronous>, transform_indices = @transform_1, window_bounds = array<i64: 336, 1>}, {pipeline_mode = #tpu.pipeline_mode<synchronous>, transform_indices = @transform_2, window_bounds = array<i64: 36, 64>}, {pipeline_mode = #tpu.pipeline_mode<synchronous>, transform_indices = @transform_3, window_bounds = array<i64: 1, 64>}, {pipeline_mode = #tpu.pipeline_mode<synchronous>, transform_indices = @transform_4, window_bounds = array<i64: 12, 576, 64>}, {pipeline_mode = #tpu.pipeline_mode<synchronous>, transform_indices = @transform_5, window_bounds = array<i64: 12, 1, 64>}, {pipeline_mode = #tpu.pipeline_mode<synchronous>, transform_indices = @transform_6, window_bounds = array<i64: 576, 4>}, {pipeline_mode = #tpu.pipeline_mode<synchronous>, transform_indices = @transform_7, window_bounds = array<i64: 1, 4>}, {transform_indices = @transform_8, window_bounds = array<i64: 1, 336, 4>}]} {
    %c0 = arith.constant 0 : index
    %c0_0 = arith.constant 0 : index
    %0 = vector.load %arg3[%c0, %c0_0] : memref<336x1xf32, #tpu.memory_space<vmem>>, vector<336x1xf32>
    %c0_1 = arith.constant 0 : index
    %c0_2 = arith.constant 0 : index
    %c0_3 = arith.constant 0 : index
    %1 = vector.load %arg2[%c0_1, %c0_2, %c0_3] : memref<1x336x36xbf16, #tpu.memory_space<vmem>>, vector<1x336x36xbf16>
    %2 = vector.shape_cast %1 : vector<1x336x36xbf16> to vector<336x36xbf16>
    %c0_4 = arith.constant 0 : index
    %c0_5 = arith.constant 0 : index
    %3 = vector.load %arg4[%c0_4, %c0_5] : memref<36x64xbf16, #tpu.memory_space<vmem>>, vector<36x64xbf16>
    %cst = arith.constant dense<0.000000e+00> : vector<336x64xf32>
    %4 = tpu.matmul %2, %3, %cst {dimension_numbers = #tpu.dot_dimension_numbers<[1], [0], [0], [1], [0, 0, 1, 1], [], []>} : vector<336x36xbf16>, vector<36x64xbf16>, vector<336x64xf32> -> vector<336x64xf32>
    %c0_6 = arith.constant 0 : index
    %c0_7 = arith.constant 0 : index
    %5 = vector.load %arg5[%c0_6, %c0_7] : memref<1x64xf32, #tpu.memory_space<vmem>>, vector<1x64xf32>
    %6 = vector.broadcast %5 : vector<1x64xf32> to vector<336x64xf32>
    %7 = arith.addf %4, %6 : vector<336x64xf32>
    %c0_8 = arith.constant 0 : index
    %8 = memref.load %arg1[%c0_8] : memref<7xf32, #tpu.memory_space<smem>>
    %cst_9 = arith.constant 0.000000e+00 : f32
    %9 = vector.broadcast %cst_9 : f32 to vector<336x64xf32>
    %10 = arith.cmpf ogt, %7, %9 : vector<336x64xf32>
    %11 = vector.broadcast %8 : f32 to vector<336x64xf32>
    %12 = arith.mulf %11, %7 : vector<336x64xf32>
    %13 = arith.select %10, %7, %12 : vector<336x64xi1>, vector<336x64xf32>
    %14 = vector.broadcast %0 : vector<336x1xf32> to vector<336x64xf32>
    %15 = arith.mulf %13, %14 : vector<336x64xf32>
    %c0_i32 = arith.constant 0 : i32
    %c6_i32 = arith.constant 6 : i32
    %16 = arith.addi %c0_i32, %c6_i32 : i32
    %c1_i32 = arith.constant 1 : i32
    %17 = scf.for %arg11 = %c0_i32 to %16 step %c1_i32 iter_args(%arg12 = %15) -> (vector<336x64xf32>)  : i32 {
      %c19_i32_20 = arith.constant 19 : i32
      %36 = tpu.dynamic_rotate %arg12 by %c19_i32_20 dim 0 : vector<336x64xf32>, i32 -> vector<336x64xf32>
      %c18_i32_21 = arith.constant 18 : i32
      %37 = tpu.dynamic_rotate %arg12 by %c18_i32_21 dim 0 : vector<336x64xf32>, i32 -> vector<336x64xf32>
      %c17_i32_22 = arith.constant 17 : i32
      %38 = tpu.dynamic_rotate %arg12 by %c17_i32_22 dim 0 : vector<336x64xf32>, i32 -> vector<336x64xf32>
      %c1_i32_23 = arith.constant 1 : i32
      %39 = tpu.dynamic_rotate %arg12 by %c1_i32_23 dim 0 : vector<336x64xf32>, i32 -> vector<336x64xf32>
      %c335_i32_24 = arith.constant 335 : i32
      %40 = tpu.dynamic_rotate %arg12 by %c335_i32_24 dim 0 : vector<336x64xf32>, i32 -> vector<336x64xf32>
      %c319_i32_25 = arith.constant 319 : i32
      %41 = tpu.dynamic_rotate %arg12 by %c319_i32_25 dim 0 : vector<336x64xf32>, i32 -> vector<336x64xf32>
      %c318_i32_26 = arith.constant 318 : i32
      %42 = tpu.dynamic_rotate %arg12 by %c318_i32_26 dim 0 : vector<336x64xf32>, i32 -> vector<336x64xf32>
      %c317_i32_27 = arith.constant 317 : i32
      %43 = tpu.dynamic_rotate %arg12 by %c317_i32_27 dim 0 : vector<336x64xf32>, i32 -> vector<336x64xf32>
      %44 = tpu.concatenate %36, %37, %38, %39, %arg12, %40, %41, %42, %43 in 1 : vector<336x64xf32>, vector<336x64xf32>, vector<336x64xf32>, vector<336x64xf32>, vector<336x64xf32>, vector<336x64xf32>, vector<336x64xf32>, vector<336x64xf32>, vector<336x64xf32> -> vector<336x576xf32>
      %45 = arith.truncf %44 : vector<336x576xf32> to vector<336x576xbf16>
      %c2_i32 = arith.constant 2 : i32
      %46 = arith.muli %c2_i32, %arg11 : i32
      %47 = arith.index_cast %46 : i32 to index
      %c0_28 = arith.constant 0 : index
      %c0_29 = arith.constant 0 : index
      %48 = vector.load %arg6[%47, %c0_28, %c0_29] : memref<12x576x64xbf16, #tpu.memory_space<vmem>>, vector<1x576x64xbf16>
      %49 = vector.shape_cast %48 : vector<1x576x64xbf16> to vector<576x64xbf16>
      %cst_30 = arith.constant dense<0.000000e+00> : vector<336x64xf32>
      %50 = tpu.matmul %45, %49, %cst_30 {dimension_numbers = #tpu.dot_dimension_numbers<[1], [0], [0], [1], [0, 0, 1, 1], [], []>} : vector<336x576xbf16>, vector<576x64xbf16>, vector<336x64xf32> -> vector<336x64xf32>
      %c2_i32_31 = arith.constant 2 : i32
      %51 = arith.muli %c2_i32_31, %arg11 : i32
      %52 = arith.index_cast %51 : i32 to index
      %c0_32 = arith.constant 0 : index
      %c0_33 = arith.constant 0 : index
      %53 = vector.load %arg7[%52, %c0_32, %c0_33] : memref<12x1x64xf32, #tpu.memory_space<vmem>>, vector<1x1x64xf32>
      %54 = vector.shape_cast %53 : vector<1x1x64xf32> to vector<1x64xf32>
      %55 = vector.broadcast %54 : vector<1x64xf32> to vector<336x64xf32>
      %56 = arith.addf %50, %55 : vector<336x64xf32>
      %c1_i32_34 = arith.constant 1 : i32
      %57 = arith.addi %c1_i32_34, %arg11 : i32
      %58 = arith.index_cast %57 : i32 to index
      %59 = memref.load %arg1[%58] : memref<7xf32, #tpu.memory_space<smem>>
      %cst_35 = arith.constant 0.000000e+00 : f32
      %60 = vector.broadcast %cst_35 : f32 to vector<336x64xf32>
      %61 = arith.cmpf ogt, %56, %60 : vector<336x64xf32>
      %62 = vector.broadcast %59 : f32 to vector<336x64xf32>
      %63 = arith.mulf %62, %56 : vector<336x64xf32>
      %64 = arith.select %61, %56, %63 : vector<336x64xi1>, vector<336x64xf32>
      %65 = vector.broadcast %0 : vector<336x1xf32> to vector<336x64xf32>
      %66 = arith.mulf %64, %65 : vector<336x64xf32>
      %c19_i32_36 = arith.constant 19 : i32
      %67 = tpu.dynamic_rotate %66 by %c19_i32_36 dim 0 : vector<336x64xf32>, i32 -> vector<336x64xf32>
      %c18_i32_37 = arith.constant 18 : i32
      %68 = tpu.dynamic_rotate %66 by %c18_i32_37 dim 0 : vector<336x64xf32>, i32 -> vector<336x64xf32>
      %c17_i32_38 = arith.constant 17 : i32
      %69 = tpu.dynamic_rotate %66 by %c17_i32_38 dim 0 : vector<336x64xf32>, i32 -> vector<336x64xf32>
      %c1_i32_39 = arith.constant 1 : i32
      %70 = tpu.dynamic_rotate %66 by %c1_i32_39 dim 0 : vector<336x64xf32>, i32 -> vector<336x64xf32>
      %c335_i32_40 = arith.constant 335 : i32
      %71 = tpu.dynamic_rotate %66 by %c335_i32_40 dim 0 : vector<336x64xf32>, i32 -> vector<336x64xf32>
      %c319_i32_41 = arith.constant 319 : i32
      %72 = tpu.dynamic_rotate %66 by %c319_i32_41 dim 0 : vector<336x64xf32>, i32 -> vector<336x64xf32>
      %c318_i32_42 = arith.constant 318 : i32
      %73 = tpu.dynamic_rotate %66 by %c318_i32_42 dim 0 : vector<336x64xf32>, i32 -> vector<336x64xf32>
      %c317_i32_43 = arith.constant 317 : i32
      %74 = tpu.dynamic_rotate %66 by %c317_i32_43 dim 0 : vector<336x64xf32>, i32 -> vector<336x64xf32>
      %75 = tpu.concatenate %67, %68, %69, %70, %66, %71, %72, %73, %74 in 1 : vector<336x64xf32>, vector<336x64xf32>, vector<336x64xf32>, vector<336x64xf32>, vector<336x64xf32>, vector<336x64xf32>, vector<336x64xf32>, vector<336x64xf32>, vector<336x64xf32> -> vector<336x576xf32>
      %76 = arith.truncf %75 : vector<336x576xf32> to vector<336x576xbf16>
      %c2_i32_44 = arith.constant 2 : i32
      %77 = arith.muli %c2_i32_44, %arg11 : i32
      %c1_i32_45 = arith.constant 1 : i32
      %78 = arith.addi %77, %c1_i32_45 : i32
      %79 = arith.index_cast %78 : i32 to index
      %c0_46 = arith.constant 0 : index
      %c0_47 = arith.constant 0 : index
      %80 = vector.load %arg6[%79, %c0_46, %c0_47] : memref<12x576x64xbf16, #tpu.memory_space<vmem>>, vector<1x576x64xbf16>
      %81 = vector.shape_cast %80 : vector<1x576x64xbf16> to vector<576x64xbf16>
      %cst_48 = arith.constant dense<0.000000e+00> : vector<336x64xf32>
      %82 = tpu.matmul %76, %81, %cst_48 {dimension_numbers = #tpu.dot_dimension_numbers<[1], [0], [0], [1], [0, 0, 1, 1], [], []>} : vector<336x576xbf16>, vector<576x64xbf16>, vector<336x64xf32> -> vector<336x64xf32>
      %c2_i32_49 = arith.constant 2 : i32
      %83 = arith.muli %c2_i32_49, %arg11 : i32
      %c1_i32_50 = arith.constant 1 : i32
      %84 = arith.addi %83, %c1_i32_50 : i32
      %85 = arith.index_cast %84 : i32 to index
      %c0_51 = arith.constant 0 : index
      %c0_52 = arith.constant 0 : index
      %86 = vector.load %arg7[%85, %c0_51, %c0_52] : memref<12x1x64xf32, #tpu.memory_space<vmem>>, vector<1x1x64xf32>
      %87 = vector.shape_cast %86 : vector<1x1x64xf32> to vector<1x64xf32>
      %88 = vector.broadcast %87 : vector<1x64xf32> to vector<336x64xf32>
      %89 = arith.addf %82, %88 : vector<336x64xf32>
      %90 = vector.broadcast %0 : vector<336x1xf32> to vector<336x64xf32>
      %91 = arith.mulf %89, %90 : vector<336x64xf32>
      %92 = arith.addf %arg12, %91 : vector<336x64xf32>
      scf.yield %92 : vector<336x64xf32>
    }
    %c6_i32_10 = arith.constant 6 : i32
    %c19_i32 = arith.constant 19 : i32
    %18 = tpu.dynamic_rotate %17 by %c19_i32 dim 0 : vector<336x64xf32>, i32 -> vector<336x64xf32>
    %c18_i32 = arith.constant 18 : i32
    %19 = tpu.dynamic_rotate %17 by %c18_i32 dim 0 : vector<336x64xf32>, i32 -> vector<336x64xf32>
    %c17_i32 = arith.constant 17 : i32
    %20 = tpu.dynamic_rotate %17 by %c17_i32 dim 0 : vector<336x64xf32>, i32 -> vector<336x64xf32>
    %c1_i32_11 = arith.constant 1 : i32
    %21 = tpu.dynamic_rotate %17 by %c1_i32_11 dim 0 : vector<336x64xf32>, i32 -> vector<336x64xf32>
    %c335_i32 = arith.constant 335 : i32
    %22 = tpu.dynamic_rotate %17 by %c335_i32 dim 0 : vector<336x64xf32>, i32 -> vector<336x64xf32>
    %c319_i32 = arith.constant 319 : i32
    %23 = tpu.dynamic_rotate %17 by %c319_i32 dim 0 : vector<336x64xf32>, i32 -> vector<336x64xf32>
    %c318_i32 = arith.constant 318 : i32
    %24 = tpu.dynamic_rotate %17 by %c318_i32 dim 0 : vector<336x64xf32>, i32 -> vector<336x64xf32>
    %c317_i32 = arith.constant 317 : i32
    %25 = tpu.dynamic_rotate %17 by %c317_i32 dim 0 : vector<336x64xf32>, i32 -> vector<336x64xf32>
    %26 = tpu.concatenate %18, %19, %20, %21, %17, %22, %23, %24, %25 in 1 : vector<336x64xf32>, vector<336x64xf32>, vector<336x64xf32>, vector<336x64xf32>, vector<336x64xf32>, vector<336x64xf32>, vector<336x64xf32>, vector<336x64xf32>, vector<336x64xf32> -> vector<336x576xf32>
    %27 = arith.truncf %26 : vector<336x576xf32> to vector<336x576xbf16>
    %c0_12 = arith.constant 0 : index
    %c0_13 = arith.constant 0 : index
    %28 = vector.load %arg8[%c0_12, %c0_13] : memref<576x4xbf16, #tpu.memory_space<vmem>>, vector<576x4xbf16>
    %cst_14 = arith.constant dense<0.000000e+00> : vector<336x4xf32>
    %29 = tpu.matmul %27, %28, %cst_14 {dimension_numbers = #tpu.dot_dimension_numbers<[1], [0], [0], [1], [0, 0, 1, 1], [], []>} : vector<336x576xbf16>, vector<576x4xbf16>, vector<336x4xf32> -> vector<336x4xf32>
    %c0_15 = arith.constant 0 : index
    %c0_16 = arith.constant 0 : index
    %30 = vector.load %arg9[%c0_15, %c0_16] : memref<1x4xf32, #tpu.memory_space<vmem>>, vector<1x4xf32>
    %31 = vector.broadcast %30 : vector<1x4xf32> to vector<336x4xf32>
    %32 = arith.addf %29, %31 : vector<336x4xf32>
    %c0_17 = arith.constant 0 : index
    %c0_18 = arith.constant 0 : index
    %c0_19 = arith.constant 0 : index
    %33 = vector.load %arg10[%c0_17, %c0_18, %c0_19] : memref<1x336x4xf32, #tpu.memory_space<vmem>>, vector<1x336x4xf32>
    %34 = vector.shape_cast %33 : vector<1x336x4xf32> to vector<336x4xf32>
    %35 = vector.shape_cast %32 : vector<336x4xf32> to vector<1x336x4xf32>
    tpu.vector_store %arg10[%c0_17, %c0_18, %c0_19], %35 {strides = array<i32>} : memref<1x336x4xf32, #tpu.memory_space<vmem>>, vector<1x336x4xf32>,
    return
  }
  func.func @transform_0(%arg0: i32, %arg1: memref<7xf32, #tpu.memory_space<smem>>) -> (i32, i32, i32) {
    %c0_i32 = arith.constant 0 : i32
    %c0_i32_0 = arith.constant 0 : i32
    %c0_i32_1 = arith.constant 0 : i32
    return %arg0, %c0_i32, %c0_i32_0 : i32, i32, i32
  }
  func.func @transform_1(%arg0: i32, %arg1: memref<7xf32, #tpu.memory_space<smem>>) -> (i32, i32) {
    %c0_i32 = arith.constant 0 : i32
    %c0_i32_0 = arith.constant 0 : i32
    %c0_i32_1 = arith.constant 0 : i32
    return %c0_i32, %c0_i32_0 : i32, i32
  }
  func.func @transform_2(%arg0: i32, %arg1: memref<7xf32, #tpu.memory_space<smem>>) -> (i32, i32) {
    %c0_i32 = arith.constant 0 : i32
    %c0_i32_0 = arith.constant 0 : i32
    %c0_i32_1 = arith.constant 0 : i32
    return %c0_i32, %c0_i32_0 : i32, i32
  }
  func.func @transform_3(%arg0: i32, %arg1: memref<7xf32, #tpu.memory_space<smem>>) -> (i32, i32) {
    %c0_i32 = arith.constant 0 : i32
    %c0_i32_0 = arith.constant 0 : i32
    %c0_i32_1 = arith.constant 0 : i32
    return %c0_i32, %c0_i32_0 : i32, i32
  }
  func.func @transform_4(%arg0: i32, %arg1: memref<7xf32, #tpu.memory_space<smem>>) -> (i32, i32, i32) {
    %c0_i32 = arith.constant 0 : i32
    %c0_i32_0 = arith.constant 0 : i32
    %c0_i32_1 = arith.constant 0 : i32
    %c0_i32_2 = arith.constant 0 : i32
    return %c0_i32, %c0_i32_0, %c0_i32_1 : i32, i32, i32
  }
  func.func @transform_5(%arg0: i32, %arg1: memref<7xf32, #tpu.memory_space<smem>>) -> (i32, i32, i32) {
    %c0_i32 = arith.constant 0 : i32
    %c0_i32_0 = arith.constant 0 : i32
    %c0_i32_1 = arith.constant 0 : i32
    %c0_i32_2 = arith.constant 0 : i32
    return %c0_i32, %c0_i32_0, %c0_i32_1 : i32, i32, i32
  }
  func.func @transform_6(%arg0: i32, %arg1: memref<7xf32, #tpu.memory_space<smem>>) -> (i32, i32) {
    %c0_i32 = arith.constant 0 : i32
    %c0_i32_0 = arith.constant 0 : i32
    %c0_i32_1 = arith.constant 0 : i32
    return %c0_i32, %c0_i32_0 : i32, i32
  }
  func.func @transform_7(%arg0: i32, %arg1: memref<7xf32, #tpu.memory_space<smem>>) -> (i32, i32) {
    %c0_i32 = arith.constant 0 : i32
    %c0_i32_0 = arith.constant 0 : i32
    %c0_i32_1 = arith.constant 0 : i32
    return %c0_i32, %c0_i32_0 : i32, i32
  }
  func.func @transform_8(%arg0: i32, %arg1: memref<7xf32, #tpu.memory_space<smem>>) -> (i32, i32, i32) {
    %c0_i32 = arith.constant 0 : i32
    %c0_i32_0 = arith.constant 0 : i32
    %c0_i32_1 = arith.constant 0 : i32
    return %arg0, %c0_i32, %c0_i32_0 : i32, i32, i32
  }
}

</mosaic_0001>

<llo_original>
// kernel: c2n_d_forward.1
$region0: #{c2n_d_forward.1}
  #allocation0 [shape = 'u32[]', space=smem, size = 0x4, offset = 0x4, fixed_abs, tag = 'smem constant byte address 0x4 - core index']
  #allocation1 [shape = 'u32[72,128]{1,0:T(1,128)}', space=vmem, size = 0x9000, scoped, tag = 'internal scratch']
  #allocation2 [shape = 's32[1]{0}', space=sflag, size = 0x4, scoped, tag = 'scoped memory for c2n_d_forward.1']
  #allocation3 [shape = 'u8[512]{0}', space=smem, size = 0x200, scoped, tag = 'prefetched SMEM operand 0']
  %s0 = inlined_call_operand.vmem [shape: f32[7], index: 0, kind: input, shape index: {}]
  %s1 = inlined_call_operand.vmem [shape: bf16[2,336,36], index: 1, kind: input, shape index: {}]
  %s2 = inlined_call_operand.vmem [shape: f32[336,1], index: 2, kind: input, shape index: {}]
  %s3 = inlined_call_operand.vmem [shape: bf16[36,64], index: 3, kind: input, shape index: {}]
  %s4 = inlined_call_operand.vmem [shape: f32[1,64], index: 4, kind: input, shape index: {}]
  %s5 = inlined_call_operand.vmem [shape: bf16[12,576,64], index: 5, kind: input, shape index: {}]
  %s6 = inlined_call_operand.vmem [shape: f32[12,1,64], index: 6, kind: input, shape index: {}]
  %s7 = inlined_call_operand.vmem [shape: bf16[576,4], index: 7, kind: input, shape index: {}]
  %s8 = inlined_call_operand.vmem [shape: f32[1,4], index: 8, kind: input, shape index: {}]
  %s9 = inlined_call_operand.vmem [shape: f32[2,336,4], index: 9, kind: output, shape index: {}]
  %s10 = sld [smem:[#allocation0]]
  $region72: #{c2n_d_forward.1} parent=0
    _
  %s12 = ssub.s32 1, %s10
  %s13 = scalar_select 0, %s12, %s10
  %s15 = sshll.u32 %s0, 4
  %s16 = int_to_ptr.vmem [resolvable:$true] %s15
  %18 = dma.vmem_to_smem %s16, 16, [#allocation3], [#allocation2]
  %20 = dma.done [#allocation2], 16
  %21 = sfence
  loop: start=0, step=1, limit=4
  $region2: #{c2n_d_forward.1} parent=0 // loop_pre_header
    _
  $region3: #{c2n_d_forward.1} parent=0 // loop_header
    %s23 = sphi 0, %s27
    %p24 = scmp.ge.s32.totalorder %s23, 4
    %s33 = sphi 0, %s35
    %s36 = sphi 0, %s33
    %s37 = sphi 0, %s36
    %s53 = sphi 0, %s37
    %s57 = sphi 0, %s57
    %s59 = sphi 0, %s57
    %s60 = sphi 0, %s59
    %s74 = sphi 0, %s60
    %s78 = sphi 0, %s78
    %s80 = sphi 0, %s78
    %s81 = sphi 0, %s80
    %s95 = sphi 0, %s81
    %s99 = sphi 0, %s99
    %s101 = sphi 0, %s99
    %s102 = sphi 0, %s101
    %s116 = sphi 0, %s102
    %s120 = sphi 0, %s120
    %s122 = sphi 0, %s120
    %s123 = sphi 0, %s122
    %s137 = sphi 0, %s123
    %s141 = sphi 0, %s141
    %s143 = sphi 0, %s141
    %s144 = sphi 0, %s143
    %s158 = sphi 0, %s144
    %s162 = sphi 0, %s162
    %s164 = sphi 0, %s162
    %s165 = sphi 0, %s164
    %s179 = sphi 0, %s165
    %s183 = sphi 0, %s183
    %s185 = sphi 0, %s183
    %s186 = sphi 0, %s185
    %s200 = sphi 0, %s186
    %s206 = sphi 0, %s208
    %s209 = sphi 0, %s206
    %s210 = sphi 0, %s209
    %s226 = sphi 0, %s210
  $region4: #{c2n_d_forward.1} parent=0 // loop_header_branch
    %26 = sbr.rel (%p24) target = $region8
  $region5: #{c2n_d_forward.1} parent=0 // loop_body
    %s28 = ssub.s32 %s23, 1
    %s29 = ssub.s32 %s23, 2
    %s30 = sadd.s32 %s23, 1
    %s31 = ssub.s32 %s23, %s30
    %p32 = scmp.eq.s32.totalorder %s31, 0
    %s34 = sadd.s32 %s33, 1
    %s35 = scalar_select %p32, %s33, %s34
    %p38 = pneg %p32
    %p39 = scmp.eq.s32.totalorder %s23, 1
    %p40 = por %p38, %p39
    %p41 = scmp.ne.s32.totalorder %s33, %s36
    %p42 = scmp.eq.s32.totalorder %s23, 0
    %p43 = por %p41, %p42
    %p44 = scmp.ne.s32.totalorder %s33, %s36
    %p45 = scmp.eq.s32.totalorder %s28, 1
    %p46 = por %p44, %p45
    %p47 = scmp.ne.s32.totalorder %s36, %s37
    %p48 = scmp.eq.s32.totalorder %s28, 0
    %p49 = por %p47, %p48
    %p50 = scmp.ne.s32.totalorder %s36, %s37
    %p51 = scmp.eq.s32.totalorder %s29, 1
    %p52 = por %p50, %p51
    %p54 = scmp.ne.s32.totalorder %s37, %s53
    %p55 = scmp.eq.s32.totalorder %s29, 0
    %p56 = por %p54, %p55
    %s58 = sadd.s32 %s57, 1
    %p61 = scmp.eq.s32.totalorder %s23, 1
    %p62 = scmp.ne.s32.totalorder %s57, %s59
    %p63 = scmp.eq.s32.totalorder %s23, 0
    %p64 = por %p62, %p63
    %p65 = scmp.ne.s32.totalorder %s57, %s59
    %p66 = scmp.eq.s32.totalorder %s28, 1
    %p67 = por %p65, %p66
    %p68 = scmp.ne.s32.totalorder %s59, %s60
    %p69 = scmp.eq.s32.totalorder %s28, 0
    %p70 = por %p68, %p69
    %p71 = scmp.ne.s32.totalorder %s59, %s60
    %p72 = scmp.eq.s32.totalorder %s29, 1
    %p73 = por %p71, %p72
    %p75 = scmp.ne.s32.totalorder %s60, %s74
    %p76 = scmp.eq.s32.totalorder %s29, 0
    %p77 = por %p75, %p76
    %s79 = sadd.s32 %s78, 1
    %p82 = scmp.eq.s32.totalorder %s23, 1
    %p83 = scmp.ne.s32.totalorder %s78, %s80
    %p84 = scmp.eq.s32.totalorder %s23, 0
    %p85 = por %p83, %p84
    %p86 = scmp.ne.s32.totalorder %s78, %s80
    %p87 = scmp.eq.s32.totalorder %s28, 1
    %p88 = por %p86, %p87
    %p89 = scmp.ne.s32.totalorder %s80, %s81
    %p90 = scmp.eq.s32.totalorder %s28, 0
    %p91 = por %p89, %p90
    %p92 = scmp.ne.s32.totalorder %s80, %s81
    %p93 = scmp.eq.s32.totalorder %s29, 1
    %p94 = por %p92, %p93
    %p96 = scmp.ne.s32.totalorder %s81, %s95
    %p97 = scmp.eq.s32.totalorder %s29, 0
    %p98 = por %p96, %p97
    %s100 = sadd.s32 %s99, 1
    %p103 = scmp.eq.s32.totalorder %s23, 1
    %p104 = scmp.ne.s32.totalorder %s99, %s101
    %p105 = scmp.eq.s32.totalorder %s23, 0
    %p106 = por %p104, %p105
    %p107 = scmp.ne.s32.totalorder %s99, %s101
    %p108 = scmp.eq.s32.totalorder %s28, 1
    %p109 = por %p107, %p108
    %p110 = scmp.ne.s32.totalorder %s101, %s102
    %p111 = scmp.eq.s32.totalorder %s28, 0
    %p112 = por %p110, %p111
    %p113 = scmp.ne.s32.totalorder %s101, %s102
    %p114 = scmp.eq.s32.totalorder %s29, 1
    %p115 = por %p113, %p114
    %p117 = scmp.ne.s32.totalorder %s102, %s116
    %p118 = scmp.eq.s32.totalorder %s29, 0
    %p119 = por %p117, %p118
    %s121 = sadd.s32 %s120, 1
    %p124 = scmp.eq.s32.totalorder %s23, 1
    %p125 = scmp.ne.s32.totalorder %s120, %s122
    %p126 = scmp.eq.s32.totalorder %s23, 0
    %p127 = por %p125, %p126
    %p128 = scmp.ne.s32.totalorder %s120, %s122
    %p129 = scmp.eq.s32.totalorder %s28, 1
    %p130 = por %p128, %p129
    %p131 = scmp.ne.s32.totalorder %s122, %s123
    %p132 = scmp.eq.s32.totalorder %s28, 0
    %p133 = por %p131, %p132
    %p134 = scmp.ne.s32.totalorder %s122, %s123
    %p135 = scmp.eq.s32.totalorder %s29, 1
    %p136 = por %p134, %p135
    %p138 = scmp.ne.s32.totalorder %s123, %s137
    %p139 = scmp.eq.s32.totalorder %s29, 0
    %p140 = por %p138, %p139
    %s142 = sadd.s32 %s141, 1
    %p145 = scmp.eq.s32.totalorder %s23, 1
    %p146 = scmp.ne.s32.totalorder %s141, %s143
    %p147 = scmp.eq.s32.totalorder %s23, 0
    %p148 = por %p146, %p147
    %p149 = scmp.ne.s32.totalorder %s141, %s143
    %p150 = scmp.eq.s32.totalorder %s28, 1
    %p151 = por %p149, %p150
    %p152 = scmp.ne.s32.totalorder %s143, %s144
    %p153 = scmp.eq.s32.totalorder %s28, 0
    %p154 = por %p152, %p153
    %p155 = scmp.ne.s32.totalorder %s143, %s144
    %p156 = scmp.eq.s32.totalorder %s29, 1
    %p157 = por %p155, %p156
    %p159 = scmp.ne.s32.totalorder %s144, %s158
    %p160 = scmp.eq.s32.totalorder %s29, 0
    %p161 = por %p159, %p160
    %s163 = sadd.s32 %s162, 1
    %p166 = scmp.eq.s32.totalorder %s23, 1
    %p167 = scmp.ne.s32.totalorder %s162, %s164
    %p168 = scmp.eq.s32.totalorder %s23, 0
    %p169 = por %p167, %p168
    %p170 = scmp.ne.s32.totalorder %s162, %s164
    %p171 = scmp.eq.s32.totalorder %s28, 1
    %p172 = por %p170, %p171
    %p173 = scmp.ne.s32.totalorder %s164, %s165
    %p174 = scmp.eq.s32.totalorder %s28, 0
    %p175 = por %p173, %p174
    %p176 = scmp.ne.s32.totalorder %s164, %s165
    %p177 = scmp.eq.s32.totalorder %s29, 1
    %p178 = por %p176, %p177
    %p180 = scmp.ne.s32.totalorder %s165, %s179
    %p181 = scmp.eq.s32.totalorder %s29, 0
    %p182 = por %p180, %p181
    %s184 = sadd.s32 %s183, 1
    %p187 = scmp.eq.s32.totalorder %s23, 1
    %p188 = scmp.ne.s32.totalorder %s183, %s185
    %p189 = scmp.eq.s32.totalorder %s23, 0
    %p190 = por %p188, %p189
    %p191 = scmp.ne.s32.totalorder %s183, %s185
    %p192 = scmp.eq.s32.totalorder %s28, 1
    %p193 = por %p191, %p192
    %p194 = scmp.ne.s32.totalorder %s185, %s186
    %p195 = scmp.eq.s32.totalorder %s28, 0
    %p196 = por %p194, %p195
    %p197 = scmp.ne.s32.totalorder %s185, %s186
    %p198 = scmp.eq.s32.totalorder %s29, 1
    %p199 = por %p197, %p198
    %p201 = scmp.ne.s32.totalorder %s186, %s200
    %p202 = scmp.eq.s32.totalorder %s29, 0
    %p203 = por %p201, %p202
    %s204 = ssub.s32 %s23, %s30
    %p205 = scmp.eq.s32.totalorder %s204, 0
    %s207 = sadd.s32 %s206, 1
    %s208 = scalar_select %p205, %s206, %s207
    %p211 = pneg %p205
    %p212 = scmp.eq.s32.totalorder %s23, 1
    %p213 = por %p211, %p212
    %p214 = scmp.ne.s32.totalorder %s206, %s209
    %p215 = scmp.eq.s32.totalorder %s23, 0
    %p216 = por %p214, %p215
    %p217 = scmp.ne.s32.totalorder %s206, %s209
    %p218 = scmp.eq.s32.totalorder %s28, 1
    %p219 = por %p217, %p218
    %p220 = scmp.ne.s32.totalorder %s209, %s210
    %p221 = scmp.eq.s32.totalorder %s28, 0
    %p222 = por %p220, %p221
    %p223 = scmp.ne.s32.totalorder %s209, %s210
    %p224 = scmp.eq.s32.totalorder %s29, 1
    %p225 = por %p223, %p224
    %p227 = scmp.ne.s32.totalorder %s210, %s226
    %p228 = scmp.eq.s32.totalorder %s29, 0
    %p229 = por %p227, %p228
    %p230 = scmp.le.s32.totalorder 1, %s23
    %p231 = scmp.lt.s32.totalorder %s23, 3
    %p232 = pnand %p230, %p231
    %p233 = pneg %p232
    // Predicated region
    $region9: #{c2n_d_forward.1} parent=5 // pred_check
      _
    $region10: #{c2n_d_forward.1} parent=5 // pred_check_branch
      %235 = sbr.rel (%p232) target = $region12
    $region11: #{c2n_d_forward.1} parent=5 // pred_region
      %s236 = ssub.s32 %s23, 1
      // Predicated region
      $region13: #{c2n_d_forward.1} parent=11 // pred_check
        %p237 = pneg %p70
      $region14: #{c2n_d_forward.1} parent=11 // pred_check_branch
        %239 = sbr.rel (%p237) target = $region16
      $region15: #{c2n_d_forward.1} parent=11 // pred_region
        _
      $region16: #{c2n_d_forward.1} parent=11 // pred_fallthru
        _
      // Predicated region
      $region17: #{c2n_d_forward.1} parent=11 // pred_check
        %p240 = pneg %p91
      $region18: #{c2n_d_forward.1} parent=11 // pred_check_branch
        %242 = sbr.rel (%p240) target = $region20
      $region19: #{c2n_d_forward.1} parent=11 // pred_region
        _
      $region20: #{c2n_d_forward.1} parent=11 // pred_fallthru
        _
      // Predicated region
      $region21: #{c2n_d_forward.1} parent=11 // pred_check
        %p243 = pneg %p112
      $region22: #{c2n_d_forward.1} parent=11 // pred_check_branch
        %245 = sbr.rel (%p243) target = $region24
      $region23: #{c2n_d_forward.1} parent=11 // pred_region
        _
      $region24: #{c2n_d_forward.1} parent=11 // pred_fallthru
        _
      // Predicated region
      $region25: #{c2n_d_forward.1} parent=11 // pred_check
        %p246 = pneg %p133
      $region26: #{c2n_d_forward.1} parent=11 // pred_check_branch
        %248 = sbr.rel (%p246) target = $region28
      $region27: #{c2n_d_forward.1} parent=11 // pred_region
        _
      $region28: #{c2n_d_forward.1} parent=11 // pred_fallthru
        _
      // Predicated region
      $region29: #{c2n_d_forward.1} parent=11 // pred_check
        %p249 = pneg %p154
      $region30: #{c2n_d_forward.1} parent=11 // pred_check_branch
        %251 = sbr.rel (%p249) target = $region32
      $region31: #{c2n_d_forward.1} parent=11 // pred_region
        _
      $region32: #{c2n_d_forward.1} parent=11 // pred_fallthru
        _
      // Predicated region
      $region33: #{c2n_d_forward.1} parent=11 // pred_check
        %p252 = pneg %p175
      $region34: #{c2n_d_forward.1} parent=11 // pred_check_branch
        %254 = sbr.rel (%p252) target = $region36
      $region35: #{c2n_d_forward.1} parent=11 // pred_region
        _
      $region36: #{c2n_d_forward.1} parent=11 // pred_fallthru
        _
      // Predicated region
      $region37: #{c2n_d_forward.1} parent=11 // pred_check
        %p255 = pneg %p196
      $region38: #{c2n_d_forward.1} parent=11 // pred_check_branch
        %257 = sbr.rel (%p255) target = $region40
      $region39: #{c2n_d_forward.1} parent=11 // pred_region
        _
      $region40: #{c2n_d_forward.1} parent=11 // pred_fallthru
        _
    $region12: #{c2n_d_forward.1} parent=5 // pred_fallthru
      _
    %p258 = scmp.lt.s32.totalorder %s23, 2
    // Predicated region
    $region41: #{c2n_d_forward.1} parent=5 // pred_check
      %p259 = pneg %p258
    $region42: #{c2n_d_forward.1} parent=5 // pred_check_branch
      %261 = sbr.rel (%p259) target = $region44
    $region43: #{c2n_d_forward.1} parent=5 // pred_region
      // Predicated region
      $region45: #{c2n_d_forward.1} parent=43 // pred_check
        %p262 = pneg %p43
      $region46: #{c2n_d_forward.1} parent=43 // pred_check_branch
        %264 = sbr.rel (%p262) target = $region48
      $region47: #{c2n_d_forward.1} parent=43 // pred_region
        %p265 = scmp.lt.s32.totalorder %s23, 1
        %s266 = scalar_select %p265, %s23, 1
        %s267 = smul.addr %s266, 42
        %s268 = smul.addr %s267, 4
        %s269 = scalar_lea.vmem %s1, %s268
      $region48: #{c2n_d_forward.1} parent=43 // pred_fallthru
        _
    $region44: #{c2n_d_forward.1} parent=5 // pred_fallthru
      _
    %p270 = scmp.le.s32.totalorder 1, %s23
    %p271 = scmp.lt.s32.totalorder %s23, 3
    %p272 = pnand %p270, %p271
    %p273 = pneg %p272
    // Predicated region
    $region49: #{c2n_d_forward.1} parent=5 // pred_check
      _
    $region50: #{c2n_d_forward.1} parent=5 // pred_check_branch
      %275 = sbr.rel (%p272) target = $region52
    $region51: #{c2n_d_forward.1} parent=5 // pred_region
      %s276 = ssub.s32 %s23, 1
      %p277 = scmp.lt.s32.totalorder %s28, 1
      %s278 = scalar_select %p277, %s28, 1
      %s279 = smul.addr %s278, 42
      %s280 = smul.addr %s279, 4
      %s281 = scalar_lea.vmem %s1, %s280
      %p282 = pneg %p49
      %p283 = pneg %p46
      %p284 = pneg %p70
      %p285 = pneg %p67
      %p286 = pneg %p91
      %p287 = pneg %p88
      %p288 = pneg %p112
      %p289 = pneg %p109
      %p290 = pneg %p133
      %p291 = pneg %p130
      %p292 = pneg %p154
      %p293 = pneg %p151
      %p294 = pneg %p175
      %p295 = pneg %p172
      %p296 = pneg %p196
      %p297 = pneg %p193
      %p298 = pneg %p222
      %p299 = pneg %p219
      %p300 = scmp.lt.s32.totalorder %s28, 1
      %s301 = scalar_select %p300, %s28, 1
      %s302 = smul.addr %s301, 42
      %s303 = smul.addr %s302, 8
      %s304 = scalar_lea.vmem %s9, %s303
      %p305 = scmp.lt.s32.totalorder %s28, 1
      %s306 = scalar_select %p305, %s28, 1
      %s307 = smul.addr %s306, 42
      %s308 = smul.addr %s307, 4
      %s309 = scalar_lea.vmem %s1, %s308
      %p310 = scmp.lt.s32.totalorder %s28, 1
      %s311 = scalar_select %p310, %s28, 1
      %s312 = smul.addr %s311, 42
      %s313 = smul.addr %s312, 8
      %s314 = scalar_lea.vmem %s9, %s313
      %v316 = vld [vmem:[%s2] sm:$0xff]
      %v317 = vld [vmem:[%s2 + $0x8] sm:$0xff]
      %v318 = vld [vmem:[%s2 + $0x10] sm:$0xff]
      %v319 = vld [vmem:[%s2 + $0x18] sm:$0xff]
      %v320 = vld [vmem:[%s2 + $0x20] sm:$0xff]
      %v321 = vld [vmem:[%s2 + $0x28] sm:$0xff]
      %v322 = vld [vmem:[%s2 + $0x30] sm:$0xff]
      %v323 = vld [vmem:[%s2 + $0x38] sm:$0xff]
      %v324 = vld [vmem:[%s2 + $0x40] sm:$0xff]
      %v325 = vld [vmem:[%s2 + $0x48] sm:$0xff]
      %v326 = vld [vmem:[%s2 + $0x50] sm:$0xff]
      %v327 = vld [vmem:[%s2 + $0x58] sm:$0xff]
      %v328 = vld [vmem:[%s2 + $0x60] sm:$0xff]
      %v329 = vld [vmem:[%s2 + $0x68] sm:$0xff]
      %v330 = vld [vmem:[%s2 + $0x70] sm:$0xff]
      %v331 = vld [vmem:[%s2 + $0x78] sm:$0xff]
      %v332 = vld [vmem:[%s2 + $0x80] sm:$0xff]
      %v333 = vld [vmem:[%s2 + $0x88] sm:$0xff]
      %v334 = vld [vmem:[%s2 + $0x90] sm:$0xff]
      %v335 = vld [vmem:[%s2 + $0x98] sm:$0xff]
      %v336 = vld [vmem:[%s2 + $0xa0] sm:$0xff]
      %v337 = vld [vmem:[%s2 + $0xa8] sm:$0xff]
      %v338 = vld [vmem:[%s2 + $0xb0] sm:$0xff]
      %v339 = vld [vmem:[%s2 + $0xb8] sm:$0xff]
      %v340 = vld [vmem:[%s2 + $0xc0] sm:$0xff]
      %v341 = vld [vmem:[%s2 + $0xc8] sm:$0xff]
      %v342 = vld [vmem:[%s2 + $0xd0] sm:$0xff]
      %v343 = vld [vmem:[%s2 + $0xd8] sm:$0xff]
      %v344 = vld [vmem:[%s2 + $0xe0] sm:$0xff]
      %v345 = vld [vmem:[%s2 + $0xe8] sm:$0xff]
      %v346 = vld [vmem:[%s2 + $0xf0] sm:$0xff]
      %v347 = vld [vmem:[%s2 + $0xf8] sm:$0xff]
      %v348 = vld [vmem:[%s2 + $0x100] sm:$0xff]
      %v349 = vld [vmem:[%s2 + $0x108] sm:$0xff]
      %v350 = vld [vmem:[%s2 + $0x110] sm:$0xff]
      %v351 = vld [vmem:[%s2 + $0x118] sm:$0xff]
      %v352 = vld [vmem:[%s2 + $0x120] sm:$0xff]
      %v353 = vld [vmem:[%s2 + $0x128] sm:$0xff]
      %v354 = vld [vmem:[%s2 + $0x130] sm:$0xff]
      %v355 = vld [vmem:[%s2 + $0x138] sm:$0xff]
      %v356 = vld [vmem:[%s2 + $0x140] sm:$0xff]
      %v357 = vld [vmem:[%s2 + $0x148] sm:$0xff]
      %v358 = vld [vmem:[%s309] sm:$0xf]
      %v359 = vld [vmem:[%s309 + $0x4] sm:$0xf]
      %v360 = vld [vmem:[%s309 + $0x8] sm:$0xf]
      %v361 = vld [vmem:[%s309 + $0xc] sm:$0xf]
      %v362 = vld [vmem:[%s309 + $0x10] sm:$0xf]
      %v363 = vld [vmem:[%s309 + $0x14] sm:$0xf]
      %v364 = vld [vmem:[%s309 + $0x18] sm:$0xf]
      %v365 = vld [vmem:[%s309 + $0x1c] sm:$0xf]
      %v366 = vld [vmem:[%s309 + $0x20] sm:$0xf]
      %v367 = vld [vmem:[%s309 + $0x24] sm:$0xf]
      %v368 = vld [vmem:[%s309 + $0x28] sm:$0xf]
      %v369 = vld [vmem:[%s309 + $0x2c] sm:$0xf]
      %v370 = vld [vmem:[%s309 + $0x30] sm:$0xf]
      %v371 = vld [vmem:[%s309 + $0x34] sm:$0xf]
      %v372 = vld [vmem:[%s309 + $0x38] sm:$0xf]
      %v373 = vld [vmem:[%s309 + $0x3c] sm:$0xf]
      %v374 = vld [vmem:[%s309 + $0x40] sm:$0xf]
      %v375 = vld [vmem:[%s309 + $0x44] sm:$0xf]
      %v376 = vld [vmem:[%s309 + $0x48] sm:$0xf]
      %v377 = vld [vmem:[%s309 + $0x4c] sm:$0xf]
      %v378 = vld [vmem:[%s309 + $0x50] sm:$0xf]
      %v379 = vld [vmem:[%s309 + $0x54] sm:$0xf]
      %v380 = vld [vmem:[%s309 + $0x58] sm:$0xf]
      %v381 = vld [vmem:[%s309 + $0x5c] sm:$0xf]
      %v382 = vld [vmem:[%s309 + $0x60] sm:$0xf]
      %v383 = vld [vmem:[%s309 + $0x64] sm:$0xf]
      %v384 = vld [vmem:[%s309 + $0x68] sm:$0xf]
      %v385 = vld [vmem:[%s309 + $0x6c] sm:$0xf]
      %v386 = vld [vmem:[%s309 + $0x70] sm:$0xf]
      %v387 = vld [vmem:[%s309 + $0x74] sm:$0xf]
      %v388 = vld [vmem:[%s309 + $0x78] sm:$0xf]
      %v389 = vld [vmem:[%s309 + $0x7c] sm:$0xf]
      %v390 = vld [vmem:[%s309 + $0x80] sm:$0xf]
      %v391 = vld [vmem:[%s309 + $0x84] sm:$0xf]
      %v392 = vld [vmem:[%s309 + $0x88] sm:$0xf]
      %v393 = vld [vmem:[%s309 + $0x8c] sm:$0xf]
      %v394 = vld [vmem:[%s309 + $0x90] sm:$0xf]
      %v395 = vld [vmem:[%s309 + $0x94] sm:$0xf]
      %v396 = vld [vmem:[%s309 + $0x98] sm:$0xf]
      %v397 = vld [vmem:[%s309 + $0x9c] sm:$0xf]
      %v398 = vld [vmem:[%s309 + $0xa0] sm:$0xf]
      %v399 = vld [vmem:[%s309 + $0xa4] sm:$0xf]
      %v400 = vld [vmem:[%s3] sm:$0xf]
      %v401 = vld [vmem:[%s3 + $0x4] sm:$0xf]
      %v402 = vld [vmem:[%s3 + $0x8] sm:$0xf]
      %v403 = vld [vmem:[%s3 + $0xc] sm:$0xf]
      %v404 = vld [vmem:[%s3 + $0x10] sm:$0x3]
      %v405 = vld [vmem:[%s4] sm:$0x1]
      %v407 = vperm.slane %v405, 0
      %v451 = vunpack.c.l.b16 %v358
      %v452 = vunpack.c.l.b16 %v359
      %v453 = vunpack.c.l.b16 %v360
      %v454 = vunpack.c.l.b16 %v361
      %v455 = vunpack.c.l.b16 %v362
      %v456 = vunpack.c.l.b16 %v363
      %v457 = vunpack.c.l.b16 %v364
      %v458 = vunpack.c.l.b16 %v365
      %v459 = vunpack.c.l.b16 %v366
      %v460 = vunpack.c.l.b16 %v367
      %v461 = vunpack.c.l.b16 %v368
      %v462 = vunpack.c.l.b16 %v369
      %v463 = vunpack.c.l.b16 %v370
      %v464 = vunpack.c.l.b16 %v371
      %v465 = vunpack.c.l.b16 %v372
      %v466 = vunpack.c.l.b16 %v373
      %v467 = vunpack.c.l.b16 %v374
      %v468 = vunpack.c.l.b16 %v375
      %v469 = vunpack.c.l.b16 %v376
      %v470 = vunpack.c.l.b16 %v377
      %v471 = vunpack.c.l.b16 %v378
      %v472 = vunpack.c.l.b16 %v379
      %v473 = vunpack.c.l.b16 %v380
      %v474 = vunpack.c.l.b16 %v381
      %v475 = vunpack.c.l.b16 %v382
      %v476 = vunpack.c.l.b16 %v383
      %v477 = vunpack.c.l.b16 %v384
      %v478 = vunpack.c.l.b16 %v385
      %v479 = vunpack.c.l.b16 %v386
      %v480 = vunpack.c.l.b16 %v387
      %v481 = vunpack.c.l.b16 %v388
      %v482 = vunpack.c.l.b16 %v389
      %v483 = vunpack.c.l.b16 %v390
      %v484 = vunpack.c.l.b16 %v391
      %v485 = vunpack.c.l.b16 %v392
      %v486 = vunpack.c.l.b16 %v393
      %v487 = vunpack.c.l.b16 %v394
      %v488 = vunpack.c.l.b16 %v395
      %v489 = vunpack.c.l.b16 %v396
      %v490 = vunpack.c.l.b16 %v397
      %v491 = vunpack.c.l.b16 %v398
      %v492 = vunpack.c.l.b16 %v399
      %v493 = vpack.c.b16 %v452, %v451
      %v494 = vpack.c.b16 %v454, %v453
      %v495 = vpack.c.b16 %v456, %v455
      %v496 = vpack.c.b16 %v458, %v457
      %v497 = vpack.c.b16 %v460, %v459
      %v498 = vpack.c.b16 %v462, %v461
      %v499 = vpack.c.b16 %v464, %v463
      %v500 = vpack.c.b16 %v466, %v465
      %v501 = vpack.c.b16 %v468, %v467
      %v502 = vpack.c.b16 %v470, %v469
      %v503 = vpack.c.b16 %v472, %v471
      %v504 = vpack.c.b16 %v474, %v473
      %v505 = vpack.c.b16 %v476, %v475
      %v506 = vpack.c.b16 %v478, %v477
      %v507 = vpack.c.b16 %v480, %v479
      %v508 = vpack.c.b16 %v482, %v481
      %v509 = vpack.c.b16 %v484, %v483
      %v510 = vpack.c.b16 %v486, %v485
      %v511 = vpack.c.b16 %v488, %v487
      %v512 = vpack.c.b16 %v490, %v489
      %v513 = vpack.c.b16 %v492, %v491
      %v519 = vunpack.c.l.b16 %v400
      %v520 = vunpack.c.l.b16 %v401
      %v521 = vunpack.c.l.b16 %v402
      %v522 = vunpack.c.l.b16 %v403
      %v523 = vunpack.c.l.b16 %v404
      %v524 = vpack.c.b16 %v520, %v519
      %v525 = vpack.c.b16 %v522, %v521
      %v526 = vpack.c.b16 %v523, %v523
      %vm529 = vcmask 293888
      %v531 = vsel %vm529, %v493, 0
      %v534 = vsel %vm529, %v494, 0
      %v537 = vsel %vm529, %v495, 0
      %v540 = vsel %vm529, %v496, 0
      %v543 = vsel %vm529, %v497, 0
      %v546 = vsel %vm529, %v498, 0
      %v549 = vsel %vm529, %v499, 0
      %v552 = vsel %vm529, %v500, 0
      %v555 = vsel %vm529, %v501, 0
      %v558 = vsel %vm529, %v502, 0
      %v561 = vsel %vm529, %v503, 0
      %v564 = vsel %vm529, %v504, 0
      %v567 = vsel %vm529, %v505, 0
      %v570 = vsel %vm529, %v506, 0
      %v573 = vsel %vm529, %v507, 0
      %v576 = vsel %vm529, %v508, 0
      %v579 = vsel %vm529, %v509, 0
      %v582 = vsel %vm529, %v510, 0
      %v585 = vsel %vm529, %v511, 0
      %v588 = vsel %vm529, %v512, 0
      %v591 = vsel %vm529, %v513, 0
      %vm593 = vcmask 1041408
      %v595 = vsel %vm593, %v526, 0
      %597 = vmatpush.bf16.msra.mxu0 0
      %598 = vmatpush.bf16.msra.mxu0 0
      %599 = vmatpush.bf16.msra.mxu0 0
      %600 = vmatpush.bf16.msra.mxu0 0
      %601 = vmatpush.bf16.msra.mxu0 0
      %602 = vmatpush.bf16.msra.mxu0 %v595
      %603 = vmatpush.bf16.msra.mxu0 %v525
      %604 = vmatpush.bf16.msra.mxu0 %v524
      %605 = vmatmul.bf16.gmra.mxu0 %v531
      %v606 = vpop.f32.mrf.mxu0
      %v607 = vadd.f32 %v407, %v606
      %v608 = vpop.f32.mrf.mxu0
      %v609 = vadd.f32 %v407, %v608
      %610 = vmatmul.bf16.gmra.mxu0 %v534
      %v611 = vpop.f32.mrf.mxu0
      %v612 = vadd.f32 %v407, %v611
      %v613 = vpop.f32.mrf.mxu0
      %v614 = vadd.f32 %v407, %v613
      %615 = vmatmul.bf16.gmra.mxu0 %v537
      %v616 = vpop.f32.mrf.mxu0
      %v617 = vadd.f32 %v407, %v616
      %v618 = vpop.f32.mrf.mxu0
      %v619 = vadd.f32 %v407, %v618
      %620 = vmatmul.bf16.gmra.mxu0 %v540
      %v621 = vpop.f32.mrf.mxu0
      %v622 = vadd.f32 %v407, %v621
      %v623 = vpop.f32.mrf.mxu0
      %v624 = vadd.f32 %v407, %v623
      %625 = vmatmul.bf16.gmra.mxu0 %v543
      %v626 = vpop.f32.mrf.mxu0
      %v627 = vadd.f32 %v407, %v626
      %v628 = vpop.f32.mrf.mxu0
      %v629 = vadd.f32 %v407, %v628
      %630 = vmatmul.bf16.gmra.mxu0 %v546
      %v631 = vpop.f32.mrf.mxu0
      %v632 = vadd.f32 %v407, %v631
      %v633 = vpop.f32.mrf.mxu0
      %v634 = vadd.f32 %v407, %v633
      %635 = vmatmul.bf16.gmra.mxu0 %v549
      %v636 = vpop.f32.mrf.mxu0
      %v637 = vadd.f32 %v407, %v636
      %v638 = vpop.f32.mrf.mxu0
      %v639 = vadd.f32 %v407, %v638
      %640 = vmatmul.bf16.gmra.mxu0 %v552
      %v641 = vpop.f32.mrf.mxu0
      %v642 = vadd.f32 %v407, %v641
      %v643 = vpop.f32.mrf.mxu0
      %v644 = vadd.f32 %v407, %v643
      %645 = vmatmul.bf16.gmra.mxu0 %v555
      %v646 = vpop.f32.mrf.mxu0
      %v647 = vadd.f32 %v407, %v646
      %v648 = vpop.f32.mrf.mxu0
      %v649 = vadd.f32 %v407, %v648
      %650 = vmatmul.bf16.gmra.mxu0 %v558
      %v651 = vpop.f32.mrf.mxu0
      %v652 = vadd.f32 %v407, %v651
      %v653 = vpop.f32.mrf.mxu0
      %v654 = vadd.f32 %v407, %v653
      %655 = vmatmul.bf16.gmra.mxu0 %v561
      %v656 = vpop.f32.mrf.mxu0
      %v657 = vadd.f32 %v407, %v656
      %v658 = vpop.f32.mrf.mxu0
      %v659 = vadd.f32 %v407, %v658
      %660 = vmatmul.bf16.gmra.mxu0 %v564
      %v661 = vpop.f32.mrf.mxu0
      %v662 = vadd.f32 %v407, %v661
      %v663 = vpop.f32.mrf.mxu0
      %v664 = vadd.f32 %v407, %v663
      %665 = vmatmul.bf16.gmra.mxu0 %v567
      %v666 = vpop.f32.mrf.mxu0
      %v667 = vadd.f32 %v407, %v666
      %v668 = vpop.f32.mrf.mxu0
      %v669 = vadd.f32 %v407, %v668
      %670 = vmatmul.bf16.gmra.mxu0 %v570
      %v671 = vpop.f32.mrf.mxu0
      %v672 = vadd.f32 %v407, %v671
      %v673 = vpop.f32.mrf.mxu0
      %v674 = vadd.f32 %v407, %v673
      %675 = vmatmul.bf16.gmra.mxu0 %v573
      %v676 = vpop.f32.mrf.mxu0
      %v677 = vadd.f32 %v407, %v676
      %v678 = vpop.f32.mrf.mxu0
      %v679 = vadd.f32 %v407, %v678
      %680 = vmatmul.bf16.gmra.mxu0 %v576
      %v681 = vpop.f32.mrf.mxu0
      %v682 = vadd.f32 %v407, %v681
      %v683 = vpop.f32.mrf.mxu0
      %v684 = vadd.f32 %v407, %v683
      %685 = vmatmul.bf16.gmra.mxu0 %v579
      %v686 = vpop.f32.mrf.mxu0
      %v687 = vadd.f32 %v407, %v686
      %v688 = vpop.f32.mrf.mxu0
      %v689 = vadd.f32 %v407, %v688
      %690 = vmatmul.bf16.gmra.mxu0 %v582
      %v691 = vpop.f32.mrf.mxu0
      %v692 = vadd.f32 %v407, %v691
      %v693 = vpop.f32.mrf.mxu0
      %v694 = vadd.f32 %v407, %v693
      %695 = vmatmul.bf16.gmra.mxu0 %v585
      %v696 = vpop.f32.mrf.mxu0
      %v697 = vadd.f32 %v407, %v696
      %v698 = vpop.f32.mrf.mxu0
      %v699 = vadd.f32 %v407, %v698
      %700 = vmatmul.bf16.gmra.mxu0 %v588
      %v701 = vpop.f32.mrf.mxu0
      %v702 = vadd.f32 %v407, %v701
      %v703 = vpop.f32.mrf.mxu0
      %v704 = vadd.f32 %v407, %v703
      %705 = vmatmul.bf16.gmra.mxu0 %v591
      %v706 = vpop.f32.mrf.mxu0
      %v707 = vadd.f32 %v407, %v706
      %v708 = vpop.f32.mrf.mxu0
      %v709 = vadd.f32 %v407, %v708
      %710 = vdwg.mxu0
      %s711 = sld [smem:[#allocation3]]
      %vm712 = vcmp.gt.f32.partialorder %v607, 0.0
      %vm713 = vcmp.gt.f32.partialorder %v609, 0.0
      %vm714 = vcmp.gt.f32.partialorder %v612, 0.0
      %vm715 = vcmp.gt.f32.partialorder %v614, 0.0
      %vm716 = vcmp.gt.f32.partialorder %v617, 0.0
      %vm717 = vcmp.gt.f32.partialorder %v619, 0.0
      %vm718 = vcmp.gt.f32.partialorder %v622, 0.0
      %vm719 = vcmp.gt.f32.partialorder %v624, 0.0
      %vm720 = vcmp.gt.f32.partialorder %v627, 0.0
      %vm721 = vcmp.gt.f32.partialorder %v629, 0.0
      %vm722 = vcmp.gt.f32.partialorder %v632, 0.0
      %vm723 = vcmp.gt.f32.partialorder %v634, 0.0
      %vm724 = vcmp.gt.f32.partialorder %v637, 0.0
      %vm725 = vcmp.gt.f32.partialorder %v639, 0.0
      %vm726 = vcmp.gt.f32.partialorder %v642, 0.0
      %vm727 = vcmp.gt.f32.partialorder %v644, 0.0
      %vm728 = vcmp.gt.f32.partialorder %v647, 0.0
      %vm729 = vcmp.gt.f32.partialorder %v649, 0.0
      %vm730 = vcmp.gt.f32.partialorder %v652, 0.0
      %vm731 = vcmp.gt.f32.partialorder %v654, 0.0
      %vm732 = vcmp.gt.f32.partialorder %v657, 0.0
      %vm733 = vcmp.gt.f32.partialorder %v659, 0.0
      %vm734 = vcmp.gt.f32.partialorder %v662, 0.0
      %vm735 = vcmp.gt.f32.partialorder %v664, 0.0
      %vm736 = vcmp.gt.f32.partialorder %v667, 0.0
      %vm737 = vcmp.gt.f32.partialorder %v669, 0.0
      %vm738 = vcmp.gt.f32.partialorder %v672, 0.0
      %vm739 = vcmp.gt.f32.partialorder %v674, 0.0
      %vm740 = vcmp.gt.f32.partialorder %v677, 0.0
      %vm741 = vcmp.gt.f32.partialorder %v679, 0.0
      %vm742 = vcmp.gt.f32.partialorder %v682, 0.0
      %vm743 = vcmp.gt.f32.partialorder %v684, 0.0
      %vm744 = vcmp.gt.f32.partialorder %v687, 0.0
      %vm745 = vcmp.gt.f32.partialorder %v689, 0.0
      %vm746 = vcmp.gt.f32.partialorder %v692, 0.0
      %vm747 = vcmp.gt.f32.partialorder %v694, 0.0
      %vm748 = vcmp.gt.f32.partialorder %v697, 0.0
      %vm749 = vcmp.gt.f32.partialorder %v699, 0.0
      %vm750 = vcmp.gt.f32.partialorder %v702, 0.0
      %vm751 = vcmp.gt.f32.partialorder %v704, 0.0
      %vm752 = vcmp.gt.f32.partialorder %v707, 0.0
      %vm753 = vcmp.gt.f32.partialorder %v709, 0.0
      %v754 = vstv %s711
      %v755 = vmul.f32 %v754, %v607
      %v756 = vmul.f32 %v754, %v609
      %v757 = vmul.f32 %v754, %v612
      %v758 = vmul.f32 %v754, %v614
      %v759 = vmul.f32 %v754, %v617
      %v760 = vmul.f32 %v754, %v619
      %v761 = vmul.f32 %v754, %v622
      %v762 = vmul.f32 %v754, %v624
      %v763 = vmul.f32 %v754, %v627
      %v764 = vmul.f32 %v754, %v629
      %v765 = vmul.f32 %v754, %v632
      %v766 = vmul.f32 %v754, %v634
      %v767 = vmul.f32 %v754, %v637
      %v768 = vmul.f32 %v754, %v639
      %v769 = vmul.f32 %v754, %v642
      %v770 = vmul.f32 %v754, %v644
      %v771 = vmul.f32 %v754, %v647
      %v772 = vmul.f32 %v754, %v649
      %v773 = vmul.f32 %v754, %v652
      %v774 = vmul.f32 %v754, %v654
      %v775 = vmul.f32 %v754, %v657
      %v776 = vmul.f32 %v754, %v659
      %v777 = vmul.f32 %v754, %v662
      %v778 = vmul.f32 %v754, %v664
      %v779 = vmul.f32 %v754, %v667
      %v780 = vmul.f32 %v754, %v669
      %v781 = vmul.f32 %v754, %v672
      %v782 = vmul.f32 %v754, %v674
      %v783 = vmul.f32 %v754, %v677
      %v784 = vmul.f32 %v754, %v679
      %v785 = vmul.f32 %v754, %v682
      %v786 = vmul.f32 %v754, %v684
      %v787 = vmul.f32 %v754, %v687
      %v788 = vmul.f32 %v754, %v689
      %v789 = vmul.f32 %v754, %v692
      %v790 = vmul.f32 %v754, %v694
      %v791 = vmul.f32 %v754, %v697
      %v792 = vmul.f32 %v754, %v699
      %v793 = vmul.f32 %v754, %v702
      %v794 = vmul.f32 %v754, %v704
      %v795 = vmul.f32 %v754, %v707
      %v796 = vmul.f32 %v754, %v709
      %v797 = vsel %vm712, %v607, %v755
      %v798 = vsel %vm713, %v609, %v756
      %v799 = vsel %vm714, %v612, %v757
      %v800 = vsel %vm715, %v614, %v758
      %v801 = vsel %vm716, %v617, %v759
      %v802 = vsel %vm717, %v619, %v760
      %v803 = vsel %vm718, %v622, %v761
      %v804 = vsel %vm719, %v624, %v762
      %v805 = vsel %vm720, %v627, %v763
      %v806 = vsel %vm721, %v629, %v764
      %v807 = vsel %vm722, %v632, %v765
      %v808 = vsel %vm723, %v634, %v766
      %v809 = vsel %vm724, %v637, %v767
      %v810 = vsel %vm725, %v639, %v768
      %v811 = vsel %vm726, %v642, %v769
      %v812 = vsel %vm727, %v644, %v770
      %v813 = vsel %vm728, %v647, %v771
      %v814 = vsel %vm729, %v649, %v772
      %v815 = vsel %vm730, %v652, %v773
      %v816 = vsel %vm731, %v654, %v774
      %v817 = vsel %vm732, %v657, %v775
      %v818 = vsel %vm733, %v659, %v776
      %v819 = vsel %vm734, %v662, %v777
      %v820 = vsel %vm735, %v664, %v778
      %v821 = vsel %vm736, %v667, %v779
      %v822 = vsel %vm737, %v669, %v780
      %v823 = vsel %vm738, %v672, %v781
      %v824 = vsel %vm739, %v674, %v782
      %v825 = vsel %vm740, %v677, %v783
      %v826 = vsel %vm741, %v679, %v784
      %v827 = vsel %vm742, %v682, %v785
      %v828 = vsel %vm743, %v684, %v786
      %v829 = vsel %vm744, %v687, %v787
      %v830 = vsel %vm745, %v689, %v788
      %v831 = vsel %vm746, %v692, %v789
      %v832 = vsel %vm747, %v694, %v790
      %v833 = vsel %vm748, %v697, %v791
      %v834 = vsel %vm749, %v699, %v792
      %v835 = vsel %vm750, %v702, %v793
      %v836 = vsel %vm751, %v704, %v794
      %v837 = vsel %vm752, %v707, %v795
      %v838 = vsel %vm753, %v709, %v796
      %840 = vset.pattern.permute.xlu0 0
      %841 = vperm.xlu0 %840, %v316
      %v842 = vpop.permute.xlu0 %841
      %845 = vset.pattern.permute.xlu0 0
      %846 = vperm.xlu0 %845, %v317
      %v847 = vpop.permute.xlu0 %846
      %850 = vset.pattern.permute.xlu0 0
      %851 = vperm.xlu0 %850, %v318
      %v852 = vpop.permute.xlu0 %851
      %855 = vset.pattern.permute.xlu0 0
      %856 = vperm.xlu0 %855, %v319
      %v857 = vpop.permute.xlu0 %856
      %860 = vset.pattern.permute.xlu0 0
      %861 = vperm.xlu0 %860, %v320
      %v862 = vpop.permute.xlu0 %861
      %865 = vset.pattern.permute.xlu0 0
      %866 = vperm.xlu0 %865, %v321
      %v867 = vpop.permute.xlu0 %866
      %870 = vset.pattern.permute.xlu0 0
      %871 = vperm.xlu0 %870, %v322
      %v872 = vpop.permute.xlu0 %871
      %875 = vset.pattern.permute.xlu0 0
      %876 = vperm.xlu0 %875, %v323
      %v877 = vpop.permute.xlu0 %876
      %880 = vset.pattern.permute.xlu0 0
      %881 = vperm.xlu0 %880, %v324
      %v882 = vpop.permute.xlu0 %881
      %885 = vset.pattern.permute.xlu0 0
      %886 = vperm.xlu0 %885, %v325
      %v887 = vpop.permute.xlu0 %886
      %890 = vset.pattern.permute.xlu0 0
      %891 = vperm.xlu0 %890, %v326
      %v892 = vpop.permute.xlu0 %891
      %895 = vset.pattern.permute.xlu0 0
      %896 = vperm.xlu0 %895, %v327
      %v897 = vpop.permute.xlu0 %896
      %900 = vset.pattern.permute.xlu0 0
      %901 = vperm.xlu0 %900, %v328
      %v902 = vpop.permute.xlu0 %901
      %905 = vset.pattern.permute.xlu0 0
      %906 = vperm.xlu0 %905, %v329
      %v907 = vpop.permute.xlu0 %906
      %910 = vset.pattern.permute.xlu0 0
      %911 = vperm.xlu0 %910, %v330
      %v912 = vpop.permute.xlu0 %911
      %915 = vset.pattern.permute.xlu0 0
      %916 = vperm.xlu0 %915, %v331
      %v917 = vpop.permute.xlu0 %916
      %920 = vset.pattern.permute.xlu0 0
      %921 = vperm.xlu0 %920, %v332
      %v922 = vpop.permute.xlu0 %921
      %925 = vset.pattern.permute.xlu0 0
      %926 = vperm.xlu0 %925, %v333
      %v927 = vpop.permute.xlu0 %926
      %930 = vset.pattern.permute.xlu0 0
      %931 = vperm.xlu0 %930, %v334
      %v932 = vpop.permute.xlu0 %931
      %935 = vset.pattern.permute.xlu0 0
      %936 = vperm.xlu0 %935, %v335
      %v937 = vpop.permute.xlu0 %936
      %940 = vset.pattern.permute.xlu0 0
      %941 = vperm.xlu0 %940, %v336
      %v942 = vpop.permute.xlu0 %941
      %945 = vset.pattern.permute.xlu0 0
      %946 = vperm.xlu0 %945, %v337
      %v947 = vpop.permute.xlu0 %946
      %950 = vset.pattern.permute.xlu0 0
      %951 = vperm.xlu0 %950, %v338
      %v952 = vpop.permute.xlu0 %951
      %955 = vset.pattern.permute.xlu0 0
      %956 = vperm.xlu0 %955, %v339
      %v957 = vpop.permute.xlu0 %956
      %960 = vset.pattern.permute.xlu0 0
      %961 = vperm.xlu0 %960, %v340
      %v962 = vpop.permute.xlu0 %961
      %965 = vset.pattern.permute.xlu0 0
      %966 = vperm.xlu0 %965, %v341
      %v967 = vpop.permute.xlu0 %966
      %970 = vset.pattern.permute.xlu0 0
      %971 = vperm.xlu0 %970, %v342
      %v972 = vpop.permute.xlu0 %971
      %975 = vset.pattern.permute.xlu0 0
      %976 = vperm.xlu0 %975, %v343
      %v977 = vpop.permute.xlu0 %976
      %980 = vset.pattern.permute.xlu0 0
      %981 = vperm.xlu0 %980, %v344
      %v982 = vpop.permute.xlu0 %981
      %985 = vset.pattern.permute.xlu0 0
      %986 = vperm.xlu0 %985, %v345
      %v987 = vpop.permute.xlu0 %986
      %990 = vset.pattern.permute.xlu0 0
      %991 = vperm.xlu0 %990, %v346
      %v992 = vpop.permute.xlu0 %991
      %995 = vset.pattern.permute.xlu0 0
      %996 = vperm.xlu0 %995, %v347
      %v997 = vpop.permute.xlu0 %996
      %1000 = vset.pattern.permute.xlu0 0
      %1001 = vperm.xlu0 %1000, %v348
      %v1002 = vpop.permute.xlu0 %1001
      %1005 = vset.pattern.permute.xlu0 0
      %1006 = vperm.xlu0 %1005, %v349
      %v1007 = vpop.permute.xlu0 %1006
      %1010 = vset.pattern.permute.xlu0 0
      %1011 = vperm.xlu0 %1010, %v350
      %v1012 = vpop.permute.xlu0 %1011
      %1015 = vset.pattern.permute.xlu0 0
      %1016 = vperm.xlu0 %1015, %v351
      %v1017 = vpop.permute.xlu0 %1016
      %1020 = vset.pattern.permute.xlu0 0
      %1021 = vperm.xlu0 %1020, %v352
      %v1022 = vpop.permute.xlu0 %1021
      %1025 = vset.pattern.permute.xlu0 0
      %1026 = vperm.xlu0 %1025, %v353
      %v1027 = vpop.permute.xlu0 %1026
      %1030 = vset.pattern.permute.xlu0 0
      %1031 = vperm.xlu0 %1030, %v354
      %v1032 = vpop.permute.xlu0 %1031
      %1035 = vset.pattern.permute.xlu0 0
      %1036 = vperm.xlu0 %1035, %v355
      %v1037 = vpop.permute.xlu0 %1036
      %1040 = vset.pattern.permute.xlu0 0
      %1041 = vperm.xlu0 %1040, %v356
      %v1042 = vpop.permute.xlu0 %1041
      %1045 = vset.pattern.permute.xlu0 0
      %1046 = vperm.xlu0 %1045, %v357
      %v1047 = vpop.permute.xlu0 %1046
      %v1049 = vmul.f32 %v797, %v842
      %v1050 = vmul.f32 %v798, %v847
      %v1051 = vmul.f32 %v799, %v852
      %v1052 = vmul.f32 %v800, %v857
      %v1053 = vmul.f32 %v801, %v862
      %v1054 = vmul.f32 %v802, %v867
      %v1055 = vmul.f32 %v803, %v872
      %v1056 = vmul.f32 %v804, %v877
      %v1057 = vmul.f32 %v805, %v882
      %v1058 = vmul.f32 %v806, %v887
      %v1059 = vmul.f32 %v807, %v892
      %v1060 = vmul.f32 %v808, %v897
      %v1061 = vmul.f32 %v809, %v902
      %v1062 = vmul.f32 %v810, %v907
      %v1063 = vmul.f32 %v811, %v912
      %v1064 = vmul.f32 %v812, %v917
      %v1065 = vmul.f32 %v813, %v922
      %v1066 = vmul.f32 %v814, %v927
      %v1067 = vmul.f32 %v815, %v932
      %v1068 = vmul.f32 %v816, %v937
      %v1069 = vmul.f32 %v817, %v942
      %v1070 = vmul.f32 %v818, %v947
      %v1071 = vmul.f32 %v819, %v952
      %v1072 = vmul.f32 %v820, %v957
      %v1073 = vmul.f32 %v821, %v962
      %v1074 = vmul.f32 %v822, %v967
      %v1075 = vmul.f32 %v823, %v972
      %v1076 = vmul.f32 %v824, %v977
      %v1077 = vmul.f32 %v825, %v982
      %v1078 = vmul.f32 %v826, %v987
      %v1079 = vmul.f32 %v827, %v992
      %v1080 = vmul.f32 %v828, %v997
      %v1081 = vmul.f32 %v829, %v1002
      %v1082 = vmul.f32 %v830, %v1007
      %v1083 = vmul.f32 %v831, %v1012
      %v1084 = vmul.f32 %v832, %v1017
      %v1085 = vmul.f32 %v833, %v1022
      %v1086 = vmul.f32 %v834, %v1027
      %v1087 = vmul.f32 %v835, %v1032
      %v1088 = vmul.f32 %v836, %v1037
      %v1089 = vmul.f32 %v837, %v1042
      %v1090 = vmul.f32 %v838, %v1047
      loop: start=0, step=1, limit=6
      $region53: #{c2n_d_forward.1} parent=51 // loop_pre_header
        _
      $region54: #{c2n_d_forward.1} parent=51 // loop_header
        %s1092 = sphi 0, %s1096
        %p1093 = scmp.ge.s32.totalorder %s1092, 6
        %v1097 = vphi %v1049, %v6119
        %v1098 = vphi %v1050, %v6120
        %v1099 = vphi %v1051, %v6121
        %v1100 = vphi %v1052, %v6122
        %v1101 = vphi %v1053, %v6123
        %v1102 = vphi %v1054, %v6124
        %v1103 = vphi %v1055, %v6125
        %v1104 = vphi %v1056, %v6126
        %v1105 = vphi %v1057, %v6127
        %v1106 = vphi %v1058, %v6128
        %v1107 = vphi %v1059, %v6129
        %v1108 = vphi %v1060, %v6130
        %v1109 = vphi %v1061, %v6131
        %v1110 = vphi %v1062, %v6132
        %v1111 = vphi %v1063, %v6133
        %v1112 = vphi %v1064, %v6134
        %v1113 = vphi %v1065, %v6135
        %v1114 = vphi %v1066, %v6136
        %v1115 = vphi %v1067, %v6137
        %v1116 = vphi %v1068, %v6138
        %v1117 = vphi %v1069, %v6139
        %v1118 = vphi %v1070, %v6140
        %v1119 = vphi %v1071, %v6141
        %v1120 = vphi %v1072, %v6142
        %v1121 = vphi %v1073, %v6143
        %v1122 = vphi %v1074, %v6144
        %v1123 = vphi %v1075, %v6145
        %v1124 = vphi %v1076, %v6146
        %v1125 = vphi %v1077, %v6147
        %v1126 = vphi %v1078, %v6148
        %v1127 = vphi %v1079, %v6149
        %v1128 = vphi %v1080, %v6150
        %v1129 = vphi %v1081, %v6151
        %v1130 = vphi %v1082, %v6152
        %v1131 = vphi %v1083, %v6153
        %v1132 = vphi %v1084, %v6154
        %v1133 = vphi %v1085, %v6155
        %v1134 = vphi %v1086, %v6156
        %v1135 = vphi %v1087, %v6157
        %v1136 = vphi %v1088, %v6158
        %v1137 = vphi %v1089, %v6159
        %v1138 = vphi %v1090, %v6160
      $region55: #{c2n_d_forward.1} parent=51 // loop_header_branch
        %1095 = sbr.rel (%p1093) target = $region59
      $region56: #{c2n_d_forward.1} parent=51 // loop_body
        %v1139 = vrot.slane %v1097, 5
        %v1140 = vrot.slane %v1098, 5
        %v1141 = vrot.slane %v1099, 5
        %v1142 = vrot.slane %v1100, 5
        %v1143 = vrot.slane %v1101, 5
        %v1144 = vrot.slane %v1102, 5
        %v1145 = vrot.slane %v1103, 5
        %v1146 = vrot.slane %v1104, 5
        %v1147 = vrot.slane %v1105, 5
        %v1148 = vrot.slane %v1106, 5
        %v1149 = vrot.slane %v1107, 5
        %v1150 = vrot.slane %v1108, 5
        %v1151 = vrot.slane %v1109, 5
        %v1152 = vrot.slane %v1110, 5
        %v1153 = vrot.slane %v1111, 5
        %v1154 = vrot.slane %v1112, 5
        %v1155 = vrot.slane %v1113, 5
        %v1156 = vrot.slane %v1114, 5
        %v1157 = vrot.slane %v1115, 5
        %v1158 = vrot.slane %v1116, 5
        %v1159 = vrot.slane %v1117, 5
        %v1160 = vrot.slane %v1118, 5
        %v1161 = vrot.slane %v1119, 5
        %v1162 = vrot.slane %v1120, 5
        %v1163 = vrot.slane %v1121, 5
        %v1164 = vrot.slane %v1122, 5
        %v1165 = vrot.slane %v1123, 5
        %v1166 = vrot.slane %v1124, 5
        %v1167 = vrot.slane %v1125, 5
        %v1168 = vrot.slane %v1126, 5
        %v1169 = vrot.slane %v1127, 5
        %v1170 = vrot.slane %v1128, 5
        %v1171 = vrot.slane %v1129, 5
        %v1172 = vrot.slane %v1130, 5
        %v1173 = vrot.slane %v1131, 5
        %v1174 = vrot.slane %v1132, 5
        %v1175 = vrot.slane %v1133, 5
        %v1176 = vrot.slane %v1134, 5
        %v1177 = vrot.slane %v1135, 5
        %v1178 = vrot.slane %v1136, 5
        %v1179 = vrot.slane %v1137, 5
        %v1180 = vrot.slane %v1138, 5
        %v1181 = vlaneseq
        %v1182 = vshrl.u32 %v1181, 7
        %vm1183 = vcmp.lt.s32.totalorder %v1182, 3
        %v1184 = vsel %vm1183, %v1179, %v1180
        %v1185 = vsel %vm1183, %v1178, %v1179
        %v1186 = vsel %vm1183, %v1177, %v1178
        %v1187 = vsel %vm1183, %v1176, %v1177
        %v1188 = vsel %vm1183, %v1175, %v1176
        %v1189 = vsel %vm1183, %v1174, %v1175
        %v1190 = vsel %vm1183, %v1173, %v1174
        %v1191 = vsel %vm1183, %v1172, %v1173
        %v1192 = vsel %vm1183, %v1171, %v1172
        %v1193 = vsel %vm1183, %v1170, %v1171
        %v1194 = vsel %vm1183, %v1169, %v1170
        %v1195 = vsel %vm1183, %v1168, %v1169
        %v1196 = vsel %vm1183, %v1167, %v1168
        %v1197 = vsel %vm1183, %v1166, %v1167
        %v1198 = vsel %vm1183, %v1165, %v1166
        %v1199 = vsel %vm1183, %v1164, %v1165
        %v1200 = vsel %vm1183, %v1163, %v1164
        %v1201 = vsel %vm1183, %v1162, %v1163
        %v1202 = vsel %vm1183, %v1161, %v1162
        %v1203 = vsel %vm1183, %v1160, %v1161
        %v1204 = vsel %vm1183, %v1159, %v1160
        %v1205 = vsel %vm1183, %v1158, %v1159
        %v1206 = vsel %vm1183, %v1157, %v1158
        %v1207 = vsel %vm1183, %v1156, %v1157
        %v1208 = vsel %vm1183, %v1155, %v1156
        %v1209 = vsel %vm1183, %v1154, %v1155
        %v1210 = vsel %vm1183, %v1153, %v1154
        %v1211 = vsel %vm1183, %v1152, %v1153
        %v1212 = vsel %vm1183, %v1151, %v1152
        %v1213 = vsel %vm1183, %v1150, %v1151
        %v1214 = vsel %vm1183, %v1149, %v1150
        %v1215 = vsel %vm1183, %v1148, %v1149
        %v1216 = vsel %vm1183, %v1147, %v1148
        %v1217 = vsel %vm1183, %v1146, %v1147
        %v1218 = vsel %vm1183, %v1145, %v1146
        %v1219 = vsel %vm1183, %v1144, %v1145
        %v1220 = vsel %vm1183, %v1143, %v1144
        %v1221 = vsel %vm1183, %v1142, %v1143
        %v1222 = vsel %vm1183, %v1141, %v1142
        %v1223 = vsel %vm1183, %v1140, %v1141
        %v1224 = vsel %vm1183, %v1139, %v1140
        %v1225 = vsel %vm1183, %v1180, %v1139
        %v1226 = vrot.slane %v1097, 6
        %v1227 = vrot.slane %v1098, 6
        %v1228 = vrot.slane %v1099, 6
        %v1229 = vrot.slane %v1100, 6
        %v1230 = vrot.slane %v1101, 6
        %v1231 = vrot.slane %v1102, 6
        %v1232 = vrot.slane %v1103, 6
        %v1233 = vrot.slane %v1104, 6
        %v1234 = vrot.slane %v1105, 6
        %v1235 = vrot.slane %v1106, 6
        %v1236 = vrot.slane %v1107, 6
        %v1237 = vrot.slane %v1108, 6
        %v1238 = vrot.slane %v1109, 6
        %v1239 = vrot.slane %v1110, 6
        %v1240 = vrot.slane %v1111, 6
        %v1241 = vrot.slane %v1112, 6
        %v1242 = vrot.slane %v1113, 6
        %v1243 = vrot.slane %v1114, 6
        %v1244 = vrot.slane %v1115, 6
        %v1245 = vrot.slane %v1116, 6
        %v1246 = vrot.slane %v1117, 6
        %v1247 = vrot.slane %v1118, 6
        %v1248 = vrot.slane %v1119, 6
        %v1249 = vrot.slane %v1120, 6
        %v1250 = vrot.slane %v1121, 6
        %v1251 = vrot.slane %v1122, 6
        %v1252 = vrot.slane %v1123, 6
        %v1253 = vrot.slane %v1124, 6
        %v1254 = vrot.slane %v1125, 6
        %v1255 = vrot.slane %v1126, 6
        %v1256 = vrot.slane %v1127, 6
        %v1257 = vrot.slane %v1128, 6
        %v1258 = vrot.slane %v1129, 6
        %v1259 = vrot.slane %v1130, 6
        %v1260 = vrot.slane %v1131, 6
        %v1261 = vrot.slane %v1132, 6
        %v1262 = vrot.slane %v1133, 6
        %v1263 = vrot.slane %v1134, 6
        %v1264 = vrot.slane %v1135, 6
        %v1265 = vrot.slane %v1136, 6
        %v1266 = vrot.slane %v1137, 6
        %v1267 = vrot.slane %v1138, 6
        %vm1268 = vcmp.lt.s32.totalorder %v1182, 2
        %v1269 = vsel %vm1268, %v1266, %v1267
        %v1270 = vsel %vm1268, %v1265, %v1266
        %v1271 = vsel %vm1268, %v1264, %v1265
        %v1272 = vsel %vm1268, %v1263, %v1264
        %v1273 = vsel %vm1268, %v1262, %v1263
        %v1274 = vsel %vm1268, %v1261, %v1262
        %v1275 = vsel %vm1268, %v1260, %v1261
        %v1276 = vsel %vm1268, %v1259, %v1260
        %v1277 = vsel %vm1268, %v1258, %v1259
        %v1278 = vsel %vm1268, %v1257, %v1258
        %v1279 = vsel %vm1268, %v1256, %v1257
        %v1280 = vsel %vm1268, %v1255, %v1256
        %v1281 = vsel %vm1268, %v1254, %v1255
        %v1282 = vsel %vm1268, %v1253, %v1254
        %v1283 = vsel %vm1268, %v1252, %v1253
        %v1284 = vsel %vm1268, %v1251, %v1252
        %v1285 = vsel %vm1268, %v1250, %v1251
        %v1286 = vsel %vm1268, %v1249, %v1250
        %v1287 = vsel %vm1268, %v1248, %v1249
        %v1288 = vsel %vm1268, %v1247, %v1248
        %v1289 = vsel %vm1268, %v1246, %v1247
        %v1290 = vsel %vm1268, %v1245, %v1246
        %v1291 = vsel %vm1268, %v1244, %v1245
        %v1292 = vsel %vm1268, %v1243, %v1244
        %v1293 = vsel %vm1268, %v1242, %v1243
        %v1294 = vsel %vm1268, %v1241, %v1242
        %v1295 = vsel %vm1268, %v1240, %v1241
        %v1296 = vsel %vm1268, %v1239, %v1240
        %v1297 = vsel %vm1268, %v1238, %v1239
        %v1298 = vsel %vm1268, %v1237, %v1238
        %v1299 = vsel %vm1268, %v1236, %v1237
        %v1300 = vsel %vm1268, %v1235, %v1236
        %v1301 = vsel %vm1268, %v1234, %v1235
        %v1302 = vsel %vm1268, %v1233, %v1234
        %v1303 = vsel %vm1268, %v1232, %v1233
        %v1304 = vsel %vm1268, %v1231, %v1232
        %v1305 = vsel %vm1268, %v1230, %v1231
        %v1306 = vsel %vm1268, %v1229, %v1230
        %v1307 = vsel %vm1268, %v1228, %v1229
        %v1308 = vsel %vm1268, %v1227, %v1228
        %v1309 = vsel %vm1268, %v1226, %v1227
        %v1310 = vsel %vm1268, %v1267, %v1226
        %v1311 = vrot.slane %v1097, 7
        %v1312 = vrot.slane %v1098, 7
        %v1313 = vrot.slane %v1099, 7
        %v1314 = vrot.slane %v1100, 7
        %v1315 = vrot.slane %v1101, 7
        %v1316 = vrot.slane %v1102, 7
        %v1317 = vrot.slane %v1103, 7
        %v1318 = vrot.slane %v1104, 7
        %v1319 = vrot.slane %v1105, 7
        %v1320 = vrot.slane %v1106, 7
        %v1321 = vrot.slane %v1107, 7
        %v1322 = vrot.slane %v1108, 7
        %v1323 = vrot.slane %v1109, 7
        %v1324 = vrot.slane %v1110, 7
        %v1325 = vrot.slane %v1111, 7
        %v1326 = vrot.slane %v1112, 7
        %v1327 = vrot.slane %v1113, 7
        %v1328 = vrot.slane %v1114, 7
        %v1329 = vrot.slane %v1115, 7
        %v1330 = vrot.slane %v1116, 7
        %v1331 = vrot.slane %v1117, 7
        %v1332 = vrot.slane %v1118, 7
        %v1333 = vrot.slane %v1119, 7
        %v1334 = vrot.slane %v1120, 7
        %v1335 = vrot.slane %v1121, 7
        %v1336 = vrot.slane %v1122, 7
        %v1337 = vrot.slane %v1123, 7
        %v1338 = vrot.slane %v1124, 7
        %v1339 = vrot.slane %v1125, 7
        %v1340 = vrot.slane %v1126, 7
        %v1341 = vrot.slane %v1127, 7
        %v1342 = vrot.slane %v1128, 7
        %v1343 = vrot.slane %v1129, 7
        %v1344 = vrot.slane %v1130, 7
        %v1345 = vrot.slane %v1131, 7
        %v1346 = vrot.slane %v1132, 7
        %v1347 = vrot.slane %v1133, 7
        %v1348 = vrot.slane %v1134, 7
        %v1349 = vrot.slane %v1135, 7
        %v1350 = vrot.slane %v1136, 7
        %v1351 = vrot.slane %v1137, 7
        %v1352 = vrot.slane %v1138, 7
        %vm1353 = vcmp.lt.s32.totalorder %v1182, 1
        %v1354 = vsel %vm1353, %v1351, %v1352
        %v1355 = vsel %vm1353, %v1350, %v1351
        %v1356 = vsel %vm1353, %v1349, %v1350
        %v1357 = vsel %vm1353, %v1348, %v1349
        %v1358 = vsel %vm1353, %v1347, %v1348
        %v1359 = vsel %vm1353, %v1346, %v1347
        %v1360 = vsel %vm1353, %v1345, %v1346
        %v1361 = vsel %vm1353, %v1344, %v1345
        %v1362 = vsel %vm1353, %v1343, %v1344
        %v1363 = vsel %vm1353, %v1342, %v1343
        %v1364 = vsel %vm1353, %v1341, %v1342
        %v1365 = vsel %vm1353, %v1340, %v1341
        %v1366 = vsel %vm1353, %v1339, %v1340
        %v1367 = vsel %vm1353, %v1338, %v1339
        %v1368 = vsel %vm1353, %v1337, %v1338
        %v1369 = vsel %vm1353, %v1336, %v1337
        %v1370 = vsel %vm1353, %v1335, %v1336
        %v1371 = vsel %vm1353, %v1334, %v1335
        %v1372 = vsel %vm1353, %v1333, %v1334
        %v1373 = vsel %vm1353, %v1332, %v1333
        %v1374 = vsel %vm1353, %v1331, %v1332
        %v1375 = vsel %vm1353, %v1330, %v1331
        %v1376 = vsel %vm1353, %v1329, %v1330
        %v1377 = vsel %vm1353, %v1328, %v1329
        %v1378 = vsel %vm1353, %v1327, %v1328
        %v1379 = vsel %vm1353, %v1326, %v1327
        %v1380 = vsel %vm1353, %v1325, %v1326
        %v1381 = vsel %vm1353, %v1324, %v1325
        %v1382 = vsel %vm1353, %v1323, %v1324
        %v1383 = vsel %vm1353, %v1322, %v1323
        %v1384 = vsel %vm1353, %v1321, %v1322
        %v1385 = vsel %vm1353, %v1320, %v1321
        %v1386 = vsel %vm1353, %v1319, %v1320
        %v1387 = vsel %vm1353, %v1318, %v1319
        %v1388 = vsel %vm1353, %v1317, %v1318
        %v1389 = vsel %vm1353, %v1316, %v1317
        %v1390 = vsel %vm1353, %v1315, %v1316
        %v1391 = vsel %vm1353, %v1314, %v1315
        %v1392 = vsel %vm1353, %v1313, %v1314
        %v1393 = vsel %vm1353, %v1312, %v1313
        %v1394 = vsel %vm1353, %v1311, %v1312
        %v1395 = vsel %vm1353, %v1352, %v1311
        %v1396 = vrot.slane %v1097, 1
        %v1397 = vrot.slane %v1098, 1
        %v1398 = vrot.slane %v1099, 1
        %v1399 = vrot.slane %v1100, 1
        %v1400 = vrot.slane %v1101, 1
        %v1401 = vrot.slane %v1102, 1
        %v1402 = vrot.slane %v1103, 1
        %v1403 = vrot.slane %v1104, 1
        %v1404 = vrot.slane %v1105, 1
        %v1405 = vrot.slane %v1106, 1
        %v1406 = vrot.slane %v1107, 1
        %v1407 = vrot.slane %v1108, 1
        %v1408 = vrot.slane %v1109, 1
        %v1409 = vrot.slane %v1110, 1
        %v1410 = vrot.slane %v1111, 1
        %v1411 = vrot.slane %v1112, 1
        %v1412 = vrot.slane %v1113, 1
        %v1413 = vrot.slane %v1114, 1
        %v1414 = vrot.slane %v1115, 1
        %v1415 = vrot.slane %v1116, 1
        %v1416 = vrot.slane %v1117, 1
        %v1417 = vrot.slane %v1118, 1
        %v1418 = vrot.slane %v1119, 1
        %v1419 = vrot.slane %v1120, 1
        %v1420 = vrot.slane %v1121, 1
        %v1421 = vrot.slane %v1122, 1
        %v1422 = vrot.slane %v1123, 1
        %v1423 = vrot.slane %v1124, 1
        %v1424 = vrot.slane %v1125, 1
        %v1425 = vrot.slane %v1126, 1
        %v1426 = vrot.slane %v1127, 1
        %v1427 = vrot.slane %v1128, 1
        %v1428 = vrot.slane %v1129, 1
        %v1429 = vrot.slane %v1130, 1
        %v1430 = vrot.slane %v1131, 1
        %v1431 = vrot.slane %v1132, 1
        %v1432 = vrot.slane %v1133, 1
        %v1433 = vrot.slane %v1134, 1
        %v1434 = vrot.slane %v1135, 1
        %v1435 = vrot.slane %v1136, 1
        %v1436 = vrot.slane %v1137, 1
        %v1437 = vrot.slane %v1138, 1
        %vm1438 = vcmp.lt.s32.totalorder %v1182, 7
        %v1439 = vsel %vm1438, %v1436, %v1437
        %v1440 = vsel %vm1438, %v1435, %v1436
        %v1441 = vsel %vm1438, %v1434, %v1435
        %v1442 = vsel %vm1438, %v1433, %v1434
        %v1443 = vsel %vm1438, %v1432, %v1433
        %v1444 = vsel %vm1438, %v1431, %v1432
        %v1445 = vsel %vm1438, %v1430, %v1431
        %v1446 = vsel %vm1438, %v1429, %v1430
        %v1447 = vsel %vm1438, %v1428, %v1429
        %v1448 = vsel %vm1438, %v1427, %v1428
        %v1449 = vsel %vm1438, %v1426, %v1427
        %v1450 = vsel %vm1438, %v1425, %v1426
        %v1451 = vsel %vm1438, %v1424, %v1425
        %v1452 = vsel %vm1438, %v1423, %v1424
        %v1453 = vsel %vm1438, %v1422, %v1423
        %v1454 = vsel %vm1438, %v1421, %v1422
        %v1455 = vsel %vm1438, %v1420, %v1421
        %v1456 = vsel %vm1438, %v1419, %v1420
        %v1457 = vsel %vm1438, %v1418, %v1419
        %v1458 = vsel %vm1438, %v1417, %v1418
        %v1459 = vsel %vm1438, %v1416, %v1417
        %v1460 = vsel %vm1438, %v1415, %v1416
        %v1461 = vsel %vm1438, %v1414, %v1415
        %v1462 = vsel %vm1438, %v1413, %v1414
        %v1463 = vsel %vm1438, %v1412, %v1413
        %v1464 = vsel %vm1438, %v1411, %v1412
        %v1465 = vsel %vm1438, %v1410, %v1411
        %v1466 = vsel %vm1438, %v1409, %v1410
        %v1467 = vsel %vm1438, %v1408, %v1409
        %v1468 = vsel %vm1438, %v1407, %v1408
        %v1469 = vsel %vm1438, %v1406, %v1407
        %v1470 = vsel %vm1438, %v1405, %v1406
        %v1471 = vsel %vm1438, %v1404, %v1405
        %v1472 = vsel %vm1438, %v1403, %v1404
        %v1473 = vsel %vm1438, %v1402, %v1403
        %v1474 = vsel %vm1438, %v1401, %v1402
        %v1475 = vsel %vm1438, %v1400, %v1401
        %v1476 = vsel %vm1438, %v1399, %v1400
        %v1477 = vsel %vm1438, %v1398, %v1399
        %v1478 = vsel %vm1438, %v1397, %v1398
        %v1479 = vsel %vm1438, %v1396, %v1397
        %v1480 = vsel %vm1438, %v1437, %v1396
        %v1481 = vrot.slane %v1097, 2
        %v1482 = vrot.slane %v1098, 2
        %v1483 = vrot.slane %v1099, 2
        %v1484 = vrot.slane %v1100, 2
        %v1485 = vrot.slane %v1101, 2
        %v1486 = vrot.slane %v1102, 2
        %v1487 = vrot.slane %v1103, 2
        %v1488 = vrot.slane %v1104, 2
        %v1489 = vrot.slane %v1105, 2
        %v1490 = vrot.slane %v1106, 2
        %v1491 = vrot.slane %v1107, 2
        %v1492 = vrot.slane %v1108, 2
        %v1493 = vrot.slane %v1109, 2
        %v1494 = vrot.slane %v1110, 2
        %v1495 = vrot.slane %v1111, 2
        %v1496 = vrot.slane %v1112, 2
        %v1497 = vrot.slane %v1113, 2
        %v1498 = vrot.slane %v1114, 2
        %v1499 = vrot.slane %v1115, 2
        %v1500 = vrot.slane %v1116, 2
        %v1501 = vrot.slane %v1117, 2
        %v1502 = vrot.slane %v1118, 2
        %v1503 = vrot.slane %v1119, 2
        %v1504 = vrot.slane %v1120, 2
        %v1505 = vrot.slane %v1121, 2
        %v1506 = vrot.slane %v1122, 2
        %v1507 = vrot.slane %v1123, 2
        %v1508 = vrot.slane %v1124, 2
        %v1509 = vrot.slane %v1125, 2
        %v1510 = vrot.slane %v1126, 2
        %v1511 = vrot.slane %v1127, 2
        %v1512 = vrot.slane %v1128, 2
        %v1513 = vrot.slane %v1129, 2
        %v1514 = vrot.slane %v1130, 2
        %v1515 = vrot.slane %v1131, 2
        %v1516 = vrot.slane %v1132, 2
        %v1517 = vrot.slane %v1133, 2
        %v1518 = vrot.slane %v1134, 2
        %v1519 = vrot.slane %v1135, 2
        %v1520 = vrot.slane %v1136, 2
        %v1521 = vrot.slane %v1137, 2
        %v1522 = vrot.slane %v1138, 2
        %vm1523 = vcmp.lt.s32.totalorder %v1182, 6
        %v1524 = vsel %vm1523, %v1521, %v1522
        %v1525 = vsel %vm1523, %v1520, %v1521
        %v1526 = vsel %vm1523, %v1519, %v1520
        %v1527 = vsel %vm1523, %v1518, %v1519
        %v1528 = vsel %vm1523, %v1517, %v1518
        %v1529 = vsel %vm1523, %v1516, %v1517
        %v1530 = vsel %vm1523, %v1515, %v1516
        %v1531 = vsel %vm1523, %v1514, %v1515
        %v1532 = vsel %vm1523, %v1513, %v1514
        %v1533 = vsel %vm1523, %v1512, %v1513
        %v1534 = vsel %vm1523, %v1511, %v1512
        %v1535 = vsel %vm1523, %v1510, %v1511
        %v1536 = vsel %vm1523, %v1509, %v1510
        %v1537 = vsel %vm1523, %v1508, %v1509
        %v1538 = vsel %vm1523, %v1507, %v1508
        %v1539 = vsel %vm1523, %v1506, %v1507
        %v1540 = vsel %vm1523, %v1505, %v1506
        %v1541 = vsel %vm1523, %v1504, %v1505
        %v1542 = vsel %vm1523, %v1503, %v1504
        %v1543 = vsel %vm1523, %v1502, %v1503
        %v1544 = vsel %vm1523, %v1501, %v1502
        %v1545 = vsel %vm1523, %v1500, %v1501
        %v1546 = vsel %vm1523, %v1499, %v1500
        %v1547 = vsel %vm1523, %v1498, %v1499
        %v1548 = vsel %vm1523, %v1497, %v1498
        %v1549 = vsel %vm1523, %v1496, %v1497
        %v1550 = vsel %vm1523, %v1495, %v1496
        %v1551 = vsel %vm1523, %v1494, %v1495
        %v1552 = vsel %vm1523, %v1493, %v1494
        %v1553 = vsel %vm1523, %v1492, %v1493
        %v1554 = vsel %vm1523, %v1491, %v1492
        %v1555 = vsel %vm1523, %v1490, %v1491
        %v1556 = vsel %vm1523, %v1489, %v1490
        %v1557 = vsel %vm1523, %v1488, %v1489
        %v1558 = vsel %vm1523, %v1487, %v1488
        %v1559 = vsel %vm1523, %v1486, %v1487
        %v1560 = vsel %vm1523, %v1485, %v1486
        %v1561 = vsel %vm1523, %v1484, %v1485
        %v1562 = vsel %vm1523, %v1483, %v1484
        %v1563 = vsel %vm1523, %v1482, %v1483
        %v1564 = vsel %vm1523, %v1481, %v1482
        %v1565 = vsel %vm1523, %v1522, %v1481
        %v1566 = vrot.slane %v1097, 3
        %v1567 = vrot.slane %v1098, 3
        %v1568 = vrot.slane %v1099, 3
        %v1569 = vrot.slane %v1100, 3
        %v1570 = vrot.slane %v1101, 3
        %v1571 = vrot.slane %v1102, 3
        %v1572 = vrot.slane %v1103, 3
        %v1573 = vrot.slane %v1104, 3
        %v1574 = vrot.slane %v1105, 3
        %v1575 = vrot.slane %v1106, 3
        %v1576 = vrot.slane %v1107, 3
        %v1577 = vrot.slane %v1108, 3
        %v1578 = vrot.slane %v1109, 3
        %v1579 = vrot.slane %v1110, 3
        %v1580 = vrot.slane %v1111, 3
        %v1581 = vrot.slane %v1112, 3
        %v1582 = vrot.slane %v1113, 3
        %v1583 = vrot.slane %v1114, 3
        %v1584 = vrot.slane %v1115, 3
        %v1585 = vrot.slane %v1116, 3
        %v1586 = vrot.slane %v1117, 3
        %v1587 = vrot.slane %v1118, 3
        %v1588 = vrot.slane %v1119, 3
        %v1589 = vrot.slane %v1120, 3
        %v1590 = vrot.slane %v1121, 3
        %v1591 = vrot.slane %v1122, 3
        %v1592 = vrot.slane %v1123, 3
        %v1593 = vrot.slane %v1124, 3
        %v1594 = vrot.slane %v1125, 3
        %v1595 = vrot.slane %v1126, 3
        %v1596 = vrot.slane %v1127, 3
        %v1597 = vrot.slane %v1128, 3
        %v1598 = vrot.slane %v1129, 3
        %v1599 = vrot.slane %v1130, 3
        %v1600 = vrot.slane %v1131, 3
        %v1601 = vrot.slane %v1132, 3
        %v1602 = vrot.slane %v1133, 3
        %v1603 = vrot.slane %v1134, 3
        %v1604 = vrot.slane %v1135, 3
        %v1605 = vrot.slane %v1136, 3
        %v1606 = vrot.slane %v1137, 3
        %v1607 = vrot.slane %v1138, 3
        %vm1608 = vcmp.lt.s32.totalorder %v1182, 5
        %v1609 = vsel %vm1608, %v1606, %v1607
        %v1610 = vsel %vm1608, %v1605, %v1606
        %v1611 = vsel %vm1608, %v1604, %v1605
        %v1612 = vsel %vm1608, %v1603, %v1604
        %v1613 = vsel %vm1608, %v1602, %v1603
        %v1614 = vsel %vm1608, %v1601, %v1602
        %v1615 = vsel %vm1608, %v1600, %v1601
        %v1616 = vsel %vm1608, %v1599, %v1600
        %v1617 = vsel %vm1608, %v1598, %v1599
        %v1618 = vsel %vm1608, %v1597, %v1598
        %v1619 = vsel %vm1608, %v1596, %v1597
        %v1620 = vsel %vm1608, %v1595, %v1596
        %v1621 = vsel %vm1608, %v1594, %v1595
        %v1622 = vsel %vm1608, %v1593, %v1594
        %v1623 = vsel %vm1608, %v1592, %v1593
        %v1624 = vsel %vm1608, %v1591, %v1592
        %v1625 = vsel %vm1608, %v1590, %v1591
        %v1626 = vsel %vm1608, %v1589, %v1590
        %v1627 = vsel %vm1608, %v1588, %v1589
        %v1628 = vsel %vm1608, %v1587, %v1588
        %v1629 = vsel %vm1608, %v1586, %v1587
        %v1630 = vsel %vm1608, %v1585, %v1586
        %v1631 = vsel %vm1608, %v1584, %v1585
        %v1632 = vsel %vm1608, %v1583, %v1584
        %v1633 = vsel %vm1608, %v1582, %v1583
        %v1634 = vsel %vm1608, %v1581, %v1582
        %v1635 = vsel %vm1608, %v1580, %v1581
        %v1636 = vsel %vm1608, %v1579, %v1580
        %v1637 = vsel %vm1608, %v1578, %v1579
        %v1638 = vsel %vm1608, %v1577, %v1578
        %v1639 = vsel %vm1608, %v1576, %v1577
        %v1640 = vsel %vm1608, %v1575, %v1576
        %v1641 = vsel %vm1608, %v1574, %v1575
        %v1642 = vsel %vm1608, %v1573, %v1574
        %v1643 = vsel %vm1608, %v1572, %v1573
        %v1644 = vsel %vm1608, %v1571, %v1572
        %v1645 = vsel %vm1608, %v1570, %v1571
        %v1646 = vsel %vm1608, %v1569, %v1570
        %v1647 = vsel %vm1608, %v1568, %v1569
        %v1648 = vsel %vm1608, %v1567, %v1568
        %v1649 = vsel %vm1608, %v1566, %v1567
        %v1650 = vsel %vm1608, %v1607, %v1566
        %1693 = vrot.lane.b32.xlu0 %v1270, 64
        %v1694 = vpop.permute.xlu0 %1693
        %1695 = vrot.lane.b32.xlu0 %v1269, 64
        %v1696 = vpop.permute.xlu0 %1695
        %1697 = vrot.lane.b32.xlu0 %v1310, 64
        %v1698 = vpop.permute.xlu0 %1697
        %1699 = vrot.lane.b32.xlu0 %v1309, 64
        %v1700 = vpop.permute.xlu0 %1699
        %1701 = vrot.lane.b32.xlu0 %v1308, 64
        %v1702 = vpop.permute.xlu0 %1701
        %1703 = vrot.lane.b32.xlu0 %v1307, 64
        %v1704 = vpop.permute.xlu0 %1703
        %1705 = vrot.lane.b32.xlu0 %v1306, 64
        %v1706 = vpop.permute.xlu0 %1705
        %1707 = vrot.lane.b32.xlu0 %v1305, 64
        %v1708 = vpop.permute.xlu0 %1707
        %1709 = vrot.lane.b32.xlu0 %v1304, 64
        %v1710 = vpop.permute.xlu0 %1709
        %1711 = vrot.lane.b32.xlu0 %v1303, 64
        %v1712 = vpop.permute.xlu0 %1711
        %1713 = vrot.lane.b32.xlu0 %v1302, 64
        %v1714 = vpop.permute.xlu0 %1713
        %1715 = vrot.lane.b32.xlu0 %v1301, 64
        %v1716 = vpop.permute.xlu0 %1715
        %1717 = vrot.lane.b32.xlu0 %v1300, 64
        %v1718 = vpop.permute.xlu0 %1717
        %1719 = vrot.lane.b32.xlu0 %v1299, 64
        %v1720 = vpop.permute.xlu0 %1719
        %1721 = vrot.lane.b32.xlu0 %v1298, 64
        %v1722 = vpop.permute.xlu0 %1721
        %1723 = vrot.lane.b32.xlu0 %v1297, 64
        %v1724 = vpop.permute.xlu0 %1723
        %1725 = vrot.lane.b32.xlu0 %v1296, 64
        %v1726 = vpop.permute.xlu0 %1725
        %1727 = vrot.lane.b32.xlu0 %v1295, 64
        %v1728 = vpop.permute.xlu0 %1727
        %1729 = vrot.lane.b32.xlu0 %v1294, 64
        %v1730 = vpop.permute.xlu0 %1729
        %1731 = vrot.lane.b32.xlu0 %v1293, 64
        %v1732 = vpop.permute.xlu0 %1731
        %1733 = vrot.lane.b32.xlu0 %v1292, 64
        %v1734 = vpop.permute.xlu0 %1733
        %1735 = vrot.lane.b32.xlu0 %v1291, 64
        %v1736 = vpop.permute.xlu0 %1735
        %1737 = vrot.lane.b32.xlu0 %v1290, 64
        %v1738 = vpop.permute.xlu0 %1737
        %1739 = vrot.lane.b32.xlu0 %v1289, 64
        %v1740 = vpop.permute.xlu0 %1739
        %1741 = vrot.lane.b32.xlu0 %v1288, 64
        %v1742 = vpop.permute.xlu0 %1741
        %1743 = vrot.lane.b32.xlu0 %v1287, 64
        %v1744 = vpop.permute.xlu0 %1743
        %1745 = vrot.lane.b32.xlu0 %v1286, 64
        %v1746 = vpop.permute.xlu0 %1745
        %1747 = vrot.lane.b32.xlu0 %v1285, 64
        %v1748 = vpop.permute.xlu0 %1747
        %1749 = vrot.lane.b32.xlu0 %v1284, 64
        %v1750 = vpop.permute.xlu0 %1749
        %1751 = vrot.lane.b32.xlu0 %v1283, 64
        %v1752 = vpop.permute.xlu0 %1751
        %1753 = vrot.lane.b32.xlu0 %v1282, 64
        %v1754 = vpop.permute.xlu0 %1753
        %1755 = vrot.lane.b32.xlu0 %v1281, 64
        %v1756 = vpop.permute.xlu0 %1755
        %1757 = vrot.lane.b32.xlu0 %v1280, 64
        %v1758 = vpop.permute.xlu0 %1757
        %1759 = vrot.lane.b32.xlu0 %v1279, 64
        %v1760 = vpop.permute.xlu0 %1759
        %1761 = vrot.lane.b32.xlu0 %v1278, 64
        %v1762 = vpop.permute.xlu0 %1761
        %1763 = vrot.lane.b32.xlu0 %v1277, 64
        %v1764 = vpop.permute.xlu0 %1763
        %1765 = vrot.lane.b32.xlu0 %v1276, 64
        %v1766 = vpop.permute.xlu0 %1765
        %1767 = vrot.lane.b32.xlu0 %v1275, 64
        %v1768 = vpop.permute.xlu0 %1767
        %1769 = vrot.lane.b32.xlu0 %v1274, 64
        %v1770 = vpop.permute.xlu0 %1769
        %1771 = vrot.lane.b32.xlu0 %v1273, 64
        %v1772 = vpop.permute.xlu0 %1771
        %1773 = vrot.lane.b32.xlu0 %v1272, 64
        %v1774 = vpop.permute.xlu0 %1773
        %1775 = vrot.lane.b32.xlu0 %v1271, 64
        %v1776 = vpop.permute.xlu0 %1775
        %1861 = vrot.lane.b32.xlu0 %v1395, 64
        %v1862 = vpop.permute.xlu0 %1861
        %1863 = vrot.lane.b32.xlu0 %v1394, 64
        %v1864 = vpop.permute.xlu0 %1863
        %1865 = vrot.lane.b32.xlu0 %v1393, 64
        %v1866 = vpop.permute.xlu0 %1865
        %1867 = vrot.lane.b32.xlu0 %v1392, 64
        %v1868 = vpop.permute.xlu0 %1867
        %1869 = vrot.lane.b32.xlu0 %v1391, 64
        %v1870 = vpop.permute.xlu0 %1869
        %1871 = vrot.lane.b32.xlu0 %v1390, 64
        %v1872 = vpop.permute.xlu0 %1871
        %1873 = vrot.lane.b32.xlu0 %v1389, 64
        %v1874 = vpop.permute.xlu0 %1873
        %1875 = vrot.lane.b32.xlu0 %v1388, 64
        %v1876 = vpop.permute.xlu0 %1875
        %1877 = vrot.lane.b32.xlu0 %v1387, 64
        %v1878 = vpop.permute.xlu0 %1877
        %1879 = vrot.lane.b32.xlu0 %v1386, 64
        %v1880 = vpop.permute.xlu0 %1879
        %1881 = vrot.lane.b32.xlu0 %v1385, 64
        %v1882 = vpop.permute.xlu0 %1881
        %1883 = vrot.lane.b32.xlu0 %v1384, 64
        %v1884 = vpop.permute.xlu0 %1883
        %1885 = vrot.lane.b32.xlu0 %v1383, 64
        %v1886 = vpop.permute.xlu0 %1885
        %1887 = vrot.lane.b32.xlu0 %v1382, 64
        %v1888 = vpop.permute.xlu0 %1887
        %1889 = vrot.lane.b32.xlu0 %v1381, 64
        %v1890 = vpop.permute.xlu0 %1889
        %1891 = vrot.lane.b32.xlu0 %v1380, 64
        %v1892 = vpop.permute.xlu0 %1891
        %1893 = vrot.lane.b32.xlu0 %v1379, 64
        %v1894 = vpop.permute.xlu0 %1893
        %1895 = vrot.lane.b32.xlu0 %v1378, 64
        %v1896 = vpop.permute.xlu0 %1895
        %1897 = vrot.lane.b32.xlu0 %v1377, 64
        %v1898 = vpop.permute.xlu0 %1897
        %1899 = vrot.lane.b32.xlu0 %v1376, 64
        %v1900 = vpop.permute.xlu0 %1899
        %1901 = vrot.lane.b32.xlu0 %v1375, 64
        %v1902 = vpop.permute.xlu0 %1901
        %1903 = vrot.lane.b32.xlu0 %v1374, 64
        %v1904 = vpop.permute.xlu0 %1903
        %1905 = vrot.lane.b32.xlu0 %v1373, 64
        %v1906 = vpop.permute.xlu0 %1905
        %1907 = vrot.lane.b32.xlu0 %v1372, 64
        %v1908 = vpop.permute.xlu0 %1907
        %1909 = vrot.lane.b32.xlu0 %v1371, 64
        %v1910 = vpop.permute.xlu0 %1909
        %1911 = vrot.lane.b32.xlu0 %v1370, 64
        %v1912 = vpop.permute.xlu0 %1911
        %1913 = vrot.lane.b32.xlu0 %v1369, 64
        %v1914 = vpop.permute.xlu0 %1913
        %1915 = vrot.lane.b32.xlu0 %v1368, 64
        %v1916 = vpop.permute.xlu0 %1915
        %1917 = vrot.lane.b32.xlu0 %v1367, 64
        %v1918 = vpop.permute.xlu0 %1917
        %1919 = vrot.lane.b32.xlu0 %v1366, 64
        %v1920 = vpop.permute.xlu0 %1919
        %1921 = vrot.lane.b32.xlu0 %v1365, 64
        %v1922 = vpop.permute.xlu0 %1921
        %1923 = vrot.lane.b32.xlu0 %v1364, 64
        %v1924 = vpop.permute.xlu0 %1923
        %1925 = vrot.lane.b32.xlu0 %v1363, 64
        %v1926 = vpop.permute.xlu0 %1925
        %1927 = vrot.lane.b32.xlu0 %v1362, 64
        %v1928 = vpop.permute.xlu0 %1927
        %1929 = vrot.lane.b32.xlu0 %v1361, 64
        %v1930 = vpop.permute.xlu0 %1929
        %1931 = vrot.lane.b32.xlu0 %v1360, 64
        %v1932 = vpop.permute.xlu0 %1931
        %1933 = vrot.lane.b32.xlu0 %v1359, 64
        %v1934 = vpop.permute.xlu0 %1933
        %1935 = vrot.lane.b32.xlu0 %v1358, 64
        %v1936 = vpop.permute.xlu0 %1935
        %1937 = vrot.lane.b32.xlu0 %v1357, 64
        %v1938 = vpop.permute.xlu0 %1937
        %1939 = vrot.lane.b32.xlu0 %v1356, 64
        %v1940 = vpop.permute.xlu0 %1939
        %1941 = vrot.lane.b32.xlu0 %v1355, 64
        %v1942 = vpop.permute.xlu0 %1941
        %1943 = vrot.lane.b32.xlu0 %v1354, 64
        %v1944 = vpop.permute.xlu0 %1943
        %2029 = vrot.lane.b32.xlu0 %v1479, 64
        %v2030 = vpop.permute.xlu0 %2029
        %2031 = vrot.lane.b32.xlu0 %v1478, 64
        %v2032 = vpop.permute.xlu0 %2031
        %2033 = vrot.lane.b32.xlu0 %v1477, 64
        %v2034 = vpop.permute.xlu0 %2033
        %2035 = vrot.lane.b32.xlu0 %v1476, 64
        %v2036 = vpop.permute.xlu0 %2035
        %2037 = vrot.lane.b32.xlu0 %v1475, 64
        %v2038 = vpop.permute.xlu0 %2037
        %2039 = vrot.lane.b32.xlu0 %v1474, 64
        %v2040 = vpop.permute.xlu0 %2039
        %2041 = vrot.lane.b32.xlu0 %v1473, 64
        %v2042 = vpop.permute.xlu0 %2041
        %2043 = vrot.lane.b32.xlu0 %v1472, 64
        %v2044 = vpop.permute.xlu0 %2043
        %2045 = vrot.lane.b32.xlu0 %v1471, 64
        %v2046 = vpop.permute.xlu0 %2045
        %2047 = vrot.lane.b32.xlu0 %v1470, 64
        %v2048 = vpop.permute.xlu0 %2047
        %2049 = vrot.lane.b32.xlu0 %v1469, 64
        %v2050 = vpop.permute.xlu0 %2049
        %2051 = vrot.lane.b32.xlu0 %v1468, 64
        %v2052 = vpop.permute.xlu0 %2051
        %2053 = vrot.lane.b32.xlu0 %v1467, 64
        %v2054 = vpop.permute.xlu0 %2053
        %2055 = vrot.lane.b32.xlu0 %v1466, 64
        %v2056 = vpop.permute.xlu0 %2055
        %2057 = vrot.lane.b32.xlu0 %v1465, 64
        %v2058 = vpop.permute.xlu0 %2057
        %2059 = vrot.lane.b32.xlu0 %v1464, 64
        %v2060 = vpop.permute.xlu0 %2059
        %2061 = vrot.lane.b32.xlu0 %v1463, 64
        %v2062 = vpop.permute.xlu0 %2061
        %2063 = vrot.lane.b32.xlu0 %v1462, 64
        %v2064 = vpop.permute.xlu0 %2063
        %2065 = vrot.lane.b32.xlu0 %v1461, 64
        %v2066 = vpop.permute.xlu0 %2065
        %2067 = vrot.lane.b32.xlu0 %v1460, 64
        %v2068 = vpop.permute.xlu0 %2067
        %2069 = vrot.lane.b32.xlu0 %v1459, 64
        %v2070 = vpop.permute.xlu0 %2069
        %2071 = vrot.lane.b32.xlu0 %v1458, 64
        %v2072 = vpop.permute.xlu0 %2071
        %2073 = vrot.lane.b32.xlu0 %v1457, 64
        %v2074 = vpop.permute.xlu0 %2073
        %2075 = vrot.lane.b32.xlu0 %v1456, 64
        %v2076 = vpop.permute.xlu0 %2075
        %2077 = vrot.lane.b32.xlu0 %v1455, 64
        %v2078 = vpop.permute.xlu0 %2077
        %2079 = vrot.lane.b32.xlu0 %v1454, 64
        %v2080 = vpop.permute.xlu0 %2079
        %2081 = vrot.lane.b32.xlu0 %v1453, 64
        %v2082 = vpop.permute.xlu0 %2081
        %2083 = vrot.lane.b32.xlu0 %v1452, 64
        %v2084 = vpop.permute.xlu0 %2083
        %2085 = vrot.lane.b32.xlu0 %v1451, 64
        %v2086 = vpop.permute.xlu0 %2085
        %2087 = vrot.lane.b32.xlu0 %v1450, 64
        %v2088 = vpop.permute.xlu0 %2087
        %2089 = vrot.lane.b32.xlu0 %v1449, 64
        %v2090 = vpop.permute.xlu0 %2089
        %2091 = vrot.lane.b32.xlu0 %v1448, 64
        %v2092 = vpop.permute.xlu0 %2091
        %2093 = vrot.lane.b32.xlu0 %v1447, 64
        %v2094 = vpop.permute.xlu0 %2093
        %2095 = vrot.lane.b32.xlu0 %v1446, 64
        %v2096 = vpop.permute.xlu0 %2095
        %2097 = vrot.lane.b32.xlu0 %v1445, 64
        %v2098 = vpop.permute.xlu0 %2097
        %2099 = vrot.lane.b32.xlu0 %v1444, 64
        %v2100 = vpop.permute.xlu0 %2099
        %2101 = vrot.lane.b32.xlu0 %v1443, 64
        %v2102 = vpop.permute.xlu0 %2101
        %2103 = vrot.lane.b32.xlu0 %v1442, 64
        %v2104 = vpop.permute.xlu0 %2103
        %2105 = vrot.lane.b32.xlu0 %v1441, 64
        %v2106 = vpop.permute.xlu0 %2105
        %2107 = vrot.lane.b32.xlu0 %v1440, 64
        %v2108 = vpop.permute.xlu0 %2107
        %2109 = vrot.lane.b32.xlu0 %v1439, 64
        %v2110 = vpop.permute.xlu0 %2109
        %2111 = vrot.lane.b32.xlu0 %v1480, 64
        %v2112 = vpop.permute.xlu0 %2111
        %2197 = vrot.lane.b32.xlu0 %v1562, 64
        %v2198 = vpop.permute.xlu0 %2197
        %2199 = vrot.lane.b32.xlu0 %v1561, 64
        %v2200 = vpop.permute.xlu0 %2199
        %2201 = vrot.lane.b32.xlu0 %v1560, 64
        %v2202 = vpop.permute.xlu0 %2201
        %2203 = vrot.lane.b32.xlu0 %v1559, 64
        %v2204 = vpop.permute.xlu0 %2203
        %2205 = vrot.lane.b32.xlu0 %v1558, 64
        %v2206 = vpop.permute.xlu0 %2205
        %2207 = vrot.lane.b32.xlu0 %v1557, 64
        %v2208 = vpop.permute.xlu0 %2207
        %2209 = vrot.lane.b32.xlu0 %v1556, 64
        %v2210 = vpop.permute.xlu0 %2209
        %2211 = vrot.lane.b32.xlu0 %v1555, 64
        %v2212 = vpop.permute.xlu0 %2211
        %2213 = vrot.lane.b32.xlu0 %v1554, 64
        %v2214 = vpop.permute.xlu0 %2213
        %2215 = vrot.lane.b32.xlu0 %v1553, 64
        %v2216 = vpop.permute.xlu0 %2215
        %2217 = vrot.lane.b32.xlu0 %v1552, 64
        %v2218 = vpop.permute.xlu0 %2217
        %2219 = vrot.lane.b32.xlu0 %v1551, 64
        %v2220 = vpop.permute.xlu0 %2219
        %2221 = vrot.lane.b32.xlu0 %v1550, 64
        %v2222 = vpop.permute.xlu0 %2221
        %2223 = vrot.lane.b32.xlu0 %v1549, 64
        %v2224 = vpop.permute.xlu0 %2223
        %2225 = vrot.lane.b32.xlu0 %v1548, 64
        %v2226 = vpop.permute.xlu0 %2225
        %2227 = vrot.lane.b32.xlu0 %v1547, 64
        %v2228 = vpop.permute.xlu0 %2227
        %2229 = vrot.lane.b32.xlu0 %v1546, 64
        %v2230 = vpop.permute.xlu0 %2229
        %2231 = vrot.lane.b32.xlu0 %v1545, 64
        %v2232 = vpop.permute.xlu0 %2231
        %2233 = vrot.lane.b32.xlu0 %v1544, 64
        %v2234 = vpop.permute.xlu0 %2233
        %2235 = vrot.lane.b32.xlu0 %v1543, 64
        %v2236 = vpop.permute.xlu0 %2235
        %2237 = vrot.lane.b32.xlu0 %v1542, 64
        %v2238 = vpop.permute.xlu0 %2237
        %2239 = vrot.lane.b32.xlu0 %v1541, 64
        %v2240 = vpop.permute.xlu0 %2239
        %2241 = vrot.lane.b32.xlu0 %v1540, 64
        %v2242 = vpop.permute.xlu0 %2241
        %2243 = vrot.lane.b32.xlu0 %v1539, 64
        %v2244 = vpop.permute.xlu0 %2243
        %2245 = vrot.lane.b32.xlu0 %v1538, 64
        %v2246 = vpop.permute.xlu0 %2245
        %2247 = vrot.lane.b32.xlu0 %v1537, 64
        %v2248 = vpop.permute.xlu0 %2247
        %2249 = vrot.lane.b32.xlu0 %v1536, 64
        %v2250 = vpop.permute.xlu0 %2249
        %2251 = vrot.lane.b32.xlu0 %v1535, 64
        %v2252 = vpop.permute.xlu0 %2251
        %2253 = vrot.lane.b32.xlu0 %v1534, 64
        %v2254 = vpop.permute.xlu0 %2253
        %2255 = vrot.lane.b32.xlu0 %v1533, 64
        %v2256 = vpop.permute.xlu0 %2255
        %2257 = vrot.lane.b32.xlu0 %v1532, 64
        %v2258 = vpop.permute.xlu0 %2257
        %2259 = vrot.lane.b32.xlu0 %v1531, 64
        %v2260 = vpop.permute.xlu0 %2259
        %2261 = vrot.lane.b32.xlu0 %v1530, 64
        %v2262 = vpop.permute.xlu0 %2261
        %2263 = vrot.lane.b32.xlu0 %v1529, 64
        %v2264 = vpop.permute.xlu0 %2263
        %2265 = vrot.lane.b32.xlu0 %v1528, 64
        %v2266 = vpop.permute.xlu0 %2265
        %2267 = vrot.lane.b32.xlu0 %v1527, 64
        %v2268 = vpop.permute.xlu0 %2267
        %2269 = vrot.lane.b32.xlu0 %v1526, 64
        %v2270 = vpop.permute.xlu0 %2269
        %2271 = vrot.lane.b32.xlu0 %v1525, 64
        %v2272 = vpop.permute.xlu0 %2271
        %2273 = vrot.lane.b32.xlu0 %v1524, 64
        %v2274 = vpop.permute.xlu0 %2273
        %2275 = vrot.lane.b32.xlu0 %v1565, 64
        %v2276 = vpop.permute.xlu0 %2275
        %2277 = vrot.lane.b32.xlu0 %v1564, 64
        %v2278 = vpop.permute.xlu0 %2277
        %2279 = vrot.lane.b32.xlu0 %v1563, 64
        %v2280 = vpop.permute.xlu0 %2279
        %vm2323 = vcmask 523264
        %v2324 = vsel %vm2323, %v1185, %v1694
        %v2325 = vsel %vm2323, %v1184, %v1696
        %v2326 = vsel %vm2323, %v1225, %v1698
        %v2327 = vsel %vm2323, %v1224, %v1700
        %v2328 = vsel %vm2323, %v1223, %v1702
        %v2329 = vsel %vm2323, %v1222, %v1704
        %v2330 = vsel %vm2323, %v1221, %v1706
        %v2331 = vsel %vm2323, %v1220, %v1708
        %v2332 = vsel %vm2323, %v1219, %v1710
        %v2333 = vsel %vm2323, %v1218, %v1712
        %v2334 = vsel %vm2323, %v1217, %v1714
        %v2335 = vsel %vm2323, %v1216, %v1716
        %v2336 = vsel %vm2323, %v1215, %v1718
        %v2337 = vsel %vm2323, %v1214, %v1720
        %v2338 = vsel %vm2323, %v1213, %v1722
        %v2339 = vsel %vm2323, %v1212, %v1724
        %v2340 = vsel %vm2323, %v1211, %v1726
        %v2341 = vsel %vm2323, %v1210, %v1728
        %v2342 = vsel %vm2323, %v1209, %v1730
        %v2343 = vsel %vm2323, %v1208, %v1732
        %v2344 = vsel %vm2323, %v1207, %v1734
        %v2345 = vsel %vm2323, %v1206, %v1736
        %v2346 = vsel %vm2323, %v1205, %v1738
        %v2347 = vsel %vm2323, %v1204, %v1740
        %v2348 = vsel %vm2323, %v1203, %v1742
        %v2349 = vsel %vm2323, %v1202, %v1744
        %v2350 = vsel %vm2323, %v1201, %v1746
        %v2351 = vsel %vm2323, %v1200, %v1748
        %v2352 = vsel %vm2323, %v1199, %v1750
        %v2353 = vsel %vm2323, %v1198, %v1752
        %v2354 = vsel %vm2323, %v1197, %v1754
        %v2355 = vsel %vm2323, %v1196, %v1756
        %v2356 = vsel %vm2323, %v1195, %v1758
        %v2357 = vsel %vm2323, %v1194, %v1760
        %v2358 = vsel %vm2323, %v1193, %v1762
        %v2359 = vsel %vm2323, %v1192, %v1764
        %v2360 = vsel %vm2323, %v1191, %v1766
        %v2361 = vsel %vm2323, %v1190, %v1768
        %v2362 = vsel %vm2323, %v1189, %v1770
        %v2363 = vsel %vm2323, %v1188, %v1772
        %v2364 = vsel %vm2323, %v1187, %v1774
        %v2365 = vsel %vm2323, %v1186, %v1776
        %v2366 = vsel %vm2323, %v1355, %v1862
        %v2367 = vsel %vm2323, %v1354, %v1864
        %v2368 = vsel %vm2323, %v1395, %v1866
        %v2369 = vsel %vm2323, %v1394, %v1868
        %v2370 = vsel %vm2323, %v1393, %v1870
        %v2371 = vsel %vm2323, %v1392, %v1872
        %v2372 = vsel %vm2323, %v1391, %v1874
        %v2373 = vsel %vm2323, %v1390, %v1876
        %v2374 = vsel %vm2323, %v1389, %v1878
        %v2375 = vsel %vm2323, %v1388, %v1880
        %v2376 = vsel %vm2323, %v1387, %v1882
        %v2377 = vsel %vm2323, %v1386, %v1884
        %v2378 = vsel %vm2323, %v1385, %v1886
        %v2379 = vsel %vm2323, %v1384, %v1888
        %v2380 = vsel %vm2323, %v1383, %v1890
        %v2381 = vsel %vm2323, %v1382, %v1892
        %v2382 = vsel %vm2323, %v1381, %v1894
        %v2383 = vsel %vm2323, %v1380, %v1896
        %v2384 = vsel %vm2323, %v1379, %v1898
        %v2385 = vsel %vm2323, %v1378, %v1900
        %v2386 = vsel %vm2323, %v1377, %v1902
        %v2387 = vsel %vm2323, %v1376, %v1904
        %v2388 = vsel %vm2323, %v1375, %v1906
        %v2389 = vsel %vm2323, %v1374, %v1908
        %v2390 = vsel %vm2323, %v1373, %v1910
        %v2391 = vsel %vm2323, %v1372, %v1912
        %v2392 = vsel %vm2323, %v1371, %v1914
        %v2393 = vsel %vm2323, %v1370, %v1916
        %v2394 = vsel %vm2323, %v1369, %v1918
        %v2395 = vsel %vm2323, %v1368, %v1920
        %v2396 = vsel %vm2323, %v1367, %v1922
        %v2397 = vsel %vm2323, %v1366, %v1924
        %v2398 = vsel %vm2323, %v1365, %v1926
        %v2399 = vsel %vm2323, %v1364, %v1928
        %v2400 = vsel %vm2323, %v1363, %v1930
        %v2401 = vsel %vm2323, %v1362, %v1932
        %v2402 = vsel %vm2323, %v1361, %v1934
        %v2403 = vsel %vm2323, %v1360, %v1936
        %v2404 = vsel %vm2323, %v1359, %v1938
        %v2405 = vsel %vm2323, %v1358, %v1940
        %v2406 = vsel %vm2323, %v1357, %v1942
        %v2407 = vsel %vm2323, %v1356, %v1944
        %v2408 = vsel %vm2323, %v1097, %v2030
        %v2409 = vsel %vm2323, %v1098, %v2032
        %v2410 = vsel %vm2323, %v1099, %v2034
        %v2411 = vsel %vm2323, %v1100, %v2036
        %v2412 = vsel %vm2323, %v1101, %v2038
        %v2413 = vsel %vm2323, %v1102, %v2040
        %v2414 = vsel %vm2323, %v1103, %v2042
        %v2415 = vsel %vm2323, %v1104, %v2044
        %v2416 = vsel %vm2323, %v1105, %v2046
        %v2417 = vsel %vm2323, %v1106, %v2048
        %v2418 = vsel %vm2323, %v1107, %v2050
        %v2419 = vsel %vm2323, %v1108, %v2052
        %v2420 = vsel %vm2323, %v1109, %v2054
        %v2421 = vsel %vm2323, %v1110, %v2056
        %v2422 = vsel %vm2323, %v1111, %v2058
        %v2423 = vsel %vm2323, %v1112, %v2060
        %v2424 = vsel %vm2323, %v1113, %v2062
        %v2425 = vsel %vm2323, %v1114, %v2064
        %v2426 = vsel %vm2323, %v1115, %v2066
        %v2427 = vsel %vm2323, %v1116, %v2068
        %v2428 = vsel %vm2323, %v1117, %v2070
        %v2429 = vsel %vm2323, %v1118, %v2072
        %v2430 = vsel %vm2323, %v1119, %v2074
        %v2431 = vsel %vm2323, %v1120, %v2076
        %v2432 = vsel %vm2323, %v1121, %v2078
        %v2433 = vsel %vm2323, %v1122, %v2080
        %v2434 = vsel %vm2323, %v1123, %v2082
        %v2435 = vsel %vm2323, %v1124, %v2084
        %v2436 = vsel %vm2323, %v1125, %v2086
        %v2437 = vsel %vm2323, %v1126, %v2088
        %v2438 = vsel %vm2323, %v1127, %v2090
        %v2439 = vsel %vm2323, %v1128, %v2092
        %v2440 = vsel %vm2323, %v1129, %v2094
        %v2441 = vsel %vm2323, %v1130, %v2096
        %v2442 = vsel %vm2323, %v1131, %v2098
        %v2443 = vsel %vm2323, %v1132, %v2100
        %v2444 = vsel %vm2323, %v1133, %v2102
        %v2445 = vsel %vm2323, %v1134, %v2104
        %v2446 = vsel %vm2323, %v1135, %v2106
        %v2447 = vsel %vm2323, %v1136, %v2108
        %v2448 = vsel %vm2323, %v1137, %v2110
        %v2449 = vsel %vm2323, %v1138, %v2112
        %v2450 = vsel %vm2323, %v1477, %v2198
        %v2451 = vsel %vm2323, %v1476, %v2200
        %v2452 = vsel %vm2323, %v1475, %v2202
        %v2453 = vsel %vm2323, %v1474, %v2204
        %v2454 = vsel %vm2323, %v1473, %v2206
        %v2455 = vsel %vm2323, %v1472, %v2208
        %v2456 = vsel %vm2323, %v1471, %v2210
        %v2457 = vsel %vm2323, %v1470, %v2212
        %v2458 = vsel %vm2323, %v1469, %v2214
        %v2459 = vsel %vm2323, %v1468, %v2216
        %v2460 = vsel %vm2323, %v1467, %v2218
        %v2461 = vsel %vm2323, %v1466, %v2220
        %v2462 = vsel %vm2323, %v1465, %v2222
        %v2463 = vsel %vm2323, %v1464, %v2224
        %v2464 = vsel %vm2323, %v1463, %v2226
        %v2465 = vsel %vm2323, %v1462, %v2228
        %v2466 = vsel %vm2323, %v1461, %v2230
        %v2467 = vsel %vm2323, %v1460, %v2232
        %v2468 = vsel %vm2323, %v1459, %v2234
        %v2469 = vsel %vm2323, %v1458, %v2236
        %v2470 = vsel %vm2323, %v1457, %v2238
        %v2471 = vsel %vm2323, %v1456, %v2240
        %v2472 = vsel %vm2323, %v1455, %v2242
        %v2473 = vsel %vm2323, %v1454, %v2244
        %v2474 = vsel %vm2323, %v1453, %v2246
        %v2475 = vsel %vm2323, %v1452, %v2248
        %v2476 = vsel %vm2323, %v1451, %v2250
        %v2477 = vsel %vm2323, %v1450, %v2252
        %v2478 = vsel %vm2323, %v1449, %v2254
        %v2479 = vsel %vm2323, %v1448, %v2256
        %v2480 = vsel %vm2323, %v1447, %v2258
        %v2481 = vsel %vm2323, %v1446, %v2260
        %v2482 = vsel %vm2323, %v1445, %v2262
        %v2483 = vsel %vm2323, %v1444, %v2264
        %v2484 = vsel %vm2323, %v1443, %v2266
        %v2485 = vsel %vm2323, %v1442, %v2268
        %v2486 = vsel %vm2323, %v1441, %v2270
        %v2487 = vsel %vm2323, %v1440, %v2272
        %v2488 = vsel %vm2323, %v1439, %v2274
        %v2489 = vsel %vm2323, %v1480, %v2276
        %v2490 = vsel %vm2323, %v1479, %v2278
        %v2491 = vsel %vm2323, %v1478, %v2280
        %v2492 = vpack.c.bf16 %v2325, %v2324
        %v2493 = vpack.c.bf16 %v2367, %v2366
        %v2494 = vpack.c.bf16 %v2409, %v2408
        %v2495 = vpack.c.bf16 %v2451, %v2450
        %v2496 = vpack.c.bf16 %v1646, %v1647
        %v2497 = vpack.c.bf16 %v2327, %v2326
        %v2498 = vpack.c.bf16 %v2369, %v2368
        %v2499 = vpack.c.bf16 %v2411, %v2410
        %v2500 = vpack.c.bf16 %v2453, %v2452
        %v2501 = vpack.c.bf16 %v1644, %v1645
        %v2502 = vpack.c.bf16 %v2329, %v2328
        %v2503 = vpack.c.bf16 %v2371, %v2370
        %v2504 = vpack.c.bf16 %v2413, %v2412
        %v2505 = vpack.c.bf16 %v2455, %v2454
        %v2506 = vpack.c.bf16 %v1642, %v1643
        %v2507 = vpack.c.bf16 %v2331, %v2330
        %v2508 = vpack.c.bf16 %v2373, %v2372
        %v2509 = vpack.c.bf16 %v2415, %v2414
        %v2510 = vpack.c.bf16 %v2457, %v2456
        %v2511 = vpack.c.bf16 %v1640, %v1641
        %v2512 = vpack.c.bf16 %v2333, %v2332
        %v2513 = vpack.c.bf16 %v2375, %v2374
        %v2514 = vpack.c.bf16 %v2417, %v2416
        %v2515 = vpack.c.bf16 %v2459, %v2458
        %v2516 = vpack.c.bf16 %v1638, %v1639
        %v2517 = vpack.c.bf16 %v2335, %v2334
        %v2518 = vpack.c.bf16 %v2377, %v2376
        %v2519 = vpack.c.bf16 %v2419, %v2418
        %v2520 = vpack.c.bf16 %v2461, %v2460
        %v2521 = vpack.c.bf16 %v1636, %v1637
        %v2522 = vpack.c.bf16 %v2337, %v2336
        %v2523 = vpack.c.bf16 %v2379, %v2378
        %v2524 = vpack.c.bf16 %v2421, %v2420
        %v2525 = vpack.c.bf16 %v2463, %v2462
        %v2526 = vpack.c.bf16 %v1634, %v1635
        %v2527 = vpack.c.bf16 %v2339, %v2338
        %v2528 = vpack.c.bf16 %v2381, %v2380
        %v2529 = vpack.c.bf16 %v2423, %v2422
        %v2530 = vpack.c.bf16 %v2465, %v2464
        %v2531 = vpack.c.bf16 %v1632, %v1633
        %v2532 = vpack.c.bf16 %v2341, %v2340
        %v2533 = vpack.c.bf16 %v2383, %v2382
        %v2534 = vpack.c.bf16 %v2425, %v2424
        %v2535 = vpack.c.bf16 %v2467, %v2466
        %v2536 = vpack.c.bf16 %v1630, %v1631
        %v2537 = vpack.c.bf16 %v2343, %v2342
        %v2538 = vpack.c.bf16 %v2385, %v2384
        %v2539 = vpack.c.bf16 %v2427, %v2426
        %v2540 = vpack.c.bf16 %v2469, %v2468
        %v2541 = vpack.c.bf16 %v1628, %v1629
        %v2542 = vpack.c.bf16 %v2345, %v2344
        %v2543 = vpack.c.bf16 %v2387, %v2386
        %v2544 = vpack.c.bf16 %v2429, %v2428
        %v2545 = vpack.c.bf16 %v2471, %v2470
        %v2546 = vpack.c.bf16 %v1626, %v1627
        %v2547 = vpack.c.bf16 %v2347, %v2346
        %v2548 = vpack.c.bf16 %v2389, %v2388
        %v2549 = vpack.c.bf16 %v2431, %v2430
        %v2550 = vpack.c.bf16 %v2473, %v2472
        %v2551 = vpack.c.bf16 %v1624, %v1625
        %v2552 = vpack.c.bf16 %v2349, %v2348
        %v2553 = vpack.c.bf16 %v2391, %v2390
        %v2554 = vpack.c.bf16 %v2433, %v2432
        %v2555 = vpack.c.bf16 %v2475, %v2474
        %v2556 = vpack.c.bf16 %v1622, %v1623
        %v2557 = vpack.c.bf16 %v2351, %v2350
        %v2558 = vpack.c.bf16 %v2393, %v2392
        %v2559 = vpack.c.bf16 %v2435, %v2434
        %v2560 = vpack.c.bf16 %v2477, %v2476
        %v2561 = vpack.c.bf16 %v1620, %v1621
        %v2562 = vpack.c.bf16 %v2353, %v2352
        %v2563 = vpack.c.bf16 %v2395, %v2394
        %v2564 = vpack.c.bf16 %v2437, %v2436
        %v2565 = vpack.c.bf16 %v2479, %v2478
        %v2566 = vpack.c.bf16 %v1618, %v1619
        %v2567 = vpack.c.bf16 %v2355, %v2354
        %v2568 = vpack.c.bf16 %v2397, %v2396
        %v2569 = vpack.c.bf16 %v2439, %v2438
        %v2570 = vpack.c.bf16 %v2481, %v2480
        %v2571 = vpack.c.bf16 %v1616, %v1617
        %v2572 = vpack.c.bf16 %v2357, %v2356
        %v2573 = vpack.c.bf16 %v2399, %v2398
        %v2574 = vpack.c.bf16 %v2441, %v2440
        %v2575 = vpack.c.bf16 %v2483, %v2482
        %v2576 = vpack.c.bf16 %v1614, %v1615
        %v2577 = vpack.c.bf16 %v2359, %v2358
        %v2578 = vpack.c.bf16 %v2401, %v2400
        %v2579 = vpack.c.bf16 %v2443, %v2442
        %v2580 = vpack.c.bf16 %v2485, %v2484
        %v2581 = vpack.c.bf16 %v1612, %v1613
        %v2582 = vpack.c.bf16 %v2361, %v2360
        %v2583 = vpack.c.bf16 %v2403, %v2402
        %v2584 = vpack.c.bf16 %v2445, %v2444
        %v2585 = vpack.c.bf16 %v2487, %v2486
        %v2586 = vpack.c.bf16 %v1610, %v1611
        %v2587 = vpack.c.bf16 %v2363, %v2362
        %v2588 = vpack.c.bf16 %v2405, %v2404
        %v2589 = vpack.c.bf16 %v2447, %v2446
        %v2590 = vpack.c.bf16 %v2489, %v2488
        %v2591 = vpack.c.bf16 %v1650, %v1609
        %v2592 = vpack.c.bf16 %v2365, %v2364
        %v2593 = vpack.c.bf16 %v2407, %v2406
        %v2594 = vpack.c.bf16 %v2449, %v2448
        %v2595 = vpack.c.bf16 %v2491, %v2490
        %v2596 = vpack.c.bf16 %v1648, %v1649
        %s2597 = smul.u32 %s1092, 2
        %s2598 = smul.u32 %s2597, 72
        %s2599 = smul.addr %s2598, 4
        %s2600 = scalar_lea.vmem %s5, %s2599
        %v2601 = vld [vmem:[%s2600] sm:$0xf]
        %v2602 = vld [vmem:[%s2600 + $0x4] sm:$0xf]
        %v2603 = vld [vmem:[%s2600 + $0x8] sm:$0xf]
        %v2604 = vld [vmem:[%s2600 + $0xc] sm:$0xf]
        %v2605 = vld [vmem:[%s2600 + $0x10] sm:$0xf]
        %v2606 = vld [vmem:[%s2600 + $0x14] sm:$0xf]
        %v2607 = vld [vmem:[%s2600 + $0x18] sm:$0xf]
        %v2608 = vld [vmem:[%s2600 + $0x1c] sm:$0xf]
        %v2609 = vld [vmem:[%s2600 + $0x20] sm:$0xf]
        %v2610 = vld [vmem:[%s2600 + $0x24] sm:$0xf]
        %v2611 = vld [vmem:[%s2600 + $0x28] sm:$0xf]
        %v2612 = vld [vmem:[%s2600 + $0x2c] sm:$0xf]
        %v2613 = vld [vmem:[%s2600 + $0x30] sm:$0xf]
        %v2614 = vld [vmem:[%s2600 + $0x34] sm:$0xf]
        %v2615 = vld [vmem:[%s2600 + $0x38] sm:$0xf]
        %v2616 = vld [vmem:[%s2600 + $0x3c] sm:$0xf]
        %v2617 = vld [vmem:[%s2600 + $0x40] sm:$0xf]
        %v2618 = vld [vmem:[%s2600 + $0x44] sm:$0xf]
        %v2619 = vld [vmem:[%s2600 + $0x48] sm:$0xf]
        %v2620 = vld [vmem:[%s2600 + $0x4c] sm:$0xf]
        %v2621 = vld [vmem:[%s2600 + $0x50] sm:$0xf]
        %v2622 = vld [vmem:[%s2600 + $0x54] sm:$0xf]
        %v2623 = vld [vmem:[%s2600 + $0x58] sm:$0xf]
        %v2624 = vld [vmem:[%s2600 + $0x5c] sm:$0xf]
        %v2625 = vld [vmem:[%s2600 + $0x60] sm:$0xf]
        %v2626 = vld [vmem:[%s2600 + $0x64] sm:$0xf]
        %v2627 = vld [vmem:[%s2600 + $0x68] sm:$0xf]
        %v2628 = vld [vmem:[%s2600 + $0x6c] sm:$0xf]
        %v2629 = vld [vmem:[%s2600 + $0x70] sm:$0xf]
        %v2630 = vld [vmem:[%s2600 + $0x74] sm:$0xf]
        %v2631 = vld [vmem:[%s2600 + $0x78] sm:$0xf]
        %v2632 = vld [vmem:[%s2600 + $0x7c] sm:$0xf]
        %v2633 = vld [vmem:[%s2600 + $0x80] sm:$0xf]
        %v2634 = vld [vmem:[%s2600 + $0x84] sm:$0xf]
        %v2635 = vld [vmem:[%s2600 + $0x88] sm:$0xf]
        %v2636 = vld [vmem:[%s2600 + $0x8c] sm:$0xf]
        %v2637 = vld [vmem:[%s2600 + $0x90] sm:$0xf]
        %v2638 = vld [vmem:[%s2600 + $0x94] sm:$0xf]
        %v2639 = vld [vmem:[%s2600 + $0x98] sm:$0xf]
        %v2640 = vld [vmem:[%s2600 + $0x9c] sm:$0xf]
        %v2641 = vld [vmem:[%s2600 + $0xa0] sm:$0xf]
        %v2642 = vld [vmem:[%s2600 + $0xa4] sm:$0xf]
        %v2643 = vld [vmem:[%s2600 + $0xa8] sm:$0xf]
        %v2644 = vld [vmem:[%s2600 + $0xac] sm:$0xf]
        %v2645 = vld [vmem:[%s2600 + $0xb0] sm:$0xf]
        %v2646 = vld [vmem:[%s2600 + $0xb4] sm:$0xf]
        %v2647 = vld [vmem:[%s2600 + $0xb8] sm:$0xf]
        %v2648 = vld [vmem:[%s2600 + $0xbc] sm:$0xf]
        %v2649 = vld [vmem:[%s2600 + $0xc0] sm:$0xf]
        %v2650 = vld [vmem:[%s2600 + $0xc4] sm:$0xf]
        %v2651 = vld [vmem:[%s2600 + $0xc8] sm:$0xf]
        %v2652 = vld [vmem:[%s2600 + $0xcc] sm:$0xf]
        %v2653 = vld [vmem:[%s2600 + $0xd0] sm:$0xf]
        %v2654 = vld [vmem:[%s2600 + $0xd4] sm:$0xf]
        %v2655 = vld [vmem:[%s2600 + $0xd8] sm:$0xf]
        %v2656 = vld [vmem:[%s2600 + $0xdc] sm:$0xf]
        %v2657 = vld [vmem:[%s2600 + $0xe0] sm:$0xf]
        %v2658 = vld [vmem:[%s2600 + $0xe4] sm:$0xf]
        %v2659 = vld [vmem:[%s2600 + $0xe8] sm:$0xf]
        %v2660 = vld [vmem:[%s2600 + $0xec] sm:$0xf]
        %v2661 = vld [vmem:[%s2600 + $0xf0] sm:$0xf]
        %v2662 = vld [vmem:[%s2600 + $0xf4] sm:$0xf]
        %v2663 = vld [vmem:[%s2600 + $0xf8] sm:$0xf]
        %v2664 = vld [vmem:[%s2600 + $0xfc] sm:$0xf]
        %v2665 = vld [vmem:[%s2600 + $0x100] sm:$0xf]
        %v2666 = vld [vmem:[%s2600 + $0x104] sm:$0xf]
        %v2667 = vld [vmem:[%s2600 + $0x108] sm:$0xf]
        %v2668 = vld [vmem:[%s2600 + $0x10c] sm:$0xf]
        %v2669 = vld [vmem:[%s2600 + $0x110] sm:$0xf]
        %v2670 = vld [vmem:[%s2600 + $0x114] sm:$0xf]
        %v2671 = vld [vmem:[%s2600 + $0x118] sm:$0xf]
        %v2672 = vld [vmem:[%s2600 + $0x11c] sm:$0xf]
        %s2673 = scalar_lea.vmem %s6, %s2597
        %v2674 = vld [vmem:[%s2673] sm:$0x1]
        %v2676 = vperm.slane %v2674, 0
        %v2750 = vunpack.c.l.b16 %v2601
        %v2751 = vunpack.c.l.b16 %v2602
        %v2752 = vunpack.c.l.b16 %v2603
        %v2753 = vunpack.c.l.b16 %v2604
        %v2754 = vunpack.c.l.b16 %v2605
        %v2755 = vunpack.c.l.b16 %v2606
        %v2756 = vunpack.c.l.b16 %v2607
        %v2757 = vunpack.c.l.b16 %v2608
        %v2758 = vunpack.c.l.b16 %v2609
        %v2759 = vunpack.c.l.b16 %v2610
        %v2760 = vunpack.c.l.b16 %v2611
        %v2761 = vunpack.c.l.b16 %v2612
        %v2762 = vunpack.c.l.b16 %v2613
        %v2763 = vunpack.c.l.b16 %v2614
        %v2764 = vunpack.c.l.b16 %v2615
        %v2765 = vunpack.c.l.b16 %v2616
        %v2766 = vunpack.c.l.b16 %v2617
        %v2767 = vunpack.c.l.b16 %v2618
        %v2768 = vunpack.c.l.b16 %v2619
        %v2769 = vunpack.c.l.b16 %v2620
        %v2770 = vunpack.c.l.b16 %v2621
        %v2771 = vunpack.c.l.b16 %v2622
        %v2772 = vunpack.c.l.b16 %v2623
        %v2773 = vunpack.c.l.b16 %v2624
        %v2774 = vunpack.c.l.b16 %v2625
        %v2775 = vunpack.c.l.b16 %v2626
        %v2776 = vunpack.c.l.b16 %v2627
        %v2777 = vunpack.c.l.b16 %v2628
        %v2778 = vunpack.c.l.b16 %v2629
        %v2779 = vunpack.c.l.b16 %v2630
        %v2780 = vunpack.c.l.b16 %v2631
        %v2781 = vunpack.c.l.b16 %v2632
        %v2782 = vunpack.c.l.b16 %v2633
        %v2783 = vunpack.c.l.b16 %v2634
        %v2784 = vunpack.c.l.b16 %v2635
        %v2785 = vunpack.c.l.b16 %v2636
        %v2786 = vunpack.c.l.b16 %v2637
        %v2787 = vunpack.c.l.b16 %v2638
        %v2788 = vunpack.c.l.b16 %v2639
        %v2789 = vunpack.c.l.b16 %v2640
        %v2790 = vunpack.c.l.b16 %v2641
        %v2791 = vunpack.c.l.b16 %v2642
        %v2792 = vunpack.c.l.b16 %v2643
        %v2793 = vunpack.c.l.b16 %v2644
        %v2794 = vunpack.c.l.b16 %v2645
        %v2795 = vunpack.c.l.b16 %v2646
        %v2796 = vunpack.c.l.b16 %v2647
        %v2797 = vunpack.c.l.b16 %v2648
        %v2798 = vunpack.c.l.b16 %v2649
        %v2799 = vunpack.c.l.b16 %v2650
        %v2800 = vunpack.c.l.b16 %v2651
        %v2801 = vunpack.c.l.b16 %v2652
        %v2802 = vunpack.c.l.b16 %v2653
        %v2803 = vunpack.c.l.b16 %v2654
        %v2804 = vunpack.c.l.b16 %v2655
        %v2805 = vunpack.c.l.b16 %v2656
        %v2806 = vunpack.c.l.b16 %v2657
        %v2807 = vunpack.c.l.b16 %v2658
        %v2808 = vunpack.c.l.b16 %v2659
        %v2809 = vunpack.c.l.b16 %v2660
        %v2810 = vunpack.c.l.b16 %v2661
        %v2811 = vunpack.c.l.b16 %v2662
        %v2812 = vunpack.c.l.b16 %v2663
        %v2813 = vunpack.c.l.b16 %v2664
        %v2814 = vunpack.c.l.b16 %v2665
        %v2815 = vunpack.c.l.b16 %v2666
        %v2816 = vunpack.c.l.b16 %v2667
        %v2817 = vunpack.c.l.b16 %v2668
        %v2818 = vunpack.c.l.b16 %v2669
        %v2819 = vunpack.c.l.b16 %v2670
        %v2820 = vunpack.c.l.b16 %v2671
        %v2821 = vunpack.c.l.b16 %v2672
        %v2822 = vpack.c.b16 %v2751, %v2750
        %v2823 = vpack.c.b16 %v2753, %v2752
        %v2824 = vpack.c.b16 %v2755, %v2754
        %v2825 = vpack.c.b16 %v2757, %v2756
        %v2826 = vpack.c.b16 %v2759, %v2758
        %v2827 = vpack.c.b16 %v2761, %v2760
        %v2828 = vpack.c.b16 %v2763, %v2762
        %v2829 = vpack.c.b16 %v2765, %v2764
        %v2830 = vpack.c.b16 %v2767, %v2766
        %v2831 = vpack.c.b16 %v2769, %v2768
        %v2832 = vpack.c.b16 %v2771, %v2770
        %v2833 = vpack.c.b16 %v2773, %v2772
        %v2834 = vpack.c.b16 %v2775, %v2774
        %v2835 = vpack.c.b16 %v2777, %v2776
        %v2836 = vpack.c.b16 %v2779, %v2778
        %v2837 = vpack.c.b16 %v2781, %v2780
        %v2838 = vpack.c.b16 %v2783, %v2782
        %v2839 = vpack.c.b16 %v2785, %v2784
        %v2840 = vpack.c.b16 %v2787, %v2786
        %v2841 = vpack.c.b16 %v2789, %v2788
        %v2842 = vpack.c.b16 %v2791, %v2790
        %v2843 = vpack.c.b16 %v2793, %v2792
        %v2844 = vpack.c.b16 %v2795, %v2794
        %v2845 = vpack.c.b16 %v2797, %v2796
        %v2846 = vpack.c.b16 %v2799, %v2798
        %v2847 = vpack.c.b16 %v2801, %v2800
        %v2848 = vpack.c.b16 %v2803, %v2802
        %v2849 = vpack.c.b16 %v2805, %v2804
        %v2850 = vpack.c.b16 %v2807, %v2806
        %v2851 = vpack.c.b16 %v2809, %v2808
        %v2852 = vpack.c.b16 %v2811, %v2810
        %v2853 = vpack.c.b16 %v2813, %v2812
        %v2854 = vpack.c.b16 %v2815, %v2814
        %v2855 = vpack.c.b16 %v2817, %v2816
        %v2856 = vpack.c.b16 %v2819, %v2818
        %v2857 = vpack.c.b16 %v2821, %v2820
        %v2895 = vsel %vm2323, %v2496, 0
        %v2898 = vsel %vm2323, %v2501, 0
        %v2901 = vsel %vm2323, %v2506, 0
        %v2904 = vsel %vm2323, %v2511, 0
        %v2907 = vsel %vm2323, %v2516, 0
        %v2910 = vsel %vm2323, %v2521, 0
        %v2913 = vsel %vm2323, %v2526, 0
        %v2916 = vsel %vm2323, %v2531, 0
        %v2919 = vsel %vm2323, %v2536, 0
        %v2922 = vsel %vm2323, %v2541, 0
        %v2925 = vsel %vm2323, %v2546, 0
        %v2928 = vsel %vm2323, %v2551, 0
        %v2931 = vsel %vm2323, %v2556, 0
        %v2934 = vsel %vm2323, %v2561, 0
        %v2937 = vsel %vm2323, %v2566, 0
        %v2940 = vsel %vm2323, %v2571, 0
        %v2943 = vsel %vm2323, %v2576, 0
        %v2946 = vsel %vm2323, %v2581, 0
        %v2949 = vsel %vm2323, %v2586, 0
        %v2952 = vsel %vm2323, %v2591, 0
        %v2955 = vsel %vm2323, %v2596, 0
        %2957 = vmatpush.bf16.msra.mxu0 %v2829
        %2958 = vmatpush.bf16.msra.mxu0 %v2828
        %2959 = vmatpush.bf16.msra.mxu0 %v2827
        %2960 = vmatpush.bf16.msra.mxu0 %v2826
        %2961 = vmatpush.bf16.msra.mxu0 %v2825
        %2962 = vmatpush.bf16.msra.mxu0 %v2824
        %2963 = vmatpush.bf16.msra.mxu0 %v2823
        %2964 = vmatpush.bf16.msra.mxu0 %v2822
        %2965 = vmatmul.bf16.gmra.mxu0 %v2492
        %v2966 = vpop.f32.mrf.mxu0
        %v2967 = vadd.f32 %v2676, %v2966
        %v2968 = vpop.f32.mrf.mxu0
        %v2969 = vadd.f32 %v2676, %v2968
        %2970 = vmatmul.bf16.gmra.mxu0 %v2497
        %v2971 = vpop.f32.mrf.mxu0
        %v2972 = vadd.f32 %v2676, %v2971
        %v2973 = vpop.f32.mrf.mxu0
        %v2974 = vadd.f32 %v2676, %v2973
        %2975 = vmatmul.bf16.gmra.mxu0 %v2502
        %v2976 = vpop.f32.mrf.mxu0
        %v2977 = vadd.f32 %v2676, %v2976
        %v2978 = vpop.f32.mrf.mxu0
        %v2979 = vadd.f32 %v2676, %v2978
        %2980 = vmatmul.bf16.gmra.mxu0 %v2507
        %v2981 = vpop.f32.mrf.mxu0
        %v2982 = vadd.f32 %v2676, %v2981
        %v2983 = vpop.f32.mrf.mxu0
        %v2984 = vadd.f32 %v2676, %v2983
        %2985 = vmatmul.bf16.gmra.mxu0 %v2512
        %v2986 = vpop.f32.mrf.mxu0
        %v2987 = vadd.f32 %v2676, %v2986
        %v2988 = vpop.f32.mrf.mxu0
        %v2989 = vadd.f32 %v2676, %v2988
        %2990 = vmatmul.bf16.gmra.mxu0 %v2517
        %v2991 = vpop.f32.mrf.mxu0
        %v2992 = vadd.f32 %v2676, %v2991
        %v2993 = vpop.f32.mrf.mxu0
        %v2994 = vadd.f32 %v2676, %v2993
        %2995 = vmatmul.bf16.gmra.mxu0 %v2522
        %v2996 = vpop.f32.mrf.mxu0
        %v2997 = vadd.f32 %v2676, %v2996
        %v2998 = vpop.f32.mrf.mxu0
        %v2999 = vadd.f32 %v2676, %v2998
        %3000 = vmatmul.bf16.gmra.mxu0 %v2527
        %v3001 = vpop.f32.mrf.mxu0
        %v3002 = vadd.f32 %v2676, %v3001
        %v3003 = vpop.f32.mrf.mxu0
        %v3004 = vadd.f32 %v2676, %v3003
        %3005 = vmatmul.bf16.gmra.mxu0 %v2532
        %v3006 = vpop.f32.mrf.mxu0
        %v3007 = vadd.f32 %v2676, %v3006
        %v3008 = vpop.f32.mrf.mxu0
        %v3009 = vadd.f32 %v2676, %v3008
        %3010 = vmatmul.bf16.gmra.mxu0 %v2537
        %v3011 = vpop.f32.mrf.mxu0
        %v3012 = vadd.f32 %v2676, %v3011
        %v3013 = vpop.f32.mrf.mxu0
        %v3014 = vadd.f32 %v2676, %v3013
        %3015 = vmatmul.bf16.gmra.mxu0 %v2542
        %v3016 = vpop.f32.mrf.mxu0
        %v3017 = vadd.f32 %v2676, %v3016
        %v3018 = vpop.f32.mrf.mxu0
        %v3019 = vadd.f32 %v2676, %v3018
        %3020 = vmatmul.bf16.gmra.mxu0 %v2547
        %v3021 = vpop.f32.mrf.mxu0
        %v3022 = vadd.f32 %v2676, %v3021
        %v3023 = vpop.f32.mrf.mxu0
        %v3024 = vadd.f32 %v2676, %v3023
        %3025 = vmatmul.bf16.gmra.mxu0 %v2552
        %v3026 = vpop.f32.mrf.mxu0
        %v3027 = vadd.f32 %v2676, %v3026
        %v3028 = vpop.f32.mrf.mxu0
        %v3029 = vadd.f32 %v2676, %v3028
        %3030 = vmatmul.bf16.gmra.mxu0 %v2557
        %v3031 = vpop.f32.mrf.mxu0
        %v3032 = vadd.f32 %v2676, %v3031
        %v3033 = vpop.f32.mrf.mxu0
        %v3034 = vadd.f32 %v2676, %v3033
        %3035 = vmatmul.bf16.gmra.mxu0 %v2562
        %v3036 = vpop.f32.mrf.mxu0
        %v3037 = vadd.f32 %v2676, %v3036
        %v3038 = vpop.f32.mrf.mxu0
        %v3039 = vadd.f32 %v2676, %v3038
        %3040 = vmatmul.bf16.gmra.mxu0 %v2567
        %v3041 = vpop.f32.mrf.mxu0
        %v3042 = vadd.f32 %v2676, %v3041
        %v3043 = vpop.f32.mrf.mxu0
        %v3044 = vadd.f32 %v2676, %v3043
        %3045 = vmatmul.bf16.gmra.mxu0 %v2572
        %v3046 = vpop.f32.mrf.mxu0
        %v3047 = vadd.f32 %v2676, %v3046
        %v3048 = vpop.f32.mrf.mxu0
        %v3049 = vadd.f32 %v2676, %v3048
        %3050 = vmatmul.bf16.gmra.mxu0 %v2577
        %v3051 = vpop.f32.mrf.mxu0
        %v3052 = vadd.f32 %v2676, %v3051
        %v3053 = vpop.f32.mrf.mxu0
        %v3054 = vadd.f32 %v2676, %v3053
        %3055 = vmatmul.bf16.gmra.mxu0 %v2582
        %v3056 = vpop.f32.mrf.mxu0
        %v3057 = vadd.f32 %v2676, %v3056
        %v3058 = vpop.f32.mrf.mxu0
        %v3059 = vadd.f32 %v2676, %v3058
        %3060 = vmatmul.bf16.gmra.mxu0 %v2587
        %v3061 = vpop.f32.mrf.mxu0
        %v3062 = vadd.f32 %v2676, %v3061
        %v3063 = vpop.f32.mrf.mxu0
        %v3064 = vadd.f32 %v2676, %v3063
        %3065 = vmatmul.bf16.gmra.mxu0 %v2592
        %v3066 = vpop.f32.mrf.mxu0
        %v3067 = vadd.f32 %v2676, %v3066
        %v3068 = vpop.f32.mrf.mxu0
        %v3069 = vadd.f32 %v2676, %v3068
        %3070 = vdwg.mxu0
        %3071 = vmatpush.bf16.msra.mxu0 %v2837
        %3072 = vmatpush.bf16.msra.mxu0 %v2836
        %3073 = vmatpush.bf16.msra.mxu0 %v2835
        %3074 = vmatpush.bf16.msra.mxu0 %v2834
        %3075 = vmatpush.bf16.msra.mxu0 %v2833
        %3076 = vmatpush.bf16.msra.mxu0 %v2832
        %3077 = vmatpush.bf16.msra.mxu0 %v2831
        %3078 = vmatpush.bf16.msra.mxu0 %v2830
        %3079 = vmatmul.bf16.gmra.mxu0 %v2493
        %v3080 = vpop.f32.mrf.mxu0
        %v3081 = vadd.f32 %v2967, %v3080
        %v3082 = vpop.f32.mrf.mxu0
        %v3083 = vadd.f32 %v2969, %v3082
        %3084 = vmatmul.bf16.gmra.mxu0 %v2498
        %v3085 = vpop.f32.mrf.mxu0
        %v3086 = vadd.f32 %v2972, %v3085
        %v3087 = vpop.f32.mrf.mxu0
        %v3088 = vadd.f32 %v2974, %v3087
        %3089 = vmatmul.bf16.gmra.mxu0 %v2503
        %v3090 = vpop.f32.mrf.mxu0
        %v3091 = vadd.f32 %v2977, %v3090
        %v3092 = vpop.f32.mrf.mxu0
        %v3093 = vadd.f32 %v2979, %v3092
        %3094 = vmatmul.bf16.gmra.mxu0 %v2508
        %v3095 = vpop.f32.mrf.mxu0
        %v3096 = vadd.f32 %v2982, %v3095
        %v3097 = vpop.f32.mrf.mxu0
        %v3098 = vadd.f32 %v2984, %v3097
        %3099 = vmatmul.bf16.gmra.mxu0 %v2513
        %v3100 = vpop.f32.mrf.mxu0
        %v3101 = vadd.f32 %v2987, %v3100
        %v3102 = vpop.f32.mrf.mxu0
        %v3103 = vadd.f32 %v2989, %v3102
        %3104 = vmatmul.bf16.gmra.mxu0 %v2518
        %v3105 = vpop.f32.mrf.mxu0
        %v3106 = vadd.f32 %v2992, %v3105
        %v3107 = vpop.f32.mrf.mxu0
        %v3108 = vadd.f32 %v2994, %v3107
        %3109 = vmatmul.bf16.gmra.mxu0 %v2523
        %v3110 = vpop.f32.mrf.mxu0
        %v3111 = vadd.f32 %v2997, %v3110
        %v3112 = vpop.f32.mrf.mxu0
        %v3113 = vadd.f32 %v2999, %v3112
        %3114 = vmatmul.bf16.gmra.mxu0 %v2528
        %v3115 = vpop.f32.mrf.mxu0
        %v3116 = vadd.f32 %v3002, %v3115
        %v3117 = vpop.f32.mrf.mxu0
        %v3118 = vadd.f32 %v3004, %v3117
        %3119 = vmatmul.bf16.gmra.mxu0 %v2533
        %v3120 = vpop.f32.mrf.mxu0
        %v3121 = vadd.f32 %v3007, %v3120
        %v3122 = vpop.f32.mrf.mxu0
        %v3123 = vadd.f32 %v3009, %v3122
        %3124 = vmatmul.bf16.gmra.mxu0 %v2538
        %v3125 = vpop.f32.mrf.mxu0
        %v3126 = vadd.f32 %v3012, %v3125
        %v3127 = vpop.f32.mrf.mxu0
        %v3128 = vadd.f32 %v3014, %v3127
        %3129 = vmatmul.bf16.gmra.mxu0 %v2543
        %v3130 = vpop.f32.mrf.mxu0
        %v3131 = vadd.f32 %v3017, %v3130
        %v3132 = vpop.f32.mrf.mxu0
        %v3133 = vadd.f32 %v3019, %v3132
        %3134 = vmatmul.bf16.gmra.mxu0 %v2548
        %v3135 = vpop.f32.mrf.mxu0
        %v3136 = vadd.f32 %v3022, %v3135
        %v3137 = vpop.f32.mrf.mxu0
        %v3138 = vadd.f32 %v3024, %v3137
        %3139 = vmatmul.bf16.gmra.mxu0 %v2553
        %v3140 = vpop.f32.mrf.mxu0
        %v3141 = vadd.f32 %v3027, %v3140
        %v3142 = vpop.f32.mrf.mxu0
        %v3143 = vadd.f32 %v3029, %v3142
        %3144 = vmatmul.bf16.gmra.mxu0 %v2558
        %v3145 = vpop.f32.mrf.mxu0
        %v3146 = vadd.f32 %v3032, %v3145
        %v3147 = vpop.f32.mrf.mxu0
        %v3148 = vadd.f32 %v3034, %v3147
        %3149 = vmatmul.bf16.gmra.mxu0 %v2563
        %v3150 = vpop.f32.mrf.mxu0
        %v3151 = vadd.f32 %v3037, %v3150
        %v3152 = vpop.f32.mrf.mxu0
        %v3153 = vadd.f32 %v3039, %v3152
        %3154 = vmatmul.bf16.gmra.mxu0 %v2568
        %v3155 = vpop.f32.mrf.mxu0
        %v3156 = vadd.f32 %v3042, %v3155
        %v3157 = vpop.f32.mrf.mxu0
        %v3158 = vadd.f32 %v3044, %v3157
        %3159 = vmatmul.bf16.gmra.mxu0 %v2573
        %v3160 = vpop.f32.mrf.mxu0
        %v3161 = vadd.f32 %v3047, %v3160
        %v3162 = vpop.f32.mrf.mxu0
        %v3163 = vadd.f32 %v3049, %v3162
        %3164 = vmatmul.bf16.gmra.mxu0 %v2578
        %v3165 = vpop.f32.mrf.mxu0
        %v3166 = vadd.f32 %v3052, %v3165
        %v3167 = vpop.f32.mrf.mxu0
        %v3168 = vadd.f32 %v3054, %v3167
        %3169 = vmatmul.bf16.gmra.mxu0 %v2583
        %v3170 = vpop.f32.mrf.mxu0
        %v3171 = vadd.f32 %v3057, %v3170
        %v3172 = vpop.f32.mrf.mxu0
        %v3173 = vadd.f32 %v3059, %v3172
        %3174 = vmatmul.bf16.gmra.mxu0 %v2588
        %v3175 = vpop.f32.mrf.mxu0
        %v3176 = vadd.f32 %v3062, %v3175
        %v3177 = vpop.f32.mrf.mxu0
        %v3178 = vadd.f32 %v3064, %v3177
        %3179 = vmatmul.bf16.gmra.mxu0 %v2593
        %v3180 = vpop.f32.mrf.mxu0
        %v3181 = vadd.f32 %v3067, %v3180
        %v3182 = vpop.f32.mrf.mxu0
        %v3183 = vadd.f32 %v3069, %v3182
        %3184 = vdwg.mxu0
        %3185 = vmatpush.bf16.msra.mxu0 %v2845
        %3186 = vmatpush.bf16.msra.mxu0 %v2844
        %3187 = vmatpush.bf16.msra.mxu0 %v2843
        %3188 = vmatpush.bf16.msra.mxu0 %v2842
        %3189 = vmatpush.bf16.msra.mxu0 %v2841
        %3190 = vmatpush.bf16.msra.mxu0 %v2840
        %3191 = vmatpush.bf16.msra.mxu0 %v2839
        %3192 = vmatpush.bf16.msra.mxu0 %v2838
        %3193 = vmatmul.bf16.gmra.mxu0 %v2494
        %v3194 = vpop.f32.mrf.mxu0
        %v3195 = vadd.f32 %v3081, %v3194
        %v3196 = vpop.f32.mrf.mxu0
        %v3197 = vadd.f32 %v3083, %v3196
        %3198 = vmatmul.bf16.gmra.mxu0 %v2499
        %v3199 = vpop.f32.mrf.mxu0
        %v3200 = vadd.f32 %v3086, %v3199
        %v3201 = vpop.f32.mrf.mxu0
        %v3202 = vadd.f32 %v3088, %v3201
        %3203 = vmatmul.bf16.gmra.mxu0 %v2504
        %v3204 = vpop.f32.mrf.mxu0
        %v3205 = vadd.f32 %v3091, %v3204
        %v3206 = vpop.f32.mrf.mxu0
        %v3207 = vadd.f32 %v3093, %v3206
        %3208 = vmatmul.bf16.gmra.mxu0 %v2509
        %v3209 = vpop.f32.mrf.mxu0
        %v3210 = vadd.f32 %v3096, %v3209
        %v3211 = vpop.f32.mrf.mxu0
        %v3212 = vadd.f32 %v3098, %v3211
        %3213 = vmatmul.bf16.gmra.mxu0 %v2514
        %v3214 = vpop.f32.mrf.mxu0
        %v3215 = vadd.f32 %v3101, %v3214
        %v3216 = vpop.f32.mrf.mxu0
        %v3217 = vadd.f32 %v3103, %v3216
        %3218 = vmatmul.bf16.gmra.mxu0 %v2519
        %v3219 = vpop.f32.mrf.mxu0
        %v3220 = vadd.f32 %v3106, %v3219
        %v3221 = vpop.f32.mrf.mxu0
        %v3222 = vadd.f32 %v3108, %v3221
        %3223 = vmatmul.bf16.gmra.mxu0 %v2524
        %v3224 = vpop.f32.mrf.mxu0
        %v3225 = vadd.f32 %v3111, %v3224
        %v3226 = vpop.f32.mrf.mxu0
        %v3227 = vadd.f32 %v3113, %v3226
        %3228 = vmatmul.bf16.gmra.mxu0 %v2529
        %v3229 = vpop.f32.mrf.mxu0
        %v3230 = vadd.f32 %v3116, %v3229
        %v3231 = vpop.f32.mrf.mxu0
        %v3232 = vadd.f32 %v3118, %v3231
        %3233 = vmatmul.bf16.gmra.mxu0 %v2534
        %v3234 = vpop.f32.mrf.mxu0
        %v3235 = vadd.f32 %v3121, %v3234
        %v3236 = vpop.f32.mrf.mxu0
        %v3237 = vadd.f32 %v3123, %v3236
        %3238 = vmatmul.bf16.gmra.mxu0 %v2539
        %v3239 = vpop.f32.mrf.mxu0
        %v3240 = vadd.f32 %v3126, %v3239
        %v3241 = vpop.f32.mrf.mxu0
        %v3242 = vadd.f32 %v3128, %v3241
        %3243 = vmatmul.bf16.gmra.mxu0 %v2544
        %v3244 = vpop.f32.mrf.mxu0
        %v3245 = vadd.f32 %v3131, %v3244
        %v3246 = vpop.f32.mrf.mxu0
        %v3247 = vadd.f32 %v3133, %v3246
        %3248 = vmatmul.bf16.gmra.mxu0 %v2549
        %v3249 = vpop.f32.mrf.mxu0
        %v3250 = vadd.f32 %v3136, %v3249
        %v3251 = vpop.f32.mrf.mxu0
        %v3252 = vadd.f32 %v3138, %v3251
        %3253 = vmatmul.bf16.gmra.mxu0 %v2554
        %v3254 = vpop.f32.mrf.mxu0
        %v3255 = vadd.f32 %v3141, %v3254
        %v3256 = vpop.f32.mrf.mxu0
        %v3257 = vadd.f32 %v3143, %v3256
        %3258 = vmatmul.bf16.gmra.mxu0 %v2559
        %v3259 = vpop.f32.mrf.mxu0
        %v3260 = vadd.f32 %v3146, %v3259
        %v3261 = vpop.f32.mrf.mxu0
        %v3262 = vadd.f32 %v3148, %v3261
        %3263 = vmatmul.bf16.gmra.mxu0 %v2564
        %v3264 = vpop.f32.mrf.mxu0
        %v3265 = vadd.f32 %v3151, %v3264
        %v3266 = vpop.f32.mrf.mxu0
        %v3267 = vadd.f32 %v3153, %v3266
        %3268 = vmatmul.bf16.gmra.mxu0 %v2569
        %v3269 = vpop.f32.mrf.mxu0
        %v3270 = vadd.f32 %v3156, %v3269
        %v3271 = vpop.f32.mrf.mxu0
        %v3272 = vadd.f32 %v3158, %v3271
        %3273 = vmatmul.bf16.gmra.mxu0 %v2574
        %v3274 = vpop.f32.mrf.mxu0
        %v3275 = vadd.f32 %v3161, %v3274
        %v3276 = vpop.f32.mrf.mxu0
        %v3277 = vadd.f32 %v3163, %v3276
        %3278 = vmatmul.bf16.gmra.mxu0 %v2579
        %v3279 = vpop.f32.mrf.mxu0
        %v3280 = vadd.f32 %v3166, %v3279
        %v3281 = vpop.f32.mrf.mxu0
        %v3282 = vadd.f32 %v3168, %v3281
        %3283 = vmatmul.bf16.gmra.mxu0 %v2584
        %v3284 = vpop.f32.mrf.mxu0
        %v3285 = vadd.f32 %v3171, %v3284
        %v3286 = vpop.f32.mrf.mxu0
        %v3287 = vadd.f32 %v3173, %v3286
        %3288 = vmatmul.bf16.gmra.mxu0 %v2589
        %v3289 = vpop.f32.mrf.mxu0
        %v3290 = vadd.f32 %v3176, %v3289
        %v3291 = vpop.f32.mrf.mxu0
        %v3292 = vadd.f32 %v3178, %v3291
        %3293 = vmatmul.bf16.gmra.mxu0 %v2594
        %v3294 = vpop.f32.mrf.mxu0
        %v3295 = vadd.f32 %v3181, %v3294
        %v3296 = vpop.f32.mrf.mxu0
        %v3297 = vadd.f32 %v3183, %v3296
        %3298 = vdwg.mxu0
        %3299 = vmatpush.bf16.msra.mxu0 %v2853
        %3300 = vmatpush.bf16.msra.mxu0 %v2852
        %3301 = vmatpush.bf16.msra.mxu0 %v2851
        %3302 = vmatpush.bf16.msra.mxu0 %v2850
        %3303 = vmatpush.bf16.msra.mxu0 %v2849
        %3304 = vmatpush.bf16.msra.mxu0 %v2848
        %3305 = vmatpush.bf16.msra.mxu0 %v2847
        %3306 = vmatpush.bf16.msra.mxu0 %v2846
        %3307 = vmatmul.bf16.gmra.mxu0 %v2495
        %v3308 = vpop.f32.mrf.mxu0
        %v3309 = vadd.f32 %v3195, %v3308
        %v3310 = vpop.f32.mrf.mxu0
        %v3311 = vadd.f32 %v3197, %v3310
        %3312 = vmatmul.bf16.gmra.mxu0 %v2500
        %v3313 = vpop.f32.mrf.mxu0
        %v3314 = vadd.f32 %v3200, %v3313
        %v3315 = vpop.f32.mrf.mxu0
        %v3316 = vadd.f32 %v3202, %v3315
        %3317 = vmatmul.bf16.gmra.mxu0 %v2505
        %v3318 = vpop.f32.mrf.mxu0
        %v3319 = vadd.f32 %v3205, %v3318
        %v3320 = vpop.f32.mrf.mxu0
        %v3321 = vadd.f32 %v3207, %v3320
        %3322 = vmatmul.bf16.gmra.mxu0 %v2510
        %v3323 = vpop.f32.mrf.mxu0
        %v3324 = vadd.f32 %v3210, %v3323
        %v3325 = vpop.f32.mrf.mxu0
        %v3326 = vadd.f32 %v3212, %v3325
        %3327 = vmatmul.bf16.gmra.mxu0 %v2515
        %v3328 = vpop.f32.mrf.mxu0
        %v3329 = vadd.f32 %v3215, %v3328
        %v3330 = vpop.f32.mrf.mxu0
        %v3331 = vadd.f32 %v3217, %v3330
        %3332 = vmatmul.bf16.gmra.mxu0 %v2520
        %v3333 = vpop.f32.mrf.mxu0
        %v3334 = vadd.f32 %v3220, %v3333
        %v3335 = vpop.f32.mrf.mxu0
        %v3336 = vadd.f32 %v3222, %v3335
        %3337 = vmatmul.bf16.gmra.mxu0 %v2525
        %v3338 = vpop.f32.mrf.mxu0
        %v3339 = vadd.f32 %v3225, %v3338
        %v3340 = vpop.f32.mrf.mxu0
        %v3341 = vadd.f32 %v3227, %v3340
        %3342 = vmatmul.bf16.gmra.mxu0 %v2530
        %v3343 = vpop.f32.mrf.mxu0
        %v3344 = vadd.f32 %v3230, %v3343
        %v3345 = vpop.f32.mrf.mxu0
        %v3346 = vadd.f32 %v3232, %v3345
        %3347 = vmatmul.bf16.gmra.mxu0 %v2535
        %v3348 = vpop.f32.mrf.mxu0
        %v3349 = vadd.f32 %v3235, %v3348
        %v3350 = vpop.f32.mrf.mxu0
        %v3351 = vadd.f32 %v3237, %v3350
        %3352 = vmatmul.bf16.gmra.mxu0 %v2540
        %v3353 = vpop.f32.mrf.mxu0
        %v3354 = vadd.f32 %v3240, %v3353
        %v3355 = vpop.f32.mrf.mxu0
        %v3356 = vadd.f32 %v3242, %v3355
        %3357 = vmatmul.bf16.gmra.mxu0 %v2545
        %v3358 = vpop.f32.mrf.mxu0
        %v3359 = vadd.f32 %v3245, %v3358
        %v3360 = vpop.f32.mrf.mxu0
        %v3361 = vadd.f32 %v3247, %v3360
        %3362 = vmatmul.bf16.gmra.mxu0 %v2550
        %v3363 = vpop.f32.mrf.mxu0
        %v3364 = vadd.f32 %v3250, %v3363
        %v3365 = vpop.f32.mrf.mxu0
        %v3366 = vadd.f32 %v3252, %v3365
        %3367 = vmatmul.bf16.gmra.mxu0 %v2555
        %v3368 = vpop.f32.mrf.mxu0
        %v3369 = vadd.f32 %v3255, %v3368
        %v3370 = vpop.f32.mrf.mxu0
        %v3371 = vadd.f32 %v3257, %v3370
        %3372 = vmatmul.bf16.gmra.mxu0 %v2560
        %v3373 = vpop.f32.mrf.mxu0
        %v3374 = vadd.f32 %v3260, %v3373
        %v3375 = vpop.f32.mrf.mxu0
        %v3376 = vadd.f32 %v3262, %v3375
        %3377 = vmatmul.bf16.gmra.mxu0 %v2565
        %v3378 = vpop.f32.mrf.mxu0
        %v3379 = vadd.f32 %v3265, %v3378
        %v3380 = vpop.f32.mrf.mxu0
        %v3381 = vadd.f32 %v3267, %v3380
        %3382 = vmatmul.bf16.gmra.mxu0 %v2570
        %v3383 = vpop.f32.mrf.mxu0
        %v3384 = vadd.f32 %v3270, %v3383
        %v3385 = vpop.f32.mrf.mxu0
        %v3386 = vadd.f32 %v3272, %v3385
        %3387 = vmatmul.bf16.gmra.mxu0 %v2575
        %v3388 = vpop.f32.mrf.mxu0
        %v3389 = vadd.f32 %v3275, %v3388
        %v3390 = vpop.f32.mrf.mxu0
        %v3391 = vadd.f32 %v3277, %v3390
        %3392 = vmatmul.bf16.gmra.mxu0 %v2580
        %v3393 = vpop.f32.mrf.mxu0
        %v3394 = vadd.f32 %v3280, %v3393
        %v3395 = vpop.f32.mrf.mxu0
        %v3396 = vadd.f32 %v3282, %v3395
        %3397 = vmatmul.bf16.gmra.mxu0 %v2585
        %v3398 = vpop.f32.mrf.mxu0
        %v3399 = vadd.f32 %v3285, %v3398
        %v3400 = vpop.f32.mrf.mxu0
        %v3401 = vadd.f32 %v3287, %v3400
        %3402 = vmatmul.bf16.gmra.mxu0 %v2590
        %v3403 = vpop.f32.mrf.mxu0
        %v3404 = vadd.f32 %v3290, %v3403
        %v3405 = vpop.f32.mrf.mxu0
        %v3406 = vadd.f32 %v3292, %v3405
        %3407 = vmatmul.bf16.gmra.mxu0 %v2595
        %v3408 = vpop.f32.mrf.mxu0
        %v3409 = vadd.f32 %v3295, %v3408
        %v3410 = vpop.f32.mrf.mxu0
        %v3411 = vadd.f32 %v3297, %v3410
        %3412 = vdwg.mxu0
        %3413 = vmatpush.bf16.msra.mxu0 0
        %3414 = vmatpush.bf16.msra.mxu0 0
        %3415 = vmatpush.bf16.msra.mxu0 0
        %3416 = vmatpush.bf16.msra.mxu0 0
        %3417 = vmatpush.bf16.msra.mxu0 %v2857
        %3418 = vmatpush.bf16.msra.mxu0 %v2856
        %3419 = vmatpush.bf16.msra.mxu0 %v2855
        %3420 = vmatpush.bf16.msra.mxu0 %v2854
        %3421 = vmatmul.bf16.gmra.mxu0 %v2895
        %v3422 = vpop.f32.mrf.mxu0
        %v3423 = vadd.f32 %v3309, %v3422
        %v3424 = vpop.f32.mrf.mxu0
        %v3425 = vadd.f32 %v3311, %v3424
        %3426 = vmatmul.bf16.gmra.mxu0 %v2898
        %v3427 = vpop.f32.mrf.mxu0
        %v3428 = vadd.f32 %v3314, %v3427
        %v3429 = vpop.f32.mrf.mxu0
        %v3430 = vadd.f32 %v3316, %v3429
        %3431 = vmatmul.bf16.gmra.mxu0 %v2901
        %v3432 = vpop.f32.mrf.mxu0
        %v3433 = vadd.f32 %v3319, %v3432
        %v3434 = vpop.f32.mrf.mxu0
        %v3435 = vadd.f32 %v3321, %v3434
        %3436 = vmatmul.bf16.gmra.mxu0 %v2904
        %v3437 = vpop.f32.mrf.mxu0
        %v3438 = vadd.f32 %v3324, %v3437
        %v3439 = vpop.f32.mrf.mxu0
        %v3440 = vadd.f32 %v3326, %v3439
        %3441 = vmatmul.bf16.gmra.mxu0 %v2907
        %v3442 = vpop.f32.mrf.mxu0
        %v3443 = vadd.f32 %v3329, %v3442
        %v3444 = vpop.f32.mrf.mxu0
        %v3445 = vadd.f32 %v3331, %v3444
        %3446 = vmatmul.bf16.gmra.mxu0 %v2910
        %v3447 = vpop.f32.mrf.mxu0
        %v3448 = vadd.f32 %v3334, %v3447
        %v3449 = vpop.f32.mrf.mxu0
        %v3450 = vadd.f32 %v3336, %v3449
        %3451 = vmatmul.bf16.gmra.mxu0 %v2913
        %v3452 = vpop.f32.mrf.mxu0
        %v3453 = vadd.f32 %v3339, %v3452
        %v3454 = vpop.f32.mrf.mxu0
        %v3455 = vadd.f32 %v3341, %v3454
        %3456 = vmatmul.bf16.gmra.mxu0 %v2916
        %v3457 = vpop.f32.mrf.mxu0
        %v3458 = vadd.f32 %v3344, %v3457
        %v3459 = vpop.f32.mrf.mxu0
        %v3460 = vadd.f32 %v3346, %v3459
        %3461 = vmatmul.bf16.gmra.mxu0 %v2919
        %v3462 = vpop.f32.mrf.mxu0
        %v3463 = vadd.f32 %v3349, %v3462
        %v3464 = vpop.f32.mrf.mxu0
        %v3465 = vadd.f32 %v3351, %v3464
        %3466 = vmatmul.bf16.gmra.mxu0 %v2922
        %v3467 = vpop.f32.mrf.mxu0
        %v3468 = vadd.f32 %v3354, %v3467
        %v3469 = vpop.f32.mrf.mxu0
        %v3470 = vadd.f32 %v3356, %v3469
        %3471 = vmatmul.bf16.gmra.mxu0 %v2925
        %v3472 = vpop.f32.mrf.mxu0
        %v3473 = vadd.f32 %v3359, %v3472
        %v3474 = vpop.f32.mrf.mxu0
        %v3475 = vadd.f32 %v3361, %v3474
        %3476 = vmatmul.bf16.gmra.mxu0 %v2928
        %v3477 = vpop.f32.mrf.mxu0
        %v3478 = vadd.f32 %v3364, %v3477
        %v3479 = vpop.f32.mrf.mxu0
        %v3480 = vadd.f32 %v3366, %v3479
        %3481 = vmatmul.bf16.gmra.mxu0 %v2931
        %v3482 = vpop.f32.mrf.mxu0
        %v3483 = vadd.f32 %v3369, %v3482
        %v3484 = vpop.f32.mrf.mxu0
        %v3485 = vadd.f32 %v3371, %v3484
        %3486 = vmatmul.bf16.gmra.mxu0 %v2934
        %v3487 = vpop.f32.mrf.mxu0
        %v3488 = vadd.f32 %v3374, %v3487
        %v3489 = vpop.f32.mrf.mxu0
        %v3490 = vadd.f32 %v3376, %v3489
        %3491 = vmatmul.bf16.gmra.mxu0 %v2937
        %v3492 = vpop.f32.mrf.mxu0
        %v3493 = vadd.f32 %v3379, %v3492
        %v3494 = vpop.f32.mrf.mxu0
        %v3495 = vadd.f32 %v3381, %v3494
        %3496 = vmatmul.bf16.gmra.mxu0 %v2940
        %v3497 = vpop.f32.mrf.mxu0
        %v3498 = vadd.f32 %v3384, %v3497
        %v3499 = vpop.f32.mrf.mxu0
        %v3500 = vadd.f32 %v3386, %v3499
        %3501 = vmatmul.bf16.gmra.mxu0 %v2943
        %v3502 = vpop.f32.mrf.mxu0
        %v3503 = vadd.f32 %v3389, %v3502
        %v3504 = vpop.f32.mrf.mxu0
        %v3505 = vadd.f32 %v3391, %v3504
        %3506 = vmatmul.bf16.gmra.mxu0 %v2946
        %v3507 = vpop.f32.mrf.mxu0
        %v3508 = vadd.f32 %v3394, %v3507
        %v3509 = vpop.f32.mrf.mxu0
        %v3510 = vadd.f32 %v3396, %v3509
        %3511 = vmatmul.bf16.gmra.mxu0 %v2949
        %v3512 = vpop.f32.mrf.mxu0
        %v3513 = vadd.f32 %v3399, %v3512
        %v3514 = vpop.f32.mrf.mxu0
        %v3515 = vadd.f32 %v3401, %v3514
        %3516 = vmatmul.bf16.gmra.mxu0 %v2952
        %v3517 = vpop.f32.mrf.mxu0
        %v3518 = vadd.f32 %v3404, %v3517
        %v3519 = vpop.f32.mrf.mxu0
        %v3520 = vadd.f32 %v3406, %v3519
        %3521 = vmatmul.bf16.gmra.mxu0 %v2955
        %v3522 = vpop.f32.mrf.mxu0
        %v3523 = vadd.f32 %v3409, %v3522
        %v3524 = vpop.f32.mrf.mxu0
        %v3525 = vadd.f32 %v3411, %v3524
        %3526 = vdwg.mxu0
        %s3527 = sadd.s32 %s1092, 1
        %s3528 = sld [smem:[#allocation3 + %s3527]]
        %vm3529 = vcmp.gt.f32.partialorder %v3423, 0.0
        %vm3530 = vcmp.gt.f32.partialorder %v3425, 0.0
        %vm3531 = vcmp.gt.f32.partialorder %v3428, 0.0
        %vm3532 = vcmp.gt.f32.partialorder %v3430, 0.0
        %vm3533 = vcmp.gt.f32.partialorder %v3433, 0.0
        %vm3534 = vcmp.gt.f32.partialorder %v3435, 0.0
        %vm3535 = vcmp.gt.f32.partialorder %v3438, 0.0
        %vm3536 = vcmp.gt.f32.partialorder %v3440, 0.0
        %vm3537 = vcmp.gt.f32.partialorder %v3443, 0.0
        %vm3538 = vcmp.gt.f32.partialorder %v3445, 0.0
        %vm3539 = vcmp.gt.f32.partialorder %v3448, 0.0
        %vm3540 = vcmp.gt.f32.partialorder %v3450, 0.0
        %vm3541 = vcmp.gt.f32.partialorder %v3453, 0.0
        %vm3542 = vcmp.gt.f32.partialorder %v3455, 0.0
        %vm3543 = vcmp.gt.f32.partialorder %v3458, 0.0
        %vm3544 = vcmp.gt.f32.partialorder %v3460, 0.0
        %vm3545 = vcmp.gt.f32.partialorder %v3463, 0.0
        %vm3546 = vcmp.gt.f32.partialorder %v3465, 0.0
        %vm3547 = vcmp.gt.f32.partialorder %v3468, 0.0
        %vm3548 = vcmp.gt.f32.partialorder %v3470, 0.0
        %vm3549 = vcmp.gt.f32.partialorder %v3473, 0.0
        %vm3550 = vcmp.gt.f32.partialorder %v3475, 0.0
        %vm3551 = vcmp.gt.f32.partialorder %v3478, 0.0
        %vm3552 = vcmp.gt.f32.partialorder %v3480, 0.0
        %vm3553 = vcmp.gt.f32.partialorder %v3483, 0.0
        %vm3554 = vcmp.gt.f32.partialorder %v3485, 0.0
        %vm3555 = vcmp.gt.f32.partialorder %v3488, 0.0
        %vm3556 = vcmp.gt.f32.partialorder %v3490, 0.0
        %vm3557 = vcmp.gt.f32.partialorder %v3493, 0.0
        %vm3558 = vcmp.gt.f32.partialorder %v3495, 0.0
        %vm3559 = vcmp.gt.f32.partialorder %v3498, 0.0
        %vm3560 = vcmp.gt.f32.partialorder %v3500, 0.0
        %vm3561 = vcmp.gt.f32.partialorder %v3503, 0.0
        %vm3562 = vcmp.gt.f32.partialorder %v3505, 0.0
        %vm3563 = vcmp.gt.f32.partialorder %v3508, 0.0
        %vm3564 = vcmp.gt.f32.partialorder %v3510, 0.0
        %vm3565 = vcmp.gt.f32.partialorder %v3513, 0.0
        %vm3566 = vcmp.gt.f32.partialorder %v3515, 0.0
        %vm3567 = vcmp.gt.f32.partialorder %v3518, 0.0
        %vm3568 = vcmp.gt.f32.partialorder %v3520, 0.0
        %vm3569 = vcmp.gt.f32.partialorder %v3523, 0.0
        %vm3570 = vcmp.gt.f32.partialorder %v3525, 0.0
        %v3571 = vstv %s3528
        %v3572 = vmul.f32 %v3571, %v3423
        %v3573 = vmul.f32 %v3571, %v3425
        %v3574 = vmul.f32 %v3571, %v3428
        %v3575 = vmul.f32 %v3571, %v3430
        %v3576 = vmul.f32 %v3571, %v3433
        %v3577 = vmul.f32 %v3571, %v3435
        %v3578 = vmul.f32 %v3571, %v3438
        %v3579 = vmul.f32 %v3571, %v3440
        %v3580 = vmul.f32 %v3571, %v3443
        %v3581 = vmul.f32 %v3571, %v3445
        %v3582 = vmul.f32 %v3571, %v3448
        %v3583 = vmul.f32 %v3571, %v3450
        %v3584 = vmul.f32 %v3571, %v3453
        %v3585 = vmul.f32 %v3571, %v3455
        %v3586 = vmul.f32 %v3571, %v3458
        %v3587 = vmul.f32 %v3571, %v3460
        %v3588 = vmul.f32 %v3571, %v3463
        %v3589 = vmul.f32 %v3571, %v3465
        %v3590 = vmul.f32 %v3571, %v3468
        %v3591 = vmul.f32 %v3571, %v3470
        %v3592 = vmul.f32 %v3571, %v3473
        %v3593 = vmul.f32 %v3571, %v3475
        %v3594 = vmul.f32 %v3571, %v3478
        %v3595 = vmul.f32 %v3571, %v3480
        %v3596 = vmul.f32 %v3571, %v3483
        %v3597 = vmul.f32 %v3571, %v3485
        %v3598 = vmul.f32 %v3571, %v3488
        %v3599 = vmul.f32 %v3571, %v3490
        %v3600 = vmul.f32 %v3571, %v3493
        %v3601 = vmul.f32 %v3571, %v3495
        %v3602 = vmul.f32 %v3571, %v3498
        %v3603 = vmul.f32 %v3571, %v3500
        %v3604 = vmul.f32 %v3571, %v3503
        %v3605 = vmul.f32 %v3571, %v3505
        %v3606 = vmul.f32 %v3571, %v3508
        %v3607 = vmul.f32 %v3571, %v3510
        %v3608 = vmul.f32 %v3571, %v3513
        %v3609 = vmul.f32 %v3571, %v3515
        %v3610 = vmul.f32 %v3571, %v3518
        %v3611 = vmul.f32 %v3571, %v3520
        %v3612 = vmul.f32 %v3571, %v3523
        %v3613 = vmul.f32 %v3571, %v3525
        %v3614 = vsel %vm3529, %v3423, %v3572
        %v3615 = vsel %vm3530, %v3425, %v3573
        %v3616 = vsel %vm3531, %v3428, %v3574
        %v3617 = vsel %vm3532, %v3430, %v3575
        %v3618 = vsel %vm3533, %v3433, %v3576
        %v3619 = vsel %vm3534, %v3435, %v3577
        %v3620 = vsel %vm3535, %v3438, %v3578
        %v3621 = vsel %vm3536, %v3440, %v3579
        %v3622 = vsel %vm3537, %v3443, %v3580
        %v3623 = vsel %vm3538, %v3445, %v3581
        %v3624 = vsel %vm3539, %v3448, %v3582
        %v3625 = vsel %vm3540, %v3450, %v3583
        %v3626 = vsel %vm3541, %v3453, %v3584
        %v3627 = vsel %vm3542, %v3455, %v3585
        %v3628 = vsel %vm3543, %v3458, %v3586
        %v3629 = vsel %vm3544, %v3460, %v3587
        %v3630 = vsel %vm3545, %v3463, %v3588
        %v3631 = vsel %vm3546, %v3465, %v3589
        %v3632 = vsel %vm3547, %v3468, %v3590
        %v3633 = vsel %vm3548, %v3470, %v3591
        %v3634 = vsel %vm3549, %v3473, %v3592
        %v3635 = vsel %vm3550, %v3475, %v3593
        %v3636 = vsel %vm3551, %v3478, %v3594
        %v3637 = vsel %vm3552, %v3480, %v3595
        %v3638 = vsel %vm3553, %v3483, %v3596
        %v3639 = vsel %vm3554, %v3485, %v3597
        %v3640 = vsel %vm3555, %v3488, %v3598
        %v3641 = vsel %vm3556, %v3490, %v3599
        %v3642 = vsel %vm3557, %v3493, %v3600
        %v3643 = vsel %vm3558, %v3495, %v3601
        %v3644 = vsel %vm3559, %v3498, %v3602
        %v3645 = vsel %vm3560, %v3500, %v3603
        %v3646 = vsel %vm3561, %v3503, %v3604
        %v3647 = vsel %vm3562, %v3505, %v3605
        %v3648 = vsel %vm3563, %v3508, %v3606
        %v3649 = vsel %vm3564, %v3510, %v3607
        %v3650 = vsel %vm3565, %v3513, %v3608
        %v3651 = vsel %vm3566, %v3515, %v3609
        %v3652 = vsel %vm3567, %v3518, %v3610
        %v3653 = vsel %vm3568, %v3520, %v3611
        %v3654 = vsel %vm3569, %v3523, %v3612
        %v3655 = vsel %vm3570, %v3525, %v3613
        %v3656 = vmul.f32 %v3614, %v842
        %v3657 = vmul.f32 %v3615, %v847
        %v3658 = vmul.f32 %v3616, %v852
        %v3659 = vmul.f32 %v3617, %v857
        %v3660 = vmul.f32 %v3618, %v862
        %v3661 = vmul.f32 %v3619, %v867
        %v3662 = vmul.f32 %v3620, %v872
        %v3663 = vmul.f32 %v3621, %v877
        %v3664 = vmul.f32 %v3622, %v882
        %v3665 = vmul.f32 %v3623, %v887
        %v3666 = vmul.f32 %v3624, %v892
        %v3667 = vmul.f32 %v3625, %v897
        %v3668 = vmul.f32 %v3626, %v902
        %v3669 = vmul.f32 %v3627, %v907
        %v3670 = vmul.f32 %v3628, %v912
        %v3671 = vmul.f32 %v3629, %v917
        %v3672 = vmul.f32 %v3630, %v922
        %v3673 = vmul.f32 %v3631, %v927
        %v3674 = vmul.f32 %v3632, %v932
        %v3675 = vmul.f32 %v3633, %v937
        %v3676 = vmul.f32 %v3634, %v942
        %v3677 = vmul.f32 %v3635, %v947
        %v3678 = vmul.f32 %v3636, %v952
        %v3679 = vmul.f32 %v3637, %v957
        %v3680 = vmul.f32 %v3638, %v962
        %v3681 = vmul.f32 %v3639, %v967
        %v3682 = vmul.f32 %v3640, %v972
        %v3683 = vmul.f32 %v3641, %v977
        %v3684 = vmul.f32 %v3642, %v982
        %v3685 = vmul.f32 %v3643, %v987
        %v3686 = vmul.f32 %v3644, %v992
        %v3687 = vmul.f32 %v3645, %v997
        %v3688 = vmul.f32 %v3646, %v1002
        %v3689 = vmul.f32 %v3647, %v1007
        %v3690 = vmul.f32 %v3648, %v1012
        %v3691 = vmul.f32 %v3649, %v1017
        %v3692 = vmul.f32 %v3650, %v1022
        %v3693 = vmul.f32 %v3651, %v1027
        %v3694 = vmul.f32 %v3652, %v1032
        %v3695 = vmul.f32 %v3653, %v1037
        %v3696 = vmul.f32 %v3654, %v1042
        %v3697 = vmul.f32 %v3655, %v1047
        %v3698 = vrot.slane %v3656, 5
        %v3699 = vrot.slane %v3657, 5
        %v3700 = vrot.slane %v3658, 5
        %v3701 = vrot.slane %v3659, 5
        %v3702 = vrot.slane %v3660, 5
        %v3703 = vrot.slane %v3661, 5
        %v3704 = vrot.slane %v3662, 5
        %v3705 = vrot.slane %v3663, 5
        %v3706 = vrot.slane %v3664, 5
        %v3707 = vrot.slane %v3665, 5
        %v3708 = vrot.slane %v3666, 5
        %v3709 = vrot.slane %v3667, 5
        %v3710 = vrot.slane %v3668, 5
        %v3711 = vrot.slane %v3669, 5
        %v3712 = vrot.slane %v3670, 5
        %v3713 = vrot.slane %v3671, 5
        %v3714 = vrot.slane %v3672, 5
        %v3715 = vrot.slane %v3673, 5
        %v3716 = vrot.slane %v3674, 5
        %v3717 = vrot.slane %v3675, 5
        %v3718 = vrot.slane %v3676, 5
        %v3719 = vrot.slane %v3677, 5
        %v3720 = vrot.slane %v3678, 5
        %v3721 = vrot.slane %v3679, 5
        %v3722 = vrot.slane %v3680, 5
        %v3723 = vrot.slane %v3681, 5
        %v3724 = vrot.slane %v3682, 5
        %v3725 = vrot.slane %v3683, 5
        %v3726 = vrot.slane %v3684, 5
        %v3727 = vrot.slane %v3685, 5
        %v3728 = vrot.slane %v3686, 5
        %v3729 = vrot.slane %v3687, 5
        %v3730 = vrot.slane %v3688, 5
        %v3731 = vrot.slane %v3689, 5
        %v3732 = vrot.slane %v3690, 5
        %v3733 = vrot.slane %v3691, 5
        %v3734 = vrot.slane %v3692, 5
        %v3735 = vrot.slane %v3693, 5
        %v3736 = vrot.slane %v3694, 5
        %v3737 = vrot.slane %v3695, 5
        %v3738 = vrot.slane %v3696, 5
        %v3739 = vrot.slane %v3697, 5
        %v3740 = vsel %vm1183, %v3738, %v3739
        %v3741 = vsel %vm1183, %v3737, %v3738
        %v3742 = vsel %vm1183, %v3736, %v3737
        %v3743 = vsel %vm1183, %v3735, %v3736
        %v3744 = vsel %vm1183, %v3734, %v3735
        %v3745 = vsel %vm1183, %v3733, %v3734
        %v3746 = vsel %vm1183, %v3732, %v3733
        %v3747 = vsel %vm1183, %v3731, %v3732
        %v3748 = vsel %vm1183, %v3730, %v3731
        %v3749 = vsel %vm1183, %v3729, %v3730
        %v3750 = vsel %vm1183, %v3728, %v3729
        %v3751 = vsel %vm1183, %v3727, %v3728
        %v3752 = vsel %vm1183, %v3726, %v3727
        %v3753 = vsel %vm1183, %v3725, %v3726
        %v3754 = vsel %vm1183, %v3724, %v3725
        %v3755 = vsel %vm1183, %v3723, %v3724
        %v3756 = vsel %vm1183, %v3722, %v3723
        %v3757 = vsel %vm1183, %v3721, %v3722
        %v3758 = vsel %vm1183, %v3720, %v3721
        %v3759 = vsel %vm1183, %v3719, %v3720
        %v3760 = vsel %vm1183, %v3718, %v3719
        %v3761 = vsel %vm1183, %v3717, %v3718
        %v3762 = vsel %vm1183, %v3716, %v3717
        %v3763 = vsel %vm1183, %v3715, %v3716
        %v3764 = vsel %vm1183, %v3714, %v3715
        %v3765 = vsel %vm1183, %v3713, %v3714
        %v3766 = vsel %vm1183, %v3712, %v3713
        %v3767 = vsel %vm1183, %v3711, %v3712
        %v3768 = vsel %vm1183, %v3710, %v3711
        %v3769 = vsel %vm1183, %v3709, %v3710
        %v3770 = vsel %vm1183, %v3708, %v3709
        %v3771 = vsel %vm1183, %v3707, %v3708
        %v3772 = vsel %vm1183, %v3706, %v3707
        %v3773 = vsel %vm1183, %v3705, %v3706
        %v3774 = vsel %vm1183, %v3704, %v3705
        %v3775 = vsel %vm1183, %v3703, %v3704
        %v3776 = vsel %vm1183, %v3702, %v3703
        %v3777 = vsel %vm1183, %v3701, %v3702
        %v3778 = vsel %vm1183, %v3700, %v3701
        %v3779 = vsel %vm1183, %v3699, %v3700
        %v3780 = vsel %vm1183, %v3698, %v3699
        %v3781 = vsel %vm1183, %v3739, %v3698
        %v3782 = vrot.slane %v3656, 6
        %v3783 = vrot.slane %v3657, 6
        %v3784 = vrot.slane %v3658, 6
        %v3785 = vrot.slane %v3659, 6
        %v3786 = vrot.slane %v3660, 6
        %v3787 = vrot.slane %v3661, 6
        %v3788 = vrot.slane %v3662, 6
        %v3789 = vrot.slane %v3663, 6
        %v3790 = vrot.slane %v3664, 6
        %v3791 = vrot.slane %v3665, 6
        %v3792 = vrot.slane %v3666, 6
        %v3793 = vrot.slane %v3667, 6
        %v3794 = vrot.slane %v3668, 6
        %v3795 = vrot.slane %v3669, 6
        %v3796 = vrot.slane %v3670, 6
        %v3797 = vrot.slane %v3671, 6
        %v3798 = vrot.slane %v3672, 6
        %v3799 = vrot.slane %v3673, 6
        %v3800 = vrot.slane %v3674, 6
        %v3801 = vrot.slane %v3675, 6
        %v3802 = vrot.slane %v3676, 6
        %v3803 = vrot.slane %v3677, 6
        %v3804 = vrot.slane %v3678, 6
        %v3805 = vrot.slane %v3679, 6
        %v3806 = vrot.slane %v3680, 6
        %v3807 = vrot.slane %v3681, 6
        %v3808 = vrot.slane %v3682, 6
        %v3809 = vrot.slane %v3683, 6
        %v3810 = vrot.slane %v3684, 6
        %v3811 = vrot.slane %v3685, 6
        %v3812 = vrot.slane %v3686, 6
        %v3813 = vrot.slane %v3687, 6
        %v3814 = vrot.slane %v3688, 6
        %v3815 = vrot.slane %v3689, 6
        %v3816 = vrot.slane %v3690, 6
        %v3817 = vrot.slane %v3691, 6
        %v3818 = vrot.slane %v3692, 6
        %v3819 = vrot.slane %v3693, 6
        %v3820 = vrot.slane %v3694, 6
        %v3821 = vrot.slane %v3695, 6
        %v3822 = vrot.slane %v3696, 6
        %v3823 = vrot.slane %v3697, 6
        %v3824 = vsel %vm1268, %v3822, %v3823
        %v3825 = vsel %vm1268, %v3821, %v3822
        %v3826 = vsel %vm1268, %v3820, %v3821
        %v3827 = vsel %vm1268, %v3819, %v3820
        %v3828 = vsel %vm1268, %v3818, %v3819
        %v3829 = vsel %vm1268, %v3817, %v3818
        %v3830 = vsel %vm1268, %v3816, %v3817
        %v3831 = vsel %vm1268, %v3815, %v3816
        %v3832 = vsel %vm1268, %v3814, %v3815
        %v3833 = vsel %vm1268, %v3813, %v3814
        %v3834 = vsel %vm1268, %v3812, %v3813
        %v3835 = vsel %vm1268, %v3811, %v3812
        %v3836 = vsel %vm1268, %v3810, %v3811
        %v3837 = vsel %vm1268, %v3809, %v3810
        %v3838 = vsel %vm1268, %v3808, %v3809
        %v3839 = vsel %vm1268, %v3807, %v3808
        %v3840 = vsel %vm1268, %v3806, %v3807
        %v3841 = vsel %vm1268, %v3805, %v3806
        %v3842 = vsel %vm1268, %v3804, %v3805
        %v3843 = vsel %vm1268, %v3803, %v3804
        %v3844 = vsel %vm1268, %v3802, %v3803
        %v3845 = vsel %vm1268, %v3801, %v3802
        %v3846 = vsel %vm1268, %v3800, %v3801
        %v3847 = vsel %vm1268, %v3799, %v3800
        %v3848 = vsel %vm1268, %v3798, %v3799
        %v3849 = vsel %vm1268, %v3797, %v3798
        %v3850 = vsel %vm1268, %v3796, %v3797
        %v3851 = vsel %vm1268, %v3795, %v3796
        %v3852 = vsel %vm1268, %v3794, %v3795
        %v3853 = vsel %vm1268, %v3793, %v3794
        %v3854 = vsel %vm1268, %v3792, %v3793
        %v3855 = vsel %vm1268, %v3791, %v3792
        %v3856 = vsel %vm1268, %v3790, %v3791
        %v3857 = vsel %vm1268, %v3789, %v3790
        %v3858 = vsel %vm1268, %v3788, %v3789
        %v3859 = vsel %vm1268, %v3787, %v3788
        %v3860 = vsel %vm1268, %v3786, %v3787
        %v3861 = vsel %vm1268, %v3785, %v3786
        %v3862 = vsel %vm1268, %v3784, %v3785
        %v3863 = vsel %vm1268, %v3783, %v3784
        %v3864 = vsel %vm1268, %v3782, %v3783
        %v3865 = vsel %vm1268, %v3823, %v3782
        %v3866 = vrot.slane %v3656, 7
        %v3867 = vrot.slane %v3657, 7
        %v3868 = vrot.slane %v3658, 7
        %v3869 = vrot.slane %v3659, 7
        %v3870 = vrot.slane %v3660, 7
        %v3871 = vrot.slane %v3661, 7
        %v3872 = vrot.slane %v3662, 7
        %v3873 = vrot.slane %v3663, 7
        %v3874 = vrot.slane %v3664, 7
        %v3875 = vrot.slane %v3665, 7
        %v3876 = vrot.slane %v3666, 7
        %v3877 = vrot.slane %v3667, 7
        %v3878 = vrot.slane %v3668, 7
        %v3879 = vrot.slane %v3669, 7
        %v3880 = vrot.slane %v3670, 7
        %v3881 = vrot.slane %v3671, 7
        %v3882 = vrot.slane %v3672, 7
        %v3883 = vrot.slane %v3673, 7
        %v3884 = vrot.slane %v3674, 7
        %v3885 = vrot.slane %v3675, 7
        %v3886 = vrot.slane %v3676, 7
        %v3887 = vrot.slane %v3677, 7
        %v3888 = vrot.slane %v3678, 7
        %v3889 = vrot.slane %v3679, 7
        %v3890 = vrot.slane %v3680, 7
        %v3891 = vrot.slane %v3681, 7
        %v3892 = vrot.slane %v3682, 7
        %v3893 = vrot.slane %v3683, 7
        %v3894 = vrot.slane %v3684, 7
        %v3895 = vrot.slane %v3685, 7
        %v3896 = vrot.slane %v3686, 7
        %v3897 = vrot.slane %v3687, 7
        %v3898 = vrot.slane %v3688, 7
        %v3899 = vrot.slane %v3689, 7
        %v3900 = vrot.slane %v3690, 7
        %v3901 = vrot.slane %v3691, 7
        %v3902 = vrot.slane %v3692, 7
        %v3903 = vrot.slane %v3693, 7
        %v3904 = vrot.slane %v3694, 7
        %v3905 = vrot.slane %v3695, 7
        %v3906 = vrot.slane %v3696, 7
        %v3907 = vrot.slane %v3697, 7
        %v3908 = vsel %vm1353, %v3906, %v3907
        %v3909 = vsel %vm1353, %v3905, %v3906
        %v3910 = vsel %vm1353, %v3904, %v3905
        %v3911 = vsel %vm1353, %v3903, %v3904
        %v3912 = vsel %vm1353, %v3902, %v3903
        %v3913 = vsel %vm1353, %v3901, %v3902
        %v3914 = vsel %vm1353, %v3900, %v3901
        %v3915 = vsel %vm1353, %v3899, %v3900
        %v3916 = vsel %vm1353, %v3898, %v3899
        %v3917 = vsel %vm1353, %v3897, %v3898
        %v3918 = vsel %vm1353, %v3896, %v3897
        %v3919 = vsel %vm1353, %v3895, %v3896
        %v3920 = vsel %vm1353, %v3894, %v3895
        %v3921 = vsel %vm1353, %v3893, %v3894
        %v3922 = vsel %vm1353, %v3892, %v3893
        %v3923 = vsel %vm1353, %v3891, %v3892
        %v3924 = vsel %vm1353, %v3890, %v3891
        %v3925 = vsel %vm1353, %v3889, %v3890
        %v3926 = vsel %vm1353, %v3888, %v3889
        %v3927 = vsel %vm1353, %v3887, %v3888
        %v3928 = vsel %vm1353, %v3886, %v3887
        %v3929 = vsel %vm1353, %v3885, %v3886
        %v3930 = vsel %vm1353, %v3884, %v3885
        %v3931 = vsel %vm1353, %v3883, %v3884
        %v3932 = vsel %vm1353, %v3882, %v3883
        %v3933 = vsel %vm1353, %v3881, %v3882
        %v3934 = vsel %vm1353, %v3880, %v3881
        %v3935 = vsel %vm1353, %v3879, %v3880
        %v3936 = vsel %vm1353, %v3878, %v3879
        %v3937 = vsel %vm1353, %v3877, %v3878
        %v3938 = vsel %vm1353, %v3876, %v3877
        %v3939 = vsel %vm1353, %v3875, %v3876
        %v3940 = vsel %vm1353, %v3874, %v3875
        %v3941 = vsel %vm1353, %v3873, %v3874
        %v3942 = vsel %vm1353, %v3872, %v3873
        %v3943 = vsel %vm1353, %v3871, %v3872
        %v3944 = vsel %vm1353, %v3870, %v3871
        %v3945 = vsel %vm1353, %v3869, %v3870
        %v3946 = vsel %vm1353, %v3868, %v3869
        %v3947 = vsel %vm1353, %v3867, %v3868
        %v3948 = vsel %vm1353, %v3866, %v3867
        %v3949 = vsel %vm1353, %v3907, %v3866
        %v3950 = vrot.slane %v3656, 1
        %v3951 = vrot.slane %v3657, 1
        %v3952 = vrot.slane %v3658, 1
        %v3953 = vrot.slane %v3659, 1
        %v3954 = vrot.slane %v3660, 1
        %v3955 = vrot.slane %v3661, 1
        %v3956 = vrot.slane %v3662, 1
        %v3957 = vrot.slane %v3663, 1
        %v3958 = vrot.slane %v3664, 1
        %v3959 = vrot.slane %v3665, 1
        %v3960 = vrot.slane %v3666, 1
        %v3961 = vrot.slane %v3667, 1
        %v3962 = vrot.slane %v3668, 1
        %v3963 = vrot.slane %v3669, 1
        %v3964 = vrot.slane %v3670, 1
        %v3965 = vrot.slane %v3671, 1
        %v3966 = vrot.slane %v3672, 1
        %v3967 = vrot.slane %v3673, 1
        %v3968 = vrot.slane %v3674, 1
        %v3969 = vrot.slane %v3675, 1
        %v3970 = vrot.slane %v3676, 1
        %v3971 = vrot.slane %v3677, 1
        %v3972 = vrot.slane %v3678, 1
        %v3973 = vrot.slane %v3679, 1
        %v3974 = vrot.slane %v3680, 1
        %v3975 = vrot.slane %v3681, 1
        %v3976 = vrot.slane %v3682, 1
        %v3977 = vrot.slane %v3683, 1
        %v3978 = vrot.slane %v3684, 1
        %v3979 = vrot.slane %v3685, 1
        %v3980 = vrot.slane %v3686, 1
        %v3981 = vrot.slane %v3687, 1
        %v3982 = vrot.slane %v3688, 1
        %v3983 = vrot.slane %v3689, 1
        %v3984 = vrot.slane %v3690, 1
        %v3985 = vrot.slane %v3691, 1
        %v3986 = vrot.slane %v3692, 1
        %v3987 = vrot.slane %v3693, 1
        %v3988 = vrot.slane %v3694, 1
        %v3989 = vrot.slane %v3695, 1
        %v3990 = vrot.slane %v3696, 1
        %v3991 = vrot.slane %v3697, 1
        %v3992 = vsel %vm1438, %v3990, %v3991
        %v3993 = vsel %vm1438, %v3989, %v3990
        %v3994 = vsel %vm1438, %v3988, %v3989
        %v3995 = vsel %vm1438, %v3987, %v3988
        %v3996 = vsel %vm1438, %v3986, %v3987
        %v3997 = vsel %vm1438, %v3985, %v3986
        %v3998 = vsel %vm1438, %v3984, %v3985
        %v3999 = vsel %vm1438, %v3983, %v3984
        %v4000 = vsel %vm1438, %v3982, %v3983
        %v4001 = vsel %vm1438, %v3981, %v3982
        %v4002 = vsel %vm1438, %v3980, %v3981
        %v4003 = vsel %vm1438, %v3979, %v3980
        %v4004 = vsel %vm1438, %v3978, %v3979
        %v4005 = vsel %vm1438, %v3977, %v3978
        %v4006 = vsel %vm1438, %v3976, %v3977
        %v4007 = vsel %vm1438, %v3975, %v3976
        %v4008 = vsel %vm1438, %v3974, %v3975
        %v4009 = vsel %vm1438, %v3973, %v3974
        %v4010 = vsel %vm1438, %v3972, %v3973
        %v4011 = vsel %vm1438, %v3971, %v3972
        %v4012 = vsel %vm1438, %v3970, %v3971
        %v4013 = vsel %vm1438, %v3969, %v3970
        %v4014 = vsel %vm1438, %v3968, %v3969
        %v4015 = vsel %vm1438, %v3967, %v3968
        %v4016 = vsel %vm1438, %v3966, %v3967
        %v4017 = vsel %vm1438, %v3965, %v3966
        %v4018 = vsel %vm1438, %v3964, %v3965
        %v4019 = vsel %vm1438, %v3963, %v3964
        %v4020 = vsel %vm1438, %v3962, %v3963
        %v4021 = vsel %vm1438, %v3961, %v3962
        %v4022 = vsel %vm1438, %v3960, %v3961
        %v4023 = vsel %vm1438, %v3959, %v3960
        %v4024 = vsel %vm1438, %v3958, %v3959
        %v4025 = vsel %vm1438, %v3957, %v3958
        %v4026 = vsel %vm1438, %v3956, %v3957
        %v4027 = vsel %vm1438, %v3955, %v3956
        %v4028 = vsel %vm1438, %v3954, %v3955
        %v4029 = vsel %vm1438, %v3953, %v3954
        %v4030 = vsel %vm1438, %v3952, %v3953
        %v4031 = vsel %vm1438, %v3951, %v3952
        %v4032 = vsel %vm1438, %v3950, %v3951
        %v4033 = vsel %vm1438, %v3991, %v3950
        %v4034 = vrot.slane %v3656, 2
        %v4035 = vrot.slane %v3657, 2
        %v4036 = vrot.slane %v3658, 2
        %v4037 = vrot.slane %v3659, 2
        %v4038 = vrot.slane %v3660, 2
        %v4039 = vrot.slane %v3661, 2
        %v4040 = vrot.slane %v3662, 2
        %v4041 = vrot.slane %v3663, 2
        %v4042 = vrot.slane %v3664, 2
        %v4043 = vrot.slane %v3665, 2
        %v4044 = vrot.slane %v3666, 2
        %v4045 = vrot.slane %v3667, 2
        %v4046 = vrot.slane %v3668, 2
        %v4047 = vrot.slane %v3669, 2
        %v4048 = vrot.slane %v3670, 2
        %v4049 = vrot.slane %v3671, 2
        %v4050 = vrot.slane %v3672, 2
        %v4051 = vrot.slane %v3673, 2
        %v4052 = vrot.slane %v3674, 2
        %v4053 = vrot.slane %v3675, 2
        %v4054 = vrot.slane %v3676, 2
        %v4055 = vrot.slane %v3677, 2
        %v4056 = vrot.slane %v3678, 2
        %v4057 = vrot.slane %v3679, 2
        %v4058 = vrot.slane %v3680, 2
        %v4059 = vrot.slane %v3681, 2
        %v4060 = vrot.slane %v3682, 2
        %v4061 = vrot.slane %v3683, 2
        %v4062 = vrot.slane %v3684, 2
        %v4063 = vrot.slane %v3685, 2
        %v4064 = vrot.slane %v3686, 2
        %v4065 = vrot.slane %v3687, 2
        %v4066 = vrot.slane %v3688, 2
        %v4067 = vrot.slane %v3689, 2
        %v4068 = vrot.slane %v3690, 2
        %v4069 = vrot.slane %v3691, 2
        %v4070 = vrot.slane %v3692, 2
        %v4071 = vrot.slane %v3693, 2
        %v4072 = vrot.slane %v3694, 2
        %v4073 = vrot.slane %v3695, 2
        %v4074 = vrot.slane %v3696, 2
        %v4075 = vrot.slane %v3697, 2
        %v4076 = vsel %vm1523, %v4074, %v4075
        %v4077 = vsel %vm1523, %v4073, %v4074
        %v4078 = vsel %vm1523, %v4072, %v4073
        %v4079 = vsel %vm1523, %v4071, %v4072
        %v4080 = vsel %vm1523, %v4070, %v4071
        %v4081 = vsel %vm1523, %v4069, %v4070
        %v4082 = vsel %vm1523, %v4068, %v4069
        %v4083 = vsel %vm1523, %v4067, %v4068
        %v4084 = vsel %vm1523, %v4066, %v4067
        %v4085 = vsel %vm1523, %v4065, %v4066
        %v4086 = vsel %vm1523, %v4064, %v4065
        %v4087 = vsel %vm1523, %v4063, %v4064
        %v4088 = vsel %vm1523, %v4062, %v4063
        %v4089 = vsel %vm1523, %v4061, %v4062
        %v4090 = vsel %vm1523, %v4060, %v4061
        %v4091 = vsel %vm1523, %v4059, %v4060
        %v4092 = vsel %vm1523, %v4058, %v4059
        %v4093 = vsel %vm1523, %v4057, %v4058
        %v4094 = vsel %vm1523, %v4056, %v4057
        %v4095 = vsel %vm1523, %v4055, %v4056
        %v4096 = vsel %vm1523, %v4054, %v4055
        %v4097 = vsel %vm1523, %v4053, %v4054
        %v4098 = vsel %vm1523, %v4052, %v4053
        %v4099 = vsel %vm1523, %v4051, %v4052
        %v4100 = vsel %vm1523, %v4050, %v4051
        %v4101 = vsel %vm1523, %v4049, %v4050
        %v4102 = vsel %vm1523, %v4048, %v4049
        %v4103 = vsel %vm1523, %v4047, %v4048
        %v4104 = vsel %vm1523, %v4046, %v4047
        %v4105 = vsel %vm1523, %v4045, %v4046
        %v4106 = vsel %vm1523, %v4044, %v4045
        %v4107 = vsel %vm1523, %v4043, %v4044
        %v4108 = vsel %vm1523, %v4042, %v4043
        %v4109 = vsel %vm1523, %v4041, %v4042
        %v4110 = vsel %vm1523, %v4040, %v4041
        %v4111 = vsel %vm1523, %v4039, %v4040
        %v4112 = vsel %vm1523, %v4038, %v4039
        %v4113 = vsel %vm1523, %v4037, %v4038
        %v4114 = vsel %vm1523, %v4036, %v4037
        %v4115 = vsel %vm1523, %v4035, %v4036
        %v4116 = vsel %vm1523, %v4034, %v4035
        %v4117 = vsel %vm1523, %v4075, %v4034
        %v4118 = vrot.slane %v3656, 3
        %v4119 = vrot.slane %v3657, 3
        %v4120 = vrot.slane %v3658, 3
        %v4121 = vrot.slane %v3659, 3
        %v4122 = vrot.slane %v3660, 3
        %v4123 = vrot.slane %v3661, 3
        %v4124 = vrot.slane %v3662, 3
        %v4125 = vrot.slane %v3663, 3
        %v4126 = vrot.slane %v3664, 3
        %v4127 = vrot.slane %v3665, 3
        %v4128 = vrot.slane %v3666, 3
        %v4129 = vrot.slane %v3667, 3
        %v4130 = vrot.slane %v3668, 3
        %v4131 = vrot.slane %v3669, 3
        %v4132 = vrot.slane %v3670, 3
        %v4133 = vrot.slane %v3671, 3
        %v4134 = vrot.slane %v3672, 3
        %v4135 = vrot.slane %v3673, 3
        %v4136 = vrot.slane %v3674, 3
        %v4137 = vrot.slane %v3675, 3
        %v4138 = vrot.slane %v3676, 3
        %v4139 = vrot.slane %v3677, 3
        %v4140 = vrot.slane %v3678, 3
        %v4141 = vrot.slane %v3679, 3
        %v4142 = vrot.slane %v3680, 3
        %v4143 = vrot.slane %v3681, 3
        %v4144 = vrot.slane %v3682, 3
        %v4145 = vrot.slane %v3683, 3
        %v4146 = vrot.slane %v3684, 3
        %v4147 = vrot.slane %v3685, 3
        %v4148 = vrot.slane %v3686, 3
        %v4149 = vrot.slane %v3687, 3
        %v4150 = vrot.slane %v3688, 3
        %v4151 = vrot.slane %v3689, 3
        %v4152 = vrot.slane %v3690, 3
        %v4153 = vrot.slane %v3691, 3
        %v4154 = vrot.slane %v3692, 3
        %v4155 = vrot.slane %v3693, 3
        %v4156 = vrot.slane %v3694, 3
        %v4157 = vrot.slane %v3695, 3
        %v4158 = vrot.slane %v3696, 3
        %v4159 = vrot.slane %v3697, 3
        %v4160 = vsel %vm1608, %v4158, %v4159
        %v4161 = vsel %vm1608, %v4157, %v4158
        %v4162 = vsel %vm1608, %v4156, %v4157
        %v4163 = vsel %vm1608, %v4155, %v4156
        %v4164 = vsel %vm1608, %v4154, %v4155
        %v4165 = vsel %vm1608, %v4153, %v4154
        %v4166 = vsel %vm1608, %v4152, %v4153
        %v4167 = vsel %vm1608, %v4151, %v4152
        %v4168 = vsel %vm1608, %v4150, %v4151
        %v4169 = vsel %vm1608, %v4149, %v4150
        %v4170 = vsel %vm1608, %v4148, %v4149
        %v4171 = vsel %vm1608, %v4147, %v4148
        %v4172 = vsel %vm1608, %v4146, %v4147
        %v4173 = vsel %vm1608, %v4145, %v4146
        %v4174 = vsel %vm1608, %v4144, %v4145
        %v4175 = vsel %vm1608, %v4143, %v4144
        %v4176 = vsel %vm1608, %v4142, %v4143
        %v4177 = vsel %vm1608, %v4141, %v4142
        %v4178 = vsel %vm1608, %v4140, %v4141
        %v4179 = vsel %vm1608, %v4139, %v4140
        %v4180 = vsel %vm1608, %v4138, %v4139
        %v4181 = vsel %vm1608, %v4137, %v4138
        %v4182 = vsel %vm1608, %v4136, %v4137
        %v4183 = vsel %vm1608, %v4135, %v4136
        %v4184 = vsel %vm1608, %v4134, %v4135
        %v4185 = vsel %vm1608, %v4133, %v4134
        %v4186 = vsel %vm1608, %v4132, %v4133
        %v4187 = vsel %vm1608, %v4131, %v4132
        %v4188 = vsel %vm1608, %v4130, %v4131
        %v4189 = vsel %vm1608, %v4129, %v4130
        %v4190 = vsel %vm1608, %v4128, %v4129
        %v4191 = vsel %vm1608, %v4127, %v4128
        %v4192 = vsel %vm1608, %v4126, %v4127
        %v4193 = vsel %vm1608, %v4125, %v4126
        %v4194 = vsel %vm1608, %v4124, %v4125
        %v4195 = vsel %vm1608, %v4123, %v4124
        %v4196 = vsel %vm1608, %v4122, %v4123
        %v4197 = vsel %vm1608, %v4121, %v4122
        %v4198 = vsel %vm1608, %v4120, %v4121
        %v4199 = vsel %vm1608, %v4119, %v4120
        %v4200 = vsel %vm1608, %v4118, %v4119
        %v4201 = vsel %vm1608, %v4159, %v4118
        %4244 = vrot.lane.b32.xlu0 %v3825, 64
        %v4245 = vpop.permute.xlu0 %4244
        %4246 = vrot.lane.b32.xlu0 %v3824, 64
        %v4247 = vpop.permute.xlu0 %4246
        %4248 = vrot.lane.b32.xlu0 %v3865, 64
        %v4249 = vpop.permute.xlu0 %4248
        %4250 = vrot.lane.b32.xlu0 %v3864, 64
        %v4251 = vpop.permute.xlu0 %4250
        %4252 = vrot.lane.b32.xlu0 %v3863, 64
        %v4253 = vpop.permute.xlu0 %4252
        %4254 = vrot.lane.b32.xlu0 %v3862, 64
        %v4255 = vpop.permute.xlu0 %4254
        %4256 = vrot.lane.b32.xlu0 %v3861, 64
        %v4257 = vpop.permute.xlu0 %4256
        %4258 = vrot.lane.b32.xlu0 %v3860, 64
        %v4259 = vpop.permute.xlu0 %4258
        %4260 = vrot.lane.b32.xlu0 %v3859, 64
        %v4261 = vpop.permute.xlu0 %4260
        %4262 = vrot.lane.b32.xlu0 %v3858, 64
        %v4263 = vpop.permute.xlu0 %4262
        %4264 = vrot.lane.b32.xlu0 %v3857, 64
        %v4265 = vpop.permute.xlu0 %4264
        %4266 = vrot.lane.b32.xlu0 %v3856, 64
        %v4267 = vpop.permute.xlu0 %4266
        %4268 = vrot.lane.b32.xlu0 %v3855, 64
        %v4269 = vpop.permute.xlu0 %4268
        %4270 = vrot.lane.b32.xlu0 %v3854, 64
        %v4271 = vpop.permute.xlu0 %4270
        %4272 = vrot.lane.b32.xlu0 %v3853, 64
        %v4273 = vpop.permute.xlu0 %4272
        %4274 = vrot.lane.b32.xlu0 %v3852, 64
        %v4275 = vpop.permute.xlu0 %4274
        %4276 = vrot.lane.b32.xlu0 %v3851, 64
        %v4277 = vpop.permute.xlu0 %4276
        %4278 = vrot.lane.b32.xlu0 %v3850, 64
        %v4279 = vpop.permute.xlu0 %4278
        %4280 = vrot.lane.b32.xlu0 %v3849, 64
        %v4281 = vpop.permute.xlu0 %4280
        %4282 = vrot.lane.b32.xlu0 %v3848, 64
        %v4283 = vpop.permute.xlu0 %4282
        %4284 = vrot.lane.b32.xlu0 %v3847, 64
        %v4285 = vpop.permute.xlu0 %4284
        %4286 = vrot.lane.b32.xlu0 %v3846, 64
        %v4287 = vpop.permute.xlu0 %4286
        %4288 = vrot.lane.b32.xlu0 %v3845, 64
        %v4289 = vpop.permute.xlu0 %4288
        %4290 = vrot.lane.b32.xlu0 %v3844, 64
        %v4291 = vpop.permute.xlu0 %4290
        %4292 = vrot.lane.b32.xlu0 %v3843, 64
        %v4293 = vpop.permute.xlu0 %4292
        %4294 = vrot.lane.b32.xlu0 %v3842, 64
        %v4295 = vpop.permute.xlu0 %4294
        %4296 = vrot.lane.b32.xlu0 %v3841, 64
        %v4297 = vpop.permute.xlu0 %4296
        %4298 = vrot.lane.b32.xlu0 %v3840, 64
        %v4299 = vpop.permute.xlu0 %4298
        %4300 = vrot.lane.b32.xlu0 %v3839, 64
        %v4301 = vpop.permute.xlu0 %4300
        %4302 = vrot.lane.b32.xlu0 %v3838, 64
        %v4303 = vpop.permute.xlu0 %4302
        %4304 = vrot.lane.b32.xlu0 %v3837, 64
        %v4305 = vpop.permute.xlu0 %4304
        %4306 = vrot.lane.b32.xlu0 %v3836, 64
        %v4307 = vpop.permute.xlu0 %4306
        %4308 = vrot.lane.b32.xlu0 %v3835, 64
        %v4309 = vpop.permute.xlu0 %4308
        %4310 = vrot.lane.b32.xlu0 %v3834, 64
        %v4311 = vpop.permute.xlu0 %4310
        %4312 = vrot.lane.b32.xlu0 %v3833, 64
        %v4313 = vpop.permute.xlu0 %4312
        %4314 = vrot.lane.b32.xlu0 %v3832, 64
        %v4315 = vpop.permute.xlu0 %4314
        %4316 = vrot.lane.b32.xlu0 %v3831, 64
        %v4317 = vpop.permute.xlu0 %4316
        %4318 = vrot.lane.b32.xlu0 %v3830, 64
        %v4319 = vpop.permute.xlu0 %4318
        %4320 = vrot.lane.b32.xlu0 %v3829, 64
        %v4321 = vpop.permute.xlu0 %4320
        %4322 = vrot.lane.b32.xlu0 %v3828, 64
        %v4323 = vpop.permute.xlu0 %4322
        %4324 = vrot.lane.b32.xlu0 %v3827, 64
        %v4325 = vpop.permute.xlu0 %4324
        %4326 = vrot.lane.b32.xlu0 %v3826, 64
        %v4327 = vpop.permute.xlu0 %4326
        %4412 = vrot.lane.b32.xlu0 %v3949, 64
        %v4413 = vpop.permute.xlu0 %4412
        %4414 = vrot.lane.b32.xlu0 %v3948, 64
        %v4415 = vpop.permute.xlu0 %4414
        %4416 = vrot.lane.b32.xlu0 %v3947, 64
        %v4417 = vpop.permute.xlu0 %4416
        %4418 = vrot.lane.b32.xlu0 %v3946, 64
        %v4419 = vpop.permute.xlu0 %4418
        %4420 = vrot.lane.b32.xlu0 %v3945, 64
        %v4421 = vpop.permute.xlu0 %4420
        %4422 = vrot.lane.b32.xlu0 %v3944, 64
        %v4423 = vpop.permute.xlu0 %4422
        %4424 = vrot.lane.b32.xlu0 %v3943, 64
        %v4425 = vpop.permute.xlu0 %4424
        %4426 = vrot.lane.b32.xlu0 %v3942, 64
        %v4427 = vpop.permute.xlu0 %4426
        %4428 = vrot.lane.b32.xlu0 %v3941, 64
        %v4429 = vpop.permute.xlu0 %4428
        %4430 = vrot.lane.b32.xlu0 %v3940, 64
        %v4431 = vpop.permute.xlu0 %4430
        %4432 = vrot.lane.b32.xlu0 %v3939, 64
        %v4433 = vpop.permute.xlu0 %4432
        %4434 = vrot.lane.b32.xlu0 %v3938, 64
        %v4435 = vpop.permute.xlu0 %4434
        %4436 = vrot.lane.b32.xlu0 %v3937, 64
        %v4437 = vpop.permute.xlu0 %4436
        %4438 = vrot.lane.b32.xlu0 %v3936, 64
        %v4439 = vpop.permute.xlu0 %4438
        %4440 = vrot.lane.b32.xlu0 %v3935, 64
        %v4441 = vpop.permute.xlu0 %4440
        %4442 = vrot.lane.b32.xlu0 %v3934, 64
        %v4443 = vpop.permute.xlu0 %4442
        %4444 = vrot.lane.b32.xlu0 %v3933, 64
        %v4445 = vpop.permute.xlu0 %4444
        %4446 = vrot.lane.b32.xlu0 %v3932, 64
        %v4447 = vpop.permute.xlu0 %4446
        %4448 = vrot.lane.b32.xlu0 %v3931, 64
        %v4449 = vpop.permute.xlu0 %4448
        %4450 = vrot.lane.b32.xlu0 %v3930, 64
        %v4451 = vpop.permute.xlu0 %4450
        %4452 = vrot.lane.b32.xlu0 %v3929, 64
        %v4453 = vpop.permute.xlu0 %4452
        %4454 = vrot.lane.b32.xlu0 %v3928, 64
        %v4455 = vpop.permute.xlu0 %4454
        %4456 = vrot.lane.b32.xlu0 %v3927, 64
        %v4457 = vpop.permute.xlu0 %4456
        %4458 = vrot.lane.b32.xlu0 %v3926, 64
        %v4459 = vpop.permute.xlu0 %4458
        %4460 = vrot.lane.b32.xlu0 %v3925, 64
        %v4461 = vpop.permute.xlu0 %4460
        %4462 = vrot.lane.b32.xlu0 %v3924, 64
        %v4463 = vpop.permute.xlu0 %4462
        %4464 = vrot.lane.b32.xlu0 %v3923, 64
        %v4465 = vpop.permute.xlu0 %4464
        %4466 = vrot.lane.b32.xlu0 %v3922, 64
        %v4467 = vpop.permute.xlu0 %4466
        %4468 = vrot.lane.b32.xlu0 %v3921, 64
        %v4469 = vpop.permute.xlu0 %4468
        %4470 = vrot.lane.b32.xlu0 %v3920, 64
        %v4471 = vpop.permute.xlu0 %4470
        %4472 = vrot.lane.b32.xlu0 %v3919, 64
        %v4473 = vpop.permute.xlu0 %4472
        %4474 = vrot.lane.b32.xlu0 %v3918, 64
        %v4475 = vpop.permute.xlu0 %4474
        %4476 = vrot.lane.b32.xlu0 %v3917, 64
        %v4477 = vpop.permute.xlu0 %4476
        %4478 = vrot.lane.b32.xlu0 %v3916, 64
        %v4479 = vpop.permute.xlu0 %4478
        %4480 = vrot.lane.b32.xlu0 %v3915, 64
        %v4481 = vpop.permute.xlu0 %4480
        %4482 = vrot.lane.b32.xlu0 %v3914, 64
        %v4483 = vpop.permute.xlu0 %4482
        %4484 = vrot.lane.b32.xlu0 %v3913, 64
        %v4485 = vpop.permute.xlu0 %4484
        %4486 = vrot.lane.b32.xlu0 %v3912, 64
        %v4487 = vpop.permute.xlu0 %4486
        %4488 = vrot.lane.b32.xlu0 %v3911, 64
        %v4489 = vpop.permute.xlu0 %4488
        %4490 = vrot.lane.b32.xlu0 %v3910, 64
        %v4491 = vpop.permute.xlu0 %4490
        %4492 = vrot.lane.b32.xlu0 %v3909, 64
        %v4493 = vpop.permute.xlu0 %4492
        %4494 = vrot.lane.b32.xlu0 %v3908, 64
        %v4495 = vpop.permute.xlu0 %4494
        %4580 = vrot.lane.b32.xlu0 %v4032, 64
        %v4581 = vpop.permute.xlu0 %4580
        %4582 = vrot.lane.b32.xlu0 %v4031, 64
        %v4583 = vpop.permute.xlu0 %4582
        %4584 = vrot.lane.b32.xlu0 %v4030, 64
        %v4585 = vpop.permute.xlu0 %4584
        %4586 = vrot.lane.b32.xlu0 %v4029, 64
        %v4587 = vpop.permute.xlu0 %4586
        %4588 = vrot.lane.b32.xlu0 %v4028, 64
        %v4589 = vpop.permute.xlu0 %4588
        %4590 = vrot.lane.b32.xlu0 %v4027, 64
        %v4591 = vpop.permute.xlu0 %4590
        %4592 = vrot.lane.b32.xlu0 %v4026, 64
        %v4593 = vpop.permute.xlu0 %4592
        %4594 = vrot.lane.b32.xlu0 %v4025, 64
        %v4595 = vpop.permute.xlu0 %4594
        %4596 = vrot.lane.b32.xlu0 %v4024, 64
        %v4597 = vpop.permute.xlu0 %4596
        %4598 = vrot.lane.b32.xlu0 %v4023, 64
        %v4599 = vpop.permute.xlu0 %4598
        %4600 = vrot.lane.b32.xlu0 %v4022, 64
        %v4601 = vpop.permute.xlu0 %4600
        %4602 = vrot.lane.b32.xlu0 %v4021, 64
        %v4603 = vpop.permute.xlu0 %4602
        %4604 = vrot.lane.b32.xlu0 %v4020, 64
        %v4605 = vpop.permute.xlu0 %4604
        %4606 = vrot.lane.b32.xlu0 %v4019, 64
        %v4607 = vpop.permute.xlu0 %4606
        %4608 = vrot.lane.b32.xlu0 %v4018, 64
        %v4609 = vpop.permute.xlu0 %4608
        %4610 = vrot.lane.b32.xlu0 %v4017, 64
        %v4611 = vpop.permute.xlu0 %4610
        %4612 = vrot.lane.b32.xlu0 %v4016, 64
        %v4613 = vpop.permute.xlu0 %4612
        %4614 = vrot.lane.b32.xlu0 %v4015, 64
        %v4615 = vpop.permute.xlu0 %4614
        %4616 = vrot.lane.b32.xlu0 %v4014, 64
        %v4617 = vpop.permute.xlu0 %4616
        %4618 = vrot.lane.b32.xlu0 %v4013, 64
        %v4619 = vpop.permute.xlu0 %4618
        %4620 = vrot.lane.b32.xlu0 %v4012, 64
        %v4621 = vpop.permute.xlu0 %4620
        %4622 = vrot.lane.b32.xlu0 %v4011, 64
        %v4623 = vpop.permute.xlu0 %4622
        %4624 = vrot.lane.b32.xlu0 %v4010, 64
        %v4625 = vpop.permute.xlu0 %4624
        %4626 = vrot.lane.b32.xlu0 %v4009, 64
        %v4627 = vpop.permute.xlu0 %4626
        %4628 = vrot.lane.b32.xlu0 %v4008, 64
        %v4629 = vpop.permute.xlu0 %4628
        %4630 = vrot.lane.b32.xlu0 %v4007, 64
        %v4631 = vpop.permute.xlu0 %4630
        %4632 = vrot.lane.b32.xlu0 %v4006, 64
        %v4633 = vpop.permute.xlu0 %4632
        %4634 = vrot.lane.b32.xlu0 %v4005, 64
        %v4635 = vpop.permute.xlu0 %4634
        %4636 = vrot.lane.b32.xlu0 %v4004, 64
        %v4637 = vpop.permute.xlu0 %4636
        %4638 = vrot.lane.b32.xlu0 %v4003, 64
        %v4639 = vpop.permute.xlu0 %4638
        %4640 = vrot.lane.b32.xlu0 %v4002, 64
        %v4641 = vpop.permute.xlu0 %4640
        %4642 = vrot.lane.b32.xlu0 %v4001, 64
        %v4643 = vpop.permute.xlu0 %4642
        %4644 = vrot.lane.b32.xlu0 %v4000, 64
        %v4645 = vpop.permute.xlu0 %4644
        %4646 = vrot.lane.b32.xlu0 %v3999, 64
        %v4647 = vpop.permute.xlu0 %4646
        %4648 = vrot.lane.b32.xlu0 %v3998, 64
        %v4649 = vpop.permute.xlu0 %4648
        %4650 = vrot.lane.b32.xlu0 %v3997, 64
        %v4651 = vpop.permute.xlu0 %4650
        %4652 = vrot.lane.b32.xlu0 %v3996, 64
        %v4653 = vpop.permute.xlu0 %4652
        %4654 = vrot.lane.b32.xlu0 %v3995, 64
        %v4655 = vpop.permute.xlu0 %4654
        %4656 = vrot.lane.b32.xlu0 %v3994, 64
        %v4657 = vpop.permute.xlu0 %4656
        %4658 = vrot.lane.b32.xlu0 %v3993, 64
        %v4659 = vpop.permute.xlu0 %4658
        %4660 = vrot.lane.b32.xlu0 %v3992, 64
        %v4661 = vpop.permute.xlu0 %4660
        %4662 = vrot.lane.b32.xlu0 %v4033, 64
        %v4663 = vpop.permute.xlu0 %4662
        %4748 = vrot.lane.b32.xlu0 %v4114, 64
        %v4749 = vpop.permute.xlu0 %4748
        %4750 = vrot.lane.b32.xlu0 %v4113, 64
        %v4751 = vpop.permute.xlu0 %4750
        %4752 = vrot.lane.b32.xlu0 %v4112, 64
        %v4753 = vpop.permute.xlu0 %4752
        %4754 = vrot.lane.b32.xlu0 %v4111, 64
        %v4755 = vpop.permute.xlu0 %4754
        %4756 = vrot.lane.b32.xlu0 %v4110, 64
        %v4757 = vpop.permute.xlu0 %4756
        %4758 = vrot.lane.b32.xlu0 %v4109, 64
        %v4759 = vpop.permute.xlu0 %4758
        %4760 = vrot.lane.b32.xlu0 %v4108, 64
        %v4761 = vpop.permute.xlu0 %4760
        %4762 = vrot.lane.b32.xlu0 %v4107, 64
        %v4763 = vpop.permute.xlu0 %4762
        %4764 = vrot.lane.b32.xlu0 %v4106, 64
        %v4765 = vpop.permute.xlu0 %4764
        %4766 = vrot.lane.b32.xlu0 %v4105, 64
        %v4767 = vpop.permute.xlu0 %4766
        %4768 = vrot.lane.b32.xlu0 %v4104, 64
        %v4769 = vpop.permute.xlu0 %4768
        %4770 = vrot.lane.b32.xlu0 %v4103, 64
        %v4771 = vpop.permute.xlu0 %4770
        %4772 = vrot.lane.b32.xlu0 %v4102, 64
        %v4773 = vpop.permute.xlu0 %4772
        %4774 = vrot.lane.b32.xlu0 %v4101, 64
        %v4775 = vpop.permute.xlu0 %4774
        %4776 = vrot.lane.b32.xlu0 %v4100, 64
        %v4777 = vpop.permute.xlu0 %4776
        %4778 = vrot.lane.b32.xlu0 %v4099, 64
        %v4779 = vpop.permute.xlu0 %4778
        %4780 = vrot.lane.b32.xlu0 %v4098, 64
        %v4781 = vpop.permute.xlu0 %4780
        %4782 = vrot.lane.b32.xlu0 %v4097, 64
        %v4783 = vpop.permute.xlu0 %4782
        %4784 = vrot.lane.b32.xlu0 %v4096, 64
        %v4785 = vpop.permute.xlu0 %4784
        %4786 = vrot.lane.b32.xlu0 %v4095, 64
        %v4787 = vpop.permute.xlu0 %4786
        %4788 = vrot.lane.b32.xlu0 %v4094, 64
        %v4789 = vpop.permute.xlu0 %4788
        %4790 = vrot.lane.b32.xlu0 %v4093, 64
        %v4791 = vpop.permute.xlu0 %4790
        %4792 = vrot.lane.b32.xlu0 %v4092, 64
        %v4793 = vpop.permute.xlu0 %4792
        %4794 = vrot.lane.b32.xlu0 %v4091, 64
        %v4795 = vpop.permute.xlu0 %4794
        %4796 = vrot.lane.b32.xlu0 %v4090, 64
        %v4797 = vpop.permute.xlu0 %4796
        %4798 = vrot.lane.b32.xlu0 %v4089, 64
        %v4799 = vpop.permute.xlu0 %4798
        %4800 = vrot.lane.b32.xlu0 %v4088, 64
        %v4801 = vpop.permute.xlu0 %4800
        %4802 = vrot.lane.b32.xlu0 %v4087, 64
        %v4803 = vpop.permute.xlu0 %4802
        %4804 = vrot.lane.b32.xlu0 %v4086, 64
        %v4805 = vpop.permute.xlu0 %4804
        %4806 = vrot.lane.b32.xlu0 %v4085, 64
        %v4807 = vpop.permute.xlu0 %4806
        %4808 = vrot.lane.b32.xlu0 %v4084, 64
        %v4809 = vpop.permute.xlu0 %4808
        %4810 = vrot.lane.b32.xlu0 %v4083, 64
        %v4811 = vpop.permute.xlu0 %4810
        %4812 = vrot.lane.b32.xlu0 %v4082, 64
        %v4813 = vpop.permute.xlu0 %4812
        %4814 = vrot.lane.b32.xlu0 %v4081, 64
        %v4815 = vpop.permute.xlu0 %4814
        %4816 = vrot.lane.b32.xlu0 %v4080, 64
        %v4817 = vpop.permute.xlu0 %4816
        %4818 = vrot.lane.b32.xlu0 %v4079, 64
        %v4819 = vpop.permute.xlu0 %4818
        %4820 = vrot.lane.b32.xlu0 %v4078, 64
        %v4821 = vpop.permute.xlu0 %4820
        %4822 = vrot.lane.b32.xlu0 %v4077, 64
        %v4823 = vpop.permute.xlu0 %4822
        %4824 = vrot.lane.b32.xlu0 %v4076, 64
        %v4825 = vpop.permute.xlu0 %4824
        %4826 = vrot.lane.b32.xlu0 %v4117, 64
        %v4827 = vpop.permute.xlu0 %4826
        %4828 = vrot.lane.b32.xlu0 %v4116, 64
        %v4829 = vpop.permute.xlu0 %4828
        %4830 = vrot.lane.b32.xlu0 %v4115, 64
        %v4831 = vpop.permute.xlu0 %4830
        %v4874 = vsel %vm2323, %v3741, %v4245
        %v4875 = vsel %vm2323, %v3740, %v4247
        %v4876 = vsel %vm2323, %v3781, %v4249
        %v4877 = vsel %vm2323, %v3780, %v4251
        %v4878 = vsel %vm2323, %v3779, %v4253
        %v4879 = vsel %vm2323, %v3778, %v4255
        %v4880 = vsel %vm2323, %v3777, %v4257
        %v4881 = vsel %vm2323, %v3776, %v4259
        %v4882 = vsel %vm2323, %v3775, %v4261
        %v4883 = vsel %vm2323, %v3774, %v4263
        %v4884 = vsel %vm2323, %v3773, %v4265
        %v4885 = vsel %vm2323, %v3772, %v4267
        %v4886 = vsel %vm2323, %v3771, %v4269
        %v4887 = vsel %vm2323, %v3770, %v4271
        %v4888 = vsel %vm2323, %v3769, %v4273
        %v4889 = vsel %vm2323, %v3768, %v4275
        %v4890 = vsel %vm2323, %v3767, %v4277
        %v4891 = vsel %vm2323, %v3766, %v4279
        %v4892 = vsel %vm2323, %v3765, %v4281
        %v4893 = vsel %vm2323, %v3764, %v4283
        %v4894 = vsel %vm2323, %v3763, %v4285
        %v4895 = vsel %vm2323, %v3762, %v4287
        %v4896 = vsel %vm2323, %v3761, %v4289
        %v4897 = vsel %vm2323, %v3760, %v4291
        %v4898 = vsel %vm2323, %v3759, %v4293
        %v4899 = vsel %vm2323, %v3758, %v4295
        %v4900 = vsel %vm2323, %v3757, %v4297
        %v4901 = vsel %vm2323, %v3756, %v4299
        %v4902 = vsel %vm2323, %v3755, %v4301
        %v4903 = vsel %vm2323, %v3754, %v4303
        %v4904 = vsel %vm2323, %v3753, %v4305
        %v4905 = vsel %vm2323, %v3752, %v4307
        %v4906 = vsel %vm2323, %v3751, %v4309
        %v4907 = vsel %vm2323, %v3750, %v4311
        %v4908 = vsel %vm2323, %v3749, %v4313
        %v4909 = vsel %vm2323, %v3748, %v4315
        %v4910 = vsel %vm2323, %v3747, %v4317
        %v4911 = vsel %vm2323, %v3746, %v4319
        %v4912 = vsel %vm2323, %v3745, %v4321
        %v4913 = vsel %vm2323, %v3744, %v4323
        %v4914 = vsel %vm2323, %v3743, %v4325
        %v4915 = vsel %vm2323, %v3742, %v4327
        %v4916 = vsel %vm2323, %v3909, %v4413
        %v4917 = vsel %vm2323, %v3908, %v4415
        %v4918 = vsel %vm2323, %v3949, %v4417
        %v4919 = vsel %vm2323, %v3948, %v4419
        %v4920 = vsel %vm2323, %v3947, %v4421
        %v4921 = vsel %vm2323, %v3946, %v4423
        %v4922 = vsel %vm2323, %v3945, %v4425
        %v4923 = vsel %vm2323, %v3944, %v4427
        %v4924 = vsel %vm2323, %v3943, %v4429
        %v4925 = vsel %vm2323, %v3942, %v4431
        %v4926 = vsel %vm2323, %v3941, %v4433
        %v4927 = vsel %vm2323, %v3940, %v4435
        %v4928 = vsel %vm2323, %v3939, %v4437
        %v4929 = vsel %vm2323, %v3938, %v4439
        %v4930 = vsel %vm2323, %v3937, %v4441
        %v4931 = vsel %vm2323, %v3936, %v4443
        %v4932 = vsel %vm2323, %v3935, %v4445
        %v4933 = vsel %vm2323, %v3934, %v4447
        %v4934 = vsel %vm2323, %v3933, %v4449
        %v4935 = vsel %vm2323, %v3932, %v4451
        %v4936 = vsel %vm2323, %v3931, %v4453
        %v4937 = vsel %vm2323, %v3930, %v4455
        %v4938 = vsel %vm2323, %v3929, %v4457
        %v4939 = vsel %vm2323, %v3928, %v4459
        %v4940 = vsel %vm2323, %v3927, %v4461
        %v4941 = vsel %vm2323, %v3926, %v4463
        %v4942 = vsel %vm2323, %v3925, %v4465
        %v4943 = vsel %vm2323, %v3924, %v4467
        %v4944 = vsel %vm2323, %v3923, %v4469
        %v4945 = vsel %vm2323, %v3922, %v4471
        %v4946 = vsel %vm2323, %v3921, %v4473
        %v4947 = vsel %vm2323, %v3920, %v4475
        %v4948 = vsel %vm2323, %v3919, %v4477
        %v4949 = vsel %vm2323, %v3918, %v4479
        %v4950 = vsel %vm2323, %v3917, %v4481
        %v4951 = vsel %vm2323, %v3916, %v4483
        %v4952 = vsel %vm2323, %v3915, %v4485
        %v4953 = vsel %vm2323, %v3914, %v4487
        %v4954 = vsel %vm2323, %v3913, %v4489
        %v4955 = vsel %vm2323, %v3912, %v4491
        %v4956 = vsel %vm2323, %v3911, %v4493
        %v4957 = vsel %vm2323, %v3910, %v4495
        %v4958 = vsel %vm2323, %v3656, %v4581
        %v4959 = vsel %vm2323, %v3657, %v4583
        %v4960 = vsel %vm2323, %v3658, %v4585
        %v4961 = vsel %vm2323, %v3659, %v4587
        %v4962 = vsel %vm2323, %v3660, %v4589
        %v4963 = vsel %vm2323, %v3661, %v4591
        %v4964 = vsel %vm2323, %v3662, %v4593
        %v4965 = vsel %vm2323, %v3663, %v4595
        %v4966 = vsel %vm2323, %v3664, %v4597
        %v4967 = vsel %vm2323, %v3665, %v4599
        %v4968 = vsel %vm2323, %v3666, %v4601
        %v4969 = vsel %vm2323, %v3667, %v4603
        %v4970 = vsel %vm2323, %v3668, %v4605
        %v4971 = vsel %vm2323, %v3669, %v4607
        %v4972 = vsel %vm2323, %v3670, %v4609
        %v4973 = vsel %vm2323, %v3671, %v4611
        %v4974 = vsel %vm2323, %v3672, %v4613
        %v4975 = vsel %vm2323, %v3673, %v4615
        %v4976 = vsel %vm2323, %v3674, %v4617
        %v4977 = vsel %vm2323, %v3675, %v4619
        %v4978 = vsel %vm2323, %v3676, %v4621
        %v4979 = vsel %vm2323, %v3677, %v4623
        %v4980 = vsel %vm2323, %v3678, %v4625
        %v4981 = vsel %vm2323, %v3679, %v4627
        %v4982 = vsel %vm2323, %v3680, %v4629
        %v4983 = vsel %vm2323, %v3681, %v4631
        %v4984 = vsel %vm2323, %v3682, %v4633
        %v4985 = vsel %vm2323, %v3683, %v4635
        %v4986 = vsel %vm2323, %v3684, %v4637
        %v4987 = vsel %vm2323, %v3685, %v4639
        %v4988 = vsel %vm2323, %v3686, %v4641
        %v4989 = vsel %vm2323, %v3687, %v4643
        %v4990 = vsel %vm2323, %v3688, %v4645
        %v4991 = vsel %vm2323, %v3689, %v4647
        %v4992 = vsel %vm2323, %v3690, %v4649
        %v4993 = vsel %vm2323, %v3691, %v4651
        %v4994 = vsel %vm2323, %v3692, %v4653
        %v4995 = vsel %vm2323, %v3693, %v4655
        %v4996 = vsel %vm2323, %v3694, %v4657
        %v4997 = vsel %vm2323, %v3695, %v4659
        %v4998 = vsel %vm2323, %v3696, %v4661
        %v4999 = vsel %vm2323, %v3697, %v4663
        %v5000 = vsel %vm2323, %v4030, %v4749
        %v5001 = vsel %vm2323, %v4029, %v4751
        %v5002 = vsel %vm2323, %v4028, %v4753
        %v5003 = vsel %vm2323, %v4027, %v4755
        %v5004 = vsel %vm2323, %v4026, %v4757
        %v5005 = vsel %vm2323, %v4025, %v4759
        %v5006 = vsel %vm2323, %v4024, %v4761
        %v5007 = vsel %vm2323, %v4023, %v4763
        %v5008 = vsel %vm2323, %v4022, %v4765
        %v5009 = vsel %vm2323, %v4021, %v4767
        %v5010 = vsel %vm2323, %v4020, %v4769
        %v5011 = vsel %vm2323, %v4019, %v4771
        %v5012 = vsel %vm2323, %v4018, %v4773
        %v5013 = vsel %vm2323, %v4017, %v4775
        %v5014 = vsel %vm2323, %v4016, %v4777
        %v5015 = vsel %vm2323, %v4015, %v4779
        %v5016 = vsel %vm2323, %v4014, %v4781
        %v5017 = vsel %vm2323, %v4013, %v4783
        %v5018 = vsel %vm2323, %v4012, %v4785
        %v5019 = vsel %vm2323, %v4011, %v4787
        %v5020 = vsel %vm2323, %v4010, %v4789
        %v5021 = vsel %vm2323, %v4009, %v4791
        %v5022 = vsel %vm2323, %v4008, %v4793
        %v5023 = vsel %vm2323, %v4007, %v4795
        %v5024 = vsel %vm2323, %v4006, %v4797
        %v5025 = vsel %vm2323, %v4005, %v4799
        %v5026 = vsel %vm2323, %v4004, %v4801
        %v5027 = vsel %vm2323, %v4003, %v4803
        %v5028 = vsel %vm2323, %v4002, %v4805
        %v5029 = vsel %vm2323, %v4001, %v4807
        %v5030 = vsel %vm2323, %v4000, %v4809
        %v5031 = vsel %vm2323, %v3999, %v4811
        %v5032 = vsel %vm2323, %v3998, %v4813
        %v5033 = vsel %vm2323, %v3997, %v4815
        %v5034 = vsel %vm2323, %v3996, %v4817
        %v5035 = vsel %vm2323, %v3995, %v4819
        %v5036 = vsel %vm2323, %v3994, %v4821
        %v5037 = vsel %vm2323, %v3993, %v4823
        %v5038 = vsel %vm2323, %v3992, %v4825
        %v5039 = vsel %vm2323, %v4033, %v4827
        %v5040 = vsel %vm2323, %v4032, %v4829
        %v5041 = vsel %vm2323, %v4031, %v4831
        %v5042 = vpack.c.bf16 %v4875, %v4874
        %v5043 = vpack.c.bf16 %v4917, %v4916
        %v5044 = vpack.c.bf16 %v4959, %v4958
        %v5045 = vpack.c.bf16 %v5001, %v5000
        %v5046 = vpack.c.bf16 %v4197, %v4198
        %v5047 = vpack.c.bf16 %v4877, %v4876
        %v5048 = vpack.c.bf16 %v4919, %v4918
        %v5049 = vpack.c.bf16 %v4961, %v4960
        %v5050 = vpack.c.bf16 %v5003, %v5002
        %v5051 = vpack.c.bf16 %v4195, %v4196
        %v5052 = vpack.c.bf16 %v4879, %v4878
        %v5053 = vpack.c.bf16 %v4921, %v4920
        %v5054 = vpack.c.bf16 %v4963, %v4962
        %v5055 = vpack.c.bf16 %v5005, %v5004
        %v5056 = vpack.c.bf16 %v4193, %v4194
        %v5057 = vpack.c.bf16 %v4881, %v4880
        %v5058 = vpack.c.bf16 %v4923, %v4922
        %v5059 = vpack.c.bf16 %v4965, %v4964
        %v5060 = vpack.c.bf16 %v5007, %v5006
        %v5061 = vpack.c.bf16 %v4191, %v4192
        %v5062 = vpack.c.bf16 %v4883, %v4882
        %v5063 = vpack.c.bf16 %v4925, %v4924
        %v5064 = vpack.c.bf16 %v4967, %v4966
        %v5065 = vpack.c.bf16 %v5009, %v5008
        %v5066 = vpack.c.bf16 %v4189, %v4190
        %v5067 = vpack.c.bf16 %v4885, %v4884
        %v5068 = vpack.c.bf16 %v4927, %v4926
        %v5069 = vpack.c.bf16 %v4969, %v4968
        %v5070 = vpack.c.bf16 %v5011, %v5010
        %v5071 = vpack.c.bf16 %v4187, %v4188
        %v5072 = vpack.c.bf16 %v4887, %v4886
        %v5073 = vpack.c.bf16 %v4929, %v4928
        %v5074 = vpack.c.bf16 %v4971, %v4970
        %v5075 = vpack.c.bf16 %v5013, %v5012
        %v5076 = vpack.c.bf16 %v4185, %v4186
        %v5077 = vpack.c.bf16 %v4889, %v4888
        %v5078 = vpack.c.bf16 %v4931, %v4930
        %v5079 = vpack.c.bf16 %v4973, %v4972
        %v5080 = vpack.c.bf16 %v5015, %v5014
        %v5081 = vpack.c.bf16 %v4183, %v4184
        %v5082 = vpack.c.bf16 %v4891, %v4890
        %v5083 = vpack.c.bf16 %v4933, %v4932
        %v5084 = vpack.c.bf16 %v4975, %v4974
        %v5085 = vpack.c.bf16 %v5017, %v5016
        %v5086 = vpack.c.bf16 %v4181, %v4182
        %v5087 = vpack.c.bf16 %v4893, %v4892
        %v5088 = vpack.c.bf16 %v4935, %v4934
        %v5089 = vpack.c.bf16 %v4977, %v4976
        %v5090 = vpack.c.bf16 %v5019, %v5018
        %v5091 = vpack.c.bf16 %v4179, %v4180
        %v5092 = vpack.c.bf16 %v4895, %v4894
        %v5093 = vpack.c.bf16 %v4937, %v4936
        %v5094 = vpack.c.bf16 %v4979, %v4978
        %v5095 = vpack.c.bf16 %v5021, %v5020
        %v5096 = vpack.c.bf16 %v4177, %v4178
        %v5097 = vpack.c.bf16 %v4897, %v4896
        %v5098 = vpack.c.bf16 %v4939, %v4938
        %v5099 = vpack.c.bf16 %v4981, %v4980
        %v5100 = vpack.c.bf16 %v5023, %v5022
        %v5101 = vpack.c.bf16 %v4175, %v4176
        %v5102 = vpack.c.bf16 %v4899, %v4898
        %v5103 = vpack.c.bf16 %v4941, %v4940
        %v5104 = vpack.c.bf16 %v4983, %v4982
        %v5105 = vpack.c.bf16 %v5025, %v5024
        %v5106 = vpack.c.bf16 %v4173, %v4174
        %v5107 = vpack.c.bf16 %v4901, %v4900
        %v5108 = vpack.c.bf16 %v4943, %v4942
        %v5109 = vpack.c.bf16 %v4985, %v4984
        %v5110 = vpack.c.bf16 %v5027, %v5026
        %v5111 = vpack.c.bf16 %v4171, %v4172
        %v5112 = vpack.c.bf16 %v4903, %v4902
        %v5113 = vpack.c.bf16 %v4945, %v4944
        %v5114 = vpack.c.bf16 %v4987, %v4986
        %v5115 = vpack.c.bf16 %v5029, %v5028
        %v5116 = vpack.c.bf16 %v4169, %v4170
        %v5117 = vpack.c.bf16 %v4905, %v4904
        %v5118 = vpack.c.bf16 %v4947, %v4946
        %v5119 = vpack.c.bf16 %v4989, %v4988
        %v5120 = vpack.c.bf16 %v5031, %v5030
        %v5121 = vpack.c.bf16 %v4167, %v4168
        %v5122 = vpack.c.bf16 %v4907, %v4906
        %v5123 = vpack.c.bf16 %v4949, %v4948
        %v5124 = vpack.c.bf16 %v4991, %v4990
        %v5125 = vpack.c.bf16 %v5033, %v5032
        %v5126 = vpack.c.bf16 %v4165, %v4166
        %v5127 = vpack.c.bf16 %v4909, %v4908
        %v5128 = vpack.c.bf16 %v4951, %v4950
        %v5129 = vpack.c.bf16 %v4993, %v4992
        %v5130 = vpack.c.bf16 %v5035, %v5034
        %v5131 = vpack.c.bf16 %v4163, %v4164
        %v5132 = vpack.c.bf16 %v4911, %v4910
        %v5133 = vpack.c.bf16 %v4953, %v4952
        %v5134 = vpack.c.bf16 %v4995, %v4994
        %v5135 = vpack.c.bf16 %v5037, %v5036
        %v5136 = vpack.c.bf16 %v4161, %v4162
        %v5137 = vpack.c.bf16 %v4913, %v4912
        %v5138 = vpack.c.bf16 %v4955, %v4954
        %v5139 = vpack.c.bf16 %v4997, %v4996
        %v5140 = vpack.c.bf16 %v5039, %v5038
        %v5141 = vpack.c.bf16 %v4201, %v4160
        %v5142 = vpack.c.bf16 %v4915, %v4914
        %v5143 = vpack.c.bf16 %v4957, %v4956
        %v5144 = vpack.c.bf16 %v4999, %v4998
        %v5145 = vpack.c.bf16 %v5041, %v5040
        %v5146 = vpack.c.bf16 %v4199, %v4200
        %s5147 = sadd.s32 %s2597, 1
        %s5148 = smul.u32 %s5147, 72
        %s5149 = smul.addr %s5148, 4
        %s5150 = scalar_lea.vmem %s5, %s5149
        %v5151 = vld [vmem:[%s5150] sm:$0xf]
        %v5152 = vld [vmem:[%s5150 + $0x4] sm:$0xf]
        %v5153 = vld [vmem:[%s5150 + $0x8] sm:$0xf]
        %v5154 = vld [vmem:[%s5150 + $0xc] sm:$0xf]
        %v5155 = vld [vmem:[%s5150 + $0x10] sm:$0xf]
        %v5156 = vld [vmem:[%s5150 + $0x14] sm:$0xf]
        %v5157 = vld [vmem:[%s5150 + $0x18] sm:$0xf]
        %v5158 = vld [vmem:[%s5150 + $0x1c] sm:$0xf]
        %v5159 = vld [vmem:[%s5150 + $0x20] sm:$0xf]
        %v5160 = vld [vmem:[%s5150 + $0x24] sm:$0xf]
        %v5161 = vld [vmem:[%s5150 + $0x28] sm:$0xf]
        %v5162 = vld [vmem:[%s5150 + $0x2c] sm:$0xf]
        %v5163 = vld [vmem:[%s5150 + $0x30] sm:$0xf]
        %v5164 = vld [vmem:[%s5150 + $0x34] sm:$0xf]
        %v5165 = vld [vmem:[%s5150 + $0x38] sm:$0xf]
        %v5166 = vld [vmem:[%s5150 + $0x3c] sm:$0xf]
        %v5167 = vld [vmem:[%s5150 + $0x40] sm:$0xf]
        %v5168 = vld [vmem:[%s5150 + $0x44] sm:$0xf]
        %v5169 = vld [vmem:[%s5150 + $0x48] sm:$0xf]
        %v5170 = vld [vmem:[%s5150 + $0x4c] sm:$0xf]
        %v5171 = vld [vmem:[%s5150 + $0x50] sm:$0xf]
        %v5172 = vld [vmem:[%s5150 + $0x54] sm:$0xf]
        %v5173 = vld [vmem:[%s5150 + $0x58] sm:$0xf]
        %v5174 = vld [vmem:[%s5150 + $0x5c] sm:$0xf]
        %v5175 = vld [vmem:[%s5150 + $0x60] sm:$0xf]
        %v5176 = vld [vmem:[%s5150 + $0x64] sm:$0xf]
        %v5177 = vld [vmem:[%s5150 + $0x68] sm:$0xf]
        %v5178 = vld [vmem:[%s5150 + $0x6c] sm:$0xf]
        %v5179 = vld [vmem:[%s5150 + $0x70] sm:$0xf]
        %v5180 = vld [vmem:[%s5150 + $0x74] sm:$0xf]
        %v5181 = vld [vmem:[%s5150 + $0x78] sm:$0xf]
        %v5182 = vld [vmem:[%s5150 + $0x7c] sm:$0xf]
        %v5183 = vld [vmem:[%s5150 + $0x80] sm:$0xf]
        %v5184 = vld [vmem:[%s5150 + $0x84] sm:$0xf]
        %v5185 = vld [vmem:[%s5150 + $0x88] sm:$0xf]
        %v5186 = vld [vmem:[%s5150 + $0x8c] sm:$0xf]
        %v5187 = vld [vmem:[%s5150 + $0x90] sm:$0xf]
        %v5188 = vld [vmem:[%s5150 + $0x94] sm:$0xf]
        %v5189 = vld [vmem:[%s5150 + $0x98] sm:$0xf]
        %v5190 = vld [vmem:[%s5150 + $0x9c] sm:$0xf]
        %v5191 = vld [vmem:[%s5150 + $0xa0] sm:$0xf]
        %v5192 = vld [vmem:[%s5150 + $0xa4] sm:$0xf]
        %v5193 = vld [vmem:[%s5150 + $0xa8] sm:$0xf]
        %v5194 = vld [vmem:[%s5150 + $0xac] sm:$0xf]
        %v5195 = vld [vmem:[%s5150 + $0xb0] sm:$0xf]
        %v5196 = vld [vmem:[%s5150 + $0xb4] sm:$0xf]
        %v5197 = vld [vmem:[%s5150 + $0xb8] sm:$0xf]
        %v5198 = vld [vmem:[%s5150 + $0xbc] sm:$0xf]
        %v5199 = vld [vmem:[%s5150 + $0xc0] sm:$0xf]
        %v5200 = vld [vmem:[%s5150 + $0xc4] sm:$0xf]
        %v5201 = vld [vmem:[%s5150 + $0xc8] sm:$0xf]
        %v5202 = vld [vmem:[%s5150 + $0xcc] sm:$0xf]
        %v5203 = vld [vmem:[%s5150 + $0xd0] sm:$0xf]
        %v5204 = vld [vmem:[%s5150 + $0xd4] sm:$0xf]
        %v5205 = vld [vmem:[%s5150 + $0xd8] sm:$0xf]
        %v5206 = vld [vmem:[%s5150 + $0xdc] sm:$0xf]
        %v5207 = vld [vmem:[%s5150 + $0xe0] sm:$0xf]
        %v5208 = vld [vmem:[%s5150 + $0xe4] sm:$0xf]
        %v5209 = vld [vmem:[%s5150 + $0xe8] sm:$0xf]
        %v5210 = vld [vmem:[%s5150 + $0xec] sm:$0xf]
        %v5211 = vld [vmem:[%s5150 + $0xf0] sm:$0xf]
        %v5212 = vld [vmem:[%s5150 + $0xf4] sm:$0xf]
        %v5213 = vld [vmem:[%s5150 + $0xf8] sm:$0xf]
        %v5214 = vld [vmem:[%s5150 + $0xfc] sm:$0xf]
        %v5215 = vld [vmem:[%s5150 + $0x100] sm:$0xf]
        %v5216 = vld [vmem:[%s5150 + $0x104] sm:$0xf]
        %v5217 = vld [vmem:[%s5150 + $0x108] sm:$0xf]
        %v5218 = vld [vmem:[%s5150 + $0x10c] sm:$0xf]
        %v5219 = vld [vmem:[%s5150 + $0x110] sm:$0xf]
        %v5220 = vld [vmem:[%s5150 + $0x114] sm:$0xf]
        %v5221 = vld [vmem:[%s5150 + $0x118] sm:$0xf]
        %v5222 = vld [vmem:[%s5150 + $0x11c] sm:$0xf]
        %s5223 = scalar_lea.vmem %s6, %s5147
        %v5224 = vld [vmem:[%s5223] sm:$0x1]
        %v5226 = vperm.slane %v5224, 0
        %v5300 = vunpack.c.l.b16 %v5151
        %v5301 = vunpack.c.l.b16 %v5152
        %v5302 = vunpack.c.l.b16 %v5153
        %v5303 = vunpack.c.l.b16 %v5154
        %v5304 = vunpack.c.l.b16 %v5155
        %v5305 = vunpack.c.l.b16 %v5156
        %v5306 = vunpack.c.l.b16 %v5157
        %v5307 = vunpack.c.l.b16 %v5158
        %v5308 = vunpack.c.l.b16 %v5159
        %v5309 = vunpack.c.l.b16 %v5160
        %v5310 = vunpack.c.l.b16 %v5161
        %v5311 = vunpack.c.l.b16 %v5162
        %v5312 = vunpack.c.l.b16 %v5163
        %v5313 = vunpack.c.l.b16 %v5164
        %v5314 = vunpack.c.l.b16 %v5165
        %v5315 = vunpack.c.l.b16 %v5166
        %v5316 = vunpack.c.l.b16 %v5167
        %v5317 = vunpack.c.l.b16 %v5168
        %v5318 = vunpack.c.l.b16 %v5169
        %v5319 = vunpack.c.l.b16 %v5170
        %v5320 = vunpack.c.l.b16 %v5171
        %v5321 = vunpack.c.l.b16 %v5172
        %v5322 = vunpack.c.l.b16 %v5173
        %v5323 = vunpack.c.l.b16 %v5174
        %v5324 = vunpack.c.l.b16 %v5175
        %v5325 = vunpack.c.l.b16 %v5176
        %v5326 = vunpack.c.l.b16 %v5177
        %v5327 = vunpack.c.l.b16 %v5178
        %v5328 = vunpack.c.l.b16 %v5179
        %v5329 = vunpack.c.l.b16 %v5180
        %v5330 = vunpack.c.l.b16 %v5181
        %v5331 = vunpack.c.l.b16 %v5182
        %v5332 = vunpack.c.l.b16 %v5183
        %v5333 = vunpack.c.l.b16 %v5184
        %v5334 = vunpack.c.l.b16 %v5185
        %v5335 = vunpack.c.l.b16 %v5186
        %v5336 = vunpack.c.l.b16 %v5187
        %v5337 = vunpack.c.l.b16 %v5188
        %v5338 = vunpack.c.l.b16 %v5189
        %v5339 = vunpack.c.l.b16 %v5190
        %v5340 = vunpack.c.l.b16 %v5191
        %v5341 = vunpack.c.l.b16 %v5192
        %v5342 = vunpack.c.l.b16 %v5193
        %v5343 = vunpack.c.l.b16 %v5194
        %v5344 = vunpack.c.l.b16 %v5195
        %v5345 = vunpack.c.l.b16 %v5196
        %v5346 = vunpack.c.l.b16 %v5197
        %v5347 = vunpack.c.l.b16 %v5198
        %v5348 = vunpack.c.l.b16 %v5199
        %v5349 = vunpack.c.l.b16 %v5200
        %v5350 = vunpack.c.l.b16 %v5201
        %v5351 = vunpack.c.l.b16 %v5202
        %v5352 = vunpack.c.l.b16 %v5203
        %v5353 = vunpack.c.l.b16 %v5204
        %v5354 = vunpack.c.l.b16 %v5205
        %v5355 = vunpack.c.l.b16 %v5206
        %v5356 = vunpack.c.l.b16 %v5207
        %v5357 = vunpack.c.l.b16 %v5208
        %v5358 = vunpack.c.l.b16 %v5209
        %v5359 = vunpack.c.l.b16 %v5210
        %v5360 = vunpack.c.l.b16 %v5211
        %v5361 = vunpack.c.l.b16 %v5212
        %v5362 = vunpack.c.l.b16 %v5213
        %v5363 = vunpack.c.l.b16 %v5214
        %v5364 = vunpack.c.l.b16 %v5215
        %v5365 = vunpack.c.l.b16 %v5216
        %v5366 = vunpack.c.l.b16 %v5217
        %v5367 = vunpack.c.l.b16 %v5218
        %v5368 = vunpack.c.l.b16 %v5219
        %v5369 = vunpack.c.l.b16 %v5220
        %v5370 = vunpack.c.l.b16 %v5221
        %v5371 = vunpack.c.l.b16 %v5222
        %v5372 = vpack.c.b16 %v5301, %v5300
        %v5373 = vpack.c.b16 %v5303, %v5302
        %v5374 = vpack.c.b16 %v5305, %v5304
        %v5375 = vpack.c.b16 %v5307, %v5306
        %v5376 = vpack.c.b16 %v5309, %v5308
        %v5377 = vpack.c.b16 %v5311, %v5310
        %v5378 = vpack.c.b16 %v5313, %v5312
        %v5379 = vpack.c.b16 %v5315, %v5314
        %v5380 = vpack.c.b16 %v5317, %v5316
        %v5381 = vpack.c.b16 %v5319, %v5318
        %v5382 = vpack.c.b16 %v5321, %v5320
        %v5383 = vpack.c.b16 %v5323, %v5322
        %v5384 = vpack.c.b16 %v5325, %v5324
        %v5385 = vpack.c.b16 %v5327, %v5326
        %v5386 = vpack.c.b16 %v5329, %v5328
        %v5387 = vpack.c.b16 %v5331, %v5330
        %v5388 = vpack.c.b16 %v5333, %v5332
        %v5389 = vpack.c.b16 %v5335, %v5334
        %v5390 = vpack.c.b16 %v5337, %v5336
        %v5391 = vpack.c.b16 %v5339, %v5338
        %v5392 = vpack.c.b16 %v5341, %v5340
        %v5393 = vpack.c.b16 %v5343, %v5342
        %v5394 = vpack.c.b16 %v5345, %v5344
        %v5395 = vpack.c.b16 %v5347, %v5346
        %v5396 = vpack.c.b16 %v5349, %v5348
        %v5397 = vpack.c.b16 %v5351, %v5350
        %v5398 = vpack.c.b16 %v5353, %v5352
        %v5399 = vpack.c.b16 %v5355, %v5354
        %v5400 = vpack.c.b16 %v5357, %v5356
        %v5401 = vpack.c.b16 %v5359, %v5358
        %v5402 = vpack.c.b16 %v5361, %v5360
        %v5403 = vpack.c.b16 %v5363, %v5362
        %v5404 = vpack.c.b16 %v5365, %v5364
        %v5405 = vpack.c.b16 %v5367, %v5366
        %v5406 = vpack.c.b16 %v5369, %v5368
        %v5407 = vpack.c.b16 %v5371, %v5370
        %v5445 = vsel %vm2323, %v5046, 0
        %v5448 = vsel %vm2323, %v5051, 0
        %v5451 = vsel %vm2323, %v5056, 0
        %v5454 = vsel %vm2323, %v5061, 0
        %v5457 = vsel %vm2323, %v5066, 0
        %v5460 = vsel %vm2323, %v5071, 0
        %v5463 = vsel %vm2323, %v5076, 0
        %v5466 = vsel %vm2323, %v5081, 0
        %v5469 = vsel %vm2323, %v5086, 0
        %v5472 = vsel %vm2323, %v5091, 0
        %v5475 = vsel %vm2323, %v5096, 0
        %v5478 = vsel %vm2323, %v5101, 0
        %v5481 = vsel %vm2323, %v5106, 0
        %v5484 = vsel %vm2323, %v5111, 0
        %v5487 = vsel %vm2323, %v5116, 0
        %v5490 = vsel %vm2323, %v5121, 0
        %v5493 = vsel %vm2323, %v5126, 0
        %v5496 = vsel %vm2323, %v5131, 0
        %v5499 = vsel %vm2323, %v5136, 0
        %v5502 = vsel %vm2323, %v5141, 0
        %v5505 = vsel %vm2323, %v5146, 0
        %5507 = vmatpush.bf16.msra.mxu0 %v5379
        %5508 = vmatpush.bf16.msra.mxu0 %v5378
        %5509 = vmatpush.bf16.msra.mxu0 %v5377
        %5510 = vmatpush.bf16.msra.mxu0 %v5376
        %5511 = vmatpush.bf16.msra.mxu0 %v5375
        %5512 = vmatpush.bf16.msra.mxu0 %v5374
        %5513 = vmatpush.bf16.msra.mxu0 %v5373
        %5514 = vmatpush.bf16.msra.mxu0 %v5372
        %5515 = vmatmul.bf16.gmra.mxu0 %v5042
        %v5516 = vpop.f32.mrf.mxu0
        %v5517 = vadd.f32 %v5226, %v5516
        %v5518 = vpop.f32.mrf.mxu0
        %v5519 = vadd.f32 %v5226, %v5518
        %5520 = vmatmul.bf16.gmra.mxu0 %v5047
        %v5521 = vpop.f32.mrf.mxu0
        %v5522 = vadd.f32 %v5226, %v5521
        %v5523 = vpop.f32.mrf.mxu0
        %v5524 = vadd.f32 %v5226, %v5523
        %5525 = vmatmul.bf16.gmra.mxu0 %v5052
        %v5526 = vpop.f32.mrf.mxu0
        %v5527 = vadd.f32 %v5226, %v5526
        %v5528 = vpop.f32.mrf.mxu0
        %v5529 = vadd.f32 %v5226, %v5528
        %5530 = vmatmul.bf16.gmra.mxu0 %v5057
        %v5531 = vpop.f32.mrf.mxu0
        %v5532 = vadd.f32 %v5226, %v5531
        %v5533 = vpop.f32.mrf.mxu0
        %v5534 = vadd.f32 %v5226, %v5533
        %5535 = vmatmul.bf16.gmra.mxu0 %v5062
        %v5536 = vpop.f32.mrf.mxu0
        %v5537 = vadd.f32 %v5226, %v5536
        %v5538 = vpop.f32.mrf.mxu0
        %v5539 = vadd.f32 %v5226, %v5538
        %5540 = vmatmul.bf16.gmra.mxu0 %v5067
        %v5541 = vpop.f32.mrf.mxu0
        %v5542 = vadd.f32 %v5226, %v5541
        %v5543 = vpop.f32.mrf.mxu0
        %v5544 = vadd.f32 %v5226, %v5543
        %5545 = vmatmul.bf16.gmra.mxu0 %v5072
        %v5546 = vpop.f32.mrf.mxu0
        %v5547 = vadd.f32 %v5226, %v5546
        %v5548 = vpop.f32.mrf.mxu0
        %v5549 = vadd.f32 %v5226, %v5548
        %5550 = vmatmul.bf16.gmra.mxu0 %v5077
        %v5551 = vpop.f32.mrf.mxu0
        %v5552 = vadd.f32 %v5226, %v5551
        %v5553 = vpop.f32.mrf.mxu0
        %v5554 = vadd.f32 %v5226, %v5553
        %5555 = vmatmul.bf16.gmra.mxu0 %v5082
        %v5556 = vpop.f32.mrf.mxu0
        %v5557 = vadd.f32 %v5226, %v5556
        %v5558 = vpop.f32.mrf.mxu0
        %v5559 = vadd.f32 %v5226, %v5558
        %5560 = vmatmul.bf16.gmra.mxu0 %v5087
        %v5561 = vpop.f32.mrf.mxu0
        %v5562 = vadd.f32 %v5226, %v5561
        %v5563 = vpop.f32.mrf.mxu0
        %v5564 = vadd.f32 %v5226, %v5563
        %5565 = vmatmul.bf16.gmra.mxu0 %v5092
        %v5566 = vpop.f32.mrf.mxu0
        %v5567 = vadd.f32 %v5226, %v5566
        %v5568 = vpop.f32.mrf.mxu0
        %v5569 = vadd.f32 %v5226, %v5568
        %5570 = vmatmul.bf16.gmra.mxu0 %v5097
        %v5571 = vpop.f32.mrf.mxu0
        %v5572 = vadd.f32 %v5226, %v5571
        %v5573 = vpop.f32.mrf.mxu0
        %v5574 = vadd.f32 %v5226, %v5573
        %5575 = vmatmul.bf16.gmra.mxu0 %v5102
        %v5576 = vpop.f32.mrf.mxu0
        %v5577 = vadd.f32 %v5226, %v5576
        %v5578 = vpop.f32.mrf.mxu0
        %v5579 = vadd.f32 %v5226, %v5578
        %5580 = vmatmul.bf16.gmra.mxu0 %v5107
        %v5581 = vpop.f32.mrf.mxu0
        %v5582 = vadd.f32 %v5226, %v5581
        %v5583 = vpop.f32.mrf.mxu0
        %v5584 = vadd.f32 %v5226, %v5583
        %5585 = vmatmul.bf16.gmra.mxu0 %v5112
        %v5586 = vpop.f32.mrf.mxu0
        %v5587 = vadd.f32 %v5226, %v5586
        %v5588 = vpop.f32.mrf.mxu0
        %v5589 = vadd.f32 %v5226, %v5588
        %5590 = vmatmul.bf16.gmra.mxu0 %v5117
        %v5591 = vpop.f32.mrf.mxu0
        %v5592 = vadd.f32 %v5226, %v5591
        %v5593 = vpop.f32.mrf.mxu0
        %v5594 = vadd.f32 %v5226, %v5593
        %5595 = vmatmul.bf16.gmra.mxu0 %v5122
        %v5596 = vpop.f32.mrf.mxu0
        %v5597 = vadd.f32 %v5226, %v5596
        %v5598 = vpop.f32.mrf.mxu0
        %v5599 = vadd.f32 %v5226, %v5598
        %5600 = vmatmul.bf16.gmra.mxu0 %v5127
        %v5601 = vpop.f32.mrf.mxu0
        %v5602 = vadd.f32 %v5226, %v5601
        %v5603 = vpop.f32.mrf.mxu0
        %v5604 = vadd.f32 %v5226, %v5603
        %5605 = vmatmul.bf16.gmra.mxu0 %v5132
        %v5606 = vpop.f32.mrf.mxu0
        %v5607 = vadd.f32 %v5226, %v5606
        %v5608 = vpop.f32.mrf.mxu0
        %v5609 = vadd.f32 %v5226, %v5608
        %5610 = vmatmul.bf16.gmra.mxu0 %v5137
        %v5611 = vpop.f32.mrf.mxu0
        %v5612 = vadd.f32 %v5226, %v5611
        %v5613 = vpop.f32.mrf.mxu0
        %v5614 = vadd.f32 %v5226, %v5613
        %5615 = vmatmul.bf16.gmra.mxu0 %v5142
        %v5616 = vpop.f32.mrf.mxu0
        %v5617 = vadd.f32 %v5226, %v5616
        %v5618 = vpop.f32.mrf.mxu0
        %v5619 = vadd.f32 %v5226, %v5618
        %5620 = vdwg.mxu0
        %5621 = vmatpush.bf16.msra.mxu0 %v5387
        %5622 = vmatpush.bf16.msra.mxu0 %v5386
        %5623 = vmatpush.bf16.msra.mxu0 %v5385
        %5624 = vmatpush.bf16.msra.mxu0 %v5384
        %5625 = vmatpush.bf16.msra.mxu0 %v5383
        %5626 = vmatpush.bf16.msra.mxu0 %v5382
        %5627 = vmatpush.bf16.msra.mxu0 %v5381
        %5628 = vmatpush.bf16.msra.mxu0 %v5380
        %5629 = vmatmul.bf16.gmra.mxu0 %v5043
        %v5630 = vpop.f32.mrf.mxu0
        %v5631 = vadd.f32 %v5517, %v5630
        %v5632 = vpop.f32.mrf.mxu0
        %v5633 = vadd.f32 %v5519, %v5632
        %5634 = vmatmul.bf16.gmra.mxu0 %v5048
        %v5635 = vpop.f32.mrf.mxu0
        %v5636 = vadd.f32 %v5522, %v5635
        %v5637 = vpop.f32.mrf.mxu0
        %v5638 = vadd.f32 %v5524, %v5637
        %5639 = vmatmul.bf16.gmra.mxu0 %v5053
        %v5640 = vpop.f32.mrf.mxu0
        %v5641 = vadd.f32 %v5527, %v5640
        %v5642 = vpop.f32.mrf.mxu0
        %v5643 = vadd.f32 %v5529, %v5642
        %5644 = vmatmul.bf16.gmra.mxu0 %v5058
        %v5645 = vpop.f32.mrf.mxu0
        %v5646 = vadd.f32 %v5532, %v5645
        %v5647 = vpop.f32.mrf.mxu0
        %v5648 = vadd.f32 %v5534, %v5647
        %5649 = vmatmul.bf16.gmra.mxu0 %v5063
        %v5650 = vpop.f32.mrf.mxu0
        %v5651 = vadd.f32 %v5537, %v5650
        %v5652 = vpop.f32.mrf.mxu0
        %v5653 = vadd.f32 %v5539, %v5652
        %5654 = vmatmul.bf16.gmra.mxu0 %v5068
        %v5655 = vpop.f32.mrf.mxu0
        %v5656 = vadd.f32 %v5542, %v5655
        %v5657 = vpop.f32.mrf.mxu0
        %v5658 = vadd.f32 %v5544, %v5657
        %5659 = vmatmul.bf16.gmra.mxu0 %v5073
        %v5660 = vpop.f32.mrf.mxu0
        %v5661 = vadd.f32 %v5547, %v5660
        %v5662 = vpop.f32.mrf.mxu0
        %v5663 = vadd.f32 %v5549, %v5662
        %5664 = vmatmul.bf16.gmra.mxu0 %v5078
        %v5665 = vpop.f32.mrf.mxu0
        %v5666 = vadd.f32 %v5552, %v5665
        %v5667 = vpop.f32.mrf.mxu0
        %v5668 = vadd.f32 %v5554, %v5667
        %5669 = vmatmul.bf16.gmra.mxu0 %v5083
        %v5670 = vpop.f32.mrf.mxu0
        %v5671 = vadd.f32 %v5557, %v5670
        %v5672 = vpop.f32.mrf.mxu0
        %v5673 = vadd.f32 %v5559, %v5672
        %5674 = vmatmul.bf16.gmra.mxu0 %v5088
        %v5675 = vpop.f32.mrf.mxu0
        %v5676 = vadd.f32 %v5562, %v5675
        %v5677 = vpop.f32.mrf.mxu0
        %v5678 = vadd.f32 %v5564, %v5677
        %5679 = vmatmul.bf16.gmra.mxu0 %v5093
        %v5680 = vpop.f32.mrf.mxu0
        %v5681 = vadd.f32 %v5567, %v5680
        %v5682 = vpop.f32.mrf.mxu0
        %v5683 = vadd.f32 %v5569, %v5682
        %5684 = vmatmul.bf16.gmra.mxu0 %v5098
        %v5685 = vpop.f32.mrf.mxu0
        %v5686 = vadd.f32 %v5572, %v5685
        %v5687 = vpop.f32.mrf.mxu0
        %v5688 = vadd.f32 %v5574, %v5687
        %5689 = vmatmul.bf16.gmra.mxu0 %v5103
        %v5690 = vpop.f32.mrf.mxu0
        %v5691 = vadd.f32 %v5577, %v5690
        %v5692 = vpop.f32.mrf.mxu0
        %v5693 = vadd.f32 %v5579, %v5692
        %5694 = vmatmul.bf16.gmra.mxu0 %v5108
        %v5695 = vpop.f32.mrf.mxu0
        %v5696 = vadd.f32 %v5582, %v5695
        %v5697 = vpop.f32.mrf.mxu0
        %v5698 = vadd.f32 %v5584, %v5697
        %5699 = vmatmul.bf16.gmra.mxu0 %v5113
        %v5700 = vpop.f32.mrf.mxu0
        %v5701 = vadd.f32 %v5587, %v5700
        %v5702 = vpop.f32.mrf.mxu0
        %v5703 = vadd.f32 %v5589, %v5702
        %5704 = vmatmul.bf16.gmra.mxu0 %v5118
        %v5705 = vpop.f32.mrf.mxu0
        %v5706 = vadd.f32 %v5592, %v5705
        %v5707 = vpop.f32.mrf.mxu0
        %v5708 = vadd.f32 %v5594, %v5707
        %5709 = vmatmul.bf16.gmra.mxu0 %v5123
        %v5710 = vpop.f32.mrf.mxu0
        %v5711 = vadd.f32 %v5597, %v5710
        %v5712 = vpop.f32.mrf.mxu0
        %v5713 = vadd.f32 %v5599, %v5712
        %5714 = vmatmul.bf16.gmra.mxu0 %v5128
        %v5715 = vpop.f32.mrf.mxu0
        %v5716 = vadd.f32 %v5602, %v5715
        %v5717 = vpop.f32.mrf.mxu0
        %v5718 = vadd.f32 %v5604, %v5717
        %5719 = vmatmul.bf16.gmra.mxu0 %v5133
        %v5720 = vpop.f32.mrf.mxu0
        %v5721 = vadd.f32 %v5607, %v5720
        %v5722 = vpop.f32.mrf.mxu0
        %v5723 = vadd.f32 %v5609, %v5722
        %5724 = vmatmul.bf16.gmra.mxu0 %v5138
        %v5725 = vpop.f32.mrf.mxu0
        %v5726 = vadd.f32 %v5612, %v5725
        %v5727 = vpop.f32.mrf.mxu0
        %v5728 = vadd.f32 %v5614, %v5727
        %5729 = vmatmul.bf16.gmra.mxu0 %v5143
        %v5730 = vpop.f32.mrf.mxu0
        %v5731 = vadd.f32 %v5617, %v5730
        %v5732 = vpop.f32.mrf.mxu0
        %v5733 = vadd.f32 %v5619, %v5732
        %5734 = vdwg.mxu0
        %5735 = vmatpush.bf16.msra.mxu0 %v5395
        %5736 = vmatpush.bf16.msra.mxu0 %v5394
        %5737 = vmatpush.bf16.msra.mxu0 %v5393
        %5738 = vmatpush.bf16.msra.mxu0 %v5392
        %5739 = vmatpush.bf16.msra.mxu0 %v5391
        %5740 = vmatpush.bf16.msra.mxu0 %v5390
        %5741 = vmatpush.bf16.msra.mxu0 %v5389
        %5742 = vmatpush.bf16.msra.mxu0 %v5388
        %5743 = vmatmul.bf16.gmra.mxu0 %v5044
        %v5744 = vpop.f32.mrf.mxu0
        %v5745 = vadd.f32 %v5631, %v5744
        %v5746 = vpop.f32.mrf.mxu0
        %v5747 = vadd.f32 %v5633, %v5746
        %5748 = vmatmul.bf16.gmra.mxu0 %v5049
        %v5749 = vpop.f32.mrf.mxu0
        %v5750 = vadd.f32 %v5636, %v5749
        %v5751 = vpop.f32.mrf.mxu0
        %v5752 = vadd.f32 %v5638, %v5751
        %5753 = vmatmul.bf16.gmra.mxu0 %v5054
        %v5754 = vpop.f32.mrf.mxu0
        %v5755 = vadd.f32 %v5641, %v5754
        %v5756 = vpop.f32.mrf.mxu0
        %v5757 = vadd.f32 %v5643, %v5756
        %5758 = vmatmul.bf16.gmra.mxu0 %v5059
        %v5759 = vpop.f32.mrf.mxu0
        %v5760 = vadd.f32 %v5646, %v5759
        %v5761 = vpop.f32.mrf.mxu0
        %v5762 = vadd.f32 %v5648, %v5761
        %5763 = vmatmul.bf16.gmra.mxu0 %v5064
        %v5764 = vpop.f32.mrf.mxu0
        %v5765 = vadd.f32 %v5651, %v5764
        %v5766 = vpop.f32.mrf.mxu0
        %v5767 = vadd.f32 %v5653, %v5766
        %5768 = vmatmul.bf16.gmra.mxu0 %v5069
        %v5769 = vpop.f32.mrf.mxu0
        %v5770 = vadd.f32 %v5656, %v5769
        %v5771 = vpop.f32.mrf.mxu0
        %v5772 = vadd.f32 %v5658, %v5771
        %5773 = vmatmul.bf16.gmra.mxu0 %v5074
        %v5774 = vpop.f32.mrf.mxu0
        %v5775 = vadd.f32 %v5661, %v5774
        %v5776 = vpop.f32.mrf.mxu0
        %v5777 = vadd.f32 %v5663, %v5776
        %5778 = vmatmul.bf16.gmra.mxu0 %v5079
        %v5779 = vpop.f32.mrf.mxu0
        %v5780 = vadd.f32 %v5666, %v5779
        %v5781 = vpop.f32.mrf.mxu0
        %v5782 = vadd.f32 %v5668, %v5781
        %5783 = vmatmul.bf16.gmra.mxu0 %v5084
        %v5784 = vpop.f32.mrf.mxu0
        %v5785 = vadd.f32 %v5671, %v5784
        %v5786 = vpop.f32.mrf.mxu0
        %v5787 = vadd.f32 %v5673, %v5786
        %5788 = vmatmul.bf16.gmra.mxu0 %v5089
        %v5789 = vpop.f32.mrf.mxu0
        %v5790 = vadd.f32 %v5676, %v5789
        %v5791 = vpop.f32.mrf.mxu0
        %v5792 = vadd.f32 %v5678, %v5791
        %5793 = vmatmul.bf16.gmra.mxu0 %v5094
        %v5794 = vpop.f32.mrf.mxu0
        %v5795 = vadd.f32 %v5681, %v5794
        %v5796 = vpop.f32.mrf.mxu0
        %v5797 = vadd.f32 %v5683, %v5796
        %5798 = vmatmul.bf16.gmra.mxu0 %v5099
        %v5799 = vpop.f32.mrf.mxu0
        %v5800 = vadd.f32 %v5686, %v5799
        %v5801 = vpop.f32.mrf.mxu0
        %v5802 = vadd.f32 %v5688, %v5801
        %5803 = vmatmul.bf16.gmra.mxu0 %v5104
        %v5804 = vpop.f32.mrf.mxu0
        %v5805 = vadd.f32 %v5691, %v5804
        %v5806 = vpop.f32.mrf.mxu0
        %v5807 = vadd.f32 %v5693, %v5806
        %5808 = vmatmul.bf16.gmra.mxu0 %v5109
        %v5809 = vpop.f32.mrf.mxu0
        %v5810 = vadd.f32 %v5696, %v5809
        %v5811 = vpop.f32.mrf.mxu0
        %v5812 = vadd.f32 %v5698, %v5811
        %5813 = vmatmul.bf16.gmra.mxu0 %v5114
        %v5814 = vpop.f32.mrf.mxu0
        %v5815 = vadd.f32 %v5701, %v5814
        %v5816 = vpop.f32.mrf.mxu0
        %v5817 = vadd.f32 %v5703, %v5816
        %5818 = vmatmul.bf16.gmra.mxu0 %v5119
        %v5819 = vpop.f32.mrf.mxu0
        %v5820 = vadd.f32 %v5706, %v5819
        %v5821 = vpop.f32.mrf.mxu0
        %v5822 = vadd.f32 %v5708, %v5821
        %5823 = vmatmul.bf16.gmra.mxu0 %v5124
        %v5824 = vpop.f32.mrf.mxu0
        %v5825 = vadd.f32 %v5711, %v5824
        %v5826 = vpop.f32.mrf.mxu0
        %v5827 = vadd.f32 %v5713, %v5826
        %5828 = vmatmul.bf16.gmra.mxu0 %v5129
        %v5829 = vpop.f32.mrf.mxu0
        %v5830 = vadd.f32 %v5716, %v5829
        %v5831 = vpop.f32.mrf.mxu0
        %v5832 = vadd.f32 %v5718, %v5831
        %5833 = vmatmul.bf16.gmra.mxu0 %v5134
        %v5834 = vpop.f32.mrf.mxu0
        %v5835 = vadd.f32 %v5721, %v5834
        %v5836 = vpop.f32.mrf.mxu0
        %v5837 = vadd.f32 %v5723, %v5836
        %5838 = vmatmul.bf16.gmra.mxu0 %v5139
        %v5839 = vpop.f32.mrf.mxu0
        %v5840 = vadd.f32 %v5726, %v5839
        %v5841 = vpop.f32.mrf.mxu0
        %v5842 = vadd.f32 %v5728, %v5841
        %5843 = vmatmul.bf16.gmra.mxu0 %v5144
        %v5844 = vpop.f32.mrf.mxu0
        %v5845 = vadd.f32 %v5731, %v5844
        %v5846 = vpop.f32.mrf.mxu0
        %v5847 = vadd.f32 %v5733, %v5846
        %5848 = vdwg.mxu0
        %5849 = vmatpush.bf16.msra.mxu0 %v5403
        %5850 = vmatpush.bf16.msra.mxu0 %v5402
        %5851 = vmatpush.bf16.msra.mxu0 %v5401
        %5852 = vmatpush.bf16.msra.mxu0 %v5400
        %5853 = vmatpush.bf16.msra.mxu0 %v5399
        %5854 = vmatpush.bf16.msra.mxu0 %v5398
        %5855 = vmatpush.bf16.msra.mxu0 %v5397
        %5856 = vmatpush.bf16.msra.mxu0 %v5396
        %5857 = vmatmul.bf16.gmra.mxu0 %v5045
        %v5858 = vpop.f32.mrf.mxu0
        %v5859 = vadd.f32 %v5745, %v5858
        %v5860 = vpop.f32.mrf.mxu0
        %v5861 = vadd.f32 %v5747, %v5860
        %5862 = vmatmul.bf16.gmra.mxu0 %v5050
        %v5863 = vpop.f32.mrf.mxu0
        %v5864 = vadd.f32 %v5750, %v5863
        %v5865 = vpop.f32.mrf.mxu0
        %v5866 = vadd.f32 %v5752, %v5865
        %5867 = vmatmul.bf16.gmra.mxu0 %v5055
        %v5868 = vpop.f32.mrf.mxu0
        %v5869 = vadd.f32 %v5755, %v5868
        %v5870 = vpop.f32.mrf.mxu0
        %v5871 = vadd.f32 %v5757, %v5870
        %5872 = vmatmul.bf16.gmra.mxu0 %v5060
        %v5873 = vpop.f32.mrf.mxu0
        %v5874 = vadd.f32 %v5760, %v5873
        %v5875 = vpop.f32.mrf.mxu0
        %v5876 = vadd.f32 %v5762, %v5875
        %5877 = vmatmul.bf16.gmra.mxu0 %v5065
        %v5878 = vpop.f32.mrf.mxu0
        %v5879 = vadd.f32 %v5765, %v5878
        %v5880 = vpop.f32.mrf.mxu0
        %v5881 = vadd.f32 %v5767, %v5880
        %5882 = vmatmul.bf16.gmra.mxu0 %v5070
        %v5883 = vpop.f32.mrf.mxu0
        %v5884 = vadd.f32 %v5770, %v5883
        %v5885 = vpop.f32.mrf.mxu0
        %v5886 = vadd.f32 %v5772, %v5885
        %5887 = vmatmul.bf16.gmra.mxu0 %v5075
        %v5888 = vpop.f32.mrf.mxu0
        %v5889 = vadd.f32 %v5775, %v5888
        %v5890 = vpop.f32.mrf.mxu0
        %v5891 = vadd.f32 %v5777, %v5890
        %5892 = vmatmul.bf16.gmra.mxu0 %v5080
        %v5893 = vpop.f32.mrf.mxu0
        %v5894 = vadd.f32 %v5780, %v5893
        %v5895 = vpop.f32.mrf.mxu0
        %v5896 = vadd.f32 %v5782, %v5895
        %5897 = vmatmul.bf16.gmra.mxu0 %v5085
        %v5898 = vpop.f32.mrf.mxu0
        %v5899 = vadd.f32 %v5785, %v5898
        %v5900 = vpop.f32.mrf.mxu0
        %v5901 = vadd.f32 %v5787, %v5900
        %5902 = vmatmul.bf16.gmra.mxu0 %v5090
        %v5903 = vpop.f32.mrf.mxu0
        %v5904 = vadd.f32 %v5790, %v5903
        %v5905 = vpop.f32.mrf.mxu0
        %v5906 = vadd.f32 %v5792, %v5905
        %5907 = vmatmul.bf16.gmra.mxu0 %v5095
        %v5908 = vpop.f32.mrf.mxu0
        %v5909 = vadd.f32 %v5795, %v5908
        %v5910 = vpop.f32.mrf.mxu0
        %v5911 = vadd.f32 %v5797, %v5910
        %5912 = vmatmul.bf16.gmra.mxu0 %v5100
        %v5913 = vpop.f32.mrf.mxu0
        %v5914 = vadd.f32 %v5800, %v5913
        %v5915 = vpop.f32.mrf.mxu0
        %v5916 = vadd.f32 %v5802, %v5915
        %5917 = vmatmul.bf16.gmra.mxu0 %v5105
        %v5918 = vpop.f32.mrf.mxu0
        %v5919 = vadd.f32 %v5805, %v5918
        %v5920 = vpop.f32.mrf.mxu0
        %v5921 = vadd.f32 %v5807, %v5920
        %5922 = vmatmul.bf16.gmra.mxu0 %v5110
        %v5923 = vpop.f32.mrf.mxu0
        %v5924 = vadd.f32 %v5810, %v5923
        %v5925 = vpop.f32.mrf.mxu0
        %v5926 = vadd.f32 %v5812, %v5925
        %5927 = vmatmul.bf16.gmra.mxu0 %v5115
        %v5928 = vpop.f32.mrf.mxu0
        %v5929 = vadd.f32 %v5815, %v5928
        %v5930 = vpop.f32.mrf.mxu0
        %v5931 = vadd.f32 %v5817, %v5930
        %5932 = vmatmul.bf16.gmra.mxu0 %v5120
        %v5933 = vpop.f32.mrf.mxu0
        %v5934 = vadd.f32 %v5820, %v5933
        %v5935 = vpop.f32.mrf.mxu0
        %v5936 = vadd.f32 %v5822, %v5935
        %5937 = vmatmul.bf16.gmra.mxu0 %v5125
        %v5938 = vpop.f32.mrf.mxu0
        %v5939 = vadd.f32 %v5825, %v5938
        %v5940 = vpop.f32.mrf.mxu0
        %v5941 = vadd.f32 %v5827, %v5940
        %5942 = vmatmul.bf16.gmra.mxu0 %v5130
        %v5943 = vpop.f32.mrf.mxu0
        %v5944 = vadd.f32 %v5830, %v5943
        %v5945 = vpop.f32.mrf.mxu0
        %v5946 = vadd.f32 %v5832, %v5945
        %5947 = vmatmul.bf16.gmra.mxu0 %v5135
        %v5948 = vpop.f32.mrf.mxu0
        %v5949 = vadd.f32 %v5835, %v5948
        %v5950 = vpop.f32.mrf.mxu0
        %v5951 = vadd.f32 %v5837, %v5950
        %5952 = vmatmul.bf16.gmra.mxu0 %v5140
        %v5953 = vpop.f32.mrf.mxu0
        %v5954 = vadd.f32 %v5840, %v5953
        %v5955 = vpop.f32.mrf.mxu0
        %v5956 = vadd.f32 %v5842, %v5955
        %5957 = vmatmul.bf16.gmra.mxu0 %v5145
        %v5958 = vpop.f32.mrf.mxu0
        %v5959 = vadd.f32 %v5845, %v5958
        %v5960 = vpop.f32.mrf.mxu0
        %v5961 = vadd.f32 %v5847, %v5960
        %5962 = vdwg.mxu0
        %5963 = vmatpush.bf16.msra.mxu0 0
        %5964 = vmatpush.bf16.msra.mxu0 0
        %5965 = vmatpush.bf16.msra.mxu0 0
        %5966 = vmatpush.bf16.msra.mxu0 0
        %5967 = vmatpush.bf16.msra.mxu0 %v5407
        %5968 = vmatpush.bf16.msra.mxu0 %v5406
        %5969 = vmatpush.bf16.msra.mxu0 %v5405
        %5970 = vmatpush.bf16.msra.mxu0 %v5404
        %5971 = vmatmul.bf16.gmra.mxu0 %v5445
        %v5972 = vpop.f32.mrf.mxu0
        %v5973 = vadd.f32 %v5859, %v5972
        %v5974 = vpop.f32.mrf.mxu0
        %v5975 = vadd.f32 %v5861, %v5974
        %5976 = vmatmul.bf16.gmra.mxu0 %v5448
        %v5977 = vpop.f32.mrf.mxu0
        %v5978 = vadd.f32 %v5864, %v5977
        %v5979 = vpop.f32.mrf.mxu0
        %v5980 = vadd.f32 %v5866, %v5979
        %5981 = vmatmul.bf16.gmra.mxu0 %v5451
        %v5982 = vpop.f32.mrf.mxu0
        %v5983 = vadd.f32 %v5869, %v5982
        %v5984 = vpop.f32.mrf.mxu0
        %v5985 = vadd.f32 %v5871, %v5984
        %5986 = vmatmul.bf16.gmra.mxu0 %v5454
        %v5987 = vpop.f32.mrf.mxu0
        %v5988 = vadd.f32 %v5874, %v5987
        %v5989 = vpop.f32.mrf.mxu0
        %v5990 = vadd.f32 %v5876, %v5989
        %5991 = vmatmul.bf16.gmra.mxu0 %v5457
        %v5992 = vpop.f32.mrf.mxu0
        %v5993 = vadd.f32 %v5879, %v5992
        %v5994 = vpop.f32.mrf.mxu0
        %v5995 = vadd.f32 %v5881, %v5994
        %5996 = vmatmul.bf16.gmra.mxu0 %v5460
        %v5997 = vpop.f32.mrf.mxu0
        %v5998 = vadd.f32 %v5884, %v5997
        %v5999 = vpop.f32.mrf.mxu0
        %v6000 = vadd.f32 %v5886, %v5999
        %6001 = vmatmul.bf16.gmra.mxu0 %v5463
        %v6002 = vpop.f32.mrf.mxu0
        %v6003 = vadd.f32 %v5889, %v6002
        %v6004 = vpop.f32.mrf.mxu0
        %v6005 = vadd.f32 %v5891, %v6004
        %6006 = vmatmul.bf16.gmra.mxu0 %v5466
        %v6007 = vpop.f32.mrf.mxu0
        %v6008 = vadd.f32 %v5894, %v6007
        %v6009 = vpop.f32.mrf.mxu0
        %v6010 = vadd.f32 %v5896, %v6009
        %6011 = vmatmul.bf16.gmra.mxu0 %v5469
        %v6012 = vpop.f32.mrf.mxu0
        %v6013 = vadd.f32 %v5899, %v6012
        %v6014 = vpop.f32.mrf.mxu0
        %v6015 = vadd.f32 %v5901, %v6014
        %6016 = vmatmul.bf16.gmra.mxu0 %v5472
        %v6017 = vpop.f32.mrf.mxu0
        %v6018 = vadd.f32 %v5904, %v6017
        %v6019 = vpop.f32.mrf.mxu0
        %v6020 = vadd.f32 %v5906, %v6019
        %6021 = vmatmul.bf16.gmra.mxu0 %v5475
        %v6022 = vpop.f32.mrf.mxu0
        %v6023 = vadd.f32 %v5909, %v6022
        %v6024 = vpop.f32.mrf.mxu0
        %v6025 = vadd.f32 %v5911, %v6024
        %6026 = vmatmul.bf16.gmra.mxu0 %v5478
        %v6027 = vpop.f32.mrf.mxu0
        %v6028 = vadd.f32 %v5914, %v6027
        %v6029 = vpop.f32.mrf.mxu0
        %v6030 = vadd.f32 %v5916, %v6029
        %6031 = vmatmul.bf16.gmra.mxu0 %v5481
        %v6032 = vpop.f32.mrf.mxu0
        %v6033 = vadd.f32 %v5919, %v6032
        %v6034 = vpop.f32.mrf.mxu0
        %v6035 = vadd.f32 %v5921, %v6034
        %6036 = vmatmul.bf16.gmra.mxu0 %v5484
        %v6037 = vpop.f32.mrf.mxu0
        %v6038 = vadd.f32 %v5924, %v6037
        %v6039 = vpop.f32.mrf.mxu0
        %v6040 = vadd.f32 %v5926, %v6039
        %6041 = vmatmul.bf16.gmra.mxu0 %v5487
        %v6042 = vpop.f32.mrf.mxu0
        %v6043 = vadd.f32 %v5929, %v6042
        %v6044 = vpop.f32.mrf.mxu0
        %v6045 = vadd.f32 %v5931, %v6044
        %6046 = vmatmul.bf16.gmra.mxu0 %v5490
        %v6047 = vpop.f32.mrf.mxu0
        %v6048 = vadd.f32 %v5934, %v6047
        %v6049 = vpop.f32.mrf.mxu0
        %v6050 = vadd.f32 %v5936, %v6049
        %6051 = vmatmul.bf16.gmra.mxu0 %v5493
        %v6052 = vpop.f32.mrf.mxu0
        %v6053 = vadd.f32 %v5939, %v6052
        %v6054 = vpop.f32.mrf.mxu0
        %v6055 = vadd.f32 %v5941, %v6054
        %6056 = vmatmul.bf16.gmra.mxu0 %v5496
        %v6057 = vpop.f32.mrf.mxu0
        %v6058 = vadd.f32 %v5944, %v6057
        %v6059 = vpop.f32.mrf.mxu0
        %v6060 = vadd.f32 %v5946, %v6059
        %6061 = vmatmul.bf16.gmra.mxu0 %v5499
        %v6062 = vpop.f32.mrf.mxu0
        %v6063 = vadd.f32 %v5949, %v6062
        %v6064 = vpop.f32.mrf.mxu0
        %v6065 = vadd.f32 %v5951, %v6064
        %6066 = vmatmul.bf16.gmra.mxu0 %v5502
        %v6067 = vpop.f32.mrf.mxu0
        %v6068 = vadd.f32 %v5954, %v6067
        %v6069 = vpop.f32.mrf.mxu0
        %v6070 = vadd.f32 %v5956, %v6069
        %6071 = vmatmul.bf16.gmra.mxu0 %v5505
        %v6072 = vpop.f32.mrf.mxu0
        %v6073 = vadd.f32 %v5959, %v6072
        %v6074 = vpop.f32.mrf.mxu0
        %v6075 = vadd.f32 %v5961, %v6074
        %6076 = vdwg.mxu0
        %v6077 = vmul.f32 %v5973, %v842
        %v6078 = vmul.f32 %v5975, %v847
        %v6079 = vmul.f32 %v5978, %v852
        %v6080 = vmul.f32 %v5980, %v857
        %v6081 = vmul.f32 %v5983, %v862
        %v6082 = vmul.f32 %v5985, %v867
        %v6083 = vmul.f32 %v5988, %v872
        %v6084 = vmul.f32 %v5990, %v877
        %v6085 = vmul.f32 %v5993, %v882
        %v6086 = vmul.f32 %v5995, %v887
        %v6087 = vmul.f32 %v5998, %v892
        %v6088 = vmul.f32 %v6000, %v897
        %v6089 = vmul.f32 %v6003, %v902
        %v6090 = vmul.f32 %v6005, %v907
        %v6091 = vmul.f32 %v6008, %v912
        %v6092 = vmul.f32 %v6010, %v917
        %v6093 = vmul.f32 %v6013, %v922
        %v6094 = vmul.f32 %v6015, %v927
        %v6095 = vmul.f32 %v6018, %v932
        %v6096 = vmul.f32 %v6020, %v937
        %v6097 = vmul.f32 %v6023, %v942
        %v6098 = vmul.f32 %v6025, %v947
        %v6099 = vmul.f32 %v6028, %v952
        %v6100 = vmul.f32 %v6030, %v957
        %v6101 = vmul.f32 %v6033, %v962
        %v6102 = vmul.f32 %v6035, %v967
        %v6103 = vmul.f32 %v6038, %v972
        %v6104 = vmul.f32 %v6040, %v977
        %v6105 = vmul.f32 %v6043, %v982
        %v6106 = vmul.f32 %v6045, %v987
        %v6107 = vmul.f32 %v6048, %v992
        %v6108 = vmul.f32 %v6050, %v997
        %v6109 = vmul.f32 %v6053, %v1002
        %v6110 = vmul.f32 %v6055, %v1007
        %v6111 = vmul.f32 %v6058, %v1012
        %v6112 = vmul.f32 %v6060, %v1017
        %v6113 = vmul.f32 %v6063, %v1022
        %v6114 = vmul.f32 %v6065, %v1027
        %v6115 = vmul.f32 %v6068, %v1032
        %v6116 = vmul.f32 %v6070, %v1037
        %v6117 = vmul.f32 %v6073, %v1042
        %v6118 = vmul.f32 %v6075, %v1047
        %v6119 = vadd.f32 %v1097, %v6077
        %v6120 = vadd.f32 %v1098, %v6078
        %v6121 = vadd.f32 %v1099, %v6079
        %v6122 = vadd.f32 %v1100, %v6080
        %v6123 = vadd.f32 %v1101, %v6081
        %v6124 = vadd.f32 %v1102, %v6082
        %v6125 = vadd.f32 %v1103, %v6083
        %v6126 = vadd.f32 %v1104, %v6084
        %v6127 = vadd.f32 %v1105, %v6085
        %v6128 = vadd.f32 %v1106, %v6086
        %v6129 = vadd.f32 %v1107, %v6087
        %v6130 = vadd.f32 %v1108, %v6088
        %v6131 = vadd.f32 %v1109, %v6089
        %v6132 = vadd.f32 %v1110, %v6090
        %v6133 = vadd.f32 %v1111, %v6091
        %v6134 = vadd.f32 %v1112, %v6092
        %v6135 = vadd.f32 %v1113, %v6093
        %v6136 = vadd.f32 %v1114, %v6094
        %v6137 = vadd.f32 %v1115, %v6095
        %v6138 = vadd.f32 %v1116, %v6096
        %v6139 = vadd.f32 %v1117, %v6097
        %v6140 = vadd.f32 %v1118, %v6098
        %v6141 = vadd.f32 %v1119, %v6099
        %v6142 = vadd.f32 %v1120, %v6100
        %v6143 = vadd.f32 %v1121, %v6101
        %v6144 = vadd.f32 %v1122, %v6102
        %v6145 = vadd.f32 %v1123, %v6103
        %v6146 = vadd.f32 %v1124, %v6104
        %v6147 = vadd.f32 %v1125, %v6105
        %v6148 = vadd.f32 %v1126, %v6106
        %v6149 = vadd.f32 %v1127, %v6107
        %v6150 = vadd.f32 %v1128, %v6108
        %v6151 = vadd.f32 %v1129, %v6109
        %v6152 = vadd.f32 %v1130, %v6110
        %v6153 = vadd.f32 %v1131, %v6111
        %v6154 = vadd.f32 %v1132, %v6112
        %v6155 = vadd.f32 %v1133, %v6113
        %v6156 = vadd.f32 %v1134, %v6114
        %v6157 = vadd.f32 %v1135, %v6115
        %v6158 = vadd.f32 %v1136, %v6116
        %v6159 = vadd.f32 %v1137, %v6117
        %v6160 = vadd.f32 %v1138, %v6118
      $region57: #{c2n_d_forward.1} parent=51 // loop_footer
        %s1096 = sadd.s32 1, %s1092
      $region58: #{c2n_d_forward.1} parent=51 // loop_footer_branch
        %1091 = sbr.rel target = $region54
      $region59: #{c2n_d_forward.1} parent=51 // loop_exit
        _
      %v6161 = vrot.slane %v1097, 5
      %v6162 = vrot.slane %v1098, 5
      %v6163 = vrot.slane %v1099, 5
      %v6164 = vrot.slane %v1100, 5
      %v6165 = vrot.slane %v1101, 5
      %v6166 = vrot.slane %v1102, 5
      %v6167 = vrot.slane %v1103, 5
      %v6168 = vrot.slane %v1104, 5
      %v6169 = vrot.slane %v1105, 5
      %v6170 = vrot.slane %v1106, 5
      %v6171 = vrot.slane %v1107, 5
      %v6172 = vrot.slane %v1108, 5
      %v6173 = vrot.slane %v1109, 5
      %v6174 = vrot.slane %v1110, 5
      %v6175 = vrot.slane %v1111, 5
      %v6176 = vrot.slane %v1112, 5
      %v6177 = vrot.slane %v1113, 5
      %v6178 = vrot.slane %v1114, 5
      %v6179 = vrot.slane %v1115, 5
      %v6180 = vrot.slane %v1116, 5
      %v6181 = vrot.slane %v1117, 5
      %v6182 = vrot.slane %v1118, 5
      %v6183 = vrot.slane %v1119, 5
      %v6184 = vrot.slane %v1120, 5
      %v6185 = vrot.slane %v1121, 5
      %v6186 = vrot.slane %v1122, 5
      %v6187 = vrot.slane %v1123, 5
      %v6188 = vrot.slane %v1124, 5
      %v6189 = vrot.slane %v1125, 5
      %v6190 = vrot.slane %v1126, 5
      %v6191 = vrot.slane %v1127, 5
      %v6192 = vrot.slane %v1128, 5
      %v6193 = vrot.slane %v1129, 5
      %v6194 = vrot.slane %v1130, 5
      %v6195 = vrot.slane %v1131, 5
      %v6196 = vrot.slane %v1132, 5
      %v6197 = vrot.slane %v1133, 5
      %v6198 = vrot.slane %v1134, 5
      %v6199 = vrot.slane %v1135, 5
      %v6200 = vrot.slane %v1136, 5
      %v6201 = vrot.slane %v1137, 5
      %v6202 = vrot.slane %v1138, 5
      %v6203 = vlaneseq
      %v6204 = vshrl.u32 %v6203, 7
      %vm6205 = vcmp.lt.s32.totalorder %v6204, 3
      %v6206 = vsel %vm6205, %v6201, %v6202
      %v6207 = vsel %vm6205, %v6200, %v6201
      %v6208 = vsel %vm6205, %v6199, %v6200
      %v6209 = vsel %vm6205, %v6198, %v6199
      %v6210 = vsel %vm6205, %v6197, %v6198
      %v6211 = vsel %vm6205, %v6196, %v6197
      %v6212 = vsel %vm6205, %v6195, %v6196
      %v6213 = vsel %vm6205, %v6194, %v6195
      %v6214 = vsel %vm6205, %v6193, %v6194
      %v6215 = vsel %vm6205, %v6192, %v6193
      %v6216 = vsel %vm6205, %v6191, %v6192
      %v6217 = vsel %vm6205, %v6190, %v6191
      %v6218 = vsel %vm6205, %v6189, %v6190
      %v6219 = vsel %vm6205, %v6188, %v6189
      %v6220 = vsel %vm6205, %v6187, %v6188
      %v6221 = vsel %vm6205, %v6186, %v6187
      %v6222 = vsel %vm6205, %v6185, %v6186
      %v6223 = vsel %vm6205, %v6184, %v6185
      %v6224 = vsel %vm6205, %v6183, %v6184
      %v6225 = vsel %vm6205, %v6182, %v6183
      %v6226 = vsel %vm6205, %v6181, %v6182
      %v6227 = vsel %vm6205, %v6180, %v6181
      %v6228 = vsel %vm6205, %v6179, %v6180
      %v6229 = vsel %vm6205, %v6178, %v6179
      %v6230 = vsel %vm6205, %v6177, %v6178
      %v6231 = vsel %vm6205, %v6176, %v6177
      %v6232 = vsel %vm6205, %v6175, %v6176
      %v6233 = vsel %vm6205, %v6174, %v6175
      %v6234 = vsel %vm6205, %v6173, %v6174
      %v6235 = vsel %vm6205, %v6172, %v6173
      %v6236 = vsel %vm6205, %v6171, %v6172
      %v6237 = vsel %vm6205, %v6170, %v6171
      %v6238 = vsel %vm6205, %v6169, %v6170
      %v6239 = vsel %vm6205, %v6168, %v6169
      %v6240 = vsel %vm6205, %v6167, %v6168
      %v6241 = vsel %vm6205, %v6166, %v6167
      %v6242 = vsel %vm6205, %v6165, %v6166
      %v6243 = vsel %vm6205, %v6164, %v6165
      %v6244 = vsel %vm6205, %v6163, %v6164
      %v6245 = vsel %vm6205, %v6162, %v6163
      %v6246 = vsel %vm6205, %v6161, %v6162
      %v6247 = vsel %vm6205, %v6202, %v6161
      %v6248 = vrot.slane %v1097, 6
      %v6249 = vrot.slane %v1098, 6
      %v6250 = vrot.slane %v1099, 6
      %v6251 = vrot.slane %v1100, 6
      %v6252 = vrot.slane %v1101, 6
      %v6253 = vrot.slane %v1102, 6
      %v6254 = vrot.slane %v1103, 6
      %v6255 = vrot.slane %v1104, 6
      %v6256 = vrot.slane %v1105, 6
      %v6257 = vrot.slane %v1106, 6
      %v6258 = vrot.slane %v1107, 6
      %v6259 = vrot.slane %v1108, 6
      %v6260 = vrot.slane %v1109, 6
      %v6261 = vrot.slane %v1110, 6
      %v6262 = vrot.slane %v1111, 6
      %v6263 = vrot.slane %v1112, 6
      %v6264 = vrot.slane %v1113, 6
      %v6265 = vrot.slane %v1114, 6
      %v6266 = vrot.slane %v1115, 6
      %v6267 = vrot.slane %v1116, 6
      %v6268 = vrot.slane %v1117, 6
      %v6269 = vrot.slane %v1118, 6
      %v6270 = vrot.slane %v1119, 6
      %v6271 = vrot.slane %v1120, 6
      %v6272 = vrot.slane %v1121, 6
      %v6273 = vrot.slane %v1122, 6
      %v6274 = vrot.slane %v1123, 6
      %v6275 = vrot.slane %v1124, 6
      %v6276 = vrot.slane %v1125, 6
      %v6277 = vrot.slane %v1126, 6
      %v6278 = vrot.slane %v1127, 6
      %v6279 = vrot.slane %v1128, 6
      %v6280 = vrot.slane %v1129, 6
      %v6281 = vrot.slane %v1130, 6
      %v6282 = vrot.slane %v1131, 6
      %v6283 = vrot.slane %v1132, 6
      %v6284 = vrot.slane %v1133, 6
      %v6285 = vrot.slane %v1134, 6
      %v6286 = vrot.slane %v1135, 6
      %v6287 = vrot.slane %v1136, 6
      %v6288 = vrot.slane %v1137, 6
      %v6289 = vrot.slane %v1138, 6
      %vm6290 = vcmp.lt.s32.totalorder %v6204, 2
      %v6291 = vsel %vm6290, %v6288, %v6289
      %v6292 = vsel %vm6290, %v6287, %v6288
      %v6293 = vsel %vm6290, %v6286, %v6287
      %v6294 = vsel %vm6290, %v6285, %v6286
      %v6295 = vsel %vm6290, %v6284, %v6285
      %v6296 = vsel %vm6290, %v6283, %v6284
      %v6297 = vsel %vm6290, %v6282, %v6283
      %v6298 = vsel %vm6290, %v6281, %v6282
      %v6299 = vsel %vm6290, %v6280, %v6281
      %v6300 = vsel %vm6290, %v6279, %v6280
      %v6301 = vsel %vm6290, %v6278, %v6279
      %v6302 = vsel %vm6290, %v6277, %v6278
      %v6303 = vsel %vm6290, %v6276, %v6277
      %v6304 = vsel %vm6290, %v6275, %v6276
      %v6305 = vsel %vm6290, %v6274, %v6275
      %v6306 = vsel %vm6290, %v6273, %v6274
      %v6307 = vsel %vm6290, %v6272, %v6273
      %v6308 = vsel %vm6290, %v6271, %v6272
      %v6309 = vsel %vm6290, %v6270, %v6271
      %v6310 = vsel %vm6290, %v6269, %v6270
      %v6311 = vsel %vm6290, %v6268, %v6269
      %v6312 = vsel %vm6290, %v6267, %v6268
      %v6313 = vsel %vm6290, %v6266, %v6267
      %v6314 = vsel %vm6290, %v6265, %v6266
      %v6315 = vsel %vm6290, %v6264, %v6265
      %v6316 = vsel %vm6290, %v6263, %v6264
      %v6317 = vsel %vm6290, %v6262, %v6263
      %v6318 = vsel %vm6290, %v6261, %v6262
      %v6319 = vsel %vm6290, %v6260, %v6261
      %v6320 = vsel %vm6290, %v6259, %v6260
      %v6321 = vsel %vm6290, %v6258, %v6259
      %v6322 = vsel %vm6290, %v6257, %v6258
      %v6323 = vsel %vm6290, %v6256, %v6257
      %v6324 = vsel %vm6290, %v6255, %v6256
      %v6325 = vsel %vm6290, %v6254, %v6255
      %v6326 = vsel %vm6290, %v6253, %v6254
      %v6327 = vsel %vm6290, %v6252, %v6253
      %v6328 = vsel %vm6290, %v6251, %v6252
      %v6329 = vsel %vm6290, %v6250, %v6251
      %v6330 = vsel %vm6290, %v6249, %v6250
      %v6331 = vsel %vm6290, %v6248, %v6249
      %v6332 = vsel %vm6290, %v6289, %v6248
      %v6333 = vrot.slane %v1097, 7
      %v6334 = vrot.slane %v1098, 7
      %v6335 = vrot.slane %v1099, 7
      %v6336 = vrot.slane %v1100, 7
      %v6337 = vrot.slane %v1101, 7
      %v6338 = vrot.slane %v1102, 7
      %v6339 = vrot.slane %v1103, 7
      %v6340 = vrot.slane %v1104, 7
      %v6341 = vrot.slane %v1105, 7
      %v6342 = vrot.slane %v1106, 7
      %v6343 = vrot.slane %v1107, 7
      %v6344 = vrot.slane %v1108, 7
      %v6345 = vrot.slane %v1109, 7
      %v6346 = vrot.slane %v1110, 7
      %v6347 = vrot.slane %v1111, 7
      %v6348 = vrot.slane %v1112, 7
      %v6349 = vrot.slane %v1113, 7
      %v6350 = vrot.slane %v1114, 7
      %v6351 = vrot.slane %v1115, 7
      %v6352 = vrot.slane %v1116, 7
      %v6353 = vrot.slane %v1117, 7
      %v6354 = vrot.slane %v1118, 7
      %v6355 = vrot.slane %v1119, 7
      %v6356 = vrot.slane %v1120, 7
      %v6357 = vrot.slane %v1121, 7
      %v6358 = vrot.slane %v1122, 7
      %v6359 = vrot.slane %v1123, 7
      %v6360 = vrot.slane %v1124, 7
      %v6361 = vrot.slane %v1125, 7
      %v6362 = vrot.slane %v1126, 7
      %v6363 = vrot.slane %v1127, 7
      %v6364 = vrot.slane %v1128, 7
      %v6365 = vrot.slane %v1129, 7
      %v6366 = vrot.slane %v1130, 7
      %v6367 = vrot.slane %v1131, 7
      %v6368 = vrot.slane %v1132, 7
      %v6369 = vrot.slane %v1133, 7
      %v6370 = vrot.slane %v1134, 7
      %v6371 = vrot.slane %v1135, 7
      %v6372 = vrot.slane %v1136, 7
      %v6373 = vrot.slane %v1137, 7
      %v6374 = vrot.slane %v1138, 7
      %vm6375 = vcmp.lt.s32.totalorder %v6204, 1
      %v6376 = vsel %vm6375, %v6373, %v6374
      %v6377 = vsel %vm6375, %v6372, %v6373
      %v6378 = vsel %vm6375, %v6371, %v6372
      %v6379 = vsel %vm6375, %v6370, %v6371
      %v6380 = vsel %vm6375, %v6369, %v6370
      %v6381 = vsel %vm6375, %v6368, %v6369
      %v6382 = vsel %vm6375, %v6367, %v6368
      %v6383 = vsel %vm6375, %v6366, %v6367
      %v6384 = vsel %vm6375, %v6365, %v6366
      %v6385 = vsel %vm6375, %v6364, %v6365
      %v6386 = vsel %vm6375, %v6363, %v6364
      %v6387 = vsel %vm6375, %v6362, %v6363
      %v6388 = vsel %vm6375, %v6361, %v6362
      %v6389 = vsel %vm6375, %v6360, %v6361
      %v6390 = vsel %vm6375, %v6359, %v6360
      %v6391 = vsel %vm6375, %v6358, %v6359
      %v6392 = vsel %vm6375, %v6357, %v6358
      %v6393 = vsel %vm6375, %v6356, %v6357
      %v6394 = vsel %vm6375, %v6355, %v6356
      %v6395 = vsel %vm6375, %v6354, %v6355
      %v6396 = vsel %vm6375, %v6353, %v6354
      %v6397 = vsel %vm6375, %v6352, %v6353
      %v6398 = vsel %vm6375, %v6351, %v6352
      %v6399 = vsel %vm6375, %v6350, %v6351
      %v6400 = vsel %vm6375, %v6349, %v6350
      %v6401 = vsel %vm6375, %v6348, %v6349
      %v6402 = vsel %vm6375, %v6347, %v6348
      %v6403 = vsel %vm6375, %v6346, %v6347
      %v6404 = vsel %vm6375, %v6345, %v6346
      %v6405 = vsel %vm6375, %v6344, %v6345
      %v6406 = vsel %vm6375, %v6343, %v6344
      %v6407 = vsel %vm6375, %v6342, %v6343
      %v6408 = vsel %vm6375, %v6341, %v6342
      %v6409 = vsel %vm6375, %v6340, %v6341
      %v6410 = vsel %vm6375, %v6339, %v6340
      %v6411 = vsel %vm6375, %v6338, %v6339
      %v6412 = vsel %vm6375, %v6337, %v6338
      %v6413 = vsel %vm6375, %v6336, %v6337
      %v6414 = vsel %vm6375, %v6335, %v6336
      %v6415 = vsel %vm6375, %v6334, %v6335
      %v6416 = vsel %vm6375, %v6333, %v6334
      %v6417 = vsel %vm6375, %v6374, %v6333
      %v6418 = vrot.slane %v1097, 1
      %v6419 = vrot.slane %v1098, 1
      %v6420 = vrot.slane %v1099, 1
      %v6421 = vrot.slane %v1100, 1
      %v6422 = vrot.slane %v1101, 1
      %v6423 = vrot.slane %v1102, 1
      %v6424 = vrot.slane %v1103, 1
      %v6425 = vrot.slane %v1104, 1
      %v6426 = vrot.slane %v1105, 1
      %v6427 = vrot.slane %v1106, 1
      %v6428 = vrot.slane %v1107, 1
      %v6429 = vrot.slane %v1108, 1
      %v6430 = vrot.slane %v1109, 1
      %v6431 = vrot.slane %v1110, 1
      %v6432 = vrot.slane %v1111, 1
      %v6433 = vrot.slane %v1112, 1
      %v6434 = vrot.slane %v1113, 1
      %v6435 = vrot.slane %v1114, 1
      %v6436 = vrot.slane %v1115, 1
      %v6437 = vrot.slane %v1116, 1
      %v6438 = vrot.slane %v1117, 1
      %v6439 = vrot.slane %v1118, 1
      %v6440 = vrot.slane %v1119, 1
      %v6441 = vrot.slane %v1120, 1
      %v6442 = vrot.slane %v1121, 1
      %v6443 = vrot.slane %v1122, 1
      %v6444 = vrot.slane %v1123, 1
      %v6445 = vrot.slane %v1124, 1
      %v6446 = vrot.slane %v1125, 1
      %v6447 = vrot.slane %v1126, 1
      %v6448 = vrot.slane %v1127, 1
      %v6449 = vrot.slane %v1128, 1
      %v6450 = vrot.slane %v1129, 1
      %v6451 = vrot.slane %v1130, 1
      %v6452 = vrot.slane %v1131, 1
      %v6453 = vrot.slane %v1132, 1
      %v6454 = vrot.slane %v1133, 1
      %v6455 = vrot.slane %v1134, 1
      %v6456 = vrot.slane %v1135, 1
      %v6457 = vrot.slane %v1136, 1
      %v6458 = vrot.slane %v1137, 1
      %v6459 = vrot.slane %v1138, 1
      %vm6460 = vcmp.lt.s32.totalorder %v6204, 7
      %v6461 = vsel %vm6460, %v6458, %v6459
      %v6462 = vsel %vm6460, %v6457, %v6458
      %v6463 = vsel %vm6460, %v6456, %v6457
      %v6464 = vsel %vm6460, %v6455, %v6456
      %v6465 = vsel %vm6460, %v6454, %v6455
      %v6466 = vsel %vm6460, %v6453, %v6454
      %v6467 = vsel %vm6460, %v6452, %v6453
      %v6468 = vsel %vm6460, %v6451, %v6452
      %v6469 = vsel %vm6460, %v6450, %v6451
      %v6470 = vsel %vm6460, %v6449, %v6450
      %v6471 = vsel %vm6460, %v6448, %v6449
      %v6472 = vsel %vm6460, %v6447, %v6448
      %v6473 = vsel %vm6460, %v6446, %v6447
      %v6474 = vsel %vm6460, %v6445, %v6446
      %v6475 = vsel %vm6460, %v6444, %v6445
      %v6476 = vsel %vm6460, %v6443, %v6444
      %v6477 = vsel %vm6460, %v6442, %v6443
      %v6478 = vsel %vm6460, %v6441, %v6442
      %v6479 = vsel %vm6460, %v6440, %v6441
      %v6480 = vsel %vm6460, %v6439, %v6440
      %v6481 = vsel %vm6460, %v6438, %v6439
      %v6482 = vsel %vm6460, %v6437, %v6438
      %v6483 = vsel %vm6460, %v6436, %v6437
      %v6484 = vsel %vm6460, %v6435, %v6436
      %v6485 = vsel %vm6460, %v6434, %v6435
      %v6486 = vsel %vm6460, %v6433, %v6434
      %v6487 = vsel %vm6460, %v6432, %v6433
      %v6488 = vsel %vm6460, %v6431, %v6432
      %v6489 = vsel %vm6460, %v6430, %v6431
      %v6490 = vsel %vm6460, %v6429, %v6430
      %v6491 = vsel %vm6460, %v6428, %v6429
      %v6492 = vsel %vm6460, %v6427, %v6428
      %v6493 = vsel %vm6460, %v6426, %v6427
      %v6494 = vsel %vm6460, %v6425, %v6426
      %v6495 = vsel %vm6460, %v6424, %v6425
      %v6496 = vsel %vm6460, %v6423, %v6424
      %v6497 = vsel %vm6460, %v6422, %v6423
      %v6498 = vsel %vm6460, %v6421, %v6422
      %v6499 = vsel %vm6460, %v6420, %v6421
      %v6500 = vsel %vm6460, %v6419, %v6420
      %v6501 = vsel %vm6460, %v6418, %v6419
      %v6502 = vsel %vm6460, %v6459, %v6418
      %v6503 = vrot.slane %v1097, 2
      %v6504 = vrot.slane %v1098, 2
      %v6505 = vrot.slane %v1099, 2
      %v6506 = vrot.slane %v1100, 2
      %v6507 = vrot.slane %v1101, 2
      %v6508 = vrot.slane %v1102, 2
      %v6509 = vrot.slane %v1103, 2
      %v6510 = vrot.slane %v1104, 2
      %v6511 = vrot.slane %v1105, 2
      %v6512 = vrot.slane %v1106, 2
      %v6513 = vrot.slane %v1107, 2
      %v6514 = vrot.slane %v1108, 2
      %v6515 = vrot.slane %v1109, 2
      %v6516 = vrot.slane %v1110, 2
      %v6517 = vrot.slane %v1111, 2
      %v6518 = vrot.slane %v1112, 2
      %v6519 = vrot.slane %v1113, 2
      %v6520 = vrot.slane %v1114, 2
      %v6521 = vrot.slane %v1115, 2
      %v6522 = vrot.slane %v1116, 2
      %v6523 = vrot.slane %v1117, 2
      %v6524 = vrot.slane %v1118, 2
      %v6525 = vrot.slane %v1119, 2
      %v6526 = vrot.slane %v1120, 2
      %v6527 = vrot.slane %v1121, 2
      %v6528 = vrot.slane %v1122, 2
      %v6529 = vrot.slane %v1123, 2
      %v6530 = vrot.slane %v1124, 2
      %v6531 = vrot.slane %v1125, 2
      %v6532 = vrot.slane %v1126, 2
      %v6533 = vrot.slane %v1127, 2
      %v6534 = vrot.slane %v1128, 2
      %v6535 = vrot.slane %v1129, 2
      %v6536 = vrot.slane %v1130, 2
      %v6537 = vrot.slane %v1131, 2
      %v6538 = vrot.slane %v1132, 2
      %v6539 = vrot.slane %v1133, 2
      %v6540 = vrot.slane %v1134, 2
      %v6541 = vrot.slane %v1135, 2
      %v6542 = vrot.slane %v1136, 2
      %v6543 = vrot.slane %v1137, 2
      %v6544 = vrot.slane %v1138, 2
      %vm6545 = vcmp.lt.s32.totalorder %v6204, 6
      %v6546 = vsel %vm6545, %v6543, %v6544
      %v6547 = vsel %vm6545, %v6542, %v6543
      %v6548 = vsel %vm6545, %v6541, %v6542
      %v6549 = vsel %vm6545, %v6540, %v6541
      %v6550 = vsel %vm6545, %v6539, %v6540
      %v6551 = vsel %vm6545, %v6538, %v6539
      %v6552 = vsel %vm6545, %v6537, %v6538
      %v6553 = vsel %vm6545, %v6536, %v6537
      %v6554 = vsel %vm6545, %v6535, %v6536
      %v6555 = vsel %vm6545, %v6534, %v6535
      %v6556 = vsel %vm6545, %v6533, %v6534
      %v6557 = vsel %vm6545, %v6532, %v6533
      %v6558 = vsel %vm6545, %v6531, %v6532
      %v6559 = vsel %vm6545, %v6530, %v6531
      %v6560 = vsel %vm6545, %v6529, %v6530
      %v6561 = vsel %vm6545, %v6528, %v6529
      %v6562 = vsel %vm6545, %v6527, %v6528
      %v6563 = vsel %vm6545, %v6526, %v6527
      %v6564 = vsel %vm6545, %v6525, %v6526
      %v6565 = vsel %vm6545, %v6524, %v6525
      %v6566 = vsel %vm6545, %v6523, %v6524
      %v6567 = vsel %vm6545, %v6522, %v6523
      %v6568 = vsel %vm6545, %v6521, %v6522
      %v6569 = vsel %vm6545, %v6520, %v6521
      %v6570 = vsel %vm6545, %v6519, %v6520
      %v6571 = vsel %vm6545, %v6518, %v6519
      %v6572 = vsel %vm6545, %v6517, %v6518
      %v6573 = vsel %vm6545, %v6516, %v6517
      %v6574 = vsel %vm6545, %v6515, %v6516
      %v6575 = vsel %vm6545, %v6514, %v6515
      %v6576 = vsel %vm6545, %v6513, %v6514
      %v6577 = vsel %vm6545, %v6512, %v6513
      %v6578 = vsel %vm6545, %v6511, %v6512
      %v6579 = vsel %vm6545, %v6510, %v6511
      %v6580 = vsel %vm6545, %v6509, %v6510
      %v6581 = vsel %vm6545, %v6508, %v6509
      %v6582 = vsel %vm6545, %v6507, %v6508
      %v6583 = vsel %vm6545, %v6506, %v6507
      %v6584 = vsel %vm6545, %v6505, %v6506
      %v6585 = vsel %vm6545, %v6504, %v6505
      %v6586 = vsel %vm6545, %v6503, %v6504
      %v6587 = vsel %vm6545, %v6544, %v6503
      %v6588 = vrot.slane %v1097, 3
      %v6589 = vrot.slane %v1098, 3
      %v6590 = vrot.slane %v1099, 3
      %v6591 = vrot.slane %v1100, 3
      %v6592 = vrot.slane %v1101, 3
      %v6593 = vrot.slane %v1102, 3
      %v6594 = vrot.slane %v1103, 3
      %v6595 = vrot.slane %v1104, 3
      %v6596 = vrot.slane %v1105, 3
      %v6597 = vrot.slane %v1106, 3
      %v6598 = vrot.slane %v1107, 3
      %v6599 = vrot.slane %v1108, 3
      %v6600 = vrot.slane %v1109, 3
      %v6601 = vrot.slane %v1110, 3
      %v6602 = vrot.slane %v1111, 3
      %v6603 = vrot.slane %v1112, 3
      %v6604 = vrot.slane %v1113, 3
      %v6605 = vrot.slane %v1114, 3
      %v6606 = vrot.slane %v1115, 3
      %v6607 = vrot.slane %v1116, 3
      %v6608 = vrot.slane %v1117, 3
      %v6609 = vrot.slane %v1118, 3
      %v6610 = vrot.slane %v1119, 3
      %v6611 = vrot.slane %v1120, 3
      %v6612 = vrot.slane %v1121, 3
      %v6613 = vrot.slane %v1122, 3
      %v6614 = vrot.slane %v1123, 3
      %v6615 = vrot.slane %v1124, 3
      %v6616 = vrot.slane %v1125, 3
      %v6617 = vrot.slane %v1126, 3
      %v6618 = vrot.slane %v1127, 3
      %v6619 = vrot.slane %v1128, 3
      %v6620 = vrot.slane %v1129, 3
      %v6621 = vrot.slane %v1130, 3
      %v6622 = vrot.slane %v1131, 3
      %v6623 = vrot.slane %v1132, 3
      %v6624 = vrot.slane %v1133, 3
      %v6625 = vrot.slane %v1134, 3
      %v6626 = vrot.slane %v1135, 3
      %v6627 = vrot.slane %v1136, 3
      %v6628 = vrot.slane %v1137, 3
      %v6629 = vrot.slane %v1138, 3
      %vm6630 = vcmp.lt.s32.totalorder %v6204, 5
      %v6631 = vsel %vm6630, %v6628, %v6629
      %v6632 = vsel %vm6630, %v6627, %v6628
      %v6633 = vsel %vm6630, %v6626, %v6627
      %v6634 = vsel %vm6630, %v6625, %v6626
      %v6635 = vsel %vm6630, %v6624, %v6625
      %v6636 = vsel %vm6630, %v6623, %v6624
      %v6637 = vsel %vm6630, %v6622, %v6623
      %v6638 = vsel %vm6630, %v6621, %v6622
      %v6639 = vsel %vm6630, %v6620, %v6621
      %v6640 = vsel %vm6630, %v6619, %v6620
      %v6641 = vsel %vm6630, %v6618, %v6619
      %v6642 = vsel %vm6630, %v6617, %v6618
      %v6643 = vsel %vm6630, %v6616, %v6617
      %v6644 = vsel %vm6630, %v6615, %v6616
      %v6645 = vsel %vm6630, %v6614, %v6615
      %v6646 = vsel %vm6630, %v6613, %v6614
      %v6647 = vsel %vm6630, %v6612, %v6613
      %v6648 = vsel %vm6630, %v6611, %v6612
      %v6649 = vsel %vm6630, %v6610, %v6611
      %v6650 = vsel %vm6630, %v6609, %v6610
      %v6651 = vsel %vm6630, %v6608, %v6609
      %v6652 = vsel %vm6630, %v6607, %v6608
      %v6653 = vsel %vm6630, %v6606, %v6607
      %v6654 = vsel %vm6630, %v6605, %v6606
      %v6655 = vsel %vm6630, %v6604, %v6605
      %v6656 = vsel %vm6630, %v6603, %v6604
      %v6657 = vsel %vm6630, %v6602, %v6603
      %v6658 = vsel %vm6630, %v6601, %v6602
      %v6659 = vsel %vm6630, %v6600, %v6601
      %v6660 = vsel %vm6630, %v6599, %v6600
      %v6661 = vsel %vm6630, %v6598, %v6599
      %v6662 = vsel %vm6630, %v6597, %v6598
      %v6663 = vsel %vm6630, %v6596, %v6597
      %v6664 = vsel %vm6630, %v6595, %v6596
      %v6665 = vsel %vm6630, %v6594, %v6595
      %v6666 = vsel %vm6630, %v6593, %v6594
      %v6667 = vsel %vm6630, %v6592, %v6593
      %v6668 = vsel %vm6630, %v6591, %v6592
      %v6669 = vsel %vm6630, %v6590, %v6591
      %v6670 = vsel %vm6630, %v6589, %v6590
      %v6671 = vsel %vm6630, %v6588, %v6589
      %v6672 = vsel %vm6630, %v6629, %v6588
      %6715 = vrot.lane.b32.xlu0 %v6292, 64
      %v6716 = vpop.permute.xlu0 %6715
      %6717 = vrot.lane.b32.xlu0 %v6291, 64
      %v6718 = vpop.permute.xlu0 %6717
      %6719 = vrot.lane.b32.xlu0 %v6332, 64
      %v6720 = vpop.permute.xlu0 %6719
      %6721 = vrot.lane.b32.xlu0 %v6331, 64
      %v6722 = vpop.permute.xlu0 %6721
      %6723 = vrot.lane.b32.xlu0 %v6330, 64
      %v6724 = vpop.permute.xlu0 %6723
      %6725 = vrot.lane.b32.xlu0 %v6329, 64
      %v6726 = vpop.permute.xlu0 %6725
      %6727 = vrot.lane.b32.xlu0 %v6328, 64
      %v6728 = vpop.permute.xlu0 %6727
      %6729 = vrot.lane.b32.xlu0 %v6327, 64
      %v6730 = vpop.permute.xlu0 %6729
      %6731 = vrot.lane.b32.xlu0 %v6326, 64
      %v6732 = vpop.permute.xlu0 %6731
      %6733 = vrot.lane.b32.xlu0 %v6325, 64
      %v6734 = vpop.permute.xlu0 %6733
      %6735 = vrot.lane.b32.xlu0 %v6324, 64
      %v6736 = vpop.permute.xlu0 %6735
      %6737 = vrot.lane.b32.xlu0 %v6323, 64
      %v6738 = vpop.permute.xlu0 %6737
      %6739 = vrot.lane.b32.xlu0 %v6322, 64
      %v6740 = vpop.permute.xlu0 %6739
      %6741 = vrot.lane.b32.xlu0 %v6321, 64
      %v6742 = vpop.permute.xlu0 %6741
      %6743 = vrot.lane.b32.xlu0 %v6320, 64
      %v6744 = vpop.permute.xlu0 %6743
      %6745 = vrot.lane.b32.xlu0 %v6319, 64
      %v6746 = vpop.permute.xlu0 %6745
      %6747 = vrot.lane.b32.xlu0 %v6318, 64
      %v6748 = vpop.permute.xlu0 %6747
      %6749 = vrot.lane.b32.xlu0 %v6317, 64
      %v6750 = vpop.permute.xlu0 %6749
      %6751 = vrot.lane.b32.xlu0 %v6316, 64
      %v6752 = vpop.permute.xlu0 %6751
      %6753 = vrot.lane.b32.xlu0 %v6315, 64
      %v6754 = vpop.permute.xlu0 %6753
      %6755 = vrot.lane.b32.xlu0 %v6314, 64
      %v6756 = vpop.permute.xlu0 %6755
      %6757 = vrot.lane.b32.xlu0 %v6313, 64
      %v6758 = vpop.permute.xlu0 %6757
      %6759 = vrot.lane.b32.xlu0 %v6312, 64
      %v6760 = vpop.permute.xlu0 %6759
      %6761 = vrot.lane.b32.xlu0 %v6311, 64
      %v6762 = vpop.permute.xlu0 %6761
      %6763 = vrot.lane.b32.xlu0 %v6310, 64
      %v6764 = vpop.permute.xlu0 %6763
      %6765 = vrot.lane.b32.xlu0 %v6309, 64
      %v6766 = vpop.permute.xlu0 %6765
      %6767 = vrot.lane.b32.xlu0 %v6308, 64
      %v6768 = vpop.permute.xlu0 %6767
      %6769 = vrot.lane.b32.xlu0 %v6307, 64
      %v6770 = vpop.permute.xlu0 %6769
      %6771 = vrot.lane.b32.xlu0 %v6306, 64
      %v6772 = vpop.permute.xlu0 %6771
      %6773 = vrot.lane.b32.xlu0 %v6305, 64
      %v6774 = vpop.permute.xlu0 %6773
      %6775 = vrot.lane.b32.xlu0 %v6304, 64
      %v6776 = vpop.permute.xlu0 %6775
      %6777 = vrot.lane.b32.xlu0 %v6303, 64
      %v6778 = vpop.permute.xlu0 %6777
      %6779 = vrot.lane.b32.xlu0 %v6302, 64
      %v6780 = vpop.permute.xlu0 %6779
      %6781 = vrot.lane.b32.xlu0 %v6301, 64
      %v6782 = vpop.permute.xlu0 %6781
      %6783 = vrot.lane.b32.xlu0 %v6300, 64
      %v6784 = vpop.permute.xlu0 %6783
      %6785 = vrot.lane.b32.xlu0 %v6299, 64
      %v6786 = vpop.permute.xlu0 %6785
      %6787 = vrot.lane.b32.xlu0 %v6298, 64
      %v6788 = vpop.permute.xlu0 %6787
      %6789 = vrot.lane.b32.xlu0 %v6297, 64
      %v6790 = vpop.permute.xlu0 %6789
      %6791 = vrot.lane.b32.xlu0 %v6296, 64
      %v6792 = vpop.permute.xlu0 %6791
      %6793 = vrot.lane.b32.xlu0 %v6295, 64
      %v6794 = vpop.permute.xlu0 %6793
      %6795 = vrot.lane.b32.xlu0 %v6294, 64
      %v6796 = vpop.permute.xlu0 %6795
      %6797 = vrot.lane.b32.xlu0 %v6293, 64
      %v6798 = vpop.permute.xlu0 %6797
      %6883 = vrot.lane.b32.xlu0 %v6417, 64
      %v6884 = vpop.permute.xlu0 %6883
      %6885 = vrot.lane.b32.xlu0 %v6416, 64
      %v6886 = vpop.permute.xlu0 %6885
      %6887 = vrot.lane.b32.xlu0 %v6415, 64
      %v6888 = vpop.permute.xlu0 %6887
      %6889 = vrot.lane.b32.xlu0 %v6414, 64
      %v6890 = vpop.permute.xlu0 %6889
      %6891 = vrot.lane.b32.xlu0 %v6413, 64
      %v6892 = vpop.permute.xlu0 %6891
      %6893 = vrot.lane.b32.xlu0 %v6412, 64
      %v6894 = vpop.permute.xlu0 %6893
      %6895 = vrot.lane.b32.xlu0 %v6411, 64
      %v6896 = vpop.permute.xlu0 %6895
      %6897 = vrot.lane.b32.xlu0 %v6410, 64
      %v6898 = vpop.permute.xlu0 %6897
      %6899 = vrot.lane.b32.xlu0 %v6409, 64
      %v6900 = vpop.permute.xlu0 %6899
      %6901 = vrot.lane.b32.xlu0 %v6408, 64
      %v6902 = vpop.permute.xlu0 %6901
      %6903 = vrot.lane.b32.xlu0 %v6407, 64
      %v6904 = vpop.permute.xlu0 %6903
      %6905 = vrot.lane.b32.xlu0 %v6406, 64
      %v6906 = vpop.permute.xlu0 %6905
      %6907 = vrot.lane.b32.xlu0 %v6405, 64
      %v6908 = vpop.permute.xlu0 %6907
      %6909 = vrot.lane.b32.xlu0 %v6404, 64
      %v6910 = vpop.permute.xlu0 %6909
      %6911 = vrot.lane.b32.xlu0 %v6403, 64
      %v6912 = vpop.permute.xlu0 %6911
      %6913 = vrot.lane.b32.xlu0 %v6402, 64
      %v6914 = vpop.permute.xlu0 %6913
      %6915 = vrot.lane.b32.xlu0 %v6401, 64
      %v6916 = vpop.permute.xlu0 %6915
      %6917 = vrot.lane.b32.xlu0 %v6400, 64
      %v6918 = vpop.permute.xlu0 %6917
      %6919 = vrot.lane.b32.xlu0 %v6399, 64
      %v6920 = vpop.permute.xlu0 %6919
      %6921 = vrot.lane.b32.xlu0 %v6398, 64
      %v6922 = vpop.permute.xlu0 %6921
      %6923 = vrot.lane.b32.xlu0 %v6397, 64
      %v6924 = vpop.permute.xlu0 %6923
      %6925 = vrot.lane.b32.xlu0 %v6396, 64
      %v6926 = vpop.permute.xlu0 %6925
      %6927 = vrot.lane.b32.xlu0 %v6395, 64
      %v6928 = vpop.permute.xlu0 %6927
      %6929 = vrot.lane.b32.xlu0 %v6394, 64
      %v6930 = vpop.permute.xlu0 %6929
      %6931 = vrot.lane.b32.xlu0 %v6393, 64
      %v6932 = vpop.permute.xlu0 %6931
      %6933 = vrot.lane.b32.xlu0 %v6392, 64
      %v6934 = vpop.permute.xlu0 %6933
      %6935 = vrot.lane.b32.xlu0 %v6391, 64
      %v6936 = vpop.permute.xlu0 %6935
      %6937 = vrot.lane.b32.xlu0 %v6390, 64
      %v6938 = vpop.permute.xlu0 %6937
      %6939 = vrot.lane.b32.xlu0 %v6389, 64
      %v6940 = vpop.permute.xlu0 %6939
      %6941 = vrot.lane.b32.xlu0 %v6388, 64
      %v6942 = vpop.permute.xlu0 %6941
      %6943 = vrot.lane.b32.xlu0 %v6387, 64
      %v6944 = vpop.permute.xlu0 %6943
      %6945 = vrot.lane.b32.xlu0 %v6386, 64
      %v6946 = vpop.permute.xlu0 %6945
      %6947 = vrot.lane.b32.xlu0 %v6385, 64
      %v6948 = vpop.permute.xlu0 %6947
      %6949 = vrot.lane.b32.xlu0 %v6384, 64
      %v6950 = vpop.permute.xlu0 %6949
      %6951 = vrot.lane.b32.xlu0 %v6383, 64
      %v6952 = vpop.permute.xlu0 %6951
      %6953 = vrot.lane.b32.xlu0 %v6382, 64
      %v6954 = vpop.permute.xlu0 %6953
      %6955 = vrot.lane.b32.xlu0 %v6381, 64
      %v6956 = vpop.permute.xlu0 %6955
      %6957 = vrot.lane.b32.xlu0 %v6380, 64
      %v6958 = vpop.permute.xlu0 %6957
      %6959 = vrot.lane.b32.xlu0 %v6379, 64
      %v6960 = vpop.permute.xlu0 %6959
      %6961 = vrot.lane.b32.xlu0 %v6378, 64
      %v6962 = vpop.permute.xlu0 %6961
      %6963 = vrot.lane.b32.xlu0 %v6377, 64
      %v6964 = vpop.permute.xlu0 %6963
      %6965 = vrot.lane.b32.xlu0 %v6376, 64
      %v6966 = vpop.permute.xlu0 %6965
      %7051 = vrot.lane.b32.xlu0 %v6501, 64
      %v7052 = vpop.permute.xlu0 %7051
      %7053 = vrot.lane.b32.xlu0 %v6500, 64
      %v7054 = vpop.permute.xlu0 %7053
      %7055 = vrot.lane.b32.xlu0 %v6499, 64
      %v7056 = vpop.permute.xlu0 %7055
      %7057 = vrot.lane.b32.xlu0 %v6498, 64
      %v7058 = vpop.permute.xlu0 %7057
      %7059 = vrot.lane.b32.xlu0 %v6497, 64
      %v7060 = vpop.permute.xlu0 %7059
      %7061 = vrot.lane.b32.xlu0 %v6496, 64
      %v7062 = vpop.permute.xlu0 %7061
      %7063 = vrot.lane.b32.xlu0 %v6495, 64
      %v7064 = vpop.permute.xlu0 %7063
      %7065 = vrot.lane.b32.xlu0 %v6494, 64
      %v7066 = vpop.permute.xlu0 %7065
      %7067 = vrot.lane.b32.xlu0 %v6493, 64
      %v7068 = vpop.permute.xlu0 %7067
      %7069 = vrot.lane.b32.xlu0 %v6492, 64
      %v7070 = vpop.permute.xlu0 %7069
      %7071 = vrot.lane.b32.xlu0 %v6491, 64
      %v7072 = vpop.permute.xlu0 %7071
      %7073 = vrot.lane.b32.xlu0 %v6490, 64
      %v7074 = vpop.permute.xlu0 %7073
      %7075 = vrot.lane.b32.xlu0 %v6489, 64
      %v7076 = vpop.permute.xlu0 %7075
      %7077 = vrot.lane.b32.xlu0 %v6488, 64
      %v7078 = vpop.permute.xlu0 %7077
      %7079 = vrot.lane.b32.xlu0 %v6487, 64
      %v7080 = vpop.permute.xlu0 %7079
      %7081 = vrot.lane.b32.xlu0 %v6486, 64
      %v7082 = vpop.permute.xlu0 %7081
      %7083 = vrot.lane.b32.xlu0 %v6485, 64
      %v7084 = vpop.permute.xlu0 %7083
      %7085 = vrot.lane.b32.xlu0 %v6484, 64
      %v7086 = vpop.permute.xlu0 %7085
      %7087 = vrot.lane.b32.xlu0 %v6483, 64
      %v7088 = vpop.permute.xlu0 %7087
      %7089 = vrot.lane.b32.xlu0 %v6482, 64
      %v7090 = vpop.permute.xlu0 %7089
      %7091 = vrot.lane.b32.xlu0 %v6481, 64
      %v7092 = vpop.permute.xlu0 %7091
      %7093 = vrot.lane.b32.xlu0 %v6480, 64
      %v7094 = vpop.permute.xlu0 %7093
      %7095 = vrot.lane.b32.xlu0 %v6479, 64
      %v7096 = vpop.permute.xlu0 %7095
      %7097 = vrot.lane.b32.xlu0 %v6478, 64
      %v7098 = vpop.permute.xlu0 %7097
      %7099 = vrot.lane.b32.xlu0 %v6477, 64
      %v7100 = vpop.permute.xlu0 %7099
      %7101 = vrot.lane.b32.xlu0 %v6476, 64
      %v7102 = vpop.permute.xlu0 %7101
      %7103 = vrot.lane.b32.xlu0 %v6475, 64
      %v7104 = vpop.permute.xlu0 %7103
      %7105 = vrot.lane.b32.xlu0 %v6474, 64
      %v7106 = vpop.permute.xlu0 %7105
      %7107 = vrot.lane.b32.xlu0 %v6473, 64
      %v7108 = vpop.permute.xlu0 %7107
      %7109 = vrot.lane.b32.xlu0 %v6472, 64
      %v7110 = vpop.permute.xlu0 %7109
      %7111 = vrot.lane.b32.xlu0 %v6471, 64
      %v7112 = vpop.permute.xlu0 %7111
      %7113 = vrot.lane.b32.xlu0 %v6470, 64
      %v7114 = vpop.permute.xlu0 %7113
      %7115 = vrot.lane.b32.xlu0 %v6469, 64
      %v7116 = vpop.permute.xlu0 %7115
      %7117 = vrot.lane.b32.xlu0 %v6468, 64
      %v7118 = vpop.permute.xlu0 %7117
      %7119 = vrot.lane.b32.xlu0 %v6467, 64
      %v7120 = vpop.permute.xlu0 %7119
      %7121 = vrot.lane.b32.xlu0 %v6466, 64
      %v7122 = vpop.permute.xlu0 %7121
      %7123 = vrot.lane.b32.xlu0 %v6465, 64
      %v7124 = vpop.permute.xlu0 %7123
      %7125 = vrot.lane.b32.xlu0 %v6464, 64
      %v7126 = vpop.permute.xlu0 %7125
      %7127 = vrot.lane.b32.xlu0 %v6463, 64
      %v7128 = vpop.permute.xlu0 %7127
      %7129 = vrot.lane.b32.xlu0 %v6462, 64
      %v7130 = vpop.permute.xlu0 %7129
      %7131 = vrot.lane.b32.xlu0 %v6461, 64
      %v7132 = vpop.permute.xlu0 %7131
      %7133 = vrot.lane.b32.xlu0 %v6502, 64
      %v7134 = vpop.permute.xlu0 %7133
      %7219 = vrot.lane.b32.xlu0 %v6584, 64
      %v7220 = vpop.permute.xlu0 %7219
      %7221 = vrot.lane.b32.xlu0 %v6583, 64
      %v7222 = vpop.permute.xlu0 %7221
      %7223 = vrot.lane.b32.xlu0 %v6582, 64
      %v7224 = vpop.permute.xlu0 %7223
      %7225 = vrot.lane.b32.xlu0 %v6581, 64
      %v7226 = vpop.permute.xlu0 %7225
      %7227 = vrot.lane.b32.xlu0 %v6580, 64
      %v7228 = vpop.permute.xlu0 %7227
      %7229 = vrot.lane.b32.xlu0 %v6579, 64
      %v7230 = vpop.permute.xlu0 %7229
      %7231 = vrot.lane.b32.xlu0 %v6578, 64
      %v7232 = vpop.permute.xlu0 %7231
      %7233 = vrot.lane.b32.xlu0 %v6577, 64
      %v7234 = vpop.permute.xlu0 %7233
      %7235 = vrot.lane.b32.xlu0 %v6576, 64
      %v7236 = vpop.permute.xlu0 %7235
      %7237 = vrot.lane.b32.xlu0 %v6575, 64
      %v7238 = vpop.permute.xlu0 %7237
      %7239 = vrot.lane.b32.xlu0 %v6574, 64
      %v7240 = vpop.permute.xlu0 %7239
      %7241 = vrot.lane.b32.xlu0 %v6573, 64
      %v7242 = vpop.permute.xlu0 %7241
      %7243 = vrot.lane.b32.xlu0 %v6572, 64
      %v7244 = vpop.permute.xlu0 %7243
      %7245 = vrot.lane.b32.xlu0 %v6571, 64
      %v7246 = vpop.permute.xlu0 %7245
      %7247 = vrot.lane.b32.xlu0 %v6570, 64
      %v7248 = vpop.permute.xlu0 %7247
      %7249 = vrot.lane.b32.xlu0 %v6569, 64
      %v7250 = vpop.permute.xlu0 %7249
      %7251 = vrot.lane.b32.xlu0 %v6568, 64
      %v7252 = vpop.permute.xlu0 %7251
      %7253 = vrot.lane.b32.xlu0 %v6567, 64
      %v7254 = vpop.permute.xlu0 %7253
      %7255 = vrot.lane.b32.xlu0 %v6566, 64
      %v7256 = vpop.permute.xlu0 %7255
      %7257 = vrot.lane.b32.xlu0 %v6565, 64
      %v7258 = vpop.permute.xlu0 %7257
      %7259 = vrot.lane.b32.xlu0 %v6564, 64
      %v7260 = vpop.permute.xlu0 %7259
      %7261 = vrot.lane.b32.xlu0 %v6563, 64
      %v7262 = vpop.permute.xlu0 %7261
      %7263 = vrot.lane.b32.xlu0 %v6562, 64
      %v7264 = vpop.permute.xlu0 %7263
      %7265 = vrot.lane.b32.xlu0 %v6561, 64
      %v7266 = vpop.permute.xlu0 %7265
      %7267 = vrot.lane.b32.xlu0 %v6560, 64
      %v7268 = vpop.permute.xlu0 %7267
      %7269 = vrot.lane.b32.xlu0 %v6559, 64
      %v7270 = vpop.permute.xlu0 %7269
      %7271 = vrot.lane.b32.xlu0 %v6558, 64
      %v7272 = vpop.permute.xlu0 %7271
      %7273 = vrot.lane.b32.xlu0 %v6557, 64
      %v7274 = vpop.permute.xlu0 %7273
      %7275 = vrot.lane.b32.xlu0 %v6556, 64
      %v7276 = vpop.permute.xlu0 %7275
      %7277 = vrot.lane.b32.xlu0 %v6555, 64
      %v7278 = vpop.permute.xlu0 %7277
      %7279 = vrot.lane.b32.xlu0 %v6554, 64
      %v7280 = vpop.permute.xlu0 %7279
      %7281 = vrot.lane.b32.xlu0 %v6553, 64
      %v7282 = vpop.permute.xlu0 %7281
      %7283 = vrot.lane.b32.xlu0 %v6552, 64
      %v7284 = vpop.permute.xlu0 %7283
      %7285 = vrot.lane.b32.xlu0 %v6551, 64
      %v7286 = vpop.permute.xlu0 %7285
      %7287 = vrot.lane.b32.xlu0 %v6550, 64
      %v7288 = vpop.permute.xlu0 %7287
      %7289 = vrot.lane.b32.xlu0 %v6549, 64
      %v7290 = vpop.permute.xlu0 %7289
      %7291 = vrot.lane.b32.xlu0 %v6548, 64
      %v7292 = vpop.permute.xlu0 %7291
      %7293 = vrot.lane.b32.xlu0 %v6547, 64
      %v7294 = vpop.permute.xlu0 %7293
      %7295 = vrot.lane.b32.xlu0 %v6546, 64
      %v7296 = vpop.permute.xlu0 %7295
      %7297 = vrot.lane.b32.xlu0 %v6587, 64
      %v7298 = vpop.permute.xlu0 %7297
      %7299 = vrot.lane.b32.xlu0 %v6586, 64
      %v7300 = vpop.permute.xlu0 %7299
      %7301 = vrot.lane.b32.xlu0 %v6585, 64
      %v7302 = vpop.permute.xlu0 %7301
      %vm7345 = vcmask 523264
      %v7346 = vsel %vm7345, %v6207, %v6716
      %v7347 = vsel %vm7345, %v6206, %v6718
      %v7348 = vsel %vm7345, %v6247, %v6720
      %v7349 = vsel %vm7345, %v6246, %v6722
      %v7350 = vsel %vm7345, %v6245, %v6724
      %v7351 = vsel %vm7345, %v6244, %v6726
      %v7352 = vsel %vm7345, %v6243, %v6728
      %v7353 = vsel %vm7345, %v6242, %v6730
      %v7354 = vsel %vm7345, %v6241, %v6732
      %v7355 = vsel %vm7345, %v6240, %v6734
      %v7356 = vsel %vm7345, %v6239, %v6736
      %v7357 = vsel %vm7345, %v6238, %v6738
      %v7358 = vsel %vm7345, %v6237, %v6740
      %v7359 = vsel %vm7345, %v6236, %v6742
      %v7360 = vsel %vm7345, %v6235, %v6744
      %v7361 = vsel %vm7345, %v6234, %v6746
      %v7362 = vsel %vm7345, %v6233, %v6748
      %v7363 = vsel %vm7345, %v6232, %v6750
      %v7364 = vsel %vm7345, %v6231, %v6752
      %v7365 = vsel %vm7345, %v6230, %v6754
      %v7366 = vsel %vm7345, %v6229, %v6756
      %v7367 = vsel %vm7345, %v6228, %v6758
      %v7368 = vsel %vm7345, %v6227, %v6760
      %v7369 = vsel %vm7345, %v6226, %v6762
      %v7370 = vsel %vm7345, %v6225, %v6764
      %v7371 = vsel %vm7345, %v6224, %v6766
      %v7372 = vsel %vm7345, %v6223, %v6768
      %v7373 = vsel %vm7345, %v6222, %v6770
      %v7374 = vsel %vm7345, %v6221, %v6772
      %v7375 = vsel %vm7345, %v6220, %v6774
      %v7376 = vsel %vm7345, %v6219, %v6776
      %v7377 = vsel %vm7345, %v6218, %v6778
      %v7378 = vsel %vm7345, %v6217, %v6780
      %v7379 = vsel %vm7345, %v6216, %v6782
      %v7380 = vsel %vm7345, %v6215, %v6784
      %v7381 = vsel %vm7345, %v6214, %v6786
      %v7382 = vsel %vm7345, %v6213, %v6788
      %v7383 = vsel %vm7345, %v6212, %v6790
      %v7384 = vsel %vm7345, %v6211, %v6792
      %v7385 = vsel %vm7345, %v6210, %v6794
      %v7386 = vsel %vm7345, %v6209, %v6796
      %v7387 = vsel %vm7345, %v6208, %v6798
      %v7388 = vsel %vm7345, %v6377, %v6884
      %v7389 = vsel %vm7345, %v6376, %v6886
      %v7390 = vsel %vm7345, %v6417, %v6888
      %v7391 = vsel %vm7345, %v6416, %v6890
      %v7392 = vsel %vm7345, %v6415, %v6892
      %v7393 = vsel %vm7345, %v6414, %v6894
      %v7394 = vsel %vm7345, %v6413, %v6896
      %v7395 = vsel %vm7345, %v6412, %v6898
      %v7396 = vsel %vm7345, %v6411, %v6900
      %v7397 = vsel %vm7345, %v6410, %v6902
      %v7398 = vsel %vm7345, %v6409, %v6904
      %v7399 = vsel %vm7345, %v6408, %v6906
      %v7400 = vsel %vm7345, %v6407, %v6908
      %v7401 = vsel %vm7345, %v6406, %v6910
      %v7402 = vsel %vm7345, %v6405, %v6912
      %v7403 = vsel %vm7345, %v6404, %v6914
      %v7404 = vsel %vm7345, %v6403, %v6916
      %v7405 = vsel %vm7345, %v6402, %v6918
      %v7406 = vsel %vm7345, %v6401, %v6920
      %v7407 = vsel %vm7345, %v6400, %v6922
      %v7408 = vsel %vm7345, %v6399, %v6924
      %v7409 = vsel %vm7345, %v6398, %v6926
      %v7410 = vsel %vm7345, %v6397, %v6928
      %v7411 = vsel %vm7345, %v6396, %v6930
      %v7412 = vsel %vm7345, %v6395, %v6932
      %v7413 = vsel %vm7345, %v6394, %v6934
      %v7414 = vsel %vm7345, %v6393, %v6936
      %v7415 = vsel %vm7345, %v6392, %v6938
      %v7416 = vsel %vm7345, %v6391, %v6940
      %v7417 = vsel %vm7345, %v6390, %v6942
      %v7418 = vsel %vm7345, %v6389, %v6944
      %v7419 = vsel %vm7345, %v6388, %v6946
      %v7420 = vsel %vm7345, %v6387, %v6948
      %v7421 = vsel %vm7345, %v6386, %v6950
      %v7422 = vsel %vm7345, %v6385, %v6952
      %v7423 = vsel %vm7345, %v6384, %v6954
      %v7424 = vsel %vm7345, %v6383, %v6956
      %v7425 = vsel %vm7345, %v6382, %v6958
      %v7426 = vsel %vm7345, %v6381, %v6960
      %v7427 = vsel %vm7345, %v6380, %v6962
      %v7428 = vsel %vm7345, %v6379, %v6964
      %v7429 = vsel %vm7345, %v6378, %v6966
      %v7430 = vsel %vm7345, %v1097, %v7052
      %v7431 = vsel %vm7345, %v1098, %v7054
      %v7432 = vsel %vm7345, %v1099, %v7056
      %v7433 = vsel %vm7345, %v1100, %v7058
      %v7434 = vsel %vm7345, %v1101, %v7060
      %v7435 = vsel %vm7345, %v1102, %v7062
      %v7436 = vsel %vm7345, %v1103, %v7064
      %v7437 = vsel %vm7345, %v1104, %v7066
      %v7438 = vsel %vm7345, %v1105, %v7068
      %v7439 = vsel %vm7345, %v1106, %v7070
      %v7440 = vsel %vm7345, %v1107, %v7072
      %v7441 = vsel %vm7345, %v1108, %v7074
      %v7442 = vsel %vm7345, %v1109, %v7076
      %v7443 = vsel %vm7345, %v1110, %v7078
      %v7444 = vsel %vm7345, %v1111, %v7080
      %v7445 = vsel %vm7345, %v1112, %v7082
      %v7446 = vsel %vm7345, %v1113, %v7084
      %v7447 = vsel %vm7345, %v1114, %v7086
      %v7448 = vsel %vm7345, %v1115, %v7088
      %v7449 = vsel %vm7345, %v1116, %v7090
      %v7450 = vsel %vm7345, %v1117, %v7092
      %v7451 = vsel %vm7345, %v1118, %v7094
      %v7452 = vsel %vm7345, %v1119, %v7096
      %v7453 = vsel %vm7345, %v1120, %v7098
      %v7454 = vsel %vm7345, %v1121, %v7100
      %v7455 = vsel %vm7345, %v1122, %v7102
      %v7456 = vsel %vm7345, %v1123, %v7104
      %v7457 = vsel %vm7345, %v1124, %v7106
      %v7458 = vsel %vm7345, %v1125, %v7108
      %v7459 = vsel %vm7345, %v1126, %v7110
      %v7460 = vsel %vm7345, %v1127, %v7112
      %v7461 = vsel %vm7345, %v1128, %v7114
      %v7462 = vsel %vm7345, %v1129, %v7116
      %v7463 = vsel %vm7345, %v1130, %v7118
      %v7464 = vsel %vm7345, %v1131, %v7120
      %v7465 = vsel %vm7345, %v1132, %v7122
      %v7466 = vsel %vm7345, %v1133, %v7124
      %v7467 = vsel %vm7345, %v1134, %v7126
      %v7468 = vsel %vm7345, %v1135, %v7128
      %v7469 = vsel %vm7345, %v1136, %v7130
      %v7470 = vsel %vm7345, %v1137, %v7132
      %v7471 = vsel %vm7345, %v1138, %v7134
      %v7472 = vsel %vm7345, %v6499, %v7220
      %v7473 = vsel %vm7345, %v6498, %v7222
      %v7474 = vsel %vm7345, %v6497, %v7224
      %v7475 = vsel %vm7345, %v6496, %v7226
      %v7476 = vsel %vm7345, %v6495, %v7228
      %v7477 = vsel %vm7345, %v6494, %v7230
      %v7478 = vsel %vm7345, %v6493, %v7232
      %v7479 = vsel %vm7345, %v6492, %v7234
      %v7480 = vsel %vm7345, %v6491, %v7236
      %v7481 = vsel %vm7345, %v6490, %v7238
      %v7482 = vsel %vm7345, %v6489, %v7240
      %v7483 = vsel %vm7345, %v6488, %v7242
      %v7484 = vsel %vm7345, %v6487, %v7244
      %v7485 = vsel %vm7345, %v6486, %v7246
      %v7486 = vsel %vm7345, %v6485, %v7248
      %v7487 = vsel %vm7345, %v6484, %v7250
      %v7488 = vsel %vm7345, %v6483, %v7252
      %v7489 = vsel %vm7345, %v6482, %v7254
      %v7490 = vsel %vm7345, %v6481, %v7256
      %v7491 = vsel %vm7345, %v6480, %v7258
      %v7492 = vsel %vm7345, %v6479, %v7260
      %v7493 = vsel %vm7345, %v6478, %v7262
      %v7494 = vsel %vm7345, %v6477, %v7264
      %v7495 = vsel %vm7345, %v6476, %v7266
      %v7496 = vsel %vm7345, %v6475, %v7268
      %v7497 = vsel %vm7345, %v6474, %v7270
      %v7498 = vsel %vm7345, %v6473, %v7272
      %v7499 = vsel %vm7345, %v6472, %v7274
      %v7500 = vsel %vm7345, %v6471, %v7276
      %v7501 = vsel %vm7345, %v6470, %v7278
      %v7502 = vsel %vm7345, %v6469, %v7280
      %v7503 = vsel %vm7345, %v6468, %v7282
      %v7504 = vsel %vm7345, %v6467, %v7284
      %v7505 = vsel %vm7345, %v6466, %v7286
      %v7506 = vsel %vm7345, %v6465, %v7288
      %v7507 = vsel %vm7345, %v6464, %v7290
      %v7508 = vsel %vm7345, %v6463, %v7292
      %v7509 = vsel %vm7345, %v6462, %v7294
      %v7510 = vsel %vm7345, %v6461, %v7296
      %v7511 = vsel %vm7345, %v6502, %v7298
      %v7512 = vsel %vm7345, %v6501, %v7300
      %v7513 = vsel %vm7345, %v6500, %v7302
      %v7514 = vpack.c.bf16 %v7347, %v7346
      %v7515 = vpack.c.bf16 %v7389, %v7388
      %v7516 = vpack.c.bf16 %v7431, %v7430
      %v7517 = vpack.c.bf16 %v7473, %v7472
      %v7518 = vpack.c.bf16 %v6668, %v6669
      %v7519 = vpack.c.bf16 %v7349, %v7348
      %v7520 = vpack.c.bf16 %v7391, %v7390
      %v7521 = vpack.c.bf16 %v7433, %v7432
      %v7522 = vpack.c.bf16 %v7475, %v7474
      %v7523 = vpack.c.bf16 %v6666, %v6667
      %v7524 = vpack.c.bf16 %v7351, %v7350
      %v7525 = vpack.c.bf16 %v7393, %v7392
      %v7526 = vpack.c.bf16 %v7435, %v7434
      %v7527 = vpack.c.bf16 %v7477, %v7476
      %v7528 = vpack.c.bf16 %v6664, %v6665
      %v7529 = vpack.c.bf16 %v7353, %v7352
      %v7530 = vpack.c.bf16 %v7395, %v7394
      %v7531 = vpack.c.bf16 %v7437, %v7436
      %v7532 = vpack.c.bf16 %v7479, %v7478
      %v7533 = vpack.c.bf16 %v6662, %v6663
      %v7534 = vpack.c.bf16 %v7355, %v7354
      %v7535 = vpack.c.bf16 %v7397, %v7396
      %v7536 = vpack.c.bf16 %v7439, %v7438
      %v7537 = vpack.c.bf16 %v7481, %v7480
      %v7538 = vpack.c.bf16 %v6660, %v6661
      %v7539 = vpack.c.bf16 %v7357, %v7356
      %v7540 = vpack.c.bf16 %v7399, %v7398
      %v7541 = vpack.c.bf16 %v7441, %v7440
      %v7542 = vpack.c.bf16 %v7483, %v7482
      %v7543 = vpack.c.bf16 %v6658, %v6659
      %v7544 = vpack.c.bf16 %v7359, %v7358
      %v7545 = vpack.c.bf16 %v7401, %v7400
      %v7546 = vpack.c.bf16 %v7443, %v7442
      %v7547 = vpack.c.bf16 %v7485, %v7484
      %v7548 = vpack.c.bf16 %v6656, %v6657
      %v7549 = vpack.c.bf16 %v7361, %v7360
      %v7550 = vpack.c.bf16 %v7403, %v7402
      %v7551 = vpack.c.bf16 %v7445, %v7444
      %v7552 = vpack.c.bf16 %v7487, %v7486
      %v7553 = vpack.c.bf16 %v6654, %v6655
      %v7554 = vpack.c.bf16 %v7363, %v7362
      %v7555 = vpack.c.bf16 %v7405, %v7404
      %v7556 = vpack.c.bf16 %v7447, %v7446
      %v7557 = vpack.c.bf16 %v7489, %v7488
      %v7558 = vpack.c.bf16 %v6652, %v6653
      %v7559 = vpack.c.bf16 %v7365, %v7364
      %v7560 = vpack.c.bf16 %v7407, %v7406
      %v7561 = vpack.c.bf16 %v7449, %v7448
      %v7562 = vpack.c.bf16 %v7491, %v7490
      %v7563 = vpack.c.bf16 %v6650, %v6651
      %v7564 = vpack.c.bf16 %v7367, %v7366
      %v7565 = vpack.c.bf16 %v7409, %v7408
      %v7566 = vpack.c.bf16 %v7451, %v7450
      %v7567 = vpack.c.bf16 %v7493, %v7492
      %v7568 = vpack.c.bf16 %v6648, %v6649
      %v7569 = vpack.c.bf16 %v7369, %v7368
      %v7570 = vpack.c.bf16 %v7411, %v7410
      %v7571 = vpack.c.bf16 %v7453, %v7452
      %v7572 = vpack.c.bf16 %v7495, %v7494
      %v7573 = vpack.c.bf16 %v6646, %v6647
      %v7574 = vpack.c.bf16 %v7371, %v7370
      %v7575 = vpack.c.bf16 %v7413, %v7412
      %v7576 = vpack.c.bf16 %v7455, %v7454
      %v7577 = vpack.c.bf16 %v7497, %v7496
      %v7578 = vpack.c.bf16 %v6644, %v6645
      %v7579 = vpack.c.bf16 %v7373, %v7372
      %v7580 = vpack.c.bf16 %v7415, %v7414
      %v7581 = vpack.c.bf16 %v7457, %v7456
      %v7582 = vpack.c.bf16 %v7499, %v7498
      %v7583 = vpack.c.bf16 %v6642, %v6643
      %v7584 = vpack.c.bf16 %v7375, %v7374
      %v7585 = vpack.c.bf16 %v7417, %v7416
      %v7586 = vpack.c.bf16 %v7459, %v7458
      %v7587 = vpack.c.bf16 %v7501, %v7500
      %v7588 = vpack.c.bf16 %v6640, %v6641
      %v7589 = vpack.c.bf16 %v7377, %v7376
      %v7590 = vpack.c.bf16 %v7419, %v7418
      %v7591 = vpack.c.bf16 %v7461, %v7460
      %v7592 = vpack.c.bf16 %v7503, %v7502
      %v7593 = vpack.c.bf16 %v6638, %v6639
      %v7594 = vpack.c.bf16 %v7379, %v7378
      %v7595 = vpack.c.bf16 %v7421, %v7420
      %v7596 = vpack.c.bf16 %v7463, %v7462
      %v7597 = vpack.c.bf16 %v7505, %v7504
      %v7598 = vpack.c.bf16 %v6636, %v6637
      %v7599 = vpack.c.bf16 %v7381, %v7380
      %v7600 = vpack.c.bf16 %v7423, %v7422
      %v7601 = vpack.c.bf16 %v7465, %v7464
      %v7602 = vpack.c.bf16 %v7507, %v7506
      %v7603 = vpack.c.bf16 %v6634, %v6635
      %v7604 = vpack.c.bf16 %v7383, %v7382
      %v7605 = vpack.c.bf16 %v7425, %v7424
      %v7606 = vpack.c.bf16 %v7467, %v7466
      %v7607 = vpack.c.bf16 %v7509, %v7508
      %v7608 = vpack.c.bf16 %v6632, %v6633
      %v7609 = vpack.c.bf16 %v7385, %v7384
      %v7610 = vpack.c.bf16 %v7427, %v7426
      %v7611 = vpack.c.bf16 %v7469, %v7468
      %v7612 = vpack.c.bf16 %v7511, %v7510
      %v7613 = vpack.c.bf16 %v6672, %v6631
      %v7614 = vpack.c.bf16 %v7387, %v7386
      %v7615 = vpack.c.bf16 %v7429, %v7428
      %v7616 = vpack.c.bf16 %v7471, %v7470
      %v7617 = vpack.c.bf16 %v7513, %v7512
      %v7618 = vpack.c.bf16 %v6670, %v6671
      %v7619 = vld [vmem:[%s7] sm:$0xf]
      %v7620 = vld [vmem:[%s7 + $0x4] sm:$0xf]
      %v7621 = vld [vmem:[%s7 + $0x8] sm:$0xf]
      %v7622 = vld [vmem:[%s7 + $0xc] sm:$0xf]
      %v7623 = vld [vmem:[%s7 + $0x10] sm:$0xf]
      %v7624 = vld [vmem:[%s7 + $0x14] sm:$0xf]
      %v7625 = vld [vmem:[%s7 + $0x18] sm:$0xf]
      %v7626 = vld [vmem:[%s7 + $0x1c] sm:$0xf]
      %v7627 = vld [vmem:[%s7 + $0x20] sm:$0xf]
      %v7628 = vld [vmem:[%s7 + $0x24] sm:$0xf]
      %v7629 = vld [vmem:[%s7 + $0x28] sm:$0xf]
      %v7630 = vld [vmem:[%s7 + $0x2c] sm:$0xf]
      %v7631 = vld [vmem:[%s7 + $0x30] sm:$0xf]
      %v7632 = vld [vmem:[%s7 + $0x34] sm:$0xf]
      %v7633 = vld [vmem:[%s7 + $0x38] sm:$0xf]
      %v7634 = vld [vmem:[%s7 + $0x3c] sm:$0xf]
      %v7635 = vld [vmem:[%s7 + $0x40] sm:$0xf]
      %v7636 = vld [vmem:[%s7 + $0x44] sm:$0xf]
      %v7637 = vld [vmem:[%s7 + $0x48] sm:$0xf]
      %v7638 = vld [vmem:[%s7 + $0x4c] sm:$0xf]
      %v7639 = vld [vmem:[%s7 + $0x50] sm:$0xf]
      %v7640 = vld [vmem:[%s7 + $0x54] sm:$0xf]
      %v7641 = vld [vmem:[%s7 + $0x58] sm:$0xf]
      %v7642 = vld [vmem:[%s7 + $0x5c] sm:$0xf]
      %v7643 = vld [vmem:[%s7 + $0x60] sm:$0xf]
      %v7644 = vld [vmem:[%s7 + $0x64] sm:$0xf]
      %v7645 = vld [vmem:[%s7 + $0x68] sm:$0xf]
      %v7646 = vld [vmem:[%s7 + $0x6c] sm:$0xf]
      %v7647 = vld [vmem:[%s7 + $0x70] sm:$0xf]
      %v7648 = vld [vmem:[%s7 + $0x74] sm:$0xf]
      %v7649 = vld [vmem:[%s7 + $0x78] sm:$0xf]
      %v7650 = vld [vmem:[%s7 + $0x7c] sm:$0xf]
      %v7651 = vld [vmem:[%s7 + $0x80] sm:$0xf]
      %v7652 = vld [vmem:[%s7 + $0x84] sm:$0xf]
      %v7653 = vld [vmem:[%s7 + $0x88] sm:$0xf]
      %v7654 = vld [vmem:[%s7 + $0x8c] sm:$0xf]
      %v7655 = vld [vmem:[%s7 + $0x90] sm:$0xf]
      %v7656 = vld [vmem:[%s7 + $0x94] sm:$0xf]
      %v7657 = vld [vmem:[%s7 + $0x98] sm:$0xf]
      %v7658 = vld [vmem:[%s7 + $0x9c] sm:$0xf]
      %v7659 = vld [vmem:[%s7 + $0xa0] sm:$0xf]
      %v7660 = vld [vmem:[%s7 + $0xa4] sm:$0xf]
      %v7661 = vld [vmem:[%s7 + $0xa8] sm:$0xf]
      %v7662 = vld [vmem:[%s7 + $0xac] sm:$0xf]
      %v7663 = vld [vmem:[%s7 + $0xb0] sm:$0xf]
      %v7664 = vld [vmem:[%s7 + $0xb4] sm:$0xf]
      %v7665 = vld [vmem:[%s7 + $0xb8] sm:$0xf]
      %v7666 = vld [vmem:[%s7 + $0xbc] sm:$0xf]
      %v7667 = vld [vmem:[%s7 + $0xc0] sm:$0xf]
      %v7668 = vld [vmem:[%s7 + $0xc4] sm:$0xf]
      %v7669 = vld [vmem:[%s7 + $0xc8] sm:$0xf]
      %v7670 = vld [vmem:[%s7 + $0xcc] sm:$0xf]
      %v7671 = vld [vmem:[%s7 + $0xd0] sm:$0xf]
      %v7672 = vld [vmem:[%s7 + $0xd4] sm:$0xf]
      %v7673 = vld [vmem:[%s7 + $0xd8] sm:$0xf]
      %v7674 = vld [vmem:[%s7 + $0xdc] sm:$0xf]
      %v7675 = vld [vmem:[%s7 + $0xe0] sm:$0xf]
      %v7676 = vld [vmem:[%s7 + $0xe4] sm:$0xf]
      %v7677 = vld [vmem:[%s7 + $0xe8] sm:$0xf]
      %v7678 = vld [vmem:[%s7 + $0xec] sm:$0xf]
      %v7679 = vld [vmem:[%s7 + $0xf0] sm:$0xf]
      %v7680 = vld [vmem:[%s7 + $0xf4] sm:$0xf]
      %v7681 = vld [vmem:[%s7 + $0xf8] sm:$0xf]
      %v7682 = vld [vmem:[%s7 + $0xfc] sm:$0xf]
      %v7683 = vld [vmem:[%s7 + $0x100] sm:$0xf]
      %v7684 = vld [vmem:[%s7 + $0x104] sm:$0xf]
      %v7685 = vld [vmem:[%s7 + $0x108] sm:$0xf]
      %v7686 = vld [vmem:[%s7 + $0x10c] sm:$0xf]
      %v7687 = vld [vmem:[%s7 + $0x110] sm:$0xf]
      %v7688 = vld [vmem:[%s7 + $0x114] sm:$0xf]
      %v7689 = vld [vmem:[%s7 + $0x118] sm:$0xf]
      %v7690 = vld [vmem:[%s7 + $0x11c] sm:$0xf]
      %v7691 = vld [vmem:[%s8] sm:$0x1]
      %v7693 = vperm.slane %v7691, 0
      %v7767 = vunpack.c.l.b16 %v7619
      %v7768 = vunpack.c.l.b16 %v7620
      %v7769 = vunpack.c.l.b16 %v7621
      %v7770 = vunpack.c.l.b16 %v7622
      %v7771 = vunpack.c.l.b16 %v7623
      %v7772 = vunpack.c.l.b16 %v7624
      %v7773 = vunpack.c.l.b16 %v7625
      %v7774 = vunpack.c.l.b16 %v7626
      %v7775 = vunpack.c.l.b16 %v7627
      %v7776 = vunpack.c.l.b16 %v7628
      %v7777 = vunpack.c.l.b16 %v7629
      %v7778 = vunpack.c.l.b16 %v7630
      %v7779 = vunpack.c.l.b16 %v7631
      %v7780 = vunpack.c.l.b16 %v7632
      %v7781 = vunpack.c.l.b16 %v7633
      %v7782 = vunpack.c.l.b16 %v7634
      %v7783 = vunpack.c.l.b16 %v7635
      %v7784 = vunpack.c.l.b16 %v7636
      %v7785 = vunpack.c.l.b16 %v7637
      %v7786 = vunpack.c.l.b16 %v7638
      %v7787 = vunpack.c.l.b16 %v7639
      %v7788 = vunpack.c.l.b16 %v7640
      %v7789 = vunpack.c.l.b16 %v7641
      %v7790 = vunpack.c.l.b16 %v7642
      %v7791 = vunpack.c.l.b16 %v7643
      %v7792 = vunpack.c.l.b16 %v7644
      %v7793 = vunpack.c.l.b16 %v7645
      %v7794 = vunpack.c.l.b16 %v7646
      %v7795 = vunpack.c.l.b16 %v7647
      %v7796 = vunpack.c.l.b16 %v7648
      %v7797 = vunpack.c.l.b16 %v7649
      %v7798 = vunpack.c.l.b16 %v7650
      %v7799 = vunpack.c.l.b16 %v7651
      %v7800 = vunpack.c.l.b16 %v7652
      %v7801 = vunpack.c.l.b16 %v7653
      %v7802 = vunpack.c.l.b16 %v7654
      %v7803 = vunpack.c.l.b16 %v7655
      %v7804 = vunpack.c.l.b16 %v7656
      %v7805 = vunpack.c.l.b16 %v7657
      %v7806 = vunpack.c.l.b16 %v7658
      %v7807 = vunpack.c.l.b16 %v7659
      %v7808 = vunpack.c.l.b16 %v7660
      %v7809 = vunpack.c.l.b16 %v7661
      %v7810 = vunpack.c.l.b16 %v7662
      %v7811 = vunpack.c.l.b16 %v7663
      %v7812 = vunpack.c.l.b16 %v7664
      %v7813 = vunpack.c.l.b16 %v7665
      %v7814 = vunpack.c.l.b16 %v7666
      %v7815 = vunpack.c.l.b16 %v7667
      %v7816 = vunpack.c.l.b16 %v7668
      %v7817 = vunpack.c.l.b16 %v7669
      %v7818 = vunpack.c.l.b16 %v7670
      %v7819 = vunpack.c.l.b16 %v7671
      %v7820 = vunpack.c.l.b16 %v7672
      %v7821 = vunpack.c.l.b16 %v7673
      %v7822 = vunpack.c.l.b16 %v7674
      %v7823 = vunpack.c.l.b16 %v7675
      %v7824 = vunpack.c.l.b16 %v7676
      %v7825 = vunpack.c.l.b16 %v7677
      %v7826 = vunpack.c.l.b16 %v7678
      %v7827 = vunpack.c.l.b16 %v7679
      %v7828 = vunpack.c.l.b16 %v7680
      %v7829 = vunpack.c.l.b16 %v7681
      %v7830 = vunpack.c.l.b16 %v7682
      %v7831 = vunpack.c.l.b16 %v7683
      %v7832 = vunpack.c.l.b16 %v7684
      %v7833 = vunpack.c.l.b16 %v7685
      %v7834 = vunpack.c.l.b16 %v7686
      %v7835 = vunpack.c.l.b16 %v7687
      %v7836 = vunpack.c.l.b16 %v7688
      %v7837 = vunpack.c.l.b16 %v7689
      %v7838 = vunpack.c.l.b16 %v7690
      %v7839 = vpack.c.b16 %v7768, %v7767
      %v7840 = vpack.c.b16 %v7770, %v7769
      %v7841 = vpack.c.b16 %v7772, %v7771
      %v7842 = vpack.c.b16 %v7774, %v7773
      %v7843 = vpack.c.b16 %v7776, %v7775
      %v7844 = vpack.c.b16 %v7778, %v7777
      %v7845 = vpack.c.b16 %v7780, %v7779
      %v7846 = vpack.c.b16 %v7782, %v7781
      %v7847 = vpack.c.b16 %v7784, %v7783
      %v7848 = vpack.c.b16 %v7786, %v7785
      %v7849 = vpack.c.b16 %v7788, %v7787
      %v7850 = vpack.c.b16 %v7790, %v7789
      %v7851 = vpack.c.b16 %v7792, %v7791
      %v7852 = vpack.c.b16 %v7794, %v7793
      %v7853 = vpack.c.b16 %v7796, %v7795
      %v7854 = vpack.c.b16 %v7798, %v7797
      %v7855 = vpack.c.b16 %v7800, %v7799
      %v7856 = vpack.c.b16 %v7802, %v7801
      %v7857 = vpack.c.b16 %v7804, %v7803
      %v7858 = vpack.c.b16 %v7806, %v7805
      %v7859 = vpack.c.b16 %v7808, %v7807
      %v7860 = vpack.c.b16 %v7810, %v7809
      %v7861 = vpack.c.b16 %v7812, %v7811
      %v7862 = vpack.c.b16 %v7814, %v7813
      %v7863 = vpack.c.b16 %v7816, %v7815
      %v7864 = vpack.c.b16 %v7818, %v7817
      %v7865 = vpack.c.b16 %v7820, %v7819
      %v7866 = vpack.c.b16 %v7822, %v7821
      %v7867 = vpack.c.b16 %v7824, %v7823
      %v7868 = vpack.c.b16 %v7826, %v7825
      %v7869 = vpack.c.b16 %v7828, %v7827
      %v7870 = vpack.c.b16 %v7830, %v7829
      %v7871 = vpack.c.b16 %v7832, %v7831
      %v7872 = vpack.c.b16 %v7834, %v7833
      %v7873 = vpack.c.b16 %v7836, %v7835
      %v7874 = vpack.c.b16 %v7838, %v7837
      %v7912 = vsel %vm7345, %v7518, 0
      %v7915 = vsel %vm7345, %v7523, 0
      %v7918 = vsel %vm7345, %v7528, 0
      %v7921 = vsel %vm7345, %v7533, 0
      %v7924 = vsel %vm7345, %v7538, 0
      %v7927 = vsel %vm7345, %v7543, 0
      %v7930 = vsel %vm7345, %v7548, 0
      %v7933 = vsel %vm7345, %v7553, 0
      %v7936 = vsel %vm7345, %v7558, 0
      %v7939 = vsel %vm7345, %v7563, 0
      %v7942 = vsel %vm7345, %v7568, 0
      %v7945 = vsel %vm7345, %v7573, 0
      %v7948 = vsel %vm7345, %v7578, 0
      %v7951 = vsel %vm7345, %v7583, 0
      %v7954 = vsel %vm7345, %v7588, 0
      %v7957 = vsel %vm7345, %v7593, 0
      %v7960 = vsel %vm7345, %v7598, 0
      %v7963 = vsel %vm7345, %v7603, 0
      %v7966 = vsel %vm7345, %v7608, 0
      %v7969 = vsel %vm7345, %v7613, 0
      %v7972 = vsel %vm7345, %v7618, 0
      %7974 = vmatpush.bf16.msra.mxu0 %v7846
      %7975 = vmatpush.bf16.msra.mxu0 %v7845
      %7976 = vmatpush.bf16.msra.mxu0 %v7844
      %7977 = vmatpush.bf16.msra.mxu0 %v7843
      %7978 = vmatpush.bf16.msra.mxu0 %v7842
      %7979 = vmatpush.bf16.msra.mxu0 %v7841
      %7980 = vmatpush.bf16.msra.mxu0 %v7840
      %7981 = vmatpush.bf16.msra.mxu0 %v7839
      %7982 = vmatmul.bf16.gmra.mxu0 %v7514
      %v7983 = vpop.f32.mrf.mxu0
      %v7984 = vadd.f32 %v7693, %v7983
      %v7985 = vpop.f32.mrf.mxu0
      %v7986 = vadd.f32 %v7693, %v7985
      %7987 = vmatmul.bf16.gmra.mxu0 %v7519
      %v7988 = vpop.f32.mrf.mxu0
      %v7989 = vadd.f32 %v7693, %v7988
      %v7990 = vpop.f32.mrf.mxu0
      %v7991 = vadd.f32 %v7693, %v7990
      %7992 = vmatmul.bf16.gmra.mxu0 %v7524
      %v7993 = vpop.f32.mrf.mxu0
      %v7994 = vadd.f32 %v7693, %v7993
      %v7995 = vpop.f32.mrf.mxu0
      %v7996 = vadd.f32 %v7693, %v7995
      %7997 = vmatmul.bf16.gmra.mxu0 %v7529
      %v7998 = vpop.f32.mrf.mxu0
      %v7999 = vadd.f32 %v7693, %v7998
      %v8000 = vpop.f32.mrf.mxu0
      %v8001 = vadd.f32 %v7693, %v8000
      %8002 = vmatmul.bf16.gmra.mxu0 %v7534
      %v8003 = vpop.f32.mrf.mxu0
      %v8004 = vadd.f32 %v7693, %v8003
      %v8005 = vpop.f32.mrf.mxu0
      %v8006 = vadd.f32 %v7693, %v8005
      %8007 = vmatmul.bf16.gmra.mxu0 %v7539
      %v8008 = vpop.f32.mrf.mxu0
      %v8009 = vadd.f32 %v7693, %v8008
      %v8010 = vpop.f32.mrf.mxu0
      %v8011 = vadd.f32 %v7693, %v8010
      %8012 = vmatmul.bf16.gmra.mxu0 %v7544
      %v8013 = vpop.f32.mrf.mxu0
      %v8014 = vadd.f32 %v7693, %v8013
      %v8015 = vpop.f32.mrf.mxu0
      %v8016 = vadd.f32 %v7693, %v8015
      %8017 = vmatmul.bf16.gmra.mxu0 %v7549
      %v8018 = vpop.f32.mrf.mxu0
      %v8019 = vadd.f32 %v7693, %v8018
      %v8020 = vpop.f32.mrf.mxu0
      %v8021 = vadd.f32 %v7693, %v8020
      %8022 = vmatmul.bf16.gmra.mxu0 %v7554
      %v8023 = vpop.f32.mrf.mxu0
      %v8024 = vadd.f32 %v7693, %v8023
      %v8025 = vpop.f32.mrf.mxu0
      %v8026 = vadd.f32 %v7693, %v8025
      %8027 = vmatmul.bf16.gmra.mxu0 %v7559
      %v8028 = vpop.f32.mrf.mxu0
      %v8029 = vadd.f32 %v7693, %v8028
      %v8030 = vpop.f32.mrf.mxu0
      %v8031 = vadd.f32 %v7693, %v8030
      %8032 = vmatmul.bf16.gmra.mxu0 %v7564
      %v8033 = vpop.f32.mrf.mxu0
      %v8034 = vadd.f32 %v7693, %v8033
      %v8035 = vpop.f32.mrf.mxu0
      %v8036 = vadd.f32 %v7693, %v8035
      %8037 = vmatmul.bf16.gmra.mxu0 %v7569
      %v8038 = vpop.f32.mrf.mxu0
      %v8039 = vadd.f32 %v7693, %v8038
      %v8040 = vpop.f32.mrf.mxu0
      %v8041 = vadd.f32 %v7693, %v8040
      %8042 = vmatmul.bf16.gmra.mxu0 %v7574
      %v8043 = vpop.f32.mrf.mxu0
      %v8044 = vadd.f32 %v7693, %v8043
      %v8045 = vpop.f32.mrf.mxu0
      %v8046 = vadd.f32 %v7693, %v8045
      %8047 = vmatmul.bf16.gmra.mxu0 %v7579
      %v8048 = vpop.f32.mrf.mxu0
      %v8049 = vadd.f32 %v7693, %v8048
      %v8050 = vpop.f32.mrf.mxu0
      %v8051 = vadd.f32 %v7693, %v8050
      %8052 = vmatmul.bf16.gmra.mxu0 %v7584
      %v8053 = vpop.f32.mrf.mxu0
      %v8054 = vadd.f32 %v7693, %v8053
      %v8055 = vpop.f32.mrf.mxu0
      %v8056 = vadd.f32 %v7693, %v8055
      %8057 = vmatmul.bf16.gmra.mxu0 %v7589
      %v8058 = vpop.f32.mrf.mxu0
      %v8059 = vadd.f32 %v7693, %v8058
      %v8060 = vpop.f32.mrf.mxu0
      %v8061 = vadd.f32 %v7693, %v8060
      %8062 = vmatmul.bf16.gmra.mxu0 %v7594
      %v8063 = vpop.f32.mrf.mxu0
      %v8064 = vadd.f32 %v7693, %v8063
      %v8065 = vpop.f32.mrf.mxu0
      %v8066 = vadd.f32 %v7693, %v8065
      %8067 = vmatmul.bf16.gmra.mxu0 %v7599
      %v8068 = vpop.f32.mrf.mxu0
      %v8069 = vadd.f32 %v7693, %v8068
      %v8070 = vpop.f32.mrf.mxu0
      %v8071 = vadd.f32 %v7693, %v8070
      %8072 = vmatmul.bf16.gmra.mxu0 %v7604
      %v8073 = vpop.f32.mrf.mxu0
      %v8074 = vadd.f32 %v7693, %v8073
      %v8075 = vpop.f32.mrf.mxu0
      %v8076 = vadd.f32 %v7693, %v8075
      %8077 = vmatmul.bf16.gmra.mxu0 %v7609
      %v8078 = vpop.f32.mrf.mxu0
      %v8079 = vadd.f32 %v7693, %v8078
      %v8080 = vpop.f32.mrf.mxu0
      %v8081 = vadd.f32 %v7693, %v8080
      %8082 = vmatmul.bf16.gmra.mxu0 %v7614
      %v8083 = vpop.f32.mrf.mxu0
      %v8084 = vadd.f32 %v7693, %v8083
      %v8085 = vpop.f32.mrf.mxu0
      %v8086 = vadd.f32 %v7693, %v8085
      %8087 = vdwg.mxu0
      %8088 = vmatpush.bf16.msra.mxu0 %v7854
      %8089 = vmatpush.bf16.msra.mxu0 %v7853
      %8090 = vmatpush.bf16.msra.mxu0 %v7852
      %8091 = vmatpush.bf16.msra.mxu0 %v7851
      %8092 = vmatpush.bf16.msra.mxu0 %v7850
      %8093 = vmatpush.bf16.msra.mxu0 %v7849
      %8094 = vmatpush.bf16.msra.mxu0 %v7848
      %8095 = vmatpush.bf16.msra.mxu0 %v7847
      %8096 = vmatmul.bf16.gmra.mxu0 %v7515
      %v8097 = vpop.f32.mrf.mxu0
      %v8098 = vadd.f32 %v7984, %v8097
      %v8099 = vpop.f32.mrf.mxu0
      %v8100 = vadd.f32 %v7986, %v8099
      %8101 = vmatmul.bf16.gmra.mxu0 %v7520
      %v8102 = vpop.f32.mrf.mxu0
      %v8103 = vadd.f32 %v7989, %v8102
      %v8104 = vpop.f32.mrf.mxu0
      %v8105 = vadd.f32 %v7991, %v8104
      %8106 = vmatmul.bf16.gmra.mxu0 %v7525
      %v8107 = vpop.f32.mrf.mxu0
      %v8108 = vadd.f32 %v7994, %v8107
      %v8109 = vpop.f32.mrf.mxu0
      %v8110 = vadd.f32 %v7996, %v8109
      %8111 = vmatmul.bf16.gmra.mxu0 %v7530
      %v8112 = vpop.f32.mrf.mxu0
      %v8113 = vadd.f32 %v7999, %v8112
      %v8114 = vpop.f32.mrf.mxu0
      %v8115 = vadd.f32 %v8001, %v8114
      %8116 = vmatmul.bf16.gmra.mxu0 %v7535
      %v8117 = vpop.f32.mrf.mxu0
      %v8118 = vadd.f32 %v8004, %v8117
      %v8119 = vpop.f32.mrf.mxu0
      %v8120 = vadd.f32 %v8006, %v8119
      %8121 = vmatmul.bf16.gmra.mxu0 %v7540
      %v8122 = vpop.f32.mrf.mxu0
      %v8123 = vadd.f32 %v8009, %v8122
      %v8124 = vpop.f32.mrf.mxu0
      %v8125 = vadd.f32 %v8011, %v8124
      %8126 = vmatmul.bf16.gmra.mxu0 %v7545
      %v8127 = vpop.f32.mrf.mxu0
      %v8128 = vadd.f32 %v8014, %v8127
      %v8129 = vpop.f32.mrf.mxu0
      %v8130 = vadd.f32 %v8016, %v8129
      %8131 = vmatmul.bf16.gmra.mxu0 %v7550
      %v8132 = vpop.f32.mrf.mxu0
      %v8133 = vadd.f32 %v8019, %v8132
      %v8134 = vpop.f32.mrf.mxu0
      %v8135 = vadd.f32 %v8021, %v8134
      %8136 = vmatmul.bf16.gmra.mxu0 %v7555
      %v8137 = vpop.f32.mrf.mxu0
      %v8138 = vadd.f32 %v8024, %v8137
      %v8139 = vpop.f32.mrf.mxu0
      %v8140 = vadd.f32 %v8026, %v8139
      %8141 = vmatmul.bf16.gmra.mxu0 %v7560
      %v8142 = vpop.f32.mrf.mxu0
      %v8143 = vadd.f32 %v8029, %v8142
      %v8144 = vpop.f32.mrf.mxu0
      %v8145 = vadd.f32 %v8031, %v8144
      %8146 = vmatmul.bf16.gmra.mxu0 %v7565
      %v8147 = vpop.f32.mrf.mxu0
      %v8148 = vadd.f32 %v8034, %v8147
      %v8149 = vpop.f32.mrf.mxu0
      %v8150 = vadd.f32 %v8036, %v8149
      %8151 = vmatmul.bf16.gmra.mxu0 %v7570
      %v8152 = vpop.f32.mrf.mxu0
      %v8153 = vadd.f32 %v8039, %v8152
      %v8154 = vpop.f32.mrf.mxu0
      %v8155 = vadd.f32 %v8041, %v8154
      %8156 = vmatmul.bf16.gmra.mxu0 %v7575
      %v8157 = vpop.f32.mrf.mxu0
      %v8158 = vadd.f32 %v8044, %v8157
      %v8159 = vpop.f32.mrf.mxu0
      %v8160 = vadd.f32 %v8046, %v8159
      %8161 = vmatmul.bf16.gmra.mxu0 %v7580
      %v8162 = vpop.f32.mrf.mxu0
      %v8163 = vadd.f32 %v8049, %v8162
      %v8164 = vpop.f32.mrf.mxu0
      %v8165 = vadd.f32 %v8051, %v8164
      %8166 = vmatmul.bf16.gmra.mxu0 %v7585
      %v8167 = vpop.f32.mrf.mxu0
      %v8168 = vadd.f32 %v8054, %v8167
      %v8169 = vpop.f32.mrf.mxu0
      %v8170 = vadd.f32 %v8056, %v8169
      %8171 = vmatmul.bf16.gmra.mxu0 %v7590
      %v8172 = vpop.f32.mrf.mxu0
      %v8173 = vadd.f32 %v8059, %v8172
      %v8174 = vpop.f32.mrf.mxu0
      %v8175 = vadd.f32 %v8061, %v8174
      %8176 = vmatmul.bf16.gmra.mxu0 %v7595
      %v8177 = vpop.f32.mrf.mxu0
      %v8178 = vadd.f32 %v8064, %v8177
      %v8179 = vpop.f32.mrf.mxu0
      %v8180 = vadd.f32 %v8066, %v8179
      %8181 = vmatmul.bf16.gmra.mxu0 %v7600
      %v8182 = vpop.f32.mrf.mxu0
      %v8183 = vadd.f32 %v8069, %v8182
      %v8184 = vpop.f32.mrf.mxu0
      %v8185 = vadd.f32 %v8071, %v8184
      %8186 = vmatmul.bf16.gmra.mxu0 %v7605
      %v8187 = vpop.f32.mrf.mxu0
      %v8188 = vadd.f32 %v8074, %v8187
      %v8189 = vpop.f32.mrf.mxu0
      %v8190 = vadd.f32 %v8076, %v8189
      %8191 = vmatmul.bf16.gmra.mxu0 %v7610
      %v8192 = vpop.f32.mrf.mxu0
      %v8193 = vadd.f32 %v8079, %v8192
      %v8194 = vpop.f32.mrf.mxu0
      %v8195 = vadd.f32 %v8081, %v8194
      %8196 = vmatmul.bf16.gmra.mxu0 %v7615
      %v8197 = vpop.f32.mrf.mxu0
      %v8198 = vadd.f32 %v8084, %v8197
      %v8199 = vpop.f32.mrf.mxu0
      %v8200 = vadd.f32 %v8086, %v8199
      %8201 = vdwg.mxu0
      %8202 = vmatpush.bf16.msra.mxu0 %v7862
      %8203 = vmatpush.bf16.msra.mxu0 %v7861
      %8204 = vmatpush.bf16.msra.mxu0 %v7860
      %8205 = vmatpush.bf16.msra.mxu0 %v7859
      %8206 = vmatpush.bf16.msra.mxu0 %v7858
      %8207 = vmatpush.bf16.msra.mxu0 %v7857
      %8208 = vmatpush.bf16.msra.mxu0 %v7856
      %8209 = vmatpush.bf16.msra.mxu0 %v7855
      %8210 = vmatmul.bf16.gmra.mxu0 %v7516
      %v8211 = vpop.f32.mrf.mxu0
      %v8212 = vadd.f32 %v8098, %v8211
      %v8213 = vpop.f32.mrf.mxu0
      %v8214 = vadd.f32 %v8100, %v8213
      %8215 = vmatmul.bf16.gmra.mxu0 %v7521
      %v8216 = vpop.f32.mrf.mxu0
      %v8217 = vadd.f32 %v8103, %v8216
      %v8218 = vpop.f32.mrf.mxu0
      %v8219 = vadd.f32 %v8105, %v8218
      %8220 = vmatmul.bf16.gmra.mxu0 %v7526
      %v8221 = vpop.f32.mrf.mxu0
      %v8222 = vadd.f32 %v8108, %v8221
      %v8223 = vpop.f32.mrf.mxu0
      %v8224 = vadd.f32 %v8110, %v8223
      %8225 = vmatmul.bf16.gmra.mxu0 %v7531
      %v8226 = vpop.f32.mrf.mxu0
      %v8227 = vadd.f32 %v8113, %v8226
      %v8228 = vpop.f32.mrf.mxu0
      %v8229 = vadd.f32 %v8115, %v8228
      %8230 = vmatmul.bf16.gmra.mxu0 %v7536
      %v8231 = vpop.f32.mrf.mxu0
      %v8232 = vadd.f32 %v8118, %v8231
      %v8233 = vpop.f32.mrf.mxu0
      %v8234 = vadd.f32 %v8120, %v8233
      %8235 = vmatmul.bf16.gmra.mxu0 %v7541
      %v8236 = vpop.f32.mrf.mxu0
      %v8237 = vadd.f32 %v8123, %v8236
      %v8238 = vpop.f32.mrf.mxu0
      %v8239 = vadd.f32 %v8125, %v8238
      %8240 = vmatmul.bf16.gmra.mxu0 %v7546
      %v8241 = vpop.f32.mrf.mxu0
      %v8242 = vadd.f32 %v8128, %v8241
      %v8243 = vpop.f32.mrf.mxu0
      %v8244 = vadd.f32 %v8130, %v8243
      %8245 = vmatmul.bf16.gmra.mxu0 %v7551
      %v8246 = vpop.f32.mrf.mxu0
      %v8247 = vadd.f32 %v8133, %v8246
      %v8248 = vpop.f32.mrf.mxu0
      %v8249 = vadd.f32 %v8135, %v8248
      %8250 = vmatmul.bf16.gmra.mxu0 %v7556
      %v8251 = vpop.f32.mrf.mxu0
      %v8252 = vadd.f32 %v8138, %v8251
      %v8253 = vpop.f32.mrf.mxu0
      %v8254 = vadd.f32 %v8140, %v8253
      %8255 = vmatmul.bf16.gmra.mxu0 %v7561
      %v8256 = vpop.f32.mrf.mxu0
      %v8257 = vadd.f32 %v8143, %v8256
      %v8258 = vpop.f32.mrf.mxu0
      %v8259 = vadd.f32 %v8145, %v8258
      %8260 = vmatmul.bf16.gmra.mxu0 %v7566
      %v8261 = vpop.f32.mrf.mxu0
      %v8262 = vadd.f32 %v8148, %v8261
      %v8263 = vpop.f32.mrf.mxu0
      %v8264 = vadd.f32 %v8150, %v8263
      %8265 = vmatmul.bf16.gmra.mxu0 %v7571
      %v8266 = vpop.f32.mrf.mxu0
      %v8267 = vadd.f32 %v8153, %v8266
      %v8268 = vpop.f32.mrf.mxu0
      %v8269 = vadd.f32 %v8155, %v8268
      %8270 = vmatmul.bf16.gmra.mxu0 %v7576
      %v8271 = vpop.f32.mrf.mxu0
      %v8272 = vadd.f32 %v8158, %v8271
      %v8273 = vpop.f32.mrf.mxu0
      %v8274 = vadd.f32 %v8160, %v8273
      %8275 = vmatmul.bf16.gmra.mxu0 %v7581
      %v8276 = vpop.f32.mrf.mxu0
      %v8277 = vadd.f32 %v8163, %v8276
      %v8278 = vpop.f32.mrf.mxu0
      %v8279 = vadd.f32 %v8165, %v8278
      %8280 = vmatmul.bf16.gmra.mxu0 %v7586
      %v8281 = vpop.f32.mrf.mxu0
      %v8282 = vadd.f32 %v8168, %v8281
      %v8283 = vpop.f32.mrf.mxu0
      %v8284 = vadd.f32 %v8170, %v8283
      %8285 = vmatmul.bf16.gmra.mxu0 %v7591
      %v8286 = vpop.f32.mrf.mxu0
      %v8287 = vadd.f32 %v8173, %v8286
      %v8288 = vpop.f32.mrf.mxu0
      %v8289 = vadd.f32 %v8175, %v8288
      %8290 = vmatmul.bf16.gmra.mxu0 %v7596
      %v8291 = vpop.f32.mrf.mxu0
      %v8292 = vadd.f32 %v8178, %v8291
      %v8293 = vpop.f32.mrf.mxu0
      %v8294 = vadd.f32 %v8180, %v8293
      %8295 = vmatmul.bf16.gmra.mxu0 %v7601
      %v8296 = vpop.f32.mrf.mxu0
      %v8297 = vadd.f32 %v8183, %v8296
      %v8298 = vpop.f32.mrf.mxu0
      %v8299 = vadd.f32 %v8185, %v8298
      %8300 = vmatmul.bf16.gmra.mxu0 %v7606
      %v8301 = vpop.f32.mrf.mxu0
      %v8302 = vadd.f32 %v8188, %v8301
      %v8303 = vpop.f32.mrf.mxu0
      %v8304 = vadd.f32 %v8190, %v8303
      %8305 = vmatmul.bf16.gmra.mxu0 %v7611
      %v8306 = vpop.f32.mrf.mxu0
      %v8307 = vadd.f32 %v8193, %v8306
      %v8308 = vpop.f32.mrf.mxu0
      %v8309 = vadd.f32 %v8195, %v8308
      %8310 = vmatmul.bf16.gmra.mxu0 %v7616
      %v8311 = vpop.f32.mrf.mxu0
      %v8312 = vadd.f32 %v8198, %v8311
      %v8313 = vpop.f32.mrf.mxu0
      %v8314 = vadd.f32 %v8200, %v8313
      %8315 = vdwg.mxu0
      %8316 = vmatpush.bf16.msra.mxu0 %v7870
      %8317 = vmatpush.bf16.msra.mxu0 %v7869
      %8318 = vmatpush.bf16.msra.mxu0 %v7868
      %8319 = vmatpush.bf16.msra.mxu0 %v7867
      %8320 = vmatpush.bf16.msra.mxu0 %v7866
      %8321 = vmatpush.bf16.msra.mxu0 %v7865
      %8322 = vmatpush.bf16.msra.mxu0 %v7864
      %8323 = vmatpush.bf16.msra.mxu0 %v7863
      %8324 = vmatmul.bf16.gmra.mxu0 %v7517
      %v8325 = vpop.f32.mrf.mxu0
      %v8326 = vadd.f32 %v8212, %v8325
      %v8327 = vpop.f32.mrf.mxu0
      %v8328 = vadd.f32 %v8214, %v8327
      %8329 = vmatmul.bf16.gmra.mxu0 %v7522
      %v8330 = vpop.f32.mrf.mxu0
      %v8331 = vadd.f32 %v8217, %v8330
      %v8332 = vpop.f32.mrf.mxu0
      %v8333 = vadd.f32 %v8219, %v8332
      %8334 = vmatmul.bf16.gmra.mxu0 %v7527
      %v8335 = vpop.f32.mrf.mxu0
      %v8336 = vadd.f32 %v8222, %v8335
      %v8337 = vpop.f32.mrf.mxu0
      %v8338 = vadd.f32 %v8224, %v8337
      %8339 = vmatmul.bf16.gmra.mxu0 %v7532
      %v8340 = vpop.f32.mrf.mxu0
      %v8341 = vadd.f32 %v8227, %v8340
      %v8342 = vpop.f32.mrf.mxu0
      %v8343 = vadd.f32 %v8229, %v8342
      %8344 = vmatmul.bf16.gmra.mxu0 %v7537
      %v8345 = vpop.f32.mrf.mxu0
      %v8346 = vadd.f32 %v8232, %v8345
      %v8347 = vpop.f32.mrf.mxu0
      %v8348 = vadd.f32 %v8234, %v8347
      %8349 = vmatmul.bf16.gmra.mxu0 %v7542
      %v8350 = vpop.f32.mrf.mxu0
      %v8351 = vadd.f32 %v8237, %v8350
      %v8352 = vpop.f32.mrf.mxu0
      %v8353 = vadd.f32 %v8239, %v8352
      %8354 = vmatmul.bf16.gmra.mxu0 %v7547
      %v8355 = vpop.f32.mrf.mxu0
      %v8356 = vadd.f32 %v8242, %v8355
      %v8357 = vpop.f32.mrf.mxu0
      %v8358 = vadd.f32 %v8244, %v8357
      %8359 = vmatmul.bf16.gmra.mxu0 %v7552
      %v8360 = vpop.f32.mrf.mxu0
      %v8361 = vadd.f32 %v8247, %v8360
      %v8362 = vpop.f32.mrf.mxu0
      %v8363 = vadd.f32 %v8249, %v8362
      %8364 = vmatmul.bf16.gmra.mxu0 %v7557
      %v8365 = vpop.f32.mrf.mxu0
      %v8366 = vadd.f32 %v8252, %v8365
      %v8367 = vpop.f32.mrf.mxu0
      %v8368 = vadd.f32 %v8254, %v8367
      %8369 = vmatmul.bf16.gmra.mxu0 %v7562
      %v8370 = vpop.f32.mrf.mxu0
      %v8371 = vadd.f32 %v8257, %v8370
      %v8372 = vpop.f32.mrf.mxu0
      %v8373 = vadd.f32 %v8259, %v8372
      %8374 = vmatmul.bf16.gmra.mxu0 %v7567
      %v8375 = vpop.f32.mrf.mxu0
      %v8376 = vadd.f32 %v8262, %v8375
      %v8377 = vpop.f32.mrf.mxu0
      %v8378 = vadd.f32 %v8264, %v8377
      %8379 = vmatmul.bf16.gmra.mxu0 %v7572
      %v8380 = vpop.f32.mrf.mxu0
      %v8381 = vadd.f32 %v8267, %v8380
      %v8382 = vpop.f32.mrf.mxu0
      %v8383 = vadd.f32 %v8269, %v8382
      %8384 = vmatmul.bf16.gmra.mxu0 %v7577
      %v8385 = vpop.f32.mrf.mxu0
      %v8386 = vadd.f32 %v8272, %v8385
      %v8387 = vpop.f32.mrf.mxu0
      %v8388 = vadd.f32 %v8274, %v8387
      %8389 = vmatmul.bf16.gmra.mxu0 %v7582
      %v8390 = vpop.f32.mrf.mxu0
      %v8391 = vadd.f32 %v8277, %v8390
      %v8392 = vpop.f32.mrf.mxu0
      %v8393 = vadd.f32 %v8279, %v8392
      %8394 = vmatmul.bf16.gmra.mxu0 %v7587
      %v8395 = vpop.f32.mrf.mxu0
      %v8396 = vadd.f32 %v8282, %v8395
      %v8397 = vpop.f32.mrf.mxu0
      %v8398 = vadd.f32 %v8284, %v8397
      %8399 = vmatmul.bf16.gmra.mxu0 %v7592
      %v8400 = vpop.f32.mrf.mxu0
      %v8401 = vadd.f32 %v8287, %v8400
      %v8402 = vpop.f32.mrf.mxu0
      %v8403 = vadd.f32 %v8289, %v8402
      %8404 = vmatmul.bf16.gmra.mxu0 %v7597
      %v8405 = vpop.f32.mrf.mxu0
      %v8406 = vadd.f32 %v8292, %v8405
      %v8407 = vpop.f32.mrf.mxu0
      %v8408 = vadd.f32 %v8294, %v8407
      %8409 = vmatmul.bf16.gmra.mxu0 %v7602
      %v8410 = vpop.f32.mrf.mxu0
      %v8411 = vadd.f32 %v8297, %v8410
      %v8412 = vpop.f32.mrf.mxu0
      %v8413 = vadd.f32 %v8299, %v8412
      %8414 = vmatmul.bf16.gmra.mxu0 %v7607
      %v8415 = vpop.f32.mrf.mxu0
      %v8416 = vadd.f32 %v8302, %v8415
      %v8417 = vpop.f32.mrf.mxu0
      %v8418 = vadd.f32 %v8304, %v8417
      %8419 = vmatmul.bf16.gmra.mxu0 %v7612
      %v8420 = vpop.f32.mrf.mxu0
      %v8421 = vadd.f32 %v8307, %v8420
      %v8422 = vpop.f32.mrf.mxu0
      %v8423 = vadd.f32 %v8309, %v8422
      %8424 = vmatmul.bf16.gmra.mxu0 %v7617
      %v8425 = vpop.f32.mrf.mxu0
      %v8426 = vadd.f32 %v8312, %v8425
      %v8427 = vpop.f32.mrf.mxu0
      %v8428 = vadd.f32 %v8314, %v8427
      %8429 = vdwg.mxu0
      %8430 = vmatpush.bf16.msra.mxu0 0
      %8431 = vmatpush.bf16.msra.mxu0 0
      %8432 = vmatpush.bf16.msra.mxu0 0
      %8433 = vmatpush.bf16.msra.mxu0 0
      %8434 = vmatpush.bf16.msra.mxu0 %v7874
      %8435 = vmatpush.bf16.msra.mxu0 %v7873
      %8436 = vmatpush.bf16.msra.mxu0 %v7872
      %8437 = vmatpush.bf16.msra.mxu0 %v7871
      %8438 = vmatmul.bf16.gmra.mxu0 %v7912
      %v8439 = vpop.f32.mrf.mxu0
      %v8440 = vadd.f32 %v8326, %v8439
      %v8441 = vpop.f32.mrf.mxu0
      %v8442 = vadd.f32 %v8328, %v8441
      %8443 = vmatmul.bf16.gmra.mxu0 %v7915
      %v8444 = vpop.f32.mrf.mxu0
      %v8445 = vadd.f32 %v8331, %v8444
      %v8446 = vpop.f32.mrf.mxu0
      %v8447 = vadd.f32 %v8333, %v8446
      %8448 = vmatmul.bf16.gmra.mxu0 %v7918
      %v8449 = vpop.f32.mrf.mxu0
      %v8450 = vadd.f32 %v8336, %v8449
      %v8451 = vpop.f32.mrf.mxu0
      %v8452 = vadd.f32 %v8338, %v8451
      %8453 = vmatmul.bf16.gmra.mxu0 %v7921
      %v8454 = vpop.f32.mrf.mxu0
      %v8455 = vadd.f32 %v8341, %v8454
      %v8456 = vpop.f32.mrf.mxu0
      %v8457 = vadd.f32 %v8343, %v8456
      %8458 = vmatmul.bf16.gmra.mxu0 %v7924
      %v8459 = vpop.f32.mrf.mxu0
      %v8460 = vadd.f32 %v8346, %v8459
      %v8461 = vpop.f32.mrf.mxu0
      %v8462 = vadd.f32 %v8348, %v8461
      %8463 = vmatmul.bf16.gmra.mxu0 %v7927
      %v8464 = vpop.f32.mrf.mxu0
      %v8465 = vadd.f32 %v8351, %v8464
      %v8466 = vpop.f32.mrf.mxu0
      %v8467 = vadd.f32 %v8353, %v8466
      %8468 = vmatmul.bf16.gmra.mxu0 %v7930
      %v8469 = vpop.f32.mrf.mxu0
      %v8470 = vadd.f32 %v8356, %v8469
      %v8471 = vpop.f32.mrf.mxu0
      %v8472 = vadd.f32 %v8358, %v8471
      %8473 = vmatmul.bf16.gmra.mxu0 %v7933
      %v8474 = vpop.f32.mrf.mxu0
      %v8475 = vadd.f32 %v8361, %v8474
      %v8476 = vpop.f32.mrf.mxu0
      %v8477 = vadd.f32 %v8363, %v8476
      %8478 = vmatmul.bf16.gmra.mxu0 %v7936
      %v8479 = vpop.f32.mrf.mxu0
      %v8480 = vadd.f32 %v8366, %v8479
      %v8481 = vpop.f32.mrf.mxu0
      %v8482 = vadd.f32 %v8368, %v8481
      %8483 = vmatmul.bf16.gmra.mxu0 %v7939
      %v8484 = vpop.f32.mrf.mxu0
      %v8485 = vadd.f32 %v8371, %v8484
      %v8486 = vpop.f32.mrf.mxu0
      %v8487 = vadd.f32 %v8373, %v8486
      %8488 = vmatmul.bf16.gmra.mxu0 %v7942
      %v8489 = vpop.f32.mrf.mxu0
      %v8490 = vadd.f32 %v8376, %v8489
      %v8491 = vpop.f32.mrf.mxu0
      %v8492 = vadd.f32 %v8378, %v8491
      %8493 = vmatmul.bf16.gmra.mxu0 %v7945
      %v8494 = vpop.f32.mrf.mxu0
      %v8495 = vadd.f32 %v8381, %v8494
      %v8496 = vpop.f32.mrf.mxu0
      %v8497 = vadd.f32 %v8383, %v8496
      %8498 = vmatmul.bf16.gmra.mxu0 %v7948
      %v8499 = vpop.f32.mrf.mxu0
      %v8500 = vadd.f32 %v8386, %v8499
      %v8501 = vpop.f32.mrf.mxu0
      %v8502 = vadd.f32 %v8388, %v8501
      %8503 = vmatmul.bf16.gmra.mxu0 %v7951
      %v8504 = vpop.f32.mrf.mxu0
      %v8505 = vadd.f32 %v8391, %v8504
      %v8506 = vpop.f32.mrf.mxu0
      %v8507 = vadd.f32 %v8393, %v8506
      %8508 = vmatmul.bf16.gmra.mxu0 %v7954
      %v8509 = vpop.f32.mrf.mxu0
      %v8510 = vadd.f32 %v8396, %v8509
      %v8511 = vpop.f32.mrf.mxu0
      %v8512 = vadd.f32 %v8398, %v8511
      %8513 = vmatmul.bf16.gmra.mxu0 %v7957
      %v8514 = vpop.f32.mrf.mxu0
      %v8515 = vadd.f32 %v8401, %v8514
      %v8516 = vpop.f32.mrf.mxu0
      %v8517 = vadd.f32 %v8403, %v8516
      %8518 = vmatmul.bf16.gmra.mxu0 %v7960
      %v8519 = vpop.f32.mrf.mxu0
      %v8520 = vadd.f32 %v8406, %v8519
      %v8521 = vpop.f32.mrf.mxu0
      %v8522 = vadd.f32 %v8408, %v8521
      %8523 = vmatmul.bf16.gmra.mxu0 %v7963
      %v8524 = vpop.f32.mrf.mxu0
      %v8525 = vadd.f32 %v8411, %v8524
      %v8526 = vpop.f32.mrf.mxu0
      %v8527 = vadd.f32 %v8413, %v8526
      %8528 = vmatmul.bf16.gmra.mxu0 %v7966
      %v8529 = vpop.f32.mrf.mxu0
      %v8530 = vadd.f32 %v8416, %v8529
      %v8531 = vpop.f32.mrf.mxu0
      %v8532 = vadd.f32 %v8418, %v8531
      %8533 = vmatmul.bf16.gmra.mxu0 %v7969
      %v8534 = vpop.f32.mrf.mxu0
      %v8535 = vadd.f32 %v8421, %v8534
      %v8536 = vpop.f32.mrf.mxu0
      %v8537 = vadd.f32 %v8423, %v8536
      %8538 = vmatmul.bf16.gmra.mxu0 %v7972
      %v8539 = vpop.f32.mrf.mxu0
      %v8540 = vadd.f32 %v8426, %v8539
      %v8541 = vpop.f32.mrf.mxu0
      %v8542 = vadd.f32 %v8428, %v8541
      %8543 = vdwg.mxu0
      %vm8544 = vcmask 31744
      %8545 = vst.msk [vmem:[%s314] sm:$0xff] %vm8544, %v8440
      %8546 = vst.msk [vmem:[%s314 + $0x8] sm:$0xff] %vm8544, %v8442
      %8547 = vst.msk [vmem:[%s314 + $0x10] sm:$0xff] %vm8544, %v8445
      %8548 = vst.msk [vmem:[%s314 + $0x18] sm:$0xff] %vm8544, %v8447
      %8549 = vst.msk [vmem:[%s314 + $0x20] sm:$0xff] %vm8544, %v8450
      %8550 = vst.msk [vmem:[%s314 + $0x28] sm:$0xff] %vm8544, %v8452
      %8551 = vst.msk [vmem:[%s314 + $0x30] sm:$0xff] %vm8544, %v8455
      %8552 = vst.msk [vmem:[%s314 + $0x38] sm:$0xff] %vm8544, %v8457
      %8553 = vst.msk [vmem:[%s314 + $0x40] sm:$0xff] %vm8544, %v8460
      %8554 = vst.msk [vmem:[%s314 + $0x48] sm:$0xff] %vm8544, %v8462
      %8555 = vst.msk [vmem:[%s314 + $0x50] sm:$0xff] %vm8544, %v8465
      %8556 = vst.msk [vmem:[%s314 + $0x58] sm:$0xff] %vm8544, %v8467
      %8557 = vst.msk [vmem:[%s314 + $0x60] sm:$0xff] %vm8544, %v8470
      %8558 = vst.msk [vmem:[%s314 + $0x68] sm:$0xff] %vm8544, %v8472
      %8559 = vst.msk [vmem:[%s314 + $0x70] sm:$0xff] %vm8544, %v8475
      %8560 = vst.msk [vmem:[%s314 + $0x78] sm:$0xff] %vm8544, %v8477
      %8561 = vst.msk [vmem:[%s314 + $0x80] sm:$0xff] %vm8544, %v8480
      %8562 = vst.msk [vmem:[%s314 + $0x88] sm:$0xff] %vm8544, %v8482
      %8563 = vst.msk [vmem:[%s314 + $0x90] sm:$0xff] %vm8544, %v8485
      %8564 = vst.msk [vmem:[%s314 + $0x98] sm:$0xff] %vm8544, %v8487
      %8565 = vst.msk [vmem:[%s314 + $0xa0] sm:$0xff] %vm8544, %v8490
      %8566 = vst.msk [vmem:[%s314 + $0xa8] sm:$0xff] %vm8544, %v8492
      %8567 = vst.msk [vmem:[%s314 + $0xb0] sm:$0xff] %vm8544, %v8495
      %8568 = vst.msk [vmem:[%s314 + $0xb8] sm:$0xff] %vm8544, %v8497
      %8569 = vst.msk [vmem:[%s314 + $0xc0] sm:$0xff] %vm8544, %v8500
      %8570 = vst.msk [vmem:[%s314 + $0xc8] sm:$0xff] %vm8544, %v8502
      %8571 = vst.msk [vmem:[%s314 + $0xd0] sm:$0xff] %vm8544, %v8505
      %8572 = vst.msk [vmem:[%s314 + $0xd8] sm:$0xff] %vm8544, %v8507
      %8573 = vst.msk [vmem:[%s314 + $0xe0] sm:$0xff] %vm8544, %v8510
      %8574 = vst.msk [vmem:[%s314 + $0xe8] sm:$0xff] %vm8544, %v8512
      %8575 = vst.msk [vmem:[%s314 + $0xf0] sm:$0xff] %vm8544, %v8515
      %8576 = vst.msk [vmem:[%s314 + $0xf8] sm:$0xff] %vm8544, %v8517
      %8577 = vst.msk [vmem:[%s314 + $0x100] sm:$0xff] %vm8544, %v8520
      %8578 = vst.msk [vmem:[%s314 + $0x108] sm:$0xff] %vm8544, %v8522
      %8579 = vst.msk [vmem:[%s314 + $0x110] sm:$0xff] %vm8544, %v8525
      %8580 = vst.msk [vmem:[%s314 + $0x118] sm:$0xff] %vm8544, %v8527
      %8581 = vst.msk [vmem:[%s314 + $0x120] sm:$0xff] %vm8544, %v8530
      %8582 = vst.msk [vmem:[%s314 + $0x128] sm:$0xff] %vm8544, %v8532
      %8583 = vst.msk [vmem:[%s314 + $0x130] sm:$0xff] %vm8544, %v8535
      %8584 = vst.msk [vmem:[%s314 + $0x138] sm:$0xff] %vm8544, %v8537
      %8585 = vst.msk [vmem:[%s314 + $0x140] sm:$0xff] %vm8544, %v8540
      %8586 = vst.msk [vmem:[%s314 + $0x148] sm:$0xff] %vm8544, %v8542
      %p8587 = scmp.lt.s32.totalorder %s28, 1
      %s8588 = scalar_select %p8587, %s28, 1
      %s8589 = smul.addr %s8588, 42
      %s8590 = smul.addr %s8589, 8
      %s8591 = scalar_lea.vmem %s9, %s8590
      // Predicated region
      $region60: #{c2n_d_forward.1} parent=51 // pred_check
        %p8592 = pneg %p219
      $region61: #{c2n_d_forward.1} parent=51 // pred_check_branch
        %8594 = sbr.rel (%p8592) target = $region63
      $region62: #{c2n_d_forward.1} parent=51 // pred_region
        _
      $region63: #{c2n_d_forward.1} parent=51 // pred_fallthru
        _
    $region52: #{c2n_d_forward.1} parent=5 // pred_fallthru
      _
    %p8595 = scmp.le.s32.totalorder 2, %s23
    // Predicated region
    $region64: #{c2n_d_forward.1} parent=5 // pred_check
      %p8596 = pneg %p8595
    $region65: #{c2n_d_forward.1} parent=5 // pred_check_branch
      %8598 = sbr.rel (%p8596) target = $region67
    $region66: #{c2n_d_forward.1} parent=5 // pred_region
      %s8599 = ssub.s32 %s23, 2
      // Predicated region
      $region68: #{c2n_d_forward.1} parent=66 // pred_check
        %p8600 = pneg %p225
      $region69: #{c2n_d_forward.1} parent=66 // pred_check_branch
        %8602 = sbr.rel (%p8600) target = $region71
      $region70: #{c2n_d_forward.1} parent=66 // pred_region
        %p8603 = scmp.lt.s32.totalorder %s29, 1
        %s8604 = scalar_select %p8603, %s29, 1
        %s8605 = smul.addr %s8604, 42
        %s8606 = smul.addr %s8605, 8
        %s8607 = scalar_lea.vmem %s9, %s8606
      $region71: #{c2n_d_forward.1} parent=66 // pred_fallthru
        _
    $region67: #{c2n_d_forward.1} parent=5 // pred_fallthru
      _
  $region6: #{c2n_d_forward.1} parent=0 // loop_footer
    %s27 = sadd.s32 1, %s23
  $region7: #{c2n_d_forward.1} parent=0 // loop_footer_branch
    %22 = sbr.rel target = $region3
  $region8: #{c2n_d_forward.1} parent=0 // loop_exit
    _

</llo_original>
